<compile_context>
chip_gen: v6e
topology: v6e:2x2x1
jax: 0.10.0
libtpu: 0.0.40
codegen_flags: <defaults>
</compile_context>

<pallas_src>
import functools

import jax
import jax.numpy as jnp
from jax.experimental import pallas as pl
from jax.experimental.pallas import tpu as pltpu

EPS = 1e-5
NEG_SLOPE = 0.2


# --------------------------------------------------------------------------
# Fused forward kernel (one batch element per grid step)
# --------------------------------------------------------------------------

def _forward_kernel(
    x_ref,
    fw1_ref, fs1_ref, fh1_ref, fw2_ref, fs2_ref, fh2_ref,
    cls_ref,
    e0_wqkv_ref, e0_bqkv_ref, e0_wo_ref, e0_bo_ref,
    e1_wqkv_ref, e1_bqkv_ref, e1_wo_ref, e1_bo_ref,
    a1_wq_ref, a1_bq_ref, a1_wkv_ref, a1_bkv_ref, a1_wo_ref, a1_bo_ref,
    a2_wq_ref, a2_bq_ref, a2_wkv_ref, a2_bkv_ref, a2_wo_ref, a2_bo_ref,
    l1w_ref, s6_ref, h6_ref, l2w_ref, s7_ref, h7_ref, l3w_ref, l3b_ref,
    logits_ref, attn_ref,
    *, emb, lin):

    def dot(a, b):
        return jnp.dot(a.astype(jnp.bfloat16), b.astype(jnp.bfloat16),
                       preferred_element_type=jnp.float32)

    def dot_nt(a, b):  # a @ b.T without an explicit transpose
        return jax.lax.dot_general(
            a.astype(jnp.bfloat16), b.astype(jnp.bfloat16),
            (((1,), (1,)), ((), ())), preferred_element_type=jnp.float32)

    def leaky(v):
        return jnp.where(v >= 0.0, v, NEG_SLOPE * v)

    def softmax_rows(s):
        m = jnp.max(s, axis=-1, keepdims=True)
        e = jnp.exp(s - m)
        return e * pl.reciprocal(jnp.sum(e, axis=-1, keepdims=True), approx=True)

    def mab(qp, kp, vp, wo_ref, bo_ref, scale):
        # O = Qp + softmax(Qp Kp^T / sqrt(dv)) Vp ; O = O + relu(O Wo + bo)
        s = dot_nt(qp, kp * scale)          # scale folded into (n, dv) keys
        a = softmax_rows(s)
        o = qp + dot(a, vp)
        h = dot(o, wo_ref[...]) + bo_ref[...]
        return o + jnp.maximum(h, 0.0), a

    def self_layer(xf, wqkv_ref, bqkv_ref, wo_ref, bo_ref, dv):
        proj = dot(xf, wqkv_ref[...]) + bqkv_ref[...]     # (N, 3*dv), one matmul
        qp = proj[:, :dv]
        kp = proj[:, dv:2 * dv]
        vp = proj[:, 2 * dv:]
        out, _ = mab(qp, kp, vp, wo_ref, bo_ref, 1.0 / float(dv) ** 0.5)
        return out

    def cross_layer(q, k, wq_ref, bq_ref, wkv_ref, bkv_ref, wo_ref, bo_ref, dv):
        qp = dot(q, wq_ref[...]) + bq_ref[...]
        kv = dot(k, wkv_ref[...]) + bkv_ref[...]          # (nk, 2*dv), one matmul
        kp = kv[:, :dv]
        vp = kv[:, dv:]
        return mab(qp, kp, vp, wo_ref, bo_ref, 1.0 / float(dv) ** 0.5)

    # ---- feature extractor (lane-dense: points on the 128-lane axis) ----
    x = x_ref[0]                                          # (3, N)
    f = dot(fw1_ref[...], x)                              # (64, N)
    f = leaky(f * fs1_ref[...] + fh1_ref[...])
    f = dot(fw2_ref[...], f)                              # (emb, N)
    f = leaky(f * fs2_ref[...] + fh2_ref[...])
    x_feat = f.T                                          # (N, emb)

    # ---- self-attention encoder stack (attention maps never materialized) --
    x_feat = self_layer(x_feat, e0_wqkv_ref, e0_bqkv_ref, e0_wo_ref, e0_bo_ref, lin)
    x_feat = self_layer(x_feat, e1_wqkv_ref, e1_bqkv_ref, e1_wo_ref, e1_bo_ref, lin)

    # ---- cross attention with cls tokens --------------------------------
    cls = cls_ref[0]                                      # (n_div, emb)
    h1, attn1 = cross_layer(cls, x_feat, a1_wq_ref, a1_bq_ref, a1_wkv_ref,
                            a1_bkv_ref, a1_wo_ref, a1_bo_ref, emb)
    x_out, _ = cross_layer(x_feat, h1, a2_wq_ref, a2_bq_ref, a2_wkv_ref,
                           a2_bkv_ref, a2_wo_ref, a2_bo_ref, emb)
    attn_ref[0] = attn1                                   # only attn1 is returned

    # ---- global max + avg pool over points ------------------------------
    mx = jnp.max(x_out, axis=0, keepdims=True)            # (1, emb)
    mn = jnp.mean(x_out, axis=0, keepdims=True)           # (1, emb)
    pooled = jnp.concatenate([mx, mn], axis=-1)           # (1, 2*emb)

    # ---- classification head (BN folded; Dropout == identity in eval) ---
    y = leaky(dot(pooled, l1w_ref[...]) * s6_ref[...] + h6_ref[...])
    y = leaky(dot(y, l2w_ref[...]) * s7_ref[...] + h7_ref[...])
    logits_ref[0] = dot(y, l3w_ref[...]) + l3b_ref[...]


def _const_spec(shape):
    zeros = (0,) * len(shape)
    return pl.BlockSpec(shape, lambda i: zeros)


def attentive_swap_net_forward(params, x, is_return_attn=False):
    b, c, n = x.shape
    n_div, emb = params["cls_token"].shape[1], params["cls_token"].shape[2]
    lin = params["enc"][0]["wo"].shape[0]
    out_ch = params["l3_w"].shape[1]

    ordered = [
        params["feat_w1t"], params["feat_s1"], params["feat_h1"],
        params["feat_w2t"], params["feat_s2"], params["feat_h2"],
        params["cls_token"],
    ]
    for layer in params["enc"]:                 # exactly 2 layers in this config
        ordered += [layer["wqkv"], layer["bqkv"], layer["wo"], layer["bo"]]
    for name in ("attn1", "attn2"):
        a = params[name]
        ordered += [a["wq"], a["bq"], a["wkv"], a["bkv"], a["wo"], a["bo"]]
    ordered += [params["l1_w"], params["bn6_s"], params["bn6_h"],
                params["l2_w"], params["bn7_s"], params["bn7_h"],
                params["l3_w"], params["l3_b"]]

    in_specs = [pl.BlockSpec((1, c, n), lambda i: (i, 0, 0))]
    in_specs += [_const_spec(w.shape) for w in ordered]

    kernel = functools.partial(_forward_kernel, emb=emb, lin=lin)
    logits, attn = pl.pallas_call(
        kernel,
        out_shape=(jax.ShapeDtypeStruct((b, 1, out_ch), jnp.float32),
                   jax.ShapeDtypeStruct((b, n_div, n), jnp.float32)),
        grid=(b,),
        in_specs=in_specs,
        out_specs=(pl.BlockSpec((1, 1, out_ch), lambda i: (i, 0, 0)),
                   pl.BlockSpec((1, n_div, n), lambda i: (i, 0, 0))),
        compiler_params=pltpu.CompilerParams(
            dimension_semantics=("parallel",)),
    )(x, *ordered)

    logits = logits.reshape(b, out_ch)
    if is_return_attn:
        return logits, attn
    return logits, None


# --------------------------------------------------------------------------
# Parameter init (deterministic, synthetic; BN folded, QKV/KV packed)
# --------------------------------------------------------------------------

def _xavier(key, shape):
    fan_in, fan_out = shape[-2], shape[-1]
    limit = (6.0 / (fan_in + fan_out)) ** 0.5
    return jax.random.uniform(key, shape, jnp.float32, -limit, limit)


def _init_bn(key, ch):
    ks = jax.random.split(key, 4)
    gamma = jax.random.uniform(ks[0], (ch,), jnp.float32, 0.5, 1.5)
    beta = jax.random.normal(ks[1], (ch,), jnp.float32) * 0.1
    mean = jax.random.normal(ks[2], (ch,), jnp.float32) * 0.1
    var = jax.random.uniform(ks[3], (ch,), jnp.float32, 0.5, 1.5)
    return gamma, beta, mean, var


def _fold_bn(gamma, beta, mean, var, bias=None):
    scale = gamma / jnp.sqrt(var + EPS)
    b = bias if bias is not None else 0.0
    shift = (b - mean) * scale + beta
    return scale, shift


def _init_attention_raw(key, dq, dk, dv):
    ks = jax.random.split(key, 8)
    return dict(
        wq=_xavier(ks[0], (dq, dv)), bq=jax.random.normal(ks[1], (dv,), jnp.float32) * 0.02,
        wk=_xavier(ks[2], (dk, dv)), bk=jax.random.normal(ks[3], (dv,), jnp.float32) * 0.02,
        wv=_xavier(ks[4], (dk, dv)), bv=jax.random.normal(ks[5], (dv,), jnp.float32) * 0.02,
        wo=_xavier(ks[6], (dv, dv)), bo=jax.random.normal(ks[7], (dv,), jnp.float32) * 0.02,
    )


def init_params(key, emb=64, lin=64, n_div=4, n_layers=2, out_ch=40):
    keys = jax.random.split(key, 16)
    p = {}
    # feature extractor (pointwise MLP stand-in for DGCNN)
    p["feat_w1t"] = _xavier(keys[0], (3, 64)).T.astype(jnp.bfloat16)        # (64, 3)
    s, h = _fold_bn(*_init_bn(keys[1], 64))
    p["feat_s1"], p["feat_h1"] = s.reshape(-1, 1), h.reshape(-1, 1)
    p["feat_w2t"] = _xavier(keys[2], (64, emb)).T.astype(jnp.bfloat16)      # (emb, 64)
    s, h = _fold_bn(*_init_bn(keys[3], emb))
    p["feat_s2"], p["feat_h2"] = s.reshape(-1, 1), h.reshape(-1, 1)
    # cls token
    p["cls_token"] = _xavier(keys[4], (1, n_div, emb))
    # encoder stack: packed QKV weights
    ekeys = jax.random.split(keys[5], n_layers)
    enc = []
    for i in range(n_layers):
        dq = emb if i == 0 else lin
        raw = _init_attention_raw(ekeys[i], dq, dq, lin)
        enc.append(dict(
            wqkv=jnp.concatenate([raw["wq"], raw["wk"], raw["wv"]], axis=1).astype(jnp.bfloat16),
            bqkv=jnp.concatenate([raw["bq"], raw["bk"], raw["bv"]]).reshape(1, -1),
            wo=raw["wo"].astype(jnp.bfloat16),
            bo=raw["bo"].reshape(1, -1)))
    p["enc"] = enc
    # cross attentions: packed KV weights
    def pack_cross(k, dq, dk, dv):
        raw = _init_attention_raw(k, dq, dk, dv)
        return dict(
            wq=raw["wq"].astype(jnp.bfloat16), bq=raw["bq"].reshape(1, -1),
            wkv=jnp.concatenate([raw["wk"], raw["wv"]], axis=1).astype(jnp.bfloat16),
            bkv=jnp.concatenate([raw["bk"], raw["bv"]]).reshape(1, -1),
            wo=raw["wo"].astype(jnp.bfloat16), bo=raw["bo"].reshape(1, -1))
    p["attn1"] = pack_cross(keys[6], emb, lin, emb)
    p["attn2"] = pack_cross(keys[7], lin, emb, emb)
    # classification head
    p["l1_w"] = _xavier(keys[8], (emb * 2, 512)).astype(jnp.bfloat16)       # bias=False
    s, h = _fold_bn(*_init_bn(keys[9], 512))
    p["bn6_s"], p["bn6_h"] = s.reshape(1, -1), h.reshape(1, -1)
    p["l2_w"] = _xavier(keys[10], (512, 256)).astype(jnp.bfloat16)
    l2_b = jax.random.normal(keys[11], (256,), jnp.float32) * 0.02
    s, h = _fold_bn(*_init_bn(keys[12], 256), bias=l2_b)
    p["bn7_s"], p["bn7_h"] = s.reshape(1, -1), h.reshape(1, -1)
    p["l3_w"] = _xavier(keys[13], (256, out_ch)).astype(jnp.bfloat16)
    p["l3_b"] = (jax.random.normal(keys[14], (out_ch,), jnp.float32) * 0.02).reshape(1, -1)
    return p


# --------------------------------------------------------------------------
# Main
# --------------------------------------------------------------------------

if __name__ == "__main__":
    key = jax.random.PRNGKey(0)
    pkey, xkey = jax.random.split(key)

    B, N, EMB, N_DIV, OUT = 2, 128, 64, 4, 40
    params = init_params(pkey, emb=EMB, lin=EMB, n_div=N_DIV, n_layers=2, out_ch=OUT)
    x = jax.random.normal(xkey, (B, 3, N), jnp.float32)

    fwd = jax.jit(functools.partial(attentive_swap_net_forward, is_return_attn=True))
    logits, attn = fwd(params, x)
    jax.block_until_ready(logits)
    jax.block_until_ready(attn)

    assert logits.shape == (B, OUT), logits.shape
    assert attn.shape == (B, N_DIV, N), attn.shape
    assert bool(jnp.all(jnp.isfinite(logits)))
    assert bool(jnp.all(jnp.isfinite(attn)))
    print("KERNEL_OK")
</pallas_src>

<mosaic_0001>
module attributes {stable_mosaic.version = 11 : i64} {
  func.func @_forward_kernel(%arg0: i32, %arg1: memref<1x3x128xf32, #tpu.memory_space<vmem>>, %arg2: memref<64x3xbf16, #tpu.memory_space<vmem>>, %arg3: memref<64x1xf32, #tpu.memory_space<vmem>>, %arg4: memref<64x1xf32, #tpu.memory_space<vmem>>, %arg5: memref<64x64xbf16, #tpu.memory_space<vmem>>, %arg6: memref<64x1xf32, #tpu.memory_space<vmem>>, %arg7: memref<64x1xf32, #tpu.memory_space<vmem>>, %arg8: memref<1x4x64xf32, #tpu.memory_space<vmem>>, %arg9: memref<64x192xbf16, #tpu.memory_space<vmem>>, %arg10: memref<1x192xf32, #tpu.memory_space<vmem>>, %arg11: memref<64x64xbf16, #tpu.memory_space<vmem>>, %arg12: memref<1x64xf32, #tpu.memory_space<vmem>>, %arg13: memref<64x192xbf16, #tpu.memory_space<vmem>>, %arg14: memref<1x192xf32, #tpu.memory_space<vmem>>, %arg15: memref<64x64xbf16, #tpu.memory_space<vmem>>, %arg16: memref<1x64xf32, #tpu.memory_space<vmem>>, %arg17: memref<64x64xbf16, #tpu.memory_space<vmem>>, %arg18: memref<1x64xf32, #tpu.memory_space<vmem>>, %arg19: memref<64x128xbf16, #tpu.memory_space<vmem>>, %arg20: memref<1x128xf32, #tpu.memory_space<vmem>>, %arg21: memref<64x64xbf16, #tpu.memory_space<vmem>>, %arg22: memref<1x64xf32, #tpu.memory_space<vmem>>, %arg23: memref<64x64xbf16, #tpu.memory_space<vmem>>, %arg24: memref<1x64xf32, #tpu.memory_space<vmem>>, %arg25: memref<64x128xbf16, #tpu.memory_space<vmem>>, %arg26: memref<1x128xf32, #tpu.memory_space<vmem>>, %arg27: memref<64x64xbf16, #tpu.memory_space<vmem>>, %arg28: memref<1x64xf32, #tpu.memory_space<vmem>>, %arg29: memref<128x512xbf16, #tpu.memory_space<vmem>>, %arg30: memref<1x512xf32, #tpu.memory_space<vmem>>, %arg31: memref<1x512xf32, #tpu.memory_space<vmem>>, %arg32: memref<512x256xbf16, #tpu.memory_space<vmem>>, %arg33: memref<1x256xf32, #tpu.memory_space<vmem>>, %arg34: memref<1x256xf32, #tpu.memory_space<vmem>>, %arg35: memref<256x40xbf16, #tpu.memory_space<vmem>>, %arg36: memref<1x40xf32, #tpu.memory_space<vmem>>, %arg37: memref<1x1x40xf32, #tpu.memory_space<vmem>>, %arg38: memref<1x4x128xf32, #tpu.memory_space<vmem>>) attributes {dimension_semantics = [#tpu.dimension_semantics<parallel>], iteration_bounds = array<i64: 2>, scalar_prefetch = 0 : i64, scratch_operands = 0 : i64, tpu.core_type = #tpu.core_type<tc>, window_params = [{transform_indices = @transform_0, window_bounds = array<i64: 1, 3, 128>}, {pipeline_mode = #tpu.pipeline_mode<synchronous>, transform_indices = @transform_1, window_bounds = array<i64: 64, 3>}, {pipeline_mode = #tpu.pipeline_mode<synchronous>, transform_indices = @transform_2, window_bounds = array<i64: 64, 1>}, {pipeline_mode = #tpu.pipeline_mode<synchronous>, transform_indices = @transform_3, window_bounds = array<i64: 64, 1>}, {pipeline_mode = #tpu.pipeline_mode<synchronous>, transform_indices = @transform_4, window_bounds = array<i64: 64, 64>}, {pipeline_mode = #tpu.pipeline_mode<synchronous>, transform_indices = @transform_5, window_bounds = array<i64: 64, 1>}, {pipeline_mode = #tpu.pipeline_mode<synchronous>, transform_indices = @transform_6, window_bounds = array<i64: 64, 1>}, {pipeline_mode = #tpu.pipeline_mode<synchronous>, transform_indices = @transform_7, window_bounds = array<i64: 1, 4, 64>}, {pipeline_mode = #tpu.pipeline_mode<synchronous>, transform_indices = @transform_8, window_bounds = array<i64: 64, 192>}, {pipeline_mode = #tpu.pipeline_mode<synchronous>, transform_indices = @transform_9, window_bounds = array<i64: 1, 192>}, {pipeline_mode = #tpu.pipeline_mode<synchronous>, transform_indices = @transform_10, window_bounds = array<i64: 64, 64>}, {pipeline_mode = #tpu.pipeline_mode<synchronous>, transform_indices = @transform_11, window_bounds = array<i64: 1, 64>}, {pipeline_mode = #tpu.pipeline_mode<synchronous>, transform_indices = @transform_12, window_bounds = array<i64: 64, 192>}, {pipeline_mode = #tpu.pipeline_mode<synchronous>, transform_indices = @transform_13, window_bounds = array<i64: 1, 192>}, {pipeline_mode = #tpu.pipeline_mode<synchronous>, transform_indices = @transform_14, window_bounds = array<i64: 64, 64>}, {pipeline_mode = #tpu.pipeline_mode<synchronous>, transform_indices = @transform_15, window_bounds = array<i64: 1, 64>}, {pipeline_mode = #tpu.pipeline_mode<synchronous>, transform_indices = @transform_16, window_bounds = array<i64: 64, 64>}, {pipeline_mode = #tpu.pipeline_mode<synchronous>, transform_indices = @transform_17, window_bounds = array<i64: 1, 64>}, {pipeline_mode = #tpu.pipeline_mode<synchronous>, transform_indices = @transform_18, window_bounds = array<i64: 64, 128>}, {pipeline_mode = #tpu.pipeline_mode<synchronous>, transform_indices = @transform_19, window_bounds = array<i64: 1, 128>}, {pipeline_mode = #tpu.pipeline_mode<synchronous>, transform_indices = @transform_20, window_bounds = array<i64: 64, 64>}, {pipeline_mode = #tpu.pipeline_mode<synchronous>, transform_indices = @transform_21, window_bounds = array<i64: 1, 64>}, {pipeline_mode = #tpu.pipeline_mode<synchronous>, transform_indices = @transform_22, window_bounds = array<i64: 64, 64>}, {pipeline_mode = #tpu.pipeline_mode<synchronous>, transform_indices = @transform_23, window_bounds = array<i64: 1, 64>}, {pipeline_mode = #tpu.pipeline_mode<synchronous>, transform_indices = @transform_24, window_bounds = array<i64: 64, 128>}, {pipeline_mode = #tpu.pipeline_mode<synchronous>, transform_indices = @transform_25, window_bounds = array<i64: 1, 128>}, {pipeline_mode = #tpu.pipeline_mode<synchronous>, transform_indices = @transform_26, window_bounds = array<i64: 64, 64>}, {pipeline_mode = #tpu.pipeline_mode<synchronous>, transform_indices = @transform_27, window_bounds = array<i64: 1, 64>}, {pipeline_mode = #tpu.pipeline_mode<synchronous>, transform_indices = @transform_28, window_bounds = array<i64: 128, 512>}, {pipeline_mode = #tpu.pipeline_mode<synchronous>, transform_indices = @transform_29, window_bounds = array<i64: 1, 512>}, {pipeline_mode = #tpu.pipeline_mode<synchronous>, transform_indices = @transform_30, window_bounds = array<i64: 1, 512>}, {pipeline_mode = #tpu.pipeline_mode<synchronous>, transform_indices = @transform_31, window_bounds = array<i64: 512, 256>}, {pipeline_mode = #tpu.pipeline_mode<synchronous>, transform_indices = @transform_32, window_bounds = array<i64: 1, 256>}, {pipeline_mode = #tpu.pipeline_mode<synchronous>, transform_indices = @transform_33, window_bounds = array<i64: 1, 256>}, {pipeline_mode = #tpu.pipeline_mode<synchronous>, transform_indices = @transform_34, window_bounds = array<i64: 256, 40>}, {pipeline_mode = #tpu.pipeline_mode<synchronous>, transform_indices = @transform_35, window_bounds = array<i64: 1, 40>}, {transform_indices = @transform_36, window_bounds = array<i64: 1, 1, 40>}, {transform_indices = @transform_37, window_bounds = array<i64: 1, 4, 128>}]} {
    %c0 = arith.constant 0 : index
    %c0_0 = arith.constant 0 : index
    %c0_1 = arith.constant 0 : index
    %0 = vector.load %arg1[%c0, %c0_0, %c0_1] : memref<1x3x128xf32, #tpu.memory_space<vmem>>, vector<1x3x128xf32>
    %1 = vector.shape_cast %0 : vector<1x3x128xf32> to vector<3x128xf32>
    %c0_2 = arith.constant 0 : index
    %c0_3 = arith.constant 0 : index
    %2 = vector.load %arg2[%c0_2, %c0_3] : memref<64x3xbf16, #tpu.memory_space<vmem>>, vector<64x3xbf16>
    %3 = arith.truncf %1 : vector<3x128xf32> to vector<3x128xbf16>
    %cst = arith.constant dense<0.000000e+00> : vector<64x128xf32>
    %4 = tpu.matmul %2, %3, %cst {dimension_numbers = #tpu.dot_dimension_numbers<[1], [0], [0], [1], [0, 0, 1, 1], [], []>} : vector<64x3xbf16>, vector<3x128xbf16>, vector<64x128xf32> -> vector<64x128xf32>
    %c0_4 = arith.constant 0 : index
    %c0_5 = arith.constant 0 : index
    %5 = vector.load %arg3[%c0_4, %c0_5] : memref<64x1xf32, #tpu.memory_space<vmem>>, vector<64x1xf32>
    %6 = vector.broadcast %5 : vector<64x1xf32> to vector<64x128xf32>
    %7 = arith.mulf %4, %6 : vector<64x128xf32>
    %c0_6 = arith.constant 0 : index
    %c0_7 = arith.constant 0 : index
    %8 = vector.load %arg4[%c0_6, %c0_7] : memref<64x1xf32, #tpu.memory_space<vmem>>, vector<64x1xf32>
    %9 = vector.broadcast %8 : vector<64x1xf32> to vector<64x128xf32>
    %10 = arith.addf %7, %9 : vector<64x128xf32>
    %cst_8 = arith.constant 0.000000e+00 : f32
    %11 = vector.broadcast %cst_8 : f32 to vector<64x128xf32>
    %12 = arith.cmpf oge, %10, %11 : vector<64x128xf32>
    %cst_9 = arith.constant 2.000000e-01 : f32
    %13 = vector.broadcast %cst_9 : f32 to vector<64x128xf32>
    %14 = arith.mulf %13, %10 : vector<64x128xf32>
    %15 = arith.select %12, %10, %14 : vector<64x128xi1>, vector<64x128xf32>
    %c0_10 = arith.constant 0 : index
    %c0_11 = arith.constant 0 : index
    %16 = vector.load %arg5[%c0_10, %c0_11] : memref<64x64xbf16, #tpu.memory_space<vmem>>, vector<64x64xbf16>
    %17 = arith.truncf %15 : vector<64x128xf32> to vector<64x128xbf16>
    %cst_12 = arith.constant dense<0.000000e+00> : vector<64x128xf32>
    %18 = tpu.matmul %16, %17, %cst_12 {dimension_numbers = #tpu.dot_dimension_numbers<[1], [0], [0], [1], [0, 0, 1, 1], [], []>} : vector<64x64xbf16>, vector<64x128xbf16>, vector<64x128xf32> -> vector<64x128xf32>
    %c0_13 = arith.constant 0 : index
    %c0_14 = arith.constant 0 : index
    %19 = vector.load %arg6[%c0_13, %c0_14] : memref<64x1xf32, #tpu.memory_space<vmem>>, vector<64x1xf32>
    %20 = vector.broadcast %19 : vector<64x1xf32> to vector<64x128xf32>
    %21 = arith.mulf %18, %20 : vector<64x128xf32>
    %c0_15 = arith.constant 0 : index
    %c0_16 = arith.constant 0 : index
    %22 = vector.load %arg7[%c0_15, %c0_16] : memref<64x1xf32, #tpu.memory_space<vmem>>, vector<64x1xf32>
    %23 = vector.broadcast %22 : vector<64x1xf32> to vector<64x128xf32>
    %24 = arith.addf %21, %23 : vector<64x128xf32>
    %cst_17 = arith.constant 0.000000e+00 : f32
    %25 = vector.broadcast %cst_17 : f32 to vector<64x128xf32>
    %26 = arith.cmpf oge, %24, %25 : vector<64x128xf32>
    %cst_18 = arith.constant 2.000000e-01 : f32
    %27 = vector.broadcast %cst_18 : f32 to vector<64x128xf32>
    %28 = arith.mulf %27, %24 : vector<64x128xf32>
    %29 = arith.select %26, %24, %28 : vector<64x128xi1>, vector<64x128xf32>
    %30 = tpu.transpose %29, [1, 0] : vector<64x128xf32> -> vector<128x64xf32>
    %c0_19 = arith.constant 0 : index
    %c0_20 = arith.constant 0 : index
    %31 = vector.load %arg9[%c0_19, %c0_20] : memref<64x192xbf16, #tpu.memory_space<vmem>>, vector<64x192xbf16>
    %32 = arith.truncf %30 : vector<128x64xf32> to vector<128x64xbf16>
    %cst_21 = arith.constant dense<0.000000e+00> : vector<128x192xf32>
    %33 = tpu.matmul %32, %31, %cst_21 {dimension_numbers = #tpu.dot_dimension_numbers<[1], [0], [0], [1], [0, 0, 1, 1], [], []>} : vector<128x64xbf16>, vector<64x192xbf16>, vector<128x192xf32> -> vector<128x192xf32>
    %c0_22 = arith.constant 0 : index
    %c0_23 = arith.constant 0 : index
    %34 = vector.load %arg10[%c0_22, %c0_23] : memref<1x192xf32, #tpu.memory_space<vmem>>, vector<1x192xf32>
    %35 = vector.broadcast %34 : vector<1x192xf32> to vector<128x192xf32>
    %36 = arith.addf %33, %35 : vector<128x192xf32>
    %37 = vector.extract_strided_slice %36 {offsets = [0, 0], sizes = [128, 64], strides = [1, 1]} : vector<128x192xf32> to vector<128x64xf32>
    %38 = vector.extract_strided_slice %36 {offsets = [0, 64], sizes = [128, 64], strides = [1, 1]} : vector<128x192xf32> to vector<128x64xf32>
    %39 = vector.extract_strided_slice %36 {offsets = [0, 128], sizes = [128, 64], strides = [1, 1]} : vector<128x192xf32> to vector<128x64xf32>
    %cst_24 = arith.constant 1.250000e-01 : f32
    %40 = vector.broadcast %cst_24 : f32 to vector<128x64xf32>
    %41 = arith.mulf %38, %40 : vector<128x64xf32>
    %42 = arith.truncf %37 : vector<128x64xf32> to vector<128x64xbf16>
    %43 = arith.truncf %41 : vector<128x64xf32> to vector<128x64xbf16>
    %cst_25 = arith.constant dense<0.000000e+00> : vector<128x128xf32>
    %44 = tpu.matmul %42, %43, %cst_25 {dimension_numbers = #tpu.dot_dimension_numbers<[1], [1], [0], [0], [0, 0, 1, 0], [], []>} : vector<128x64xbf16>, vector<128x64xbf16>, vector<128x128xf32> -> vector<128x128xf32>
    %cst_26 = arith.constant dense<0xFF800000> : vector<128xf32>
    %45 = vector.multi_reduction <maximumf>, %44, %cst_26 [1] : vector<128x128xf32> to vector<128xf32>
    %46 = vector.shape_cast %45 : vector<128xf32> to vector<128x1xf32>
    %47 = vector.broadcast %46 : vector<128x1xf32> to vector<128x128xf32>
    %48 = arith.subf %44, %47 : vector<128x128xf32>
    %49 = math.exp %48 : vector<128x128xf32>
    %cst_27 = arith.constant dense<0.000000e+00> : vector<128xf32>
    %50 = vector.multi_reduction <add>, %49, %cst_27 [1] : vector<128x128xf32> to vector<128xf32>
    %51 = vector.shape_cast %50 : vector<128xf32> to vector<128x1xf32>
    %52 = tpu.reciprocal %51 {approx = true} : vector<128x1xf32> -> vector<128x1xf32>
    %53 = vector.broadcast %52 : vector<128x1xf32> to vector<128x128xf32>
    %54 = arith.mulf %49, %53 : vector<128x128xf32>
    %55 = arith.truncf %54 : vector<128x128xf32> to vector<128x128xbf16>
    %56 = arith.truncf %39 : vector<128x64xf32> to vector<128x64xbf16>
    %cst_28 = arith.constant dense<0.000000e+00> : vector<128x64xf32>
    %57 = tpu.matmul %55, %56, %cst_28 {dimension_numbers = #tpu.dot_dimension_numbers<[1], [0], [0], [1], [0, 0, 1, 1], [], []>} : vector<128x128xbf16>, vector<128x64xbf16>, vector<128x64xf32> -> vector<128x64xf32>
    %58 = arith.addf %37, %57 : vector<128x64xf32>
    %c0_29 = arith.constant 0 : index
    %c0_30 = arith.constant 0 : index
    %59 = vector.load %arg11[%c0_29, %c0_30] : memref<64x64xbf16, #tpu.memory_space<vmem>>, vector<64x64xbf16>
    %60 = arith.truncf %58 : vector<128x64xf32> to vector<128x64xbf16>
    %cst_31 = arith.constant dense<0.000000e+00> : vector<128x64xf32>
    %61 = tpu.matmul %60, %59, %cst_31 {dimension_numbers = #tpu.dot_dimension_numbers<[1], [0], [0], [1], [0, 0, 1, 1], [], []>} : vector<128x64xbf16>, vector<64x64xbf16>, vector<128x64xf32> -> vector<128x64xf32>
    %c0_32 = arith.constant 0 : index
    %c0_33 = arith.constant 0 : index
    %62 = vector.load %arg12[%c0_32, %c0_33] : memref<1x64xf32, #tpu.memory_space<vmem>>, vector<1x64xf32>
    %63 = vector.broadcast %62 : vector<1x64xf32> to vector<128x64xf32>
    %64 = arith.addf %61, %63 : vector<128x64xf32>
    %cst_34 = arith.constant 0.000000e+00 : f32
    %65 = vector.broadcast %cst_34 : f32 to vector<128x64xf32>
    %66 = arith.maximumf %64, %65 : vector<128x64xf32>
    %67 = arith.addf %58, %66 : vector<128x64xf32>
    %c0_35 = arith.constant 0 : index
    %c0_36 = arith.constant 0 : index
    %68 = vector.load %arg13[%c0_35, %c0_36] : memref<64x192xbf16, #tpu.memory_space<vmem>>, vector<64x192xbf16>
    %69 = arith.truncf %67 : vector<128x64xf32> to vector<128x64xbf16>
    %cst_37 = arith.constant dense<0.000000e+00> : vector<128x192xf32>
    %70 = tpu.matmul %69, %68, %cst_37 {dimension_numbers = #tpu.dot_dimension_numbers<[1], [0], [0], [1], [0, 0, 1, 1], [], []>} : vector<128x64xbf16>, vector<64x192xbf16>, vector<128x192xf32> -> vector<128x192xf32>
    %c0_38 = arith.constant 0 : index
    %c0_39 = arith.constant 0 : index
    %71 = vector.load %arg14[%c0_38, %c0_39] : memref<1x192xf32, #tpu.memory_space<vmem>>, vector<1x192xf32>
    %72 = vector.broadcast %71 : vector<1x192xf32> to vector<128x192xf32>
    %73 = arith.addf %70, %72 : vector<128x192xf32>
    %74 = vector.extract_strided_slice %73 {offsets = [0, 0], sizes = [128, 64], strides = [1, 1]} : vector<128x192xf32> to vector<128x64xf32>
    %75 = vector.extract_strided_slice %73 {offsets = [0, 64], sizes = [128, 64], strides = [1, 1]} : vector<128x192xf32> to vector<128x64xf32>
    %76 = vector.extract_strided_slice %73 {offsets = [0, 128], sizes = [128, 64], strides = [1, 1]} : vector<128x192xf32> to vector<128x64xf32>
    %cst_40 = arith.constant 1.250000e-01 : f32
    %77 = vector.broadcast %cst_40 : f32 to vector<128x64xf32>
    %78 = arith.mulf %75, %77 : vector<128x64xf32>
    %79 = arith.truncf %74 : vector<128x64xf32> to vector<128x64xbf16>
    %80 = arith.truncf %78 : vector<128x64xf32> to vector<128x64xbf16>
    %cst_41 = arith.constant dense<0.000000e+00> : vector<128x128xf32>
    %81 = tpu.matmul %79, %80, %cst_41 {dimension_numbers = #tpu.dot_dimension_numbers<[1], [1], [0], [0], [0, 0, 1, 0], [], []>} : vector<128x64xbf16>, vector<128x64xbf16>, vector<128x128xf32> -> vector<128x128xf32>
    %cst_42 = arith.constant dense<0xFF800000> : vector<128xf32>
    %82 = vector.multi_reduction <maximumf>, %81, %cst_42 [1] : vector<128x128xf32> to vector<128xf32>
    %83 = vector.shape_cast %82 : vector<128xf32> to vector<128x1xf32>
    %84 = vector.broadcast %83 : vector<128x1xf32> to vector<128x128xf32>
    %85 = arith.subf %81, %84 : vector<128x128xf32>
    %86 = math.exp %85 : vector<128x128xf32>
    %cst_43 = arith.constant dense<0.000000e+00> : vector<128xf32>
    %87 = vector.multi_reduction <add>, %86, %cst_43 [1] : vector<128x128xf32> to vector<128xf32>
    %88 = vector.shape_cast %87 : vector<128xf32> to vector<128x1xf32>
    %89 = tpu.reciprocal %88 {approx = true} : vector<128x1xf32> -> vector<128x1xf32>
    %90 = vector.broadcast %89 : vector<128x1xf32> to vector<128x128xf32>
    %91 = arith.mulf %86, %90 : vector<128x128xf32>
    %92 = arith.truncf %91 : vector<128x128xf32> to vector<128x128xbf16>
    %93 = arith.truncf %76 : vector<128x64xf32> to vector<128x64xbf16>
    %cst_44 = arith.constant dense<0.000000e+00> : vector<128x64xf32>
    %94 = tpu.matmul %92, %93, %cst_44 {dimension_numbers = #tpu.dot_dimension_numbers<[1], [0], [0], [1], [0, 0, 1, 1], [], []>} : vector<128x128xbf16>, vector<128x64xbf16>, vector<128x64xf32> -> vector<128x64xf32>
    %95 = arith.addf %74, %94 : vector<128x64xf32>
    %c0_45 = arith.constant 0 : index
    %c0_46 = arith.constant 0 : index
    %96 = vector.load %arg15[%c0_45, %c0_46] : memref<64x64xbf16, #tpu.memory_space<vmem>>, vector<64x64xbf16>
    %97 = arith.truncf %95 : vector<128x64xf32> to vector<128x64xbf16>
    %cst_47 = arith.constant dense<0.000000e+00> : vector<128x64xf32>
    %98 = tpu.matmul %97, %96, %cst_47 {dimension_numbers = #tpu.dot_dimension_numbers<[1], [0], [0], [1], [0, 0, 1, 1], [], []>} : vector<128x64xbf16>, vector<64x64xbf16>, vector<128x64xf32> -> vector<128x64xf32>
    %c0_48 = arith.constant 0 : index
    %c0_49 = arith.constant 0 : index
    %99 = vector.load %arg16[%c0_48, %c0_49] : memref<1x64xf32, #tpu.memory_space<vmem>>, vector<1x64xf32>
    %100 = vector.broadcast %99 : vector<1x64xf32> to vector<128x64xf32>
    %101 = arith.addf %98, %100 : vector<128x64xf32>
    %cst_50 = arith.constant 0.000000e+00 : f32
    %102 = vector.broadcast %cst_50 : f32 to vector<128x64xf32>
    %103 = arith.maximumf %101, %102 : vector<128x64xf32>
    %104 = arith.addf %95, %103 : vector<128x64xf32>
    %c0_51 = arith.constant 0 : index
    %c0_52 = arith.constant 0 : index
    %c0_53 = arith.constant 0 : index
    %105 = vector.load %arg8[%c0_51, %c0_52, %c0_53] : memref<1x4x64xf32, #tpu.memory_space<vmem>>, vector<1x4x64xf32>
    %106 = vector.shape_cast %105 : vector<1x4x64xf32> to vector<4x64xf32>
    %c0_54 = arith.constant 0 : index
    %c0_55 = arith.constant 0 : index
    %107 = vector.load %arg17[%c0_54, %c0_55] : memref<64x64xbf16, #tpu.memory_space<vmem>>, vector<64x64xbf16>
    %108 = arith.truncf %106 : vector<4x64xf32> to vector<4x64xbf16>
    %cst_56 = arith.constant dense<0.000000e+00> : vector<4x64xf32>
    %109 = tpu.matmul %108, %107, %cst_56 {dimension_numbers = #tpu.dot_dimension_numbers<[1], [0], [0], [1], [0, 0, 1, 1], [], []>} : vector<4x64xbf16>, vector<64x64xbf16>, vector<4x64xf32> -> vector<4x64xf32>
    %c0_57 = arith.constant 0 : index
    %c0_58 = arith.constant 0 : index
    %110 = vector.load %arg18[%c0_57, %c0_58] : memref<1x64xf32, #tpu.memory_space<vmem>>, vector<1x64xf32>
    %111 = vector.broadcast %110 : vector<1x64xf32> to vector<4x64xf32>
    %112 = arith.addf %109, %111 : vector<4x64xf32>
    %c0_59 = arith.constant 0 : index
    %c0_60 = arith.constant 0 : index
    %113 = vector.load %arg19[%c0_59, %c0_60] : memref<64x128xbf16, #tpu.memory_space<vmem>>, vector<64x128xbf16>
    %114 = arith.truncf %104 : vector<128x64xf32> to vector<128x64xbf16>
    %cst_61 = arith.constant dense<0.000000e+00> : vector<128x128xf32>
    %115 = tpu.matmul %114, %113, %cst_61 {dimension_numbers = #tpu.dot_dimension_numbers<[1], [0], [0], [1], [0, 0, 1, 1], [], []>} : vector<128x64xbf16>, vector<64x128xbf16>, vector<128x128xf32> -> vector<128x128xf32>
    %c0_62 = arith.constant 0 : index
    %c0_63 = arith.constant 0 : index
    %116 = vector.load %arg20[%c0_62, %c0_63] : memref<1x128xf32, #tpu.memory_space<vmem>>, vector<1x128xf32>
    %117 = vector.broadcast %116 : vector<1x128xf32> to vector<128x128xf32>
    %118 = arith.addf %115, %117 : vector<128x128xf32>
    %119 = vector.extract_strided_slice %118 {offsets = [0, 0], sizes = [128, 64], strides = [1, 1]} : vector<128x128xf32> to vector<128x64xf32>
    %120 = vector.extract_strided_slice %118 {offsets = [0, 64], sizes = [128, 64], strides = [1, 1]} : vector<128x128xf32> to vector<128x64xf32>
    %cst_64 = arith.constant 1.250000e-01 : f32
    %121 = vector.broadcast %cst_64 : f32 to vector<128x64xf32>
    %122 = arith.mulf %119, %121 : vector<128x64xf32>
    %123 = arith.truncf %112 : vector<4x64xf32> to vector<4x64xbf16>
    %124 = arith.truncf %122 : vector<128x64xf32> to vector<128x64xbf16>
    %cst_65 = arith.constant dense<0.000000e+00> : vector<4x128xf32>
    %125 = tpu.matmul %123, %124, %cst_65 {dimension_numbers = #tpu.dot_dimension_numbers<[1], [1], [0], [0], [0, 0, 1, 0], [], []>} : vector<4x64xbf16>, vector<128x64xbf16>, vector<4x128xf32> -> vector<4x128xf32>
    %cst_66 = arith.constant dense<0xFF800000> : vector<4xf32>
    %126 = vector.multi_reduction <maximumf>, %125, %cst_66 [1] : vector<4x128xf32> to vector<4xf32>
    %127 = vector.shape_cast %126 : vector<4xf32> to vector<4x1xf32>
    %128 = vector.broadcast %127 : vector<4x1xf32> to vector<4x128xf32>
    %129 = arith.subf %125, %128 : vector<4x128xf32>
    %130 = math.exp %129 : vector<4x128xf32>
    %cst_67 = arith.constant dense<0.000000e+00> : vector<4xf32>
    %131 = vector.multi_reduction <add>, %130, %cst_67 [1] : vector<4x128xf32> to vector<4xf32>
    %132 = vector.shape_cast %131 : vector<4xf32> to vector<4x1xf32>
    %133 = tpu.reciprocal %132 {approx = true} : vector<4x1xf32> -> vector<4x1xf32>
    %134 = vector.broadcast %133 : vector<4x1xf32> to vector<4x128xf32>
    %135 = arith.mulf %130, %134 : vector<4x128xf32>
    %136 = arith.truncf %135 : vector<4x128xf32> to vector<4x128xbf16>
    %137 = arith.truncf %120 : vector<128x64xf32> to vector<128x64xbf16>
    %cst_68 = arith.constant dense<0.000000e+00> : vector<4x64xf32>
    %138 = tpu.matmul %136, %137, %cst_68 {dimension_numbers = #tpu.dot_dimension_numbers<[1], [0], [0], [1], [0, 0, 1, 1], [], []>} : vector<4x128xbf16>, vector<128x64xbf16>, vector<4x64xf32> -> vector<4x64xf32>
    %139 = arith.addf %112, %138 : vector<4x64xf32>
    %c0_69 = arith.constant 0 : index
    %c0_70 = arith.constant 0 : index
    %140 = vector.load %arg21[%c0_69, %c0_70] : memref<64x64xbf16, #tpu.memory_space<vmem>>, vector<64x64xbf16>
    %141 = arith.truncf %139 : vector<4x64xf32> to vector<4x64xbf16>
    %cst_71 = arith.constant dense<0.000000e+00> : vector<4x64xf32>
    %142 = tpu.matmul %141, %140, %cst_71 {dimension_numbers = #tpu.dot_dimension_numbers<[1], [0], [0], [1], [0, 0, 1, 1], [], []>} : vector<4x64xbf16>, vector<64x64xbf16>, vector<4x64xf32> -> vector<4x64xf32>
    %c0_72 = arith.constant 0 : index
    %c0_73 = arith.constant 0 : index
    %143 = vector.load %arg22[%c0_72, %c0_73] : memref<1x64xf32, #tpu.memory_space<vmem>>, vector<1x64xf32>
    %144 = vector.broadcast %143 : vector<1x64xf32> to vector<4x64xf32>
    %145 = arith.addf %142, %144 : vector<4x64xf32>
    %cst_74 = arith.constant 0.000000e+00 : f32
    %146 = vector.broadcast %cst_74 : f32 to vector<4x64xf32>
    %147 = arith.maximumf %145, %146 : vector<4x64xf32>
    %148 = arith.addf %139, %147 : vector<4x64xf32>
    %c0_75 = arith.constant 0 : index
    %c0_76 = arith.constant 0 : index
    %149 = vector.load %arg23[%c0_75, %c0_76] : memref<64x64xbf16, #tpu.memory_space<vmem>>, vector<64x64xbf16>
    %150 = arith.truncf %104 : vector<128x64xf32> to vector<128x64xbf16>
    %cst_77 = arith.constant dense<0.000000e+00> : vector<128x64xf32>
    %151 = tpu.matmul %150, %149, %cst_77 {dimension_numbers = #tpu.dot_dimension_numbers<[1], [0], [0], [1], [0, 0, 1, 1], [], []>} : vector<128x64xbf16>, vector<64x64xbf16>, vector<128x64xf32> -> vector<128x64xf32>
    %c0_78 = arith.constant 0 : index
    %c0_79 = arith.constant 0 : index
    %152 = vector.load %arg24[%c0_78, %c0_79] : memref<1x64xf32, #tpu.memory_space<vmem>>, vector<1x64xf32>
    %153 = vector.broadcast %152 : vector<1x64xf32> to vector<128x64xf32>
    %154 = arith.addf %151, %153 : vector<128x64xf32>
    %c0_80 = arith.constant 0 : index
    %c0_81 = arith.constant 0 : index
    %155 = vector.load %arg25[%c0_80, %c0_81] : memref<64x128xbf16, #tpu.memory_space<vmem>>, vector<64x128xbf16>
    %156 = arith.truncf %148 : vector<4x64xf32> to vector<4x64xbf16>
    %cst_82 = arith.constant dense<0.000000e+00> : vector<4x128xf32>
    %157 = tpu.matmul %156, %155, %cst_82 {dimension_numbers = #tpu.dot_dimension_numbers<[1], [0], [0], [1], [0, 0, 1, 1], [], []>} : vector<4x64xbf16>, vector<64x128xbf16>, vector<4x128xf32> -> vector<4x128xf32>
    %c0_83 = arith.constant 0 : index
    %c0_84 = arith.constant 0 : index
    %158 = vector.load %arg26[%c0_83, %c0_84] : memref<1x128xf32, #tpu.memory_space<vmem>>, vector<1x128xf32>
    %159 = vector.broadcast %158 : vector<1x128xf32> to vector<4x128xf32>
    %160 = arith.addf %157, %159 : vector<4x128xf32>
    %161 = vector.extract_strided_slice %160 {offsets = [0, 0], sizes = [4, 64], strides = [1, 1]} : vector<4x128xf32> to vector<4x64xf32>
    %162 = vector.extract_strided_slice %160 {offsets = [0, 64], sizes = [4, 64], strides = [1, 1]} : vector<4x128xf32> to vector<4x64xf32>
    %cst_85 = arith.constant 1.250000e-01 : f32
    %163 = vector.broadcast %cst_85 : f32 to vector<4x64xf32>
    %164 = arith.mulf %161, %163 : vector<4x64xf32>
    %165 = arith.truncf %154 : vector<128x64xf32> to vector<128x64xbf16>
    %166 = arith.truncf %164 : vector<4x64xf32> to vector<4x64xbf16>
    %cst_86 = arith.constant dense<0.000000e+00> : vector<128x4xf32>
    %167 = tpu.matmul %165, %166, %cst_86 {dimension_numbers = #tpu.dot_dimension_numbers<[1], [1], [0], [0], [0, 0, 1, 0], [], []>} : vector<128x64xbf16>, vector<4x64xbf16>, vector<128x4xf32> -> vector<128x4xf32>
    %cst_87 = arith.constant dense<0xFF800000> : vector<128xf32>
    %168 = vector.multi_reduction <maximumf>, %167, %cst_87 [1] : vector<128x4xf32> to vector<128xf32>
    %169 = vector.shape_cast %168 : vector<128xf32> to vector<128x1xf32>
    %170 = vector.broadcast %169 : vector<128x1xf32> to vector<128x4xf32>
    %171 = arith.subf %167, %170 : vector<128x4xf32>
    %172 = math.exp %171 : vector<128x4xf32>
    %cst_88 = arith.constant dense<0.000000e+00> : vector<128xf32>
    %173 = vector.multi_reduction <add>, %172, %cst_88 [1] : vector<128x4xf32> to vector<128xf32>
    %174 = vector.shape_cast %173 : vector<128xf32> to vector<128x1xf32>
    %175 = tpu.reciprocal %174 {approx = true} : vector<128x1xf32> -> vector<128x1xf32>
    %176 = vector.broadcast %175 : vector<128x1xf32> to vector<128x4xf32>
    %177 = arith.mulf %172, %176 : vector<128x4xf32>
    %178 = arith.truncf %177 : vector<128x4xf32> to vector<128x4xbf16>
    %179 = arith.truncf %162 : vector<4x64xf32> to vector<4x64xbf16>
    %cst_89 = arith.constant dense<0.000000e+00> : vector<128x64xf32>
    %180 = tpu.matmul %178, %179, %cst_89 {dimension_numbers = #tpu.dot_dimension_numbers<[1], [0], [0], [1], [0, 0, 1, 1], [], []>} : vector<128x4xbf16>, vector<4x64xbf16>, vector<128x64xf32> -> vector<128x64xf32>
    %181 = arith.addf %154, %180 : vector<128x64xf32>
    %c0_90 = arith.constant 0 : index
    %c0_91 = arith.constant 0 : index
    %182 = vector.load %arg27[%c0_90, %c0_91] : memref<64x64xbf16, #tpu.memory_space<vmem>>, vector<64x64xbf16>
    %183 = arith.truncf %181 : vector<128x64xf32> to vector<128x64xbf16>
    %cst_92 = arith.constant dense<0.000000e+00> : vector<128x64xf32>
    %184 = tpu.matmul %183, %182, %cst_92 {dimension_numbers = #tpu.dot_dimension_numbers<[1], [0], [0], [1], [0, 0, 1, 1], [], []>} : vector<128x64xbf16>, vector<64x64xbf16>, vector<128x64xf32> -> vector<128x64xf32>
    %c0_93 = arith.constant 0 : index
    %c0_94 = arith.constant 0 : index
    %185 = vector.load %arg28[%c0_93, %c0_94] : memref<1x64xf32, #tpu.memory_space<vmem>>, vector<1x64xf32>
    %186 = vector.broadcast %185 : vector<1x64xf32> to vector<128x64xf32>
    %187 = arith.addf %184, %186 : vector<128x64xf32>
    %cst_95 = arith.constant 0.000000e+00 : f32
    %188 = vector.broadcast %cst_95 : f32 to vector<128x64xf32>
    %189 = arith.maximumf %187, %188 : vector<128x64xf32>
    %190 = arith.addf %181, %189 : vector<128x64xf32>
    %c0_96 = arith.constant 0 : index
    %c0_97 = arith.constant 0 : index
    %c0_98 = arith.constant 0 : index
    %191 = vector.load %arg38[%c0_96, %c0_97, %c0_98] : memref<1x4x128xf32, #tpu.memory_space<vmem>>, vector<1x4x128xf32>
    %192 = vector.shape_cast %191 : vector<1x4x128xf32> to vector<4x128xf32>
    %193 = vector.shape_cast %135 : vector<4x128xf32> to vector<1x4x128xf32>
    tpu.vector_store %arg38[%c0_96, %c0_97, %c0_98], %193 {strides = array<i32>} : memref<1x4x128xf32, #tpu.memory_space<vmem>>, vector<1x4x128xf32>,
    %cst_99 = arith.constant dense<0xFF800000> : vector<64xf32>
    %194 = vector.multi_reduction <maximumf>, %190, %cst_99 [0] : vector<128x64xf32> to vector<64xf32>
    %195 = vector.shape_cast %194 : vector<64xf32> to vector<1x64xf32>
    %cst_100 = arith.constant dense<0.000000e+00> : vector<64xf32>
    %196 = vector.multi_reduction <add>, %190, %cst_100 [0] : vector<128x64xf32> to vector<64xf32>
    %197 = vector.shape_cast %196 : vector<64xf32> to vector<1x64xf32>
    %cst_101 = arith.constant 1.280000e+02 : f32
    %198 = vector.broadcast %cst_101 : f32 to vector<1x64xf32>
    %199 = arith.divf %197, %198 : vector<1x64xf32>
    %200 = tpu.concatenate %195, %199 in 1 : vector<1x64xf32>, vector<1x64xf32> -> vector<1x128xf32>
    %c0_102 = arith.constant 0 : index
    %c0_103 = arith.constant 0 : index
    %201 = vector.load %arg29[%c0_102, %c0_103] : memref<128x512xbf16, #tpu.memory_space<vmem>>, vector<128x512xbf16>
    %202 = arith.truncf %200 : vector<1x128xf32> to vector<1x128xbf16>
    %cst_104 = arith.constant dense<0.000000e+00> : vector<1x512xf32>
    %203 = tpu.matmul %202, %201, %cst_104 {dimension_numbers = #tpu.dot_dimension_numbers<[1], [0], [0], [1], [0, 0, 1, 1], [], []>} : vector<1x128xbf16>, vector<128x512xbf16>, vector<1x512xf32> -> vector<1x512xf32>
    %c0_105 = arith.constant 0 : index
    %c0_106 = arith.constant 0 : index
    %204 = vector.load %arg30[%c0_105, %c0_106] : memref<1x512xf32, #tpu.memory_space<vmem>>, vector<1x512xf32>
    %205 = arith.mulf %203, %204 : vector<1x512xf32>
    %c0_107 = arith.constant 0 : index
    %c0_108 = arith.constant 0 : index
    %206 = vector.load %arg31[%c0_107, %c0_108] : memref<1x512xf32, #tpu.memory_space<vmem>>, vector<1x512xf32>
    %207 = arith.addf %205, %206 : vector<1x512xf32>
    %cst_109 = arith.constant 0.000000e+00 : f32
    %208 = vector.broadcast %cst_109 : f32 to vector<1x512xf32>
    %209 = arith.cmpf oge, %207, %208 : vector<1x512xf32>
    %cst_110 = arith.constant 2.000000e-01 : f32
    %210 = vector.broadcast %cst_110 : f32 to vector<1x512xf32>
    %211 = arith.mulf %210, %207 : vector<1x512xf32>
    %212 = arith.select %209, %207, %211 : vector<1x512xi1>, vector<1x512xf32>
    %c0_111 = arith.constant 0 : index
    %c0_112 = arith.constant 0 : index
    %213 = vector.load %arg32[%c0_111, %c0_112] : memref<512x256xbf16, #tpu.memory_space<vmem>>, vector<512x256xbf16>
    %214 = arith.truncf %212 : vector<1x512xf32> to vector<1x512xbf16>
    %cst_113 = arith.constant dense<0.000000e+00> : vector<1x256xf32>
    %215 = tpu.matmul %214, %213, %cst_113 {dimension_numbers = #tpu.dot_dimension_numbers<[1], [0], [0], [1], [0, 0, 1, 1], [], []>} : vector<1x512xbf16>, vector<512x256xbf16>, vector<1x256xf32> -> vector<1x256xf32>
    %c0_114 = arith.constant 0 : index
    %c0_115 = arith.constant 0 : index
    %216 = vector.load %arg33[%c0_114, %c0_115] : memref<1x256xf32, #tpu.memory_space<vmem>>, vector<1x256xf32>
    %217 = arith.mulf %215, %216 : vector<1x256xf32>
    %c0_116 = arith.constant 0 : index
    %c0_117 = arith.constant 0 : index
    %218 = vector.load %arg34[%c0_116, %c0_117] : memref<1x256xf32, #tpu.memory_space<vmem>>, vector<1x256xf32>
    %219 = arith.addf %217, %218 : vector<1x256xf32>
    %cst_118 = arith.constant 0.000000e+00 : f32
    %220 = vector.broadcast %cst_118 : f32 to vector<1x256xf32>
    %221 = arith.cmpf oge, %219, %220 : vector<1x256xf32>
    %cst_119 = arith.constant 2.000000e-01 : f32
    %222 = vector.broadcast %cst_119 : f32 to vector<1x256xf32>
    %223 = arith.mulf %222, %219 : vector<1x256xf32>
    %224 = arith.select %221, %219, %223 : vector<1x256xi1>, vector<1x256xf32>
    %c0_120 = arith.constant 0 : index
    %c0_121 = arith.constant 0 : index
    %225 = vector.load %arg35[%c0_120, %c0_121] : memref<256x40xbf16, #tpu.memory_space<vmem>>, vector<256x40xbf16>
    %226 = arith.truncf %224 : vector<1x256xf32> to vector<1x256xbf16>
    %cst_122 = arith.constant dense<0.000000e+00> : vector<1x40xf32>
    %227 = tpu.matmul %226, %225, %cst_122 {dimension_numbers = #tpu.dot_dimension_numbers<[1], [0], [0], [1], [0, 0, 1, 1], [], []>} : vector<1x256xbf16>, vector<256x40xbf16>, vector<1x40xf32> -> vector<1x40xf32>
    %c0_123 = arith.constant 0 : index
    %c0_124 = arith.constant 0 : index
    %228 = vector.load %arg36[%c0_123, %c0_124] : memref<1x40xf32, #tpu.memory_space<vmem>>, vector<1x40xf32>
    %229 = arith.addf %227, %228 : vector<1x40xf32>
    %c0_125 = arith.constant 0 : index
    %c0_126 = arith.constant 0 : index
    %c0_127 = arith.constant 0 : index
    %230 = vector.load %arg37[%c0_125, %c0_126, %c0_127] : memref<1x1x40xf32, #tpu.memory_space<vmem>>, vector<1x1x40xf32>
    %231 = vector.shape_cast %230 : vector<1x1x40xf32> to vector<1x40xf32>
    %232 = vector.shape_cast %229 : vector<1x40xf32> to vector<1x1x40xf32>
    tpu.vector_store %arg37[%c0_125, %c0_126, %c0_127], %232 {strides = array<i32>} : memref<1x1x40xf32, #tpu.memory_space<vmem>>, vector<1x1x40xf32>,
    return
  }
  func.func @transform_0(%arg0: i32) -> (i32, i32, i32) {
    %c0_i32 = arith.constant 0 : i32
    %c0_i32_0 = arith.constant 0 : i32
    %c0_i32_1 = arith.constant 0 : i32
    return %arg0, %c0_i32, %c0_i32_0 : i32, i32, i32
  }
  func.func @transform_1(%arg0: i32) -> (i32, i32) {
    %c0_i32 = arith.constant 0 : i32
    %c0_i32_0 = arith.constant 0 : i32
    %c0_i32_1 = arith.constant 0 : i32
    return %c0_i32, %c0_i32_0 : i32, i32
  }
  func.func @transform_2(%arg0: i32) -> (i32, i32) {
    %c0_i32 = arith.constant 0 : i32
    %c0_i32_0 = arith.constant 0 : i32
    %c0_i32_1 = arith.constant 0 : i32
    return %c0_i32, %c0_i32_0 : i32, i32
  }
  func.func @transform_3(%arg0: i32) -> (i32, i32) {
    %c0_i32 = arith.constant 0 : i32
    %c0_i32_0 = arith.constant 0 : i32
    %c0_i32_1 = arith.constant 0 : i32
    return %c0_i32, %c0_i32_0 : i32, i32
  }
  func.func @transform_4(%arg0: i32) -> (i32, i32) {
    %c0_i32 = arith.constant 0 : i32
    %c0_i32_0 = arith.constant 0 : i32
    %c0_i32_1 = arith.constant 0 : i32
    return %c0_i32, %c0_i32_0 : i32, i32
  }
  func.func @transform_5(%arg0: i32) -> (i32, i32) {
    %c0_i32 = arith.constant 0 : i32
    %c0_i32_0 = arith.constant 0 : i32
    %c0_i32_1 = arith.constant 0 : i32
    return %c0_i32, %c0_i32_0 : i32, i32
  }
  func.func @transform_6(%arg0: i32) -> (i32, i32) {
    %c0_i32 = arith.constant 0 : i32
    %c0_i32_0 = arith.constant 0 : i32
    %c0_i32_1 = arith.constant 0 : i32
    return %c0_i32, %c0_i32_0 : i32, i32
  }
  func.func @transform_7(%arg0: i32) -> (i32, i32, i32) {
    %c0_i32 = arith.constant 0 : i32
    %c0_i32_0 = arith.constant 0 : i32
    %c0_i32_1 = arith.constant 0 : i32
    %c0_i32_2 = arith.constant 0 : i32
    return %c0_i32, %c0_i32_0, %c0_i32_1 : i32, i32, i32
  }
  func.func @transform_8(%arg0: i32) -> (i32, i32) {
    %c0_i32 = arith.constant 0 : i32
    %c0_i32_0 = arith.constant 0 : i32
    %c0_i32_1 = arith.constant 0 : i32
    return %c0_i32, %c0_i32_0 : i32, i32
  }
  func.func @transform_9(%arg0: i32) -> (i32, i32) {
    %c0_i32 = arith.constant 0 : i32
    %c0_i32_0 = arith.constant 0 : i32
    %c0_i32_1 = arith.constant 0 : i32
    return %c0_i32, %c0_i32_0 : i32, i32
  }
  func.func @transform_10(%arg0: i32) -> (i32, i32) {
    %c0_i32 = arith.constant 0 : i32
    %c0_i32_0 = arith.constant 0 : i32
    %c0_i32_1 = arith.constant 0 : i32
    return %c0_i32, %c0_i32_0 : i32, i32
  }
  func.func @transform_11(%arg0: i32) -> (i32, i32) {
    %c0_i32 = arith.constant 0 : i32
    %c0_i32_0 = arith.constant 0 : i32
    %c0_i32_1 = arith.constant 0 : i32
    return %c0_i32, %c0_i32_0 : i32, i32
  }
  func.func @transform_12(%arg0: i32) -> (i32, i32) {
    %c0_i32 = arith.constant 0 : i32
    %c0_i32_0 = arith.constant 0 : i32
    %c0_i32_1 = arith.constant 0 : i32
    return %c0_i32, %c0_i32_0 : i32, i32
  }
  func.func @transform_13(%arg0: i32) -> (i32, i32) {
    %c0_i32 = arith.constant 0 : i32
    %c0_i32_0 = arith.constant 0 : i32
    %c0_i32_1 = arith.constant 0 : i32
    return %c0_i32, %c0_i32_0 : i32, i32
  }
  func.func @transform_14(%arg0: i32) -> (i32, i32) {
    %c0_i32 = arith.constant 0 : i32
    %c0_i32_0 = arith.constant 0 : i32
    %c0_i32_1 = arith.constant 0 : i32
    return %c0_i32, %c0_i32_0 : i32, i32
  }
  func.func @transform_15(%arg0: i32) -> (i32, i32) {
    %c0_i32 = arith.constant 0 : i32
    %c0_i32_0 = arith.constant 0 : i32
    %c0_i32_1 = arith.constant 0 : i32
    return %c0_i32, %c0_i32_0 : i32, i32
  }
  func.func @transform_16(%arg0: i32) -> (i32, i32) {
    %c0_i32 = arith.constant 0 : i32
    %c0_i32_0 = arith.constant 0 : i32
    %c0_i32_1 = arith.constant 0 : i32
    return %c0_i32, %c0_i32_0 : i32, i32
  }
  func.func @transform_17(%arg0: i32) -> (i32, i32) {
    %c0_i32 = arith.constant 0 : i32
    %c0_i32_0 = arith.constant 0 : i32
    %c0_i32_1 = arith.constant 0 : i32
    return %c0_i32, %c0_i32_0 : i32, i32
  }
  func.func @transform_18(%arg0: i32) -> (i32, i32) {
    %c0_i32 = arith.constant 0 : i32
    %c0_i32_0 = arith.constant 0 : i32
    %c0_i32_1 = arith.constant 0 : i32
    return %c0_i32, %c0_i32_0 : i32, i32
  }
  func.func @transform_19(%arg0: i32) -> (i32, i32) {
    %c0_i32 = arith.constant 0 : i32
    %c0_i32_0 = arith.constant 0 : i32
    %c0_i32_1 = arith.constant 0 : i32
    return %c0_i32, %c0_i32_0 : i32, i32
  }
  func.func @transform_20(%arg0: i32) -> (i32, i32) {
    %c0_i32 = arith.constant 0 : i32
    %c0_i32_0 = arith.constant 0 : i32
    %c0_i32_1 = arith.constant 0 : i32
    return %c0_i32, %c0_i32_0 : i32, i32
  }
  func.func @transform_21(%arg0: i32) -> (i32, i32) {
    %c0_i32 = arith.constant 0 : i32
    %c0_i32_0 = arith.constant 0 : i32
    %c0_i32_1 = arith.constant 0 : i32
    return %c0_i32, %c0_i32_0 : i32, i32
  }
  func.func @transform_22(%arg0: i32) -> (i32, i32) {
    %c0_i32 = arith.constant 0 : i32
    %c0_i32_0 = arith.constant 0 : i32
    %c0_i32_1 = arith.constant 0 : i32
    return %c0_i32, %c0_i32_0 : i32, i32
  }
  func.func @transform_23(%arg0: i32) -> (i32, i32) {
    %c0_i32 = arith.constant 0 : i32
    %c0_i32_0 = arith.constant 0 : i32
    %c0_i32_1 = arith.constant 0 : i32
    return %c0_i32, %c0_i32_0 : i32, i32
  }
  func.func @transform_24(%arg0: i32) -> (i32, i32) {
    %c0_i32 = arith.constant 0 : i32
    %c0_i32_0 = arith.constant 0 : i32
    %c0_i32_1 = arith.constant 0 : i32
    return %c0_i32, %c0_i32_0 : i32, i32
  }
  func.func @transform_25(%arg0: i32) -> (i32, i32) {
    %c0_i32 = arith.constant 0 : i32
    %c0_i32_0 = arith.constant 0 : i32
    %c0_i32_1 = arith.constant 0 : i32
    return %c0_i32, %c0_i32_0 : i32, i32
  }
  func.func @transform_26(%arg0: i32) -> (i32, i32) {
    %c0_i32 = arith.constant 0 : i32
    %c0_i32_0 = arith.constant 0 : i32
    %c0_i32_1 = arith.constant 0 : i32
    return %c0_i32, %c0_i32_0 : i32, i32
  }
  func.func @transform_27(%arg0: i32) -> (i32, i32) {
    %c0_i32 = arith.constant 0 : i32
    %c0_i32_0 = arith.constant 0 : i32
    %c0_i32_1 = arith.constant 0 : i32
    return %c0_i32, %c0_i32_0 : i32, i32
  }
  func.func @transform_28(%arg0: i32) -> (i32, i32) {
    %c0_i32 = arith.constant 0 : i32
    %c0_i32_0 = arith.constant 0 : i32
    %c0_i32_1 = arith.constant 0 : i32
    return %c0_i32, %c0_i32_0 : i32, i32
  }
  func.func @transform_29(%arg0: i32) -> (i32, i32) {
    %c0_i32 = arith.constant 0 : i32
    %c0_i32_0 = arith.constant 0 : i32
    %c0_i32_1 = arith.constant 0 : i32
    return %c0_i32, %c0_i32_0 : i32, i32
  }
  func.func @transform_30(%arg0: i32) -> (i32, i32) {
    %c0_i32 = arith.constant 0 : i32
    %c0_i32_0 = arith.constant 0 : i32
    %c0_i32_1 = arith.constant 0 : i32
    return %c0_i32, %c0_i32_0 : i32, i32
  }
  func.func @transform_31(%arg0: i32) -> (i32, i32) {
    %c0_i32 = arith.constant 0 : i32
    %c0_i32_0 = arith.constant 0 : i32
    %c0_i32_1 = arith.constant 0 : i32
    return %c0_i32, %c0_i32_0 : i32, i32
  }
  func.func @transform_32(%arg0: i32) -> (i32, i32) {
    %c0_i32 = arith.constant 0 : i32
    %c0_i32_0 = arith.constant 0 : i32
    %c0_i32_1 = arith.constant 0 : i32
    return %c0_i32, %c0_i32_0 : i32, i32
  }
  func.func @transform_33(%arg0: i32) -> (i32, i32) {
    %c0_i32 = arith.constant 0 : i32
    %c0_i32_0 = arith.constant 0 : i32
    %c0_i32_1 = arith.constant 0 : i32
    return %c0_i32, %c0_i32_0 : i32, i32
  }
  func.func @transform_34(%arg0: i32) -> (i32, i32) {
    %c0_i32 = arith.constant 0 : i32
    %c0_i32_0 = arith.constant 0 : i32
    %c0_i32_1 = arith.constant 0 : i32
    return %c0_i32, %c0_i32_0 : i32, i32
  }
  func.func @transform_35(%arg0: i32) -> (i32, i32) {
    %c0_i32 = arith.constant 0 : i32
    %c0_i32_0 = arith.constant 0 : i32
    %c0_i32_1 = arith.constant 0 : i32
    return %c0_i32, %c0_i32_0 : i32, i32
  }
  func.func @transform_36(%arg0: i32) -> (i32, i32, i32) {
    %c0_i32 = arith.constant 0 : i32
    %c0_i32_0 = arith.constant 0 : i32
    %c0_i32_1 = arith.constant 0 : i32
    return %arg0, %c0_i32, %c0_i32_0 : i32, i32, i32
  }
  func.func @transform_37(%arg0: i32) -> (i32, i32, i32) {
    %c0_i32 = arith.constant 0 : i32
    %c0_i32_0 = arith.constant 0 : i32
    %c0_i32_1 = arith.constant 0 : i32
    return %arg0, %c0_i32, %c0_i32_0 : i32, i32, i32
  }
}

</mosaic_0001>

<llo_original>
// kernel: attentive_swap_net_forward.1
$region0: #{attentive_swap_net_forward.1}
  #allocation0 [shape = 'u32[]', space=smem, size = 0x4, offset = 0x4, fixed_abs, tag = 'smem constant byte address 0x4 - core index']
  #allocation1 [shape = 'u32[144,128]{1,0:T(1,128)}', space=vmem, size = 0x12000, scoped, tag = 'internal scratch']
  %s0 = inlined_call_operand.smem [shape: u32[38], index: -1, kind: input, shape index: {}]
  %s1 = sld [smem:[%s0]]
  %s2 = scalar_lea.smem %s0, 1
  %s3 = sld [smem:[%s2]]
  %s4 = scalar_lea.smem %s0, 2
  %s5 = sld [smem:[%s4]]
  %s6 = scalar_lea.smem %s0, 3
  %s7 = sld [smem:[%s6]]
  %s8 = scalar_lea.smem %s0, 4
  %s9 = sld [smem:[%s8]]
  %s10 = scalar_lea.smem %s0, 5
  %s11 = sld [smem:[%s10]]
  %s12 = scalar_lea.smem %s0, 6
  %s13 = sld [smem:[%s12]]
  %s14 = scalar_lea.smem %s0, 7
  %s15 = sld [smem:[%s14]]
  %s16 = scalar_lea.smem %s0, 8
  %s17 = sld [smem:[%s16]]
  %s18 = scalar_lea.smem %s0, 9
  %s19 = sld [smem:[%s18]]
  %s20 = scalar_lea.smem %s0, 10
  %s21 = sld [smem:[%s20]]
  %s22 = scalar_lea.smem %s0, 11
  %s23 = sld [smem:[%s22]]
  %s24 = scalar_lea.smem %s0, 12
  %s25 = sld [smem:[%s24]]
  %s26 = scalar_lea.smem %s0, 13
  %s27 = sld [smem:[%s26]]
  %s28 = scalar_lea.smem %s0, 14
  %s29 = sld [smem:[%s28]]
  %s30 = scalar_lea.smem %s0, 15
  %s31 = sld [smem:[%s30]]
  %s32 = scalar_lea.smem %s0, 16
  %s33 = sld [smem:[%s32]]
  %s34 = scalar_lea.smem %s0, 17
  %s35 = sld [smem:[%s34]]
  %s36 = scalar_lea.smem %s0, 18
  %s37 = sld [smem:[%s36]]
  %s38 = scalar_lea.smem %s0, 19
  %s39 = sld [smem:[%s38]]
  %s40 = scalar_lea.smem %s0, 20
  %s41 = sld [smem:[%s40]]
  %s42 = scalar_lea.smem %s0, 21
  %s43 = sld [smem:[%s42]]
  %s44 = scalar_lea.smem %s0, 22
  %s45 = sld [smem:[%s44]]
  %s46 = scalar_lea.smem %s0, 23
  %s47 = sld [smem:[%s46]]
  %s48 = scalar_lea.smem %s0, 24
  %s49 = sld [smem:[%s48]]
  %s50 = scalar_lea.smem %s0, 25
  %s51 = sld [smem:[%s50]]
  %s52 = scalar_lea.smem %s0, 26
  %s53 = sld [smem:[%s52]]
  %s54 = scalar_lea.smem %s0, 27
  %s55 = sld [smem:[%s54]]
  %s56 = scalar_lea.smem %s0, 28
  %s57 = sld [smem:[%s56]]
  %s58 = scalar_lea.smem %s0, 29
  %s59 = sld [smem:[%s58]]
  %s60 = scalar_lea.smem %s0, 30
  %s61 = sld [smem:[%s60]]
  %s62 = scalar_lea.smem %s0, 31
  %s63 = sld [smem:[%s62]]
  %s64 = scalar_lea.smem %s0, 32
  %s65 = sld [smem:[%s64]]
  %s66 = scalar_lea.smem %s0, 33
  %s67 = sld [smem:[%s66]]
  %s68 = scalar_lea.smem %s0, 34
  %s69 = sld [smem:[%s68]]
  %s70 = scalar_lea.smem %s0, 35
  %s71 = sld [smem:[%s70]]
  %s72 = scalar_lea.smem %s0, 36
  %s73 = sld [smem:[%s72]]
  %s74 = scalar_lea.smem %s0, 37
  %s75 = sld [smem:[%s74]]
  %76 = xla_tuple %s73, %s75
  %s77 = sld [smem:[#allocation0]]
  $region273: #{attentive_swap_net_forward.1} parent=0
    _
  %s79 = ssub.s32 1, %s77
  %s80 = scalar_select 0, %s79, %s77
  $region1: #{attentive_swap_net_forward.1} parent=0
    #allocation2 [shape = 'u8[16384]{0}', space=vmem, size = 0x4000, scoped, tag = 'input window, operand 4, single buffered']
    #allocation3 [shape = 's32[2]{0}', space=sflag, size = 0x8, scoped, tag = 'scoped memory for attentive_swap_net_forward.1']
    #allocation4 [shape = 's32[2]{0}', space=sflag, size = 0x8, scoped, tag = 'scoped memory for attentive_swap_net_forward.1']
    #allocation5 [shape = 'u8[32768]{0}', space=vmem, size = 0x8000, scoped, tag = 'input window, operand 8, single buffered']
    #allocation6 [shape = 's32[1]{0}', space=sflag, size = 0x4, scoped, tag = 'scoped memory for attentive_swap_net_forward.1']
    #allocation7 [shape = 'u8[16384]{0}', space=vmem, size = 0x4000, scoped, tag = 'input window, operand 10, single buffered']
    #allocation8 [shape = 'u8[512]{0}', space=vmem, size = 0x400, scoped, tag = 'input window, operand 11, single buffered']
    #allocation9 [shape = 's32[1]{0}', space=sflag, size = 0x4, scoped, tag = 'scoped memory for attentive_swap_net_forward.1']
    #allocation10 [shape = 'u8[32768]{0}', space=vmem, size = 0x8000, scoped, tag = 'input window, operand 12, single buffered']
    #allocation11 [shape = 'u8[16384]{0}', space=vmem, size = 0x4000, scoped, tag = 'input window, operand 14, single buffered']
    #allocation12 [shape = 's32[1]{0}', space=sflag, size = 0x4, scoped, tag = 'scoped memory for attentive_swap_net_forward.1']
    #allocation13 [shape = 'u8[512]{0}', space=vmem, size = 0x400, scoped, tag = 'input window, operand 15, single buffered']
    #allocation14 [shape = 'u8[16384]{0}', space=vmem, size = 0x4000, scoped, tag = 'input window, operand 16, single buffered']
    #allocation15 [shape = 's32[1]{0}', space=sflag, size = 0x4, scoped, tag = 'scoped memory for attentive_swap_net_forward.1']
    #allocation16 [shape = 'u8[512]{0}', space=vmem, size = 0x400, scoped, tag = 'input window, operand 17, single buffered']
    #allocation17 [shape = 'u8[16384]{0}', space=vmem, size = 0x4000, scoped, tag = 'input window, operand 18, single buffered']
    #allocation18 [shape = 's32[1]{0}', space=sflag, size = 0x4, scoped, tag = 'scoped memory for attentive_swap_net_forward.1']
    #allocation19 [shape = 'u8[512]{0}', space=vmem, size = 0x400, scoped, tag = 'input window, operand 19, single buffered']
    #allocation20 [shape = 'u8[16384]{0}', space=vmem, size = 0x4000, scoped, tag = 'input window, operand 20, single buffered']
    #allocation21 [shape = 's32[1]{0}', space=sflag, size = 0x4, scoped, tag = 'scoped memory for attentive_swap_net_forward.1']
    #allocation22 [shape = 'u8[512]{0}', space=vmem, size = 0x400, scoped, tag = 'input window, operand 21, single buffered']
    #allocation23 [shape = 'u8[16384]{0}', space=vmem, size = 0x4000, scoped, tag = 'input window, operand 22, single buffered']
    #allocation24 [shape = 's32[1]{0}', space=sflag, size = 0x4, scoped, tag = 'scoped memory for attentive_swap_net_forward.1']
    #allocation25 [shape = 'u8[512]{0}', space=vmem, size = 0x400, scoped, tag = 'input window, operand 23, single buffered']
    #allocation26 [shape = 'u8[16384]{0}', space=vmem, size = 0x4000, scoped, tag = 'input window, operand 24, single buffered']
    #allocation27 [shape = 's32[1]{0}', space=sflag, size = 0x4, scoped, tag = 'scoped memory for attentive_swap_net_forward.1']
    #allocation28 [shape = 'u8[512]{0}', space=vmem, size = 0x400, scoped, tag = 'input window, operand 25, single buffered']
    #allocation29 [shape = 'u8[16384]{0}', space=vmem, size = 0x4000, scoped, tag = 'input window, operand 26, single buffered']
    #allocation30 [shape = 's32[1]{0}', space=sflag, size = 0x4, scoped, tag = 'scoped memory for attentive_swap_net_forward.1']
    #allocation31 [shape = 'u8[512]{0}', space=vmem, size = 0x400, scoped, tag = 'input window, operand 27, single buffered']
    #allocation32 [shape = 'u8[131072]{0}', space=vmem, size = 0x20000, scoped, tag = 'input window, operand 28, single buffered']
    #allocation33 [shape = 's32[1]{0}', space=sflag, size = 0x4, scoped, tag = 'scoped memory for attentive_swap_net_forward.1']
    #allocation34 [shape = 'u8[1024]{0}', space=vmem, size = 0x400, scoped, tag = 'input window, operand 33, single buffered']
    #allocation35 [shape = 'u8[512]{0}', space=vmem, size = 0x400, scoped, tag = 'input window, operand 35, single buffered']
    #allocation36 [shape = 's32[1]{0}', space=sflag, size = 0x4, scoped, tag = 'scoped memory for attentive_swap_net_forward.1']
    #allocation37 [shape = 'u8[1024]{0}', space=vmem, size = 0x400, scoped, tag = 'output window, operand 0']
    #allocation38 [shape = 'u8[4096]{0}', space=vmem, size = 0x1000, scoped, tag = 'output window, operand 1']
    #allocation39 [shape = 's32[2]{0}', space=sflag, size = 0x8, scoped, tag = 'scoped memory for attentive_swap_net_forward.1']
    %81 = vsyncpa [#allocation3], 0
    %82 = vsyncpa [#allocation6], 0
    %83 = vsyncpa [#allocation9], 0
    %84 = vsyncpa [#allocation12], 0
    %85 = vsyncpa [#allocation15], 0
    %86 = vsyncpa [#allocation18], 0
    %87 = vsyncpa [#allocation21], 0
    %88 = vsyncpa [#allocation24], 0
    %89 = vsyncpa [#allocation27], 0
    %90 = vsyncpa [#allocation30], 0
    %91 = vsyncpa [#allocation33], 0
    %92 = vsyncpa [#allocation36], 0
    %93 = vsyncpa [#allocation4], 0
    %s94 = scalar_lea.sflag [#allocation4], 1
    %95 = vsyncpa %s94, 0
    %96 = vsyncpa [#allocation39], 0
    %s97 = scalar_lea.sflag [#allocation39], 1
    %98 = vsyncpa %s97, 0
    loop: start=0, step=1, limit=4
    $region2: #{attentive_swap_net_forward.1} parent=1 // loop_pre_header
      _
    $region3: #{attentive_swap_net_forward.1} parent=1 // loop_header
      %s100 = sphi 0, %s104
      %p101 = scmp.ge.s32.totalorder %s100, 4
      %s110 = sphi 0, %s112
      %s113 = sphi 0, %s110
      %s114 = sphi 0, %s113
      %s130 = sphi 0, %s114
      %s134 = sphi 0, %s134
      %s136 = sphi 0, %s134
      %s137 = sphi 0, %s136
      %s151 = sphi 0, %s137
      %s155 = sphi 0, %s155
      %s157 = sphi 0, %s155
      %s158 = sphi 0, %s157
      %s172 = sphi 0, %s158
      %s176 = sphi 0, %s176
      %s178 = sphi 0, %s176
      %s179 = sphi 0, %s178
      %s193 = sphi 0, %s179
      %s197 = sphi 0, %s197
      %s199 = sphi 0, %s197
      %s200 = sphi 0, %s199
      %s214 = sphi 0, %s200
      %s218 = sphi 0, %s218
      %s220 = sphi 0, %s218
      %s221 = sphi 0, %s220
      %s235 = sphi 0, %s221
      %s239 = sphi 0, %s239
      %s241 = sphi 0, %s239
      %s242 = sphi 0, %s241
      %s256 = sphi 0, %s242
      %s260 = sphi 0, %s260
      %s262 = sphi 0, %s260
      %s263 = sphi 0, %s262
      %s277 = sphi 0, %s263
      %s281 = sphi 0, %s281
      %s283 = sphi 0, %s281
      %s284 = sphi 0, %s283
      %s298 = sphi 0, %s284
      %s302 = sphi 0, %s302
      %s304 = sphi 0, %s302
      %s305 = sphi 0, %s304
      %s319 = sphi 0, %s305
      %s323 = sphi 0, %s323
      %s325 = sphi 0, %s323
      %s326 = sphi 0, %s325
      %s340 = sphi 0, %s326
      %s344 = sphi 0, %s344
      %s346 = sphi 0, %s344
      %s347 = sphi 0, %s346
      %s361 = sphi 0, %s347
      %s365 = sphi 0, %s365
      %s367 = sphi 0, %s365
      %s368 = sphi 0, %s367
      %s382 = sphi 0, %s368
      %s386 = sphi 0, %s386
      %s388 = sphi 0, %s386
      %s389 = sphi 0, %s388
      %s403 = sphi 0, %s389
      %s407 = sphi 0, %s407
      %s409 = sphi 0, %s407
      %s410 = sphi 0, %s409
      %s424 = sphi 0, %s410
      %s428 = sphi 0, %s428
      %s430 = sphi 0, %s428
      %s431 = sphi 0, %s430
      %s445 = sphi 0, %s431
      %s449 = sphi 0, %s449
      %s451 = sphi 0, %s449
      %s452 = sphi 0, %s451
      %s466 = sphi 0, %s452
      %s470 = sphi 0, %s470
      %s472 = sphi 0, %s470
      %s473 = sphi 0, %s472
      %s487 = sphi 0, %s473
      %s491 = sphi 0, %s491
      %s493 = sphi 0, %s491
      %s494 = sphi 0, %s493
      %s508 = sphi 0, %s494
      %s512 = sphi 0, %s512
      %s514 = sphi 0, %s512
      %s515 = sphi 0, %s514
      %s529 = sphi 0, %s515
      %s533 = sphi 0, %s533
      %s535 = sphi 0, %s533
      %s536 = sphi 0, %s535
      %s550 = sphi 0, %s536
      %s554 = sphi 0, %s554
      %s556 = sphi 0, %s554
      %s557 = sphi 0, %s556
      %s571 = sphi 0, %s557
      %s575 = sphi 0, %s575
      %s577 = sphi 0, %s575
      %s578 = sphi 0, %s577
      %s592 = sphi 0, %s578
      %s596 = sphi 0, %s596
      %s598 = sphi 0, %s596
      %s599 = sphi 0, %s598
      %s613 = sphi 0, %s599
      %s617 = sphi 0, %s617
      %s619 = sphi 0, %s617
      %s620 = sphi 0, %s619
      %s634 = sphi 0, %s620
      %s638 = sphi 0, %s638
      %s640 = sphi 0, %s638
      %s641 = sphi 0, %s640
      %s655 = sphi 0, %s641
      %s659 = sphi 0, %s659
      %s661 = sphi 0, %s659
      %s662 = sphi 0, %s661
      %s676 = sphi 0, %s662
      %s680 = sphi 0, %s680
      %s682 = sphi 0, %s680
      %s683 = sphi 0, %s682
      %s697 = sphi 0, %s683
      %s701 = sphi 0, %s701
      %s703 = sphi 0, %s701
      %s704 = sphi 0, %s703
      %s718 = sphi 0, %s704
      %s722 = sphi 0, %s722
      %s724 = sphi 0, %s722
      %s725 = sphi 0, %s724
      %s739 = sphi 0, %s725
      %s743 = sphi 0, %s743
      %s745 = sphi 0, %s743
      %s746 = sphi 0, %s745
      %s760 = sphi 0, %s746
      %s764 = sphi 0, %s764
      %s766 = sphi 0, %s764
      %s767 = sphi 0, %s766
      %s781 = sphi 0, %s767
      %s785 = sphi 0, %s785
      %s787 = sphi 0, %s785
      %s788 = sphi 0, %s787
      %s802 = sphi 0, %s788
      %s806 = sphi 0, %s806
      %s808 = sphi 0, %s806
      %s809 = sphi 0, %s808
      %s823 = sphi 0, %s809
      %s827 = sphi 0, %s827
      %s829 = sphi 0, %s827
      %s830 = sphi 0, %s829
      %s844 = sphi 0, %s830
      %s848 = sphi 0, %s848
      %s850 = sphi 0, %s848
      %s851 = sphi 0, %s850
      %s865 = sphi 0, %s851
      %s871 = sphi 0, %s873
      %s874 = sphi 0, %s871
      %s875 = sphi 0, %s874
      %s891 = sphi 0, %s875
      %s897 = sphi 0, %s899
      %s900 = sphi 0, %s897
      %s901 = sphi 0, %s900
      %s917 = sphi 0, %s901
    $region4: #{attentive_swap_net_forward.1} parent=1 // loop_header_branch
      %103 = sbr.rel (%p101) target = $region8
    $region5: #{attentive_swap_net_forward.1} parent=1 // loop_body
      %s105 = ssub.s32 %s100, 1
      %s106 = ssub.s32 %s100, 2
      %s107 = sadd.s32 %s100, 1
      %s108 = ssub.s32 %s100, %s107
      %p109 = scmp.eq.s32.totalorder %s108, 0
      %s111 = sadd.s32 %s110, 1
      %s112 = scalar_select %p109, %s110, %s111
      %p115 = pneg %p109
      %p116 = scmp.eq.s32.totalorder %s100, 1
      %p117 = por %p115, %p116
      %p118 = scmp.ne.s32.totalorder %s110, %s113
      %p119 = scmp.eq.s32.totalorder %s100, 0
      %p120 = por %p118, %p119
      %p121 = scmp.ne.s32.totalorder %s110, %s113
      %p122 = scmp.eq.s32.totalorder %s105, 1
      %p123 = por %p121, %p122
      %p124 = scmp.ne.s32.totalorder %s113, %s114
      %p125 = scmp.eq.s32.totalorder %s105, 0
      %p126 = por %p124, %p125
      %p127 = scmp.ne.s32.totalorder %s113, %s114
      %p128 = scmp.eq.s32.totalorder %s106, 1
      %p129 = por %p127, %p128
      %p131 = scmp.ne.s32.totalorder %s114, %s130
      %p132 = scmp.eq.s32.totalorder %s106, 0
      %p133 = por %p131, %p132
      %s135 = sadd.s32 %s134, 1
      %p138 = scmp.eq.s32.totalorder %s100, 1
      %p139 = scmp.ne.s32.totalorder %s134, %s136
      %p140 = scmp.eq.s32.totalorder %s100, 0
      %p141 = por %p139, %p140
      %p142 = scmp.ne.s32.totalorder %s134, %s136
      %p143 = scmp.eq.s32.totalorder %s105, 1
      %p144 = por %p142, %p143
      %p145 = scmp.ne.s32.totalorder %s136, %s137
      %p146 = scmp.eq.s32.totalorder %s105, 0
      %p147 = por %p145, %p146
      %p148 = scmp.ne.s32.totalorder %s136, %s137
      %p149 = scmp.eq.s32.totalorder %s106, 1
      %p150 = por %p148, %p149
      %p152 = scmp.ne.s32.totalorder %s137, %s151
      %p153 = scmp.eq.s32.totalorder %s106, 0
      %p154 = por %p152, %p153
      %s156 = sadd.s32 %s155, 1
      %p159 = scmp.eq.s32.totalorder %s100, 1
      %p160 = scmp.ne.s32.totalorder %s155, %s157
      %p161 = scmp.eq.s32.totalorder %s100, 0
      %p162 = por %p160, %p161
      %p163 = scmp.ne.s32.totalorder %s155, %s157
      %p164 = scmp.eq.s32.totalorder %s105, 1
      %p165 = por %p163, %p164
      %p166 = scmp.ne.s32.totalorder %s157, %s158
      %p167 = scmp.eq.s32.totalorder %s105, 0
      %p168 = por %p166, %p167
      %p169 = scmp.ne.s32.totalorder %s157, %s158
      %p170 = scmp.eq.s32.totalorder %s106, 1
      %p171 = por %p169, %p170
      %p173 = scmp.ne.s32.totalorder %s158, %s172
      %p174 = scmp.eq.s32.totalorder %s106, 0
      %p175 = por %p173, %p174
      %s177 = sadd.s32 %s176, 1
      %p180 = scmp.eq.s32.totalorder %s100, 1
      %p181 = scmp.ne.s32.totalorder %s176, %s178
      %p182 = scmp.eq.s32.totalorder %s100, 0
      %p183 = por %p181, %p182
      %p184 = scmp.ne.s32.totalorder %s176, %s178
      %p185 = scmp.eq.s32.totalorder %s105, 1
      %p186 = por %p184, %p185
      %p187 = scmp.ne.s32.totalorder %s178, %s179
      %p188 = scmp.eq.s32.totalorder %s105, 0
      %p189 = por %p187, %p188
      %p190 = scmp.ne.s32.totalorder %s178, %s179
      %p191 = scmp.eq.s32.totalorder %s106, 1
      %p192 = por %p190, %p191
      %p194 = scmp.ne.s32.totalorder %s179, %s193
      %p195 = scmp.eq.s32.totalorder %s106, 0
      %p196 = por %p194, %p195
      %s198 = sadd.s32 %s197, 1
      %p201 = scmp.eq.s32.totalorder %s100, 1
      %p202 = scmp.ne.s32.totalorder %s197, %s199
      %p203 = scmp.eq.s32.totalorder %s100, 0
      %p204 = por %p202, %p203
      %p205 = scmp.ne.s32.totalorder %s197, %s199
      %p206 = scmp.eq.s32.totalorder %s105, 1
      %p207 = por %p205, %p206
      %p208 = scmp.ne.s32.totalorder %s199, %s200
      %p209 = scmp.eq.s32.totalorder %s105, 0
      %p210 = por %p208, %p209
      %p211 = scmp.ne.s32.totalorder %s199, %s200
      %p212 = scmp.eq.s32.totalorder %s106, 1
      %p213 = por %p211, %p212
      %p215 = scmp.ne.s32.totalorder %s200, %s214
      %p216 = scmp.eq.s32.totalorder %s106, 0
      %p217 = por %p215, %p216
      %s219 = sadd.s32 %s218, 1
      %p222 = scmp.eq.s32.totalorder %s100, 1
      %p223 = scmp.ne.s32.totalorder %s218, %s220
      %p224 = scmp.eq.s32.totalorder %s100, 0
      %p225 = por %p223, %p224
      %p226 = scmp.ne.s32.totalorder %s218, %s220
      %p227 = scmp.eq.s32.totalorder %s105, 1
      %p228 = por %p226, %p227
      %p229 = scmp.ne.s32.totalorder %s220, %s221
      %p230 = scmp.eq.s32.totalorder %s105, 0
      %p231 = por %p229, %p230
      %p232 = scmp.ne.s32.totalorder %s220, %s221
      %p233 = scmp.eq.s32.totalorder %s106, 1
      %p234 = por %p232, %p233
      %p236 = scmp.ne.s32.totalorder %s221, %s235
      %p237 = scmp.eq.s32.totalorder %s106, 0
      %p238 = por %p236, %p237
      %s240 = sadd.s32 %s239, 1
      %p243 = scmp.eq.s32.totalorder %s100, 1
      %p244 = scmp.ne.s32.totalorder %s239, %s241
      %p245 = scmp.eq.s32.totalorder %s100, 0
      %p246 = por %p244, %p245
      %p247 = scmp.ne.s32.totalorder %s239, %s241
      %p248 = scmp.eq.s32.totalorder %s105, 1
      %p249 = por %p247, %p248
      %p250 = scmp.ne.s32.totalorder %s241, %s242
      %p251 = scmp.eq.s32.totalorder %s105, 0
      %p252 = por %p250, %p251
      %p253 = scmp.ne.s32.totalorder %s241, %s242
      %p254 = scmp.eq.s32.totalorder %s106, 1
      %p255 = por %p253, %p254
      %p257 = scmp.ne.s32.totalorder %s242, %s256
      %p258 = scmp.eq.s32.totalorder %s106, 0
      %p259 = por %p257, %p258
      %s261 = sadd.s32 %s260, 1
      %p264 = scmp.eq.s32.totalorder %s100, 1
      %p265 = scmp.ne.s32.totalorder %s260, %s262
      %p266 = scmp.eq.s32.totalorder %s100, 0
      %p267 = por %p265, %p266
      %p268 = scmp.ne.s32.totalorder %s260, %s262
      %p269 = scmp.eq.s32.totalorder %s105, 1
      %p270 = por %p268, %p269
      %p271 = scmp.ne.s32.totalorder %s262, %s263
      %p272 = scmp.eq.s32.totalorder %s105, 0
      %p273 = por %p271, %p272
      %p274 = scmp.ne.s32.totalorder %s262, %s263
      %p275 = scmp.eq.s32.totalorder %s106, 1
      %p276 = por %p274, %p275
      %p278 = scmp.ne.s32.totalorder %s263, %s277
      %p279 = scmp.eq.s32.totalorder %s106, 0
      %p280 = por %p278, %p279
      %s282 = sadd.s32 %s281, 1
      %p285 = scmp.eq.s32.totalorder %s100, 1
      %p286 = scmp.ne.s32.totalorder %s281, %s283
      %p287 = scmp.eq.s32.totalorder %s100, 0
      %p288 = por %p286, %p287
      %p289 = scmp.ne.s32.totalorder %s281, %s283
      %p290 = scmp.eq.s32.totalorder %s105, 1
      %p291 = por %p289, %p290
      %p292 = scmp.ne.s32.totalorder %s283, %s284
      %p293 = scmp.eq.s32.totalorder %s105, 0
      %p294 = por %p292, %p293
      %p295 = scmp.ne.s32.totalorder %s283, %s284
      %p296 = scmp.eq.s32.totalorder %s106, 1
      %p297 = por %p295, %p296
      %p299 = scmp.ne.s32.totalorder %s284, %s298
      %p300 = scmp.eq.s32.totalorder %s106, 0
      %p301 = por %p299, %p300
      %s303 = sadd.s32 %s302, 1
      %p306 = scmp.eq.s32.totalorder %s100, 1
      %p307 = scmp.ne.s32.totalorder %s302, %s304
      %p308 = scmp.eq.s32.totalorder %s100, 0
      %p309 = por %p307, %p308
      %p310 = scmp.ne.s32.totalorder %s302, %s304
      %p311 = scmp.eq.s32.totalorder %s105, 1
      %p312 = por %p310, %p311
      %p313 = scmp.ne.s32.totalorder %s304, %s305
      %p314 = scmp.eq.s32.totalorder %s105, 0
      %p315 = por %p313, %p314
      %p316 = scmp.ne.s32.totalorder %s304, %s305
      %p317 = scmp.eq.s32.totalorder %s106, 1
      %p318 = por %p316, %p317
      %p320 = scmp.ne.s32.totalorder %s305, %s319
      %p321 = scmp.eq.s32.totalorder %s106, 0
      %p322 = por %p320, %p321
      %s324 = sadd.s32 %s323, 1
      %p327 = scmp.eq.s32.totalorder %s100, 1
      %p328 = scmp.ne.s32.totalorder %s323, %s325
      %p329 = scmp.eq.s32.totalorder %s100, 0
      %p330 = por %p328, %p329
      %p331 = scmp.ne.s32.totalorder %s323, %s325
      %p332 = scmp.eq.s32.totalorder %s105, 1
      %p333 = por %p331, %p332
      %p334 = scmp.ne.s32.totalorder %s325, %s326
      %p335 = scmp.eq.s32.totalorder %s105, 0
      %p336 = por %p334, %p335
      %p337 = scmp.ne.s32.totalorder %s325, %s326
      %p338 = scmp.eq.s32.totalorder %s106, 1
      %p339 = por %p337, %p338
      %p341 = scmp.ne.s32.totalorder %s326, %s340
      %p342 = scmp.eq.s32.totalorder %s106, 0
      %p343 = por %p341, %p342
      %s345 = sadd.s32 %s344, 1
      %p348 = scmp.eq.s32.totalorder %s100, 1
      %p349 = scmp.ne.s32.totalorder %s344, %s346
      %p350 = scmp.eq.s32.totalorder %s100, 0
      %p351 = por %p349, %p350
      %p352 = scmp.ne.s32.totalorder %s344, %s346
      %p353 = scmp.eq.s32.totalorder %s105, 1
      %p354 = por %p352, %p353
      %p355 = scmp.ne.s32.totalorder %s346, %s347
      %p356 = scmp.eq.s32.totalorder %s105, 0
      %p357 = por %p355, %p356
      %p358 = scmp.ne.s32.totalorder %s346, %s347
      %p359 = scmp.eq.s32.totalorder %s106, 1
      %p360 = por %p358, %p359
      %p362 = scmp.ne.s32.totalorder %s347, %s361
      %p363 = scmp.eq.s32.totalorder %s106, 0
      %p364 = por %p362, %p363
      %s366 = sadd.s32 %s365, 1
      %p369 = scmp.eq.s32.totalorder %s100, 1
      %p370 = scmp.ne.s32.totalorder %s365, %s367
      %p371 = scmp.eq.s32.totalorder %s100, 0
      %p372 = por %p370, %p371
      %p373 = scmp.ne.s32.totalorder %s365, %s367
      %p374 = scmp.eq.s32.totalorder %s105, 1
      %p375 = por %p373, %p374
      %p376 = scmp.ne.s32.totalorder %s367, %s368
      %p377 = scmp.eq.s32.totalorder %s105, 0
      %p378 = por %p376, %p377
      %p379 = scmp.ne.s32.totalorder %s367, %s368
      %p380 = scmp.eq.s32.totalorder %s106, 1
      %p381 = por %p379, %p380
      %p383 = scmp.ne.s32.totalorder %s368, %s382
      %p384 = scmp.eq.s32.totalorder %s106, 0
      %p385 = por %p383, %p384
      %s387 = sadd.s32 %s386, 1
      %p390 = scmp.eq.s32.totalorder %s100, 1
      %p391 = scmp.ne.s32.totalorder %s386, %s388
      %p392 = scmp.eq.s32.totalorder %s100, 0
      %p393 = por %p391, %p392
      %p394 = scmp.ne.s32.totalorder %s386, %s388
      %p395 = scmp.eq.s32.totalorder %s105, 1
      %p396 = por %p394, %p395
      %p397 = scmp.ne.s32.totalorder %s388, %s389
      %p398 = scmp.eq.s32.totalorder %s105, 0
      %p399 = por %p397, %p398
      %p400 = scmp.ne.s32.totalorder %s388, %s389
      %p401 = scmp.eq.s32.totalorder %s106, 1
      %p402 = por %p400, %p401
      %p404 = scmp.ne.s32.totalorder %s389, %s403
      %p405 = scmp.eq.s32.totalorder %s106, 0
      %p406 = por %p404, %p405
      %s408 = sadd.s32 %s407, 1
      %p411 = scmp.eq.s32.totalorder %s100, 1
      %p412 = scmp.ne.s32.totalorder %s407, %s409
      %p413 = scmp.eq.s32.totalorder %s100, 0
      %p414 = por %p412, %p413
      %p415 = scmp.ne.s32.totalorder %s407, %s409
      %p416 = scmp.eq.s32.totalorder %s105, 1
      %p417 = por %p415, %p416
      %p418 = scmp.ne.s32.totalorder %s409, %s410
      %p419 = scmp.eq.s32.totalorder %s105, 0
      %p420 = por %p418, %p419
      %p421 = scmp.ne.s32.totalorder %s409, %s410
      %p422 = scmp.eq.s32.totalorder %s106, 1
      %p423 = por %p421, %p422
      %p425 = scmp.ne.s32.totalorder %s410, %s424
      %p426 = scmp.eq.s32.totalorder %s106, 0
      %p427 = por %p425, %p426
      %s429 = sadd.s32 %s428, 1
      %p432 = scmp.eq.s32.totalorder %s100, 1
      %p433 = scmp.ne.s32.totalorder %s428, %s430
      %p434 = scmp.eq.s32.totalorder %s100, 0
      %p435 = por %p433, %p434
      %p436 = scmp.ne.s32.totalorder %s428, %s430
      %p437 = scmp.eq.s32.totalorder %s105, 1
      %p438 = por %p436, %p437
      %p439 = scmp.ne.s32.totalorder %s430, %s431
      %p440 = scmp.eq.s32.totalorder %s105, 0
      %p441 = por %p439, %p440
      %p442 = scmp.ne.s32.totalorder %s430, %s431
      %p443 = scmp.eq.s32.totalorder %s106, 1
      %p444 = por %p442, %p443
      %p446 = scmp.ne.s32.totalorder %s431, %s445
      %p447 = scmp.eq.s32.totalorder %s106, 0
      %p448 = por %p446, %p447
      %s450 = sadd.s32 %s449, 1
      %p453 = scmp.eq.s32.totalorder %s100, 1
      %p454 = scmp.ne.s32.totalorder %s449, %s451
      %p455 = scmp.eq.s32.totalorder %s100, 0
      %p456 = por %p454, %p455
      %p457 = scmp.ne.s32.totalorder %s449, %s451
      %p458 = scmp.eq.s32.totalorder %s105, 1
      %p459 = por %p457, %p458
      %p460 = scmp.ne.s32.totalorder %s451, %s452
      %p461 = scmp.eq.s32.totalorder %s105, 0
      %p462 = por %p460, %p461
      %p463 = scmp.ne.s32.totalorder %s451, %s452
      %p464 = scmp.eq.s32.totalorder %s106, 1
      %p465 = por %p463, %p464
      %p467 = scmp.ne.s32.totalorder %s452, %s466
      %p468 = scmp.eq.s32.totalorder %s106, 0
      %p469 = por %p467, %p468
      %s471 = sadd.s32 %s470, 1
      %p474 = scmp.eq.s32.totalorder %s100, 1
      %p475 = scmp.ne.s32.totalorder %s470, %s472
      %p476 = scmp.eq.s32.totalorder %s100, 0
      %p477 = por %p475, %p476
      %p478 = scmp.ne.s32.totalorder %s470, %s472
      %p479 = scmp.eq.s32.totalorder %s105, 1
      %p480 = por %p478, %p479
      %p481 = scmp.ne.s32.totalorder %s472, %s473
      %p482 = scmp.eq.s32.totalorder %s105, 0
      %p483 = por %p481, %p482
      %p484 = scmp.ne.s32.totalorder %s472, %s473
      %p485 = scmp.eq.s32.totalorder %s106, 1
      %p486 = por %p484, %p485
      %p488 = scmp.ne.s32.totalorder %s473, %s487
      %p489 = scmp.eq.s32.totalorder %s106, 0
      %p490 = por %p488, %p489
      %s492 = sadd.s32 %s491, 1
      %p495 = scmp.eq.s32.totalorder %s100, 1
      %p496 = scmp.ne.s32.totalorder %s491, %s493
      %p497 = scmp.eq.s32.totalorder %s100, 0
      %p498 = por %p496, %p497
      %p499 = scmp.ne.s32.totalorder %s491, %s493
      %p500 = scmp.eq.s32.totalorder %s105, 1
      %p501 = por %p499, %p500
      %p502 = scmp.ne.s32.totalorder %s493, %s494
      %p503 = scmp.eq.s32.totalorder %s105, 0
      %p504 = por %p502, %p503
      %p505 = scmp.ne.s32.totalorder %s493, %s494
      %p506 = scmp.eq.s32.totalorder %s106, 1
      %p507 = por %p505, %p506
      %p509 = scmp.ne.s32.totalorder %s494, %s508
      %p510 = scmp.eq.s32.totalorder %s106, 0
      %p511 = por %p509, %p510
      %s513 = sadd.s32 %s512, 1
      %p516 = scmp.eq.s32.totalorder %s100, 1
      %p517 = scmp.ne.s32.totalorder %s512, %s514
      %p518 = scmp.eq.s32.totalorder %s100, 0
      %p519 = por %p517, %p518
      %p520 = scmp.ne.s32.totalorder %s512, %s514
      %p521 = scmp.eq.s32.totalorder %s105, 1
      %p522 = por %p520, %p521
      %p523 = scmp.ne.s32.totalorder %s514, %s515
      %p524 = scmp.eq.s32.totalorder %s105, 0
      %p525 = por %p523, %p524
      %p526 = scmp.ne.s32.totalorder %s514, %s515
      %p527 = scmp.eq.s32.totalorder %s106, 1
      %p528 = por %p526, %p527
      %p530 = scmp.ne.s32.totalorder %s515, %s529
      %p531 = scmp.eq.s32.totalorder %s106, 0
      %p532 = por %p530, %p531
      %s534 = sadd.s32 %s533, 1
      %p537 = scmp.eq.s32.totalorder %s100, 1
      %p538 = scmp.ne.s32.totalorder %s533, %s535
      %p539 = scmp.eq.s32.totalorder %s100, 0
      %p540 = por %p538, %p539
      %p541 = scmp.ne.s32.totalorder %s533, %s535
      %p542 = scmp.eq.s32.totalorder %s105, 1
      %p543 = por %p541, %p542
      %p544 = scmp.ne.s32.totalorder %s535, %s536
      %p545 = scmp.eq.s32.totalorder %s105, 0
      %p546 = por %p544, %p545
      %p547 = scmp.ne.s32.totalorder %s535, %s536
      %p548 = scmp.eq.s32.totalorder %s106, 1
      %p549 = por %p547, %p548
      %p551 = scmp.ne.s32.totalorder %s536, %s550
      %p552 = scmp.eq.s32.totalorder %s106, 0
      %p553 = por %p551, %p552
      %s555 = sadd.s32 %s554, 1
      %p558 = scmp.eq.s32.totalorder %s100, 1
      %p559 = scmp.ne.s32.totalorder %s554, %s556
      %p560 = scmp.eq.s32.totalorder %s100, 0
      %p561 = por %p559, %p560
      %p562 = scmp.ne.s32.totalorder %s554, %s556
      %p563 = scmp.eq.s32.totalorder %s105, 1
      %p564 = por %p562, %p563
      %p565 = scmp.ne.s32.totalorder %s556, %s557
      %p566 = scmp.eq.s32.totalorder %s105, 0
      %p567 = por %p565, %p566
      %p568 = scmp.ne.s32.totalorder %s556, %s557
      %p569 = scmp.eq.s32.totalorder %s106, 1
      %p570 = por %p568, %p569
      %p572 = scmp.ne.s32.totalorder %s557, %s571
      %p573 = scmp.eq.s32.totalorder %s106, 0
      %p574 = por %p572, %p573
      %s576 = sadd.s32 %s575, 1
      %p579 = scmp.eq.s32.totalorder %s100, 1
      %p580 = scmp.ne.s32.totalorder %s575, %s577
      %p581 = scmp.eq.s32.totalorder %s100, 0
      %p582 = por %p580, %p581
      %p583 = scmp.ne.s32.totalorder %s575, %s577
      %p584 = scmp.eq.s32.totalorder %s105, 1
      %p585 = por %p583, %p584
      %p586 = scmp.ne.s32.totalorder %s577, %s578
      %p587 = scmp.eq.s32.totalorder %s105, 0
      %p588 = por %p586, %p587
      %p589 = scmp.ne.s32.totalorder %s577, %s578
      %p590 = scmp.eq.s32.totalorder %s106, 1
      %p591 = por %p589, %p590
      %p593 = scmp.ne.s32.totalorder %s578, %s592
      %p594 = scmp.eq.s32.totalorder %s106, 0
      %p595 = por %p593, %p594
      %s597 = sadd.s32 %s596, 1
      %p600 = scmp.eq.s32.totalorder %s100, 1
      %p601 = scmp.ne.s32.totalorder %s596, %s598
      %p602 = scmp.eq.s32.totalorder %s100, 0
      %p603 = por %p601, %p602
      %p604 = scmp.ne.s32.totalorder %s596, %s598
      %p605 = scmp.eq.s32.totalorder %s105, 1
      %p606 = por %p604, %p605
      %p607 = scmp.ne.s32.totalorder %s598, %s599
      %p608 = scmp.eq.s32.totalorder %s105, 0
      %p609 = por %p607, %p608
      %p610 = scmp.ne.s32.totalorder %s598, %s599
      %p611 = scmp.eq.s32.totalorder %s106, 1
      %p612 = por %p610, %p611
      %p614 = scmp.ne.s32.totalorder %s599, %s613
      %p615 = scmp.eq.s32.totalorder %s106, 0
      %p616 = por %p614, %p615
      %s618 = sadd.s32 %s617, 1
      %p621 = scmp.eq.s32.totalorder %s100, 1
      %p622 = scmp.ne.s32.totalorder %s617, %s619
      %p623 = scmp.eq.s32.totalorder %s100, 0
      %p624 = por %p622, %p623
      %p625 = scmp.ne.s32.totalorder %s617, %s619
      %p626 = scmp.eq.s32.totalorder %s105, 1
      %p627 = por %p625, %p626
      %p628 = scmp.ne.s32.totalorder %s619, %s620
      %p629 = scmp.eq.s32.totalorder %s105, 0
      %p630 = por %p628, %p629
      %p631 = scmp.ne.s32.totalorder %s619, %s620
      %p632 = scmp.eq.s32.totalorder %s106, 1
      %p633 = por %p631, %p632
      %p635 = scmp.ne.s32.totalorder %s620, %s634
      %p636 = scmp.eq.s32.totalorder %s106, 0
      %p637 = por %p635, %p636
      %s639 = sadd.s32 %s638, 1
      %p642 = scmp.eq.s32.totalorder %s100, 1
      %p643 = scmp.ne.s32.totalorder %s638, %s640
      %p644 = scmp.eq.s32.totalorder %s100, 0
      %p645 = por %p643, %p644
      %p646 = scmp.ne.s32.totalorder %s638, %s640
      %p647 = scmp.eq.s32.totalorder %s105, 1
      %p648 = por %p646, %p647
      %p649 = scmp.ne.s32.totalorder %s640, %s641
      %p650 = scmp.eq.s32.totalorder %s105, 0
      %p651 = por %p649, %p650
      %p652 = scmp.ne.s32.totalorder %s640, %s641
      %p653 = scmp.eq.s32.totalorder %s106, 1
      %p654 = por %p652, %p653
      %p656 = scmp.ne.s32.totalorder %s641, %s655
      %p657 = scmp.eq.s32.totalorder %s106, 0
      %p658 = por %p656, %p657
      %s660 = sadd.s32 %s659, 1
      %p663 = scmp.eq.s32.totalorder %s100, 1
      %p664 = scmp.ne.s32.totalorder %s659, %s661
      %p665 = scmp.eq.s32.totalorder %s100, 0
      %p666 = por %p664, %p665
      %p667 = scmp.ne.s32.totalorder %s659, %s661
      %p668 = scmp.eq.s32.totalorder %s105, 1
      %p669 = por %p667, %p668
      %p670 = scmp.ne.s32.totalorder %s661, %s662
      %p671 = scmp.eq.s32.totalorder %s105, 0
      %p672 = por %p670, %p671
      %p673 = scmp.ne.s32.totalorder %s661, %s662
      %p674 = scmp.eq.s32.totalorder %s106, 1
      %p675 = por %p673, %p674
      %p677 = scmp.ne.s32.totalorder %s662, %s676
      %p678 = scmp.eq.s32.totalorder %s106, 0
      %p679 = por %p677, %p678
      %s681 = sadd.s32 %s680, 1
      %p684 = scmp.eq.s32.totalorder %s100, 1
      %p685 = scmp.ne.s32.totalorder %s680, %s682
      %p686 = scmp.eq.s32.totalorder %s100, 0
      %p687 = por %p685, %p686
      %p688 = scmp.ne.s32.totalorder %s680, %s682
      %p689 = scmp.eq.s32.totalorder %s105, 1
      %p690 = por %p688, %p689
      %p691 = scmp.ne.s32.totalorder %s682, %s683
      %p692 = scmp.eq.s32.totalorder %s105, 0
      %p693 = por %p691, %p692
      %p694 = scmp.ne.s32.totalorder %s682, %s683
      %p695 = scmp.eq.s32.totalorder %s106, 1
      %p696 = por %p694, %p695
      %p698 = scmp.ne.s32.totalorder %s683, %s697
      %p699 = scmp.eq.s32.totalorder %s106, 0
      %p700 = por %p698, %p699
      %s702 = sadd.s32 %s701, 1
      %p705 = scmp.eq.s32.totalorder %s100, 1
      %p706 = scmp.ne.s32.totalorder %s701, %s703
      %p707 = scmp.eq.s32.totalorder %s100, 0
      %p708 = por %p706, %p707
      %p709 = scmp.ne.s32.totalorder %s701, %s703
      %p710 = scmp.eq.s32.totalorder %s105, 1
      %p711 = por %p709, %p710
      %p712 = scmp.ne.s32.totalorder %s703, %s704
      %p713 = scmp.eq.s32.totalorder %s105, 0
      %p714 = por %p712, %p713
      %p715 = scmp.ne.s32.totalorder %s703, %s704
      %p716 = scmp.eq.s32.totalorder %s106, 1
      %p717 = por %p715, %p716
      %p719 = scmp.ne.s32.totalorder %s704, %s718
      %p720 = scmp.eq.s32.totalorder %s106, 0
      %p721 = por %p719, %p720
      %s723 = sadd.s32 %s722, 1
      %p726 = scmp.eq.s32.totalorder %s100, 1
      %p727 = scmp.ne.s32.totalorder %s722, %s724
      %p728 = scmp.eq.s32.totalorder %s100, 0
      %p729 = por %p727, %p728
      %p730 = scmp.ne.s32.totalorder %s722, %s724
      %p731 = scmp.eq.s32.totalorder %s105, 1
      %p732 = por %p730, %p731
      %p733 = scmp.ne.s32.totalorder %s724, %s725
      %p734 = scmp.eq.s32.totalorder %s105, 0
      %p735 = por %p733, %p734
      %p736 = scmp.ne.s32.totalorder %s724, %s725
      %p737 = scmp.eq.s32.totalorder %s106, 1
      %p738 = por %p736, %p737
      %p740 = scmp.ne.s32.totalorder %s725, %s739
      %p741 = scmp.eq.s32.totalorder %s106, 0
      %p742 = por %p740, %p741
      %s744 = sadd.s32 %s743, 1
      %p747 = scmp.eq.s32.totalorder %s100, 1
      %p748 = scmp.ne.s32.totalorder %s743, %s745
      %p749 = scmp.eq.s32.totalorder %s100, 0
      %p750 = por %p748, %p749
      %p751 = scmp.ne.s32.totalorder %s743, %s745
      %p752 = scmp.eq.s32.totalorder %s105, 1
      %p753 = por %p751, %p752
      %p754 = scmp.ne.s32.totalorder %s745, %s746
      %p755 = scmp.eq.s32.totalorder %s105, 0
      %p756 = por %p754, %p755
      %p757 = scmp.ne.s32.totalorder %s745, %s746
      %p758 = scmp.eq.s32.totalorder %s106, 1
      %p759 = por %p757, %p758
      %p761 = scmp.ne.s32.totalorder %s746, %s760
      %p762 = scmp.eq.s32.totalorder %s106, 0
      %p763 = por %p761, %p762
      %s765 = sadd.s32 %s764, 1
      %p768 = scmp.eq.s32.totalorder %s100, 1
      %p769 = scmp.ne.s32.totalorder %s764, %s766
      %p770 = scmp.eq.s32.totalorder %s100, 0
      %p771 = por %p769, %p770
      %p772 = scmp.ne.s32.totalorder %s764, %s766
      %p773 = scmp.eq.s32.totalorder %s105, 1
      %p774 = por %p772, %p773
      %p775 = scmp.ne.s32.totalorder %s766, %s767
      %p776 = scmp.eq.s32.totalorder %s105, 0
      %p777 = por %p775, %p776
      %p778 = scmp.ne.s32.totalorder %s766, %s767
      %p779 = scmp.eq.s32.totalorder %s106, 1
      %p780 = por %p778, %p779
      %p782 = scmp.ne.s32.totalorder %s767, %s781
      %p783 = scmp.eq.s32.totalorder %s106, 0
      %p784 = por %p782, %p783
      %s786 = sadd.s32 %s785, 1
      %p789 = scmp.eq.s32.totalorder %s100, 1
      %p790 = scmp.ne.s32.totalorder %s785, %s787
      %p791 = scmp.eq.s32.totalorder %s100, 0
      %p792 = por %p790, %p791
      %p793 = scmp.ne.s32.totalorder %s785, %s787
      %p794 = scmp.eq.s32.totalorder %s105, 1
      %p795 = por %p793, %p794
      %p796 = scmp.ne.s32.totalorder %s787, %s788
      %p797 = scmp.eq.s32.totalorder %s105, 0
      %p798 = por %p796, %p797
      %p799 = scmp.ne.s32.totalorder %s787, %s788
      %p800 = scmp.eq.s32.totalorder %s106, 1
      %p801 = por %p799, %p800
      %p803 = scmp.ne.s32.totalorder %s788, %s802
      %p804 = scmp.eq.s32.totalorder %s106, 0
      %p805 = por %p803, %p804
      %s807 = sadd.s32 %s806, 1
      %p810 = scmp.eq.s32.totalorder %s100, 1
      %p811 = scmp.ne.s32.totalorder %s806, %s808
      %p812 = scmp.eq.s32.totalorder %s100, 0
      %p813 = por %p811, %p812
      %p814 = scmp.ne.s32.totalorder %s806, %s808
      %p815 = scmp.eq.s32.totalorder %s105, 1
      %p816 = por %p814, %p815
      %p817 = scmp.ne.s32.totalorder %s808, %s809
      %p818 = scmp.eq.s32.totalorder %s105, 0
      %p819 = por %p817, %p818
      %p820 = scmp.ne.s32.totalorder %s808, %s809
      %p821 = scmp.eq.s32.totalorder %s106, 1
      %p822 = por %p820, %p821
      %p824 = scmp.ne.s32.totalorder %s809, %s823
      %p825 = scmp.eq.s32.totalorder %s106, 0
      %p826 = por %p824, %p825
      %s828 = sadd.s32 %s827, 1
      %p831 = scmp.eq.s32.totalorder %s100, 1
      %p832 = scmp.ne.s32.totalorder %s827, %s829
      %p833 = scmp.eq.s32.totalorder %s100, 0
      %p834 = por %p832, %p833
      %p835 = scmp.ne.s32.totalorder %s827, %s829
      %p836 = scmp.eq.s32.totalorder %s105, 1
      %p837 = por %p835, %p836
      %p838 = scmp.ne.s32.totalorder %s829, %s830
      %p839 = scmp.eq.s32.totalorder %s105, 0
      %p840 = por %p838, %p839
      %p841 = scmp.ne.s32.totalorder %s829, %s830
      %p842 = scmp.eq.s32.totalorder %s106, 1
      %p843 = por %p841, %p842
      %p845 = scmp.ne.s32.totalorder %s830, %s844
      %p846 = scmp.eq.s32.totalorder %s106, 0
      %p847 = por %p845, %p846
      %s849 = sadd.s32 %s848, 1
      %p852 = scmp.eq.s32.totalorder %s100, 1
      %p853 = scmp.ne.s32.totalorder %s848, %s850
      %p854 = scmp.eq.s32.totalorder %s100, 0
      %p855 = por %p853, %p854
      %p856 = scmp.ne.s32.totalorder %s848, %s850
      %p857 = scmp.eq.s32.totalorder %s105, 1
      %p858 = por %p856, %p857
      %p859 = scmp.ne.s32.totalorder %s850, %s851
      %p860 = scmp.eq.s32.totalorder %s105, 0
      %p861 = por %p859, %p860
      %p862 = scmp.ne.s32.totalorder %s850, %s851
      %p863 = scmp.eq.s32.totalorder %s106, 1
      %p864 = por %p862, %p863
      %p866 = scmp.ne.s32.totalorder %s851, %s865
      %p867 = scmp.eq.s32.totalorder %s106, 0
      %p868 = por %p866, %p867
      %s869 = ssub.s32 %s100, %s107
      %p870 = scmp.eq.s32.totalorder %s869, 0
      %s872 = sadd.s32 %s871, 1
      %s873 = scalar_select %p870, %s871, %s872
      %p876 = pneg %p870
      %p877 = scmp.eq.s32.totalorder %s100, 1
      %p878 = por %p876, %p877
      %p879 = scmp.ne.s32.totalorder %s871, %s874
      %p880 = scmp.eq.s32.totalorder %s100, 0
      %p881 = por %p879, %p880
      %p882 = scmp.ne.s32.totalorder %s871, %s874
      %p883 = scmp.eq.s32.totalorder %s105, 1
      %p884 = por %p882, %p883
      %p885 = scmp.ne.s32.totalorder %s874, %s875
      %p886 = scmp.eq.s32.totalorder %s105, 0
      %p887 = por %p885, %p886
      %p888 = scmp.ne.s32.totalorder %s874, %s875
      %p889 = scmp.eq.s32.totalorder %s106, 1
      %p890 = por %p888, %p889
      %p892 = scmp.ne.s32.totalorder %s875, %s891
      %p893 = scmp.eq.s32.totalorder %s106, 0
      %p894 = por %p892, %p893
      %s895 = ssub.s32 %s100, %s107
      %p896 = scmp.eq.s32.totalorder %s895, 0
      %s898 = sadd.s32 %s897, 1
      %s899 = scalar_select %p896, %s897, %s898
      %p902 = pneg %p896
      %p903 = scmp.eq.s32.totalorder %s100, 1
      %p904 = por %p902, %p903
      %p905 = scmp.ne.s32.totalorder %s897, %s900
      %p906 = scmp.eq.s32.totalorder %s100, 0
      %p907 = por %p905, %p906
      %p908 = scmp.ne.s32.totalorder %s897, %s900
      %p909 = scmp.eq.s32.totalorder %s105, 1
      %p910 = por %p908, %p909
      %p911 = scmp.ne.s32.totalorder %s900, %s901
      %p912 = scmp.eq.s32.totalorder %s105, 0
      %p913 = por %p911, %p912
      %p914 = scmp.ne.s32.totalorder %s900, %s901
      %p915 = scmp.eq.s32.totalorder %s106, 1
      %p916 = por %p914, %p915
      %p918 = scmp.ne.s32.totalorder %s901, %s917
      %p919 = scmp.eq.s32.totalorder %s106, 0
      %p920 = por %p918, %p919
      %p921 = scmp.le.s32.totalorder 1, %s100
      %p922 = scmp.lt.s32.totalorder %s100, 3
      %p923 = pnand %p921, %p922
      %p924 = pneg %p923
      // Predicated region
      $region9: #{attentive_swap_net_forward.1} parent=5 // pred_check
        _
      $region10: #{attentive_swap_net_forward.1} parent=5 // pred_check_branch
        %926 = sbr.rel (%p923) target = $region12
      $region11: #{attentive_swap_net_forward.1} parent=5 // pred_region
        %s927 = ssub.s32 %s100, 1
        // Predicated region
        $region13: #{attentive_swap_net_forward.1} parent=11 // pred_check
          %p928 = pneg %p147
        $region14: #{attentive_swap_net_forward.1} parent=11 // pred_check_branch
          %930 = sbr.rel (%p928) target = $region16
        $region15: #{attentive_swap_net_forward.1} parent=11 // pred_region
          _
        $region16: #{attentive_swap_net_forward.1} parent=11 // pred_fallthru
          _
        // Predicated region
        $region17: #{attentive_swap_net_forward.1} parent=11 // pred_check
          %p931 = pneg %p168
        $region18: #{attentive_swap_net_forward.1} parent=11 // pred_check_branch
          %933 = sbr.rel (%p931) target = $region20
        $region19: #{attentive_swap_net_forward.1} parent=11 // pred_region
          _
        $region20: #{attentive_swap_net_forward.1} parent=11 // pred_fallthru
          _
        // Predicated region
        $region21: #{attentive_swap_net_forward.1} parent=11 // pred_check
          %p934 = pneg %p189
        $region22: #{attentive_swap_net_forward.1} parent=11 // pred_check_branch
          %936 = sbr.rel (%p934) target = $region24
        $region23: #{attentive_swap_net_forward.1} parent=11 // pred_region
          _
        $region24: #{attentive_swap_net_forward.1} parent=11 // pred_fallthru
          _
        // Predicated region
        $region25: #{attentive_swap_net_forward.1} parent=11 // pred_check
          %p937 = pneg %p210
        $region26: #{attentive_swap_net_forward.1} parent=11 // pred_check_branch
          %939 = sbr.rel (%p937) target = $region28
        $region27: #{attentive_swap_net_forward.1} parent=11 // pred_region
          %s941 = ssub.s32 512, 512
          %942 = vsyncadd [#allocation3], %s941
          %s943 = sshll.u32 [#allocation2], 4
          %s944 = int_to_ptr.vmem [resolvable:$true] %s943
          %949 = dma.hbm_to_vmem [thread:$0]  %s9, 512, %s944, [#allocation3], 64, 64, 4
        $region28: #{attentive_swap_net_forward.1} parent=11 // pred_fallthru
          _
        // Predicated region
        $region29: #{attentive_swap_net_forward.1} parent=11 // pred_check
          %p950 = pneg %p231
        $region30: #{attentive_swap_net_forward.1} parent=11 // pred_check_branch
          %952 = sbr.rel (%p950) target = $region32
        $region31: #{attentive_swap_net_forward.1} parent=11 // pred_region
          _
        $region32: #{attentive_swap_net_forward.1} parent=11 // pred_fallthru
          _
        // Predicated region
        $region33: #{attentive_swap_net_forward.1} parent=11 // pred_check
          %p953 = pneg %p252
        $region34: #{attentive_swap_net_forward.1} parent=11 // pred_check_branch
          %955 = sbr.rel (%p953) target = $region36
        $region35: #{attentive_swap_net_forward.1} parent=11 // pred_region
          _
        $region36: #{attentive_swap_net_forward.1} parent=11 // pred_fallthru
          _
        // Predicated region
        $region37: #{attentive_swap_net_forward.1} parent=11 // pred_check
          %p956 = pneg %p273
        $region38: #{attentive_swap_net_forward.1} parent=11 // pred_check_branch
          %958 = sbr.rel (%p956) target = $region40
        $region39: #{attentive_swap_net_forward.1} parent=11 // pred_region
          _
        $region40: #{attentive_swap_net_forward.1} parent=11 // pred_fallthru
          _
        // Predicated region
        $region41: #{attentive_swap_net_forward.1} parent=11 // pred_check
          %p959 = pneg %p294
        $region42: #{attentive_swap_net_forward.1} parent=11 // pred_check_branch
          %961 = sbr.rel (%p959) target = $region44
        $region43: #{attentive_swap_net_forward.1} parent=11 // pred_region
          %s963 = ssub.s32 1024, 1024
          %964 = vsyncadd [#allocation6], %s963
          %s965 = sshll.u32 [#allocation5], 4
          %s966 = int_to_ptr.vmem [resolvable:$true] %s965
          %971 = dma.hbm_to_vmem [thread:$0]  %s17, 1024, %s966, [#allocation6], 128, 128, 8
        $region44: #{attentive_swap_net_forward.1} parent=11 // pred_fallthru
          _
        // Predicated region
        $region45: #{attentive_swap_net_forward.1} parent=11 // pred_check
          %p972 = pneg %p315
        $region46: #{attentive_swap_net_forward.1} parent=11 // pred_check_branch
          %974 = sbr.rel (%p972) target = $region48
        $region47: #{attentive_swap_net_forward.1} parent=11 // pred_region
          _
        $region48: #{attentive_swap_net_forward.1} parent=11 // pred_fallthru
          _
        // Predicated region
        $region49: #{attentive_swap_net_forward.1} parent=11 // pred_check
          %p975 = pneg %p336
        $region50: #{attentive_swap_net_forward.1} parent=11 // pred_check_branch
          %977 = sbr.rel (%p975) target = $region52
        $region51: #{attentive_swap_net_forward.1} parent=11 // pred_region
          %s979 = ssub.s32 512, 512
          %980 = vsyncadd [#allocation6], %s979
          %s981 = sshll.u32 [#allocation7], 4
          %s982 = int_to_ptr.vmem [resolvable:$true] %s981
          %987 = dma.hbm_to_vmem [thread:$0]  %s21, 512, %s982, [#allocation6], 64, 64, 4
        $region52: #{attentive_swap_net_forward.1} parent=11 // pred_fallthru
          _
        // Predicated region
        $region53: #{attentive_swap_net_forward.1} parent=11 // pred_check
          %p988 = pneg %p357
        $region54: #{attentive_swap_net_forward.1} parent=11 // pred_check_branch
          %990 = sbr.rel (%p988) target = $region56
        $region55: #{attentive_swap_net_forward.1} parent=11 // pred_region
          %s992 = ssub.s32 16, 16
          %993 = vsyncadd [#allocation9], %s992
          %s995 = sshll.u32 [#allocation8], 4
          %s996 = int_to_ptr.vmem [resolvable:$true] %s995
          %998 = dma.hbm_to_vmem [thread:$0]  %s23, 16, %s996, [#allocation9]
        $region56: #{attentive_swap_net_forward.1} parent=11 // pred_fallthru
          _
        // Predicated region
        $region57: #{attentive_swap_net_forward.1} parent=11 // pred_check
          %p999 = pneg %p378
        $region58: #{attentive_swap_net_forward.1} parent=11 // pred_check_branch
          %1001 = sbr.rel (%p999) target = $region60
        $region59: #{attentive_swap_net_forward.1} parent=11 // pred_region
          %s1003 = ssub.s32 1024, 1024
          %1004 = vsyncadd [#allocation9], %s1003
          %s1005 = sshll.u32 [#allocation10], 4
          %s1006 = int_to_ptr.vmem [resolvable:$true] %s1005
          %1011 = dma.hbm_to_vmem [thread:$0]  %s25, 1024, %s1006, [#allocation9], 128, 128, 8
        $region60: #{attentive_swap_net_forward.1} parent=11 // pred_fallthru
          _
        // Predicated region
        $region61: #{attentive_swap_net_forward.1} parent=11 // pred_check
          %p1012 = pneg %p399
        $region62: #{attentive_swap_net_forward.1} parent=11 // pred_check_branch
          %1014 = sbr.rel (%p1012) target = $region64
        $region63: #{attentive_swap_net_forward.1} parent=11 // pred_region
          _
        $region64: #{attentive_swap_net_forward.1} parent=11 // pred_fallthru
          _
        // Predicated region
        $region65: #{attentive_swap_net_forward.1} parent=11 // pred_check
          %p1015 = pneg %p420
        $region66: #{attentive_swap_net_forward.1} parent=11 // pred_check_branch
          %1017 = sbr.rel (%p1015) target = $region68
        $region67: #{attentive_swap_net_forward.1} parent=11 // pred_region
          %s1019 = ssub.s32 512, 512
          %1020 = vsyncadd [#allocation12], %s1019
          %s1021 = sshll.u32 [#allocation11], 4
          %s1022 = int_to_ptr.vmem [resolvable:$true] %s1021
          %1027 = dma.hbm_to_vmem [thread:$0]  %s29, 512, %s1022, [#allocation12], 64, 64, 4
        $region68: #{attentive_swap_net_forward.1} parent=11 // pred_fallthru
          _
        // Predicated region
        $region69: #{attentive_swap_net_forward.1} parent=11 // pred_check
          %p1028 = pneg %p441
        $region70: #{attentive_swap_net_forward.1} parent=11 // pred_check_branch
          %1030 = sbr.rel (%p1028) target = $region72
        $region71: #{attentive_swap_net_forward.1} parent=11 // pred_region
          %s1032 = ssub.s32 16, 16
          %1033 = vsyncadd [#allocation12], %s1032
          %s1035 = sshll.u32 [#allocation13], 4
          %s1036 = int_to_ptr.vmem [resolvable:$true] %s1035
          %1038 = dma.hbm_to_vmem [thread:$0]  %s31, 16, %s1036, [#allocation12]
        $region72: #{attentive_swap_net_forward.1} parent=11 // pred_fallthru
          _
        // Predicated region
        $region73: #{attentive_swap_net_forward.1} parent=11 // pred_check
          %p1039 = pneg %p462
        $region74: #{attentive_swap_net_forward.1} parent=11 // pred_check_branch
          %1041 = sbr.rel (%p1039) target = $region76
        $region75: #{attentive_swap_net_forward.1} parent=11 // pred_region
          %s1043 = ssub.s32 512, 512
          %1044 = vsyncadd [#allocation15], %s1043
          %s1045 = sshll.u32 [#allocation14], 4
          %s1046 = int_to_ptr.vmem [resolvable:$true] %s1045
          %1051 = dma.hbm_to_vmem [thread:$0]  %s33, 512, %s1046, [#allocation15], 64, 64, 4
        $region76: #{attentive_swap_net_forward.1} parent=11 // pred_fallthru
          _
        // Predicated region
        $region77: #{attentive_swap_net_forward.1} parent=11 // pred_check
          %p1052 = pneg %p483
        $region78: #{attentive_swap_net_forward.1} parent=11 // pred_check_branch
          %1054 = sbr.rel (%p1052) target = $region80
        $region79: #{attentive_swap_net_forward.1} parent=11 // pred_region
          %s1056 = ssub.s32 16, 16
          %1057 = vsyncadd [#allocation15], %s1056
          %s1059 = sshll.u32 [#allocation16], 4
          %s1060 = int_to_ptr.vmem [resolvable:$true] %s1059
          %1062 = dma.hbm_to_vmem [thread:$0]  %s35, 16, %s1060, [#allocation15]
        $region80: #{attentive_swap_net_forward.1} parent=11 // pred_fallthru
          _
        // Predicated region
        $region81: #{attentive_swap_net_forward.1} parent=11 // pred_check
          %p1063 = pneg %p504
        $region82: #{attentive_swap_net_forward.1} parent=11 // pred_check_branch
          %1065 = sbr.rel (%p1063) target = $region84
        $region83: #{attentive_swap_net_forward.1} parent=11 // pred_region
          %s1067 = ssub.s32 512, 512
          %1068 = vsyncadd [#allocation18], %s1067
          %s1069 = sshll.u32 [#allocation17], 4
          %s1070 = int_to_ptr.vmem [resolvable:$true] %s1069
          %1075 = dma.hbm_to_vmem [thread:$0]  %s37, 512, %s1070, [#allocation18], 64, 64, 4
        $region84: #{attentive_swap_net_forward.1} parent=11 // pred_fallthru
          _
        // Predicated region
        $region85: #{attentive_swap_net_forward.1} parent=11 // pred_check
          %p1076 = pneg %p525
        $region86: #{attentive_swap_net_forward.1} parent=11 // pred_check_branch
          %1078 = sbr.rel (%p1076) target = $region88
        $region87: #{attentive_swap_net_forward.1} parent=11 // pred_region
          %s1080 = ssub.s32 16, 16
          %1081 = vsyncadd [#allocation18], %s1080
          %s1083 = sshll.u32 [#allocation19], 4
          %s1084 = int_to_ptr.vmem [resolvable:$true] %s1083
          %1086 = dma.hbm_to_vmem [thread:$0]  %s39, 16, %s1084, [#allocation18]
        $region88: #{attentive_swap_net_forward.1} parent=11 // pred_fallthru
          _
        // Predicated region
        $region89: #{attentive_swap_net_forward.1} parent=11 // pred_check
          %p1087 = pneg %p546
        $region90: #{attentive_swap_net_forward.1} parent=11 // pred_check_branch
          %1089 = sbr.rel (%p1087) target = $region92
        $region91: #{attentive_swap_net_forward.1} parent=11 // pred_region
          %s1091 = ssub.s32 512, 512
          %1092 = vsyncadd [#allocation21], %s1091
          %s1093 = sshll.u32 [#allocation20], 4
          %s1094 = int_to_ptr.vmem [resolvable:$true] %s1093
          %1099 = dma.hbm_to_vmem [thread:$0]  %s41, 512, %s1094, [#allocation21], 64, 64, 4
        $region92: #{attentive_swap_net_forward.1} parent=11 // pred_fallthru
          _
        // Predicated region
        $region93: #{attentive_swap_net_forward.1} parent=11 // pred_check
          %p1100 = pneg %p567
        $region94: #{attentive_swap_net_forward.1} parent=11 // pred_check_branch
          %1102 = sbr.rel (%p1100) target = $region96
        $region95: #{attentive_swap_net_forward.1} parent=11 // pred_region
          %s1104 = ssub.s32 16, 16
          %1105 = vsyncadd [#allocation21], %s1104
          %s1107 = sshll.u32 [#allocation22], 4
          %s1108 = int_to_ptr.vmem [resolvable:$true] %s1107
          %1110 = dma.hbm_to_vmem [thread:$0]  %s43, 16, %s1108, [#allocation21]
        $region96: #{attentive_swap_net_forward.1} parent=11 // pred_fallthru
          _
        // Predicated region
        $region97: #{attentive_swap_net_forward.1} parent=11 // pred_check
          %p1111 = pneg %p588
        $region98: #{attentive_swap_net_forward.1} parent=11 // pred_check_branch
          %1113 = sbr.rel (%p1111) target = $region100
        $region99: #{attentive_swap_net_forward.1} parent=11 // pred_region
          %s1115 = ssub.s32 512, 512
          %1116 = vsyncadd [#allocation24], %s1115
          %s1117 = sshll.u32 [#allocation23], 4
          %s1118 = int_to_ptr.vmem [resolvable:$true] %s1117
          %1123 = dma.hbm_to_vmem [thread:$0]  %s45, 512, %s1118, [#allocation24], 64, 64, 4
        $region100: #{attentive_swap_net_forward.1} parent=11 // pred_fallthru
          _
        // Predicated region
        $region101: #{attentive_swap_net_forward.1} parent=11 // pred_check
          %p1124 = pneg %p609
        $region102: #{attentive_swap_net_forward.1} parent=11 // pred_check_branch
          %1126 = sbr.rel (%p1124) target = $region104
        $region103: #{attentive_swap_net_forward.1} parent=11 // pred_region
          %s1128 = ssub.s32 16, 16
          %1129 = vsyncadd [#allocation24], %s1128
          %s1131 = sshll.u32 [#allocation25], 4
          %s1132 = int_to_ptr.vmem [resolvable:$true] %s1131
          %1134 = dma.hbm_to_vmem [thread:$0]  %s47, 16, %s1132, [#allocation24]
        $region104: #{attentive_swap_net_forward.1} parent=11 // pred_fallthru
          _
        // Predicated region
        $region105: #{attentive_swap_net_forward.1} parent=11 // pred_check
          %p1135 = pneg %p630
        $region106: #{attentive_swap_net_forward.1} parent=11 // pred_check_branch
          %1137 = sbr.rel (%p1135) target = $region108
        $region107: #{attentive_swap_net_forward.1} parent=11 // pred_region
          %s1139 = ssub.s32 512, 512
          %1140 = vsyncadd [#allocation27], %s1139
          %s1141 = sshll.u32 [#allocation26], 4
          %s1142 = int_to_ptr.vmem [resolvable:$true] %s1141
          %1147 = dma.hbm_to_vmem [thread:$0]  %s49, 512, %s1142, [#allocation27], 64, 64, 4
        $region108: #{attentive_swap_net_forward.1} parent=11 // pred_fallthru
          _
        // Predicated region
        $region109: #{attentive_swap_net_forward.1} parent=11 // pred_check
          %p1148 = pneg %p651
        $region110: #{attentive_swap_net_forward.1} parent=11 // pred_check_branch
          %1150 = sbr.rel (%p1148) target = $region112
        $region111: #{attentive_swap_net_forward.1} parent=11 // pred_region
          %s1152 = ssub.s32 16, 16
          %1153 = vsyncadd [#allocation27], %s1152
          %s1155 = sshll.u32 [#allocation28], 4
          %s1156 = int_to_ptr.vmem [resolvable:$true] %s1155
          %1158 = dma.hbm_to_vmem [thread:$0]  %s51, 16, %s1156, [#allocation27]
        $region112: #{attentive_swap_net_forward.1} parent=11 // pred_fallthru
          _
        // Predicated region
        $region113: #{attentive_swap_net_forward.1} parent=11 // pred_check
          %p1159 = pneg %p672
        $region114: #{attentive_swap_net_forward.1} parent=11 // pred_check_branch
          %1161 = sbr.rel (%p1159) target = $region116
        $region115: #{attentive_swap_net_forward.1} parent=11 // pred_region
          %s1163 = ssub.s32 512, 512
          %1164 = vsyncadd [#allocation30], %s1163
          %s1165 = sshll.u32 [#allocation29], 4
          %s1166 = int_to_ptr.vmem [resolvable:$true] %s1165
          %1171 = dma.hbm_to_vmem [thread:$0]  %s53, 512, %s1166, [#allocation30], 64, 64, 4
        $region116: #{attentive_swap_net_forward.1} parent=11 // pred_fallthru
          _
        // Predicated region
        $region117: #{attentive_swap_net_forward.1} parent=11 // pred_check
          %p1172 = pneg %p693
        $region118: #{attentive_swap_net_forward.1} parent=11 // pred_check_branch
          %1174 = sbr.rel (%p1172) target = $region120
        $region119: #{attentive_swap_net_forward.1} parent=11 // pred_region
          %s1176 = ssub.s32 16, 16
          %1177 = vsyncadd [#allocation30], %s1176
          %s1179 = sshll.u32 [#allocation31], 4
          %s1180 = int_to_ptr.vmem [resolvable:$true] %s1179
          %1182 = dma.hbm_to_vmem [thread:$0]  %s55, 16, %s1180, [#allocation30]
        $region120: #{attentive_swap_net_forward.1} parent=11 // pred_fallthru
          _
        // Predicated region
        $region121: #{attentive_swap_net_forward.1} parent=11 // pred_check
          %p1183 = pneg %p714
        $region122: #{attentive_swap_net_forward.1} parent=11 // pred_check_branch
          %1185 = sbr.rel (%p1183) target = $region124
        $region123: #{attentive_swap_net_forward.1} parent=11 // pred_region
          %s1187 = ssub.s32 4096, 4096
          %1188 = vsyncadd [#allocation33], %s1187
          %s1189 = sshll.u32 [#allocation32], 4
          %s1190 = int_to_ptr.vmem [resolvable:$true] %s1189
          %1195 = dma.hbm_to_vmem [thread:$0]  %s57, 4096, %s1190, [#allocation33], 256, 256, 16
        $region124: #{attentive_swap_net_forward.1} parent=11 // pred_fallthru
          _
        // Predicated region
        $region125: #{attentive_swap_net_forward.1} parent=11 // pred_check
          %p1196 = pneg %p735
        $region126: #{attentive_swap_net_forward.1} parent=11 // pred_check_branch
          %1198 = sbr.rel (%p1196) target = $region128
        $region127: #{attentive_swap_net_forward.1} parent=11 // pred_region
          _
        $region128: #{attentive_swap_net_forward.1} parent=11 // pred_fallthru
          _
        // Predicated region
        $region129: #{attentive_swap_net_forward.1} parent=11 // pred_check
          %p1199 = pneg %p756
        $region130: #{attentive_swap_net_forward.1} parent=11 // pred_check_branch
          %1201 = sbr.rel (%p1199) target = $region132
        $region131: #{attentive_swap_net_forward.1} parent=11 // pred_region
          _
        $region132: #{attentive_swap_net_forward.1} parent=11 // pred_fallthru
          _
        // Predicated region
        $region133: #{attentive_swap_net_forward.1} parent=11 // pred_check
          %p1202 = pneg %p777
        $region134: #{attentive_swap_net_forward.1} parent=11 // pred_check_branch
          %1204 = sbr.rel (%p1202) target = $region136
        $region135: #{attentive_swap_net_forward.1} parent=11 // pred_region
          _
        $region136: #{attentive_swap_net_forward.1} parent=11 // pred_fallthru
          _
        // Predicated region
        $region137: #{attentive_swap_net_forward.1} parent=11 // pred_check
          %p1205 = pneg %p798
        $region138: #{attentive_swap_net_forward.1} parent=11 // pred_check_branch
          %1207 = sbr.rel (%p1205) target = $region140
        $region139: #{attentive_swap_net_forward.1} parent=11 // pred_region
          _
        $region140: #{attentive_swap_net_forward.1} parent=11 // pred_fallthru
          _
        // Predicated region
        $region141: #{attentive_swap_net_forward.1} parent=11 // pred_check
          %p1208 = pneg %p819
        $region142: #{attentive_swap_net_forward.1} parent=11 // pred_check_branch
          %1210 = sbr.rel (%p1208) target = $region144
        $region143: #{attentive_swap_net_forward.1} parent=11 // pred_region
          %s1212 = ssub.s32 32, 32
          %1213 = vsyncadd [#allocation33], %s1212
          %s1215 = sshll.u32 [#allocation34], 4
          %s1216 = int_to_ptr.vmem [resolvable:$true] %s1215
          %1218 = dma.hbm_to_vmem [thread:$0]  %s67, 32, %s1216, [#allocation33]
        $region144: #{attentive_swap_net_forward.1} parent=11 // pred_fallthru
          _
        // Predicated region
        $region145: #{attentive_swap_net_forward.1} parent=11 // pred_check
          %p1219 = pneg %p840
        $region146: #{attentive_swap_net_forward.1} parent=11 // pred_check_branch
          %1221 = sbr.rel (%p1219) target = $region148
        $region147: #{attentive_swap_net_forward.1} parent=11 // pred_region
          _
        $region148: #{attentive_swap_net_forward.1} parent=11 // pred_fallthru
          _
        // Predicated region
        $region149: #{attentive_swap_net_forward.1} parent=11 // pred_check
          %p1222 = pneg %p861
        $region150: #{attentive_swap_net_forward.1} parent=11 // pred_check_branch
          %1224 = sbr.rel (%p1222) target = $region152
        $region151: #{attentive_swap_net_forward.1} parent=11 // pred_region
          %s1226 = ssub.s32 16, 16
          %1227 = vsyncadd [#allocation36], %s1226
          %s1229 = sshll.u32 [#allocation35], 4
          %s1230 = int_to_ptr.vmem [resolvable:$true] %s1229
          %1232 = dma.hbm_to_vmem [thread:$0]  %s71, 16, %s1230, [#allocation36]
        $region152: #{attentive_swap_net_forward.1} parent=11 // pred_fallthru
          _
      $region12: #{attentive_swap_net_forward.1} parent=5 // pred_fallthru
        _
      %p1233 = scmp.lt.s32.totalorder %s100, 2
      // Predicated region
      $region153: #{attentive_swap_net_forward.1} parent=5 // pred_check
        %p1234 = pneg %p1233
      $region154: #{attentive_swap_net_forward.1} parent=5 // pred_check_branch
        %1236 = sbr.rel (%p1234) target = $region156
      $region155: #{attentive_swap_net_forward.1} parent=5 // pred_region
        // Predicated region
        $region157: #{attentive_swap_net_forward.1} parent=155 // pred_check
          %p1237 = pneg %p120
        $region158: #{attentive_swap_net_forward.1} parent=155 // pred_check_branch
          %1239 = sbr.rel (%p1237) target = $region160
        $region159: #{attentive_swap_net_forward.1} parent=155 // pred_region
          %p1240 = scmp.lt.s32.totalorder %s100, 1
          %s1241 = scalar_select %p1240, %s100, 1
          %s1242 = smul.addr %s1241, 4
          %s1243 = scalar_lea.vmem %s1, %s1242
        $region160: #{attentive_swap_net_forward.1} parent=155 // pred_fallthru
          _
      $region156: #{attentive_swap_net_forward.1} parent=5 // pred_fallthru
        _
      %p1244 = scmp.le.s32.totalorder 1, %s100
      %p1245 = scmp.lt.s32.totalorder %s100, 3
      %p1246 = pnand %p1244, %p1245
      %p1247 = pneg %p1246
      // Predicated region
      $region161: #{attentive_swap_net_forward.1} parent=5 // pred_check
        _
      $region162: #{attentive_swap_net_forward.1} parent=5 // pred_check_branch
        %1249 = sbr.rel (%p1246) target = $region164
      $region163: #{attentive_swap_net_forward.1} parent=5 // pred_region
        %s1250 = ssub.s32 %s100, 1
        // Predicated region
        $region165: #{attentive_swap_net_forward.1} parent=163 // pred_check
          %p1251 = pneg %p210
        $region166: #{attentive_swap_net_forward.1} parent=163 // pred_check_branch
          %1253 = sbr.rel (%p1251) target = $region168
        $region167: #{attentive_swap_net_forward.1} parent=163 // pred_region
          %1254 = dma.done [#allocation3], 512
        $region168: #{attentive_swap_net_forward.1} parent=163 // pred_fallthru
          _
        // Predicated region
        $region169: #{attentive_swap_net_forward.1} parent=163 // pred_check
          %p1255 = pneg %p294
        $region170: #{attentive_swap_net_forward.1} parent=163 // pred_check_branch
          %1257 = sbr.rel (%p1255) target = $region172
        $region171: #{attentive_swap_net_forward.1} parent=163 // pred_region
          %1258 = dma.done [#allocation6], 1024
        $region172: #{attentive_swap_net_forward.1} parent=163 // pred_fallthru
          _
        // Predicated region
        $region173: #{attentive_swap_net_forward.1} parent=163 // pred_check
          %p1259 = pneg %p336
        $region174: #{attentive_swap_net_forward.1} parent=163 // pred_check_branch
          %1261 = sbr.rel (%p1259) target = $region176
        $region175: #{attentive_swap_net_forward.1} parent=163 // pred_region
          %1262 = dma.done [#allocation6], 512
        $region176: #{attentive_swap_net_forward.1} parent=163 // pred_fallthru
          _
        // Predicated region
        $region177: #{attentive_swap_net_forward.1} parent=163 // pred_check
          %p1263 = pneg %p357
        $region178: #{attentive_swap_net_forward.1} parent=163 // pred_check_branch
          %1265 = sbr.rel (%p1263) target = $region180
        $region179: #{attentive_swap_net_forward.1} parent=163 // pred_region
          %1266 = dma.done [#allocation9], 16
        $region180: #{attentive_swap_net_forward.1} parent=163 // pred_fallthru
          _
        // Predicated region
        $region181: #{attentive_swap_net_forward.1} parent=163 // pred_check
          %p1267 = pneg %p378
        $region182: #{attentive_swap_net_forward.1} parent=163 // pred_check_branch
          %1269 = sbr.rel (%p1267) target = $region184
        $region183: #{attentive_swap_net_forward.1} parent=163 // pred_region
          %1270 = dma.done [#allocation9], 1024
        $region184: #{attentive_swap_net_forward.1} parent=163 // pred_fallthru
          _
        // Predicated region
        $region185: #{attentive_swap_net_forward.1} parent=163 // pred_check
          %p1271 = pneg %p420
        $region186: #{attentive_swap_net_forward.1} parent=163 // pred_check_branch
          %1273 = sbr.rel (%p1271) target = $region188
        $region187: #{attentive_swap_net_forward.1} parent=163 // pred_region
          %1274 = dma.done [#allocation12], 512
        $region188: #{attentive_swap_net_forward.1} parent=163 // pred_fallthru
          _
        // Predicated region
        $region189: #{attentive_swap_net_forward.1} parent=163 // pred_check
          %p1275 = pneg %p441
        $region190: #{attentive_swap_net_forward.1} parent=163 // pred_check_branch
          %1277 = sbr.rel (%p1275) target = $region192
        $region191: #{attentive_swap_net_forward.1} parent=163 // pred_region
          %1278 = dma.done [#allocation12], 16
        $region192: #{attentive_swap_net_forward.1} parent=163 // pred_fallthru
          _
        // Predicated region
        $region193: #{attentive_swap_net_forward.1} parent=163 // pred_check
          %p1279 = pneg %p462
        $region194: #{attentive_swap_net_forward.1} parent=163 // pred_check_branch
          %1281 = sbr.rel (%p1279) target = $region196
        $region195: #{attentive_swap_net_forward.1} parent=163 // pred_region
          %1282 = dma.done [#allocation15], 512
        $region196: #{attentive_swap_net_forward.1} parent=163 // pred_fallthru
          _
        // Predicated region
        $region197: #{attentive_swap_net_forward.1} parent=163 // pred_check
          %p1283 = pneg %p483
        $region198: #{attentive_swap_net_forward.1} parent=163 // pred_check_branch
          %1285 = sbr.rel (%p1283) target = $region200
        $region199: #{attentive_swap_net_forward.1} parent=163 // pred_region
          %1286 = dma.done [#allocation15], 16
        $region200: #{attentive_swap_net_forward.1} parent=163 // pred_fallthru
          _
        // Predicated region
        $region201: #{attentive_swap_net_forward.1} parent=163 // pred_check
          %p1287 = pneg %p504
        $region202: #{attentive_swap_net_forward.1} parent=163 // pred_check_branch
          %1289 = sbr.rel (%p1287) target = $region204
        $region203: #{attentive_swap_net_forward.1} parent=163 // pred_region
          %1290 = dma.done [#allocation18], 512
        $region204: #{attentive_swap_net_forward.1} parent=163 // pred_fallthru
          _
        // Predicated region
        $region205: #{attentive_swap_net_forward.1} parent=163 // pred_check
          %p1291 = pneg %p525
        $region206: #{attentive_swap_net_forward.1} parent=163 // pred_check_branch
          %1293 = sbr.rel (%p1291) target = $region208
        $region207: #{attentive_swap_net_forward.1} parent=163 // pred_region
          %1294 = dma.done [#allocation18], 16
        $region208: #{attentive_swap_net_forward.1} parent=163 // pred_fallthru
          _
        // Predicated region
        $region209: #{attentive_swap_net_forward.1} parent=163 // pred_check
          %p1295 = pneg %p546
        $region210: #{attentive_swap_net_forward.1} parent=163 // pred_check_branch
          %1297 = sbr.rel (%p1295) target = $region212
        $region211: #{attentive_swap_net_forward.1} parent=163 // pred_region
          %1298 = dma.done [#allocation21], 512
        $region212: #{attentive_swap_net_forward.1} parent=163 // pred_fallthru
          _
        // Predicated region
        $region213: #{attentive_swap_net_forward.1} parent=163 // pred_check
          %p1299 = pneg %p567
        $region214: #{attentive_swap_net_forward.1} parent=163 // pred_check_branch
          %1301 = sbr.rel (%p1299) target = $region216
        $region215: #{attentive_swap_net_forward.1} parent=163 // pred_region
          %1302 = dma.done [#allocation21], 16
        $region216: #{attentive_swap_net_forward.1} parent=163 // pred_fallthru
          _
        // Predicated region
        $region217: #{attentive_swap_net_forward.1} parent=163 // pred_check
          %p1303 = pneg %p588
        $region218: #{attentive_swap_net_forward.1} parent=163 // pred_check_branch
          %1305 = sbr.rel (%p1303) target = $region220
        $region219: #{attentive_swap_net_forward.1} parent=163 // pred_region
          %1306 = dma.done [#allocation24], 512
        $region220: #{attentive_swap_net_forward.1} parent=163 // pred_fallthru
          _
        // Predicated region
        $region221: #{attentive_swap_net_forward.1} parent=163 // pred_check
          %p1307 = pneg %p609
        $region222: #{attentive_swap_net_forward.1} parent=163 // pred_check_branch
          %1309 = sbr.rel (%p1307) target = $region224
        $region223: #{attentive_swap_net_forward.1} parent=163 // pred_region
          %1310 = dma.done [#allocation24], 16
        $region224: #{attentive_swap_net_forward.1} parent=163 // pred_fallthru
          _
        // Predicated region
        $region225: #{attentive_swap_net_forward.1} parent=163 // pred_check
          %p1311 = pneg %p630
        $region226: #{attentive_swap_net_forward.1} parent=163 // pred_check_branch
          %1313 = sbr.rel (%p1311) target = $region228
        $region227: #{attentive_swap_net_forward.1} parent=163 // pred_region
          %1314 = dma.done [#allocation27], 512
        $region228: #{attentive_swap_net_forward.1} parent=163 // pred_fallthru
          _
        // Predicated region
        $region229: #{attentive_swap_net_forward.1} parent=163 // pred_check
          %p1315 = pneg %p651
        $region230: #{attentive_swap_net_forward.1} parent=163 // pred_check_branch
          %1317 = sbr.rel (%p1315) target = $region232
        $region231: #{attentive_swap_net_forward.1} parent=163 // pred_region
          %1318 = dma.done [#allocation27], 16
        $region232: #{attentive_swap_net_forward.1} parent=163 // pred_fallthru
          _
        // Predicated region
        $region233: #{attentive_swap_net_forward.1} parent=163 // pred_check
          %p1319 = pneg %p672
        $region234: #{attentive_swap_net_forward.1} parent=163 // pred_check_branch
          %1321 = sbr.rel (%p1319) target = $region236
        $region235: #{attentive_swap_net_forward.1} parent=163 // pred_region
          %1322 = dma.done [#allocation30], 512
        $region236: #{attentive_swap_net_forward.1} parent=163 // pred_fallthru
          _
        // Predicated region
        $region237: #{attentive_swap_net_forward.1} parent=163 // pred_check
          %p1323 = pneg %p693
        $region238: #{attentive_swap_net_forward.1} parent=163 // pred_check_branch
          %1325 = sbr.rel (%p1323) target = $region240
        $region239: #{attentive_swap_net_forward.1} parent=163 // pred_region
          %1326 = dma.done [#allocation30], 16
        $region240: #{attentive_swap_net_forward.1} parent=163 // pred_fallthru
          _
        // Predicated region
        $region241: #{attentive_swap_net_forward.1} parent=163 // pred_check
          %p1327 = pneg %p714
        $region242: #{attentive_swap_net_forward.1} parent=163 // pred_check_branch
          %1329 = sbr.rel (%p1327) target = $region244
        $region243: #{attentive_swap_net_forward.1} parent=163 // pred_region
          %1330 = dma.done [#allocation33], 4096
        $region244: #{attentive_swap_net_forward.1} parent=163 // pred_fallthru
          _
        // Predicated region
        $region245: #{attentive_swap_net_forward.1} parent=163 // pred_check
          %p1331 = pneg %p819
        $region246: #{attentive_swap_net_forward.1} parent=163 // pred_check_branch
          %1333 = sbr.rel (%p1331) target = $region248
        $region247: #{attentive_swap_net_forward.1} parent=163 // pred_region
          %1334 = dma.done [#allocation33], 32
        $region248: #{attentive_swap_net_forward.1} parent=163 // pred_fallthru
          _
        // Predicated region
        $region249: #{attentive_swap_net_forward.1} parent=163 // pred_check
          %p1335 = pneg %p861
        $region250: #{attentive_swap_net_forward.1} parent=163 // pred_check_branch
          %1337 = sbr.rel (%p1335) target = $region252
        $region251: #{attentive_swap_net_forward.1} parent=163 // pred_region
          %1338 = dma.done [#allocation36], 16
        $region252: #{attentive_swap_net_forward.1} parent=163 // pred_fallthru
          _
        %p1339 = scmp.lt.s32.totalorder %s105, 1
        %s1340 = scalar_select %p1339, %s105, 1
        %s1341 = smul.addr %s1340, 4
        %s1342 = scalar_lea.vmem %s1, %s1341
        %p1343 = pneg %p126
        %p1344 = pneg %p123
        %p1345 = pneg %p147
        %p1346 = pneg %p144
        %p1347 = pneg %p168
        %p1348 = pneg %p165
        %p1349 = pneg %p189
        %p1350 = pneg %p186
        %p1351 = pneg %p210
        %p1352 = pneg %p207
        %p1353 = pneg %p231
        %p1354 = pneg %p228
        %p1355 = pneg %p252
        %p1356 = pneg %p249
        %p1357 = pneg %p273
        %p1358 = pneg %p270
        %p1359 = pneg %p294
        %p1360 = pneg %p291
        %p1361 = pneg %p315
        %p1362 = pneg %p312
        %p1363 = pneg %p336
        %p1364 = pneg %p333
        %p1365 = pneg %p357
        %p1366 = pneg %p354
        %p1367 = pneg %p378
        %p1368 = pneg %p375
        %p1369 = pneg %p399
        %p1370 = pneg %p396
        %p1371 = pneg %p420
        %p1372 = pneg %p417
        %p1373 = pneg %p441
        %p1374 = pneg %p438
        %p1375 = pneg %p462
        %p1376 = pneg %p459
        %p1377 = pneg %p483
        %p1378 = pneg %p480
        %p1379 = pneg %p504
        %p1380 = pneg %p501
        %p1381 = pneg %p525
        %p1382 = pneg %p522
        %p1383 = pneg %p546
        %p1384 = pneg %p543
        %p1385 = pneg %p567
        %p1386 = pneg %p564
        %p1387 = pneg %p588
        %p1388 = pneg %p585
        %p1389 = pneg %p609
        %p1390 = pneg %p606
        %p1391 = pneg %p630
        %p1392 = pneg %p627
        %p1393 = pneg %p651
        %p1394 = pneg %p648
        %p1395 = pneg %p672
        %p1396 = pneg %p669
        %p1397 = pneg %p693
        %p1398 = pneg %p690
        %p1399 = pneg %p714
        %p1400 = pneg %p711
        %p1401 = pneg %p735
        %p1402 = pneg %p732
        %p1403 = pneg %p756
        %p1404 = pneg %p753
        %p1405 = pneg %p777
        %p1406 = pneg %p774
        %p1407 = pneg %p798
        %p1408 = pneg %p795
        %p1409 = pneg %p819
        %p1410 = pneg %p816
        %p1411 = pneg %p840
        %p1412 = pneg %p837
        %p1413 = pneg %p861
        %p1414 = pneg %p858
        %p1415 = pneg %p887
        %p1416 = pneg %p884
        %s1417 = sand.u32 %s874, 1
        %s1418 = scalar_lea.sflag [#allocation4], %s1417
        %s1419 = sand.u32 %s874, 1
        %s1420 = scalar_lea.vmem [#allocation37], %s1419
        %p1421 = pneg %p913
        %p1422 = pneg %p910
        %s1423 = sand.u32 %s900, 1
        %s1424 = scalar_lea.sflag [#allocation39], %s1423
        %s1425 = sand.u32 %s900, 1
        %s1426 = smul.addr %s1425, 4
        %s1427 = scalar_lea.vmem [#allocation38], %s1426
        %p1428 = scmp.lt.s32.totalorder %s105, 1
        %s1429 = scalar_select %p1428, %s105, 1
        %s1430 = smul.addr %s1429, 4
        %s1431 = scalar_lea.vmem %s1, %s1430
        %v1433 = vld [vmem:[%s1431] sm:$0x7]
        %v1434 = vld [vmem:[%s3] sm:$0xf]
        %v1435 = vld [vmem:[%s3 + $0x4] sm:$0xf]
        %v1436 = vld [vmem:[%s3 + $0x8] sm:$0xf]
        %v1437 = vld [vmem:[%s3 + $0xc] sm:$0xf]
        %v1438 = vld [vmem:[%s3 + $0x10] sm:$0xf]
        %v1439 = vld [vmem:[%s3 + $0x14] sm:$0xf]
        %v1440 = vld [vmem:[%s3 + $0x18] sm:$0xf]
        %v1441 = vld [vmem:[%s3 + $0x1c] sm:$0xf]
        %v1442 = vpack.c.bf16 %v1433, %v1433
        %v1451 = vunpack.c.l.b16 %v1434
        %v1452 = vunpack.c.l.b16 %v1435
        %v1453 = vunpack.c.l.b16 %v1436
        %v1454 = vunpack.c.l.b16 %v1437
        %v1455 = vunpack.c.l.b16 %v1438
        %v1456 = vunpack.c.l.b16 %v1439
        %v1457 = vunpack.c.l.b16 %v1440
        %v1458 = vunpack.c.l.b16 %v1441
        %v1459 = vpack.c.b16 %v1452, %v1451
        %v1460 = vpack.c.b16 %v1454, %v1453
        %v1461 = vpack.c.b16 %v1456, %v1455
        %v1462 = vpack.c.b16 %v1458, %v1457
        %vm1463 = vcmask 23552
        %v1465 = vsel %vm1463, %v1459, 0
        %v1468 = vsel %vm1463, %v1460, 0
        %v1471 = vsel %vm1463, %v1461, 0
        %v1474 = vsel %vm1463, %v1462, 0
        %vm1476 = vcmask 1040384
        %vm1477 = vcmask 1041408
        %v1478 = vsel %vm1476, 4294967295, 65535
        %v1479 = vsel %vm1477, %v1478, 0
        %v1481 = vand.u32 %v1442, %v1479
        %1483 = vmatprep.subr.bf16.mxu0 0
        %1484 = vmatpush1.bf16.msra.mxu0 0
        %1485 = vmatprep.subr.bf16.mxu0 0
        %1486 = vmatpush1.bf16.msra.mxu0 0
        %1487 = vmatprep.subr.bf16.mxu0 0
        %1488 = vmatpush1.bf16.msra.mxu0 0
        %1489 = vmatprep.subr.bf16.mxu0 0
        %1490 = vmatpush1.bf16.msra.mxu0 0
        %1491 = vmatprep.subr.bf16.mxu0 0
        %1492 = vmatpush1.bf16.msra.mxu0 0
        %1493 = vmatprep.subr.bf16.mxu0 0
        %1494 = vmatpush1.bf16.msra.mxu0 0
        %1495 = vmatprep.subr.bf16.mxu0 0
        %1496 = vmatpush1.bf16.msra.mxu0 0
        %1497 = vmatprep.subr.bf16.mxu0 0
        %1498 = vmatpush1.bf16.msra.mxu0 %v1481
        %1499 = vmatprep.subr.bf16.mxu0 0
        %1500 = vmatpush2.bf16.msra.mxu0 0
        %1501 = vmatprep.subr.bf16.mxu0 0
        %1502 = vmatpush2.bf16.msra.mxu0 0
        %1503 = vmatprep.subr.bf16.mxu0 0
        %1504 = vmatpush2.bf16.msra.mxu0 0
        %1505 = vmatprep.subr.bf16.mxu0 0
        %1506 = vmatpush2.bf16.msra.mxu0 0
        %1507 = vmatprep.subr.bf16.mxu0 0
        %1508 = vmatpush2.bf16.msra.mxu0 0
        %1509 = vmatprep.subr.bf16.mxu0 0
        %1510 = vmatpush2.bf16.msra.mxu0 0
        %1511 = vmatprep.subr.bf16.mxu0 0
        %1512 = vmatpush2.bf16.msra.mxu0 0
        %1513 = vmatprep.subr.bf16.mxu0 0
        %1514 = vmatpush2.bf16.msra.mxu0 0
        %1515 = vmatprep.mubr.bf16.mxu0 0
        %1516 = vmatmul.mubr.bf16.gmra.mxu0 %v1465
        %v1517 = vpop.f32.mrf.mxu0
        %v1518 = vadd.f32 0.0, %v1517
        %v1519 = vpop.f32.mrf.mxu0
        %v1520 = vpop.f32.mrf.mxu0
        %v1521 = vadd.f32 0.0, %v1520
        %v1522 = vpop.f32.mrf.mxu0
        %1523 = vmatprep.mubr.bf16.mxu0 0
        %1524 = vmatmul.mubr.bf16.gmra.mxu0 %v1468
        %v1525 = vpop.f32.mrf.mxu0
        %v1526 = vadd.f32 0.0, %v1525
        %v1527 = vpop.f32.mrf.mxu0
        %v1528 = vpop.f32.mrf.mxu0
        %v1529 = vadd.f32 0.0, %v1528
        %v1530 = vpop.f32.mrf.mxu0
        %1531 = vmatprep.mubr.bf16.mxu0 0
        %1532 = vmatmul.mubr.bf16.gmra.mxu0 %v1471
        %v1533 = vpop.f32.mrf.mxu0
        %v1534 = vadd.f32 0.0, %v1533
        %v1535 = vpop.f32.mrf.mxu0
        %v1536 = vpop.f32.mrf.mxu0
        %v1537 = vadd.f32 0.0, %v1536
        %v1538 = vpop.f32.mrf.mxu0
        %1539 = vmatprep.mubr.bf16.mxu0 0
        %1540 = vmatmul.mubr.bf16.gmra.mxu0 %v1474
        %v1541 = vpop.f32.mrf.mxu0
        %v1542 = vadd.f32 0.0, %v1541
        %v1543 = vpop.f32.mrf.mxu0
        %v1544 = vpop.f32.mrf.mxu0
        %v1545 = vadd.f32 0.0, %v1544
        %v1546 = vpop.f32.mrf.mxu0
        %1547 = vdwg.mxu0
        %v1548 = vld [vmem:[%s5] sm:$0xff]
        %v1549 = vld [vmem:[%s5 + $0x8] sm:$0xff]
        %v1550 = vld [vmem:[%s5 + $0x10] sm:$0xff]
        %v1551 = vld [vmem:[%s5 + $0x18] sm:$0xff]
        %v1552 = vld [vmem:[%s5 + $0x20] sm:$0xff]
        %v1553 = vld [vmem:[%s5 + $0x28] sm:$0xff]
        %v1554 = vld [vmem:[%s5 + $0x30] sm:$0xff]
        %v1555 = vld [vmem:[%s5 + $0x38] sm:$0xff]
        %1557 = vset.pattern.permute.xlu0 0
        %1558 = vperm.xlu0 %1557, %v1548
        %v1559 = vpop.permute.xlu0 %1558
        %1562 = vset.pattern.permute.xlu0 0
        %1563 = vperm.xlu0 %1562, %v1549
        %v1564 = vpop.permute.xlu0 %1563
        %1567 = vset.pattern.permute.xlu0 0
        %1568 = vperm.xlu0 %1567, %v1550
        %v1569 = vpop.permute.xlu0 %1568
        %1572 = vset.pattern.permute.xlu0 0
        %1573 = vperm.xlu0 %1572, %v1551
        %v1574 = vpop.permute.xlu0 %1573
        %1577 = vset.pattern.permute.xlu0 0
        %1578 = vperm.xlu0 %1577, %v1552
        %v1579 = vpop.permute.xlu0 %1578
        %1582 = vset.pattern.permute.xlu0 0
        %1583 = vperm.xlu0 %1582, %v1553
        %v1584 = vpop.permute.xlu0 %1583
        %1587 = vset.pattern.permute.xlu0 0
        %1588 = vperm.xlu0 %1587, %v1554
        %v1589 = vpop.permute.xlu0 %1588
        %1592 = vset.pattern.permute.xlu0 0
        %1593 = vperm.xlu0 %1592, %v1555
        %v1594 = vpop.permute.xlu0 %1593
        %v1596 = vmul.f32 %v1518, %v1559
        %v1597 = vmul.f32 %v1521, %v1564
        %v1598 = vmul.f32 %v1526, %v1569
        %v1599 = vmul.f32 %v1529, %v1574
        %v1600 = vmul.f32 %v1534, %v1579
        %v1601 = vmul.f32 %v1537, %v1584
        %v1602 = vmul.f32 %v1542, %v1589
        %v1603 = vmul.f32 %v1545, %v1594
        %v1604 = vld [vmem:[%s7] sm:$0xff]
        %v1605 = vld [vmem:[%s7 + $0x8] sm:$0xff]
        %v1606 = vld [vmem:[%s7 + $0x10] sm:$0xff]
        %v1607 = vld [vmem:[%s7 + $0x18] sm:$0xff]
        %v1608 = vld [vmem:[%s7 + $0x20] sm:$0xff]
        %v1609 = vld [vmem:[%s7 + $0x28] sm:$0xff]
        %v1610 = vld [vmem:[%s7 + $0x30] sm:$0xff]
        %v1611 = vld [vmem:[%s7 + $0x38] sm:$0xff]
        %1613 = vset.pattern.permute.xlu0 0
        %1614 = vperm.xlu0 %1613, %v1604
        %v1615 = vpop.permute.xlu0 %1614
        %1618 = vset.pattern.permute.xlu0 0
        %1619 = vperm.xlu0 %1618, %v1605
        %v1620 = vpop.permute.xlu0 %1619
        %1623 = vset.pattern.permute.xlu0 0
        %1624 = vperm.xlu0 %1623, %v1606
        %v1625 = vpop.permute.xlu0 %1624
        %1628 = vset.pattern.permute.xlu0 0
        %1629 = vperm.xlu0 %1628, %v1607
        %v1630 = vpop.permute.xlu0 %1629
        %1633 = vset.pattern.permute.xlu0 0
        %1634 = vperm.xlu0 %1633, %v1608
        %v1635 = vpop.permute.xlu0 %1634
        %1638 = vset.pattern.permute.xlu0 0
        %1639 = vperm.xlu0 %1638, %v1609
        %v1640 = vpop.permute.xlu0 %1639
        %1643 = vset.pattern.permute.xlu0 0
        %1644 = vperm.xlu0 %1643, %v1610
        %v1645 = vpop.permute.xlu0 %1644
        %1648 = vset.pattern.permute.xlu0 0
        %1649 = vperm.xlu0 %1648, %v1611
        %v1650 = vpop.permute.xlu0 %1649
        %v1652 = vadd.f32 %v1596, %v1615
        %v1653 = vadd.f32 %v1597, %v1620
        %v1654 = vadd.f32 %v1598, %v1625
        %v1655 = vadd.f32 %v1599, %v1630
        %v1656 = vadd.f32 %v1600, %v1635
        %v1657 = vadd.f32 %v1601, %v1640
        %v1658 = vadd.f32 %v1602, %v1645
        %v1659 = vadd.f32 %v1603, %v1650
        %vm1660 = vcmp.ge.f32.partialorder %v1652, 0.0
        %vm1661 = vcmp.ge.f32.partialorder %v1653, 0.0
        %vm1662 = vcmp.ge.f32.partialorder %v1654, 0.0
        %vm1663 = vcmp.ge.f32.partialorder %v1655, 0.0
        %vm1664 = vcmp.ge.f32.partialorder %v1656, 0.0
        %vm1665 = vcmp.ge.f32.partialorder %v1657, 0.0
        %vm1666 = vcmp.ge.f32.partialorder %v1658, 0.0
        %vm1667 = vcmp.ge.f32.partialorder %v1659, 0.0
        %v1668 = vmul.f32 %v1652, 0.2
        %v1669 = vmul.f32 %v1653, 0.2
        %v1670 = vmul.f32 %v1654, 0.2
        %v1671 = vmul.f32 %v1655, 0.2
        %v1672 = vmul.f32 %v1656, 0.2
        %v1673 = vmul.f32 %v1657, 0.2
        %v1674 = vmul.f32 %v1658, 0.2
        %v1675 = vmul.f32 %v1659, 0.2
        %v1676 = vsel %vm1660, %v1652, %v1668
        %v1677 = vsel %vm1661, %v1653, %v1669
        %v1678 = vsel %vm1662, %v1654, %v1670
        %v1679 = vsel %vm1663, %v1655, %v1671
        %v1680 = vsel %vm1664, %v1656, %v1672
        %v1681 = vsel %vm1665, %v1657, %v1673
        %v1682 = vsel %vm1666, %v1658, %v1674
        %v1683 = vsel %vm1667, %v1659, %v1675
        %v1684 = vld [vmem:[#allocation2] sm:$0xf]
        %v1685 = vld [vmem:[#allocation2 + $0x4] sm:$0xf]
        %v1686 = vld [vmem:[#allocation2 + $0x8] sm:$0xf]
        %v1687 = vld [vmem:[#allocation2 + $0xc] sm:$0xf]
        %v1688 = vld [vmem:[#allocation2 + $0x10] sm:$0xf]
        %v1689 = vld [vmem:[#allocation2 + $0x14] sm:$0xf]
        %v1690 = vld [vmem:[#allocation2 + $0x18] sm:$0xf]
        %v1691 = vld [vmem:[#allocation2 + $0x1c] sm:$0xf]
        %v1692 = vpack.c.bf16 %v1677, %v1676
        %v1693 = vpack.c.bf16 %v1679, %v1678
        %v1694 = vpack.c.bf16 %v1681, %v1680
        %v1695 = vpack.c.bf16 %v1683, %v1682
        %v1704 = vunpack.c.l.b16 %v1684
        %v1705 = vunpack.c.l.b16 %v1685
        %v1706 = vunpack.c.l.b16 %v1686
        %v1707 = vunpack.c.l.b16 %v1687
        %v1708 = vunpack.c.l.b16 %v1688
        %v1709 = vunpack.c.l.b16 %v1689
        %v1710 = vunpack.c.l.b16 %v1690
        %v1711 = vunpack.c.l.b16 %v1691
        %v1712 = vpack.c.b16 %v1705, %v1704
        %v1713 = vpack.c.b16 %v1707, %v1706
        %v1714 = vpack.c.b16 %v1709, %v1708
        %v1715 = vpack.c.b16 %v1711, %v1710
        %vm1716 = vcmask 523264
        %v1718 = vsel %vm1716, %v1712, 0
        %v1721 = vsel %vm1716, %v1713, 0
        %v1724 = vsel %vm1716, %v1714, 0
        %v1727 = vsel %vm1716, %v1715, 0
        %1729 = vmatprep.subr.bf16.mxu0 0
        %1730 = vmatpush1.bf16.msra.mxu0 0
        %1731 = vmatprep.subr.bf16.mxu0 0
        %1732 = vmatpush1.bf16.msra.mxu0 0
        %1733 = vmatprep.subr.bf16.mxu0 0
        %1734 = vmatpush1.bf16.msra.mxu0 0
        %1735 = vmatprep.subr.bf16.mxu0 0
        %1736 = vmatpush1.bf16.msra.mxu0 0
        %1737 = vmatprep.subr.bf16.mxu0 0
        %1738 = vmatpush1.bf16.msra.mxu0 %v1695
        %1739 = vmatprep.subr.bf16.mxu0 0
        %1740 = vmatpush1.bf16.msra.mxu0 %v1694
        %1741 = vmatprep.subr.bf16.mxu0 0
        %1742 = vmatpush1.bf16.msra.mxu0 %v1693
        %1743 = vmatprep.subr.bf16.mxu0 0
        %1744 = vmatpush1.bf16.msra.mxu0 %v1692
        %1745 = vmatprep.subr.bf16.mxu0 0
        %1746 = vmatpush2.bf16.msra.mxu0 0
        %1747 = vmatprep.subr.bf16.mxu0 0
        %1748 = vmatpush2.bf16.msra.mxu0 0
        %1749 = vmatprep.subr.bf16.mxu0 0
        %1750 = vmatpush2.bf16.msra.mxu0 0
        %1751 = vmatprep.subr.bf16.mxu0 0
        %1752 = vmatpush2.bf16.msra.mxu0 0
        %1753 = vmatprep.subr.bf16.mxu0 0
        %1754 = vmatpush2.bf16.msra.mxu0 0
        %1755 = vmatprep.subr.bf16.mxu0 0
        %1756 = vmatpush2.bf16.msra.mxu0 0
        %1757 = vmatprep.subr.bf16.mxu0 0
        %1758 = vmatpush2.bf16.msra.mxu0 0
        %1759 = vmatprep.subr.bf16.mxu0 0
        %1760 = vmatpush2.bf16.msra.mxu0 0
        %1761 = vmatprep.mubr.bf16.mxu0 0
        %1762 = vmatmul.mubr.bf16.gmra.mxu0 %v1718
        %v1763 = vpop.f32.mrf.mxu0
        %v1764 = vadd.f32 0.0, %v1763
        %v1765 = vpop.f32.mrf.mxu0
        %v1766 = vpop.f32.mrf.mxu0
        %v1767 = vadd.f32 0.0, %v1766
        %v1768 = vpop.f32.mrf.mxu0
        %1769 = vmatprep.mubr.bf16.mxu0 0
        %1770 = vmatmul.mubr.bf16.gmra.mxu0 %v1721
        %v1771 = vpop.f32.mrf.mxu0
        %v1772 = vadd.f32 0.0, %v1771
        %v1773 = vpop.f32.mrf.mxu0
        %v1774 = vpop.f32.mrf.mxu0
        %v1775 = vadd.f32 0.0, %v1774
        %v1776 = vpop.f32.mrf.mxu0
        %1777 = vmatprep.mubr.bf16.mxu0 0
        %1778 = vmatmul.mubr.bf16.gmra.mxu0 %v1724
        %v1779 = vpop.f32.mrf.mxu0
        %v1780 = vadd.f32 0.0, %v1779
        %v1781 = vpop.f32.mrf.mxu0
        %v1782 = vpop.f32.mrf.mxu0
        %v1783 = vadd.f32 0.0, %v1782
        %v1784 = vpop.f32.mrf.mxu0
        %1785 = vmatprep.mubr.bf16.mxu0 0
        %1786 = vmatmul.mubr.bf16.gmra.mxu0 %v1727
        %v1787 = vpop.f32.mrf.mxu0
        %v1788 = vadd.f32 0.0, %v1787
        %v1789 = vpop.f32.mrf.mxu0
        %v1790 = vpop.f32.mrf.mxu0
        %v1791 = vadd.f32 0.0, %v1790
        %v1792 = vpop.f32.mrf.mxu0
        %1793 = vdwg.mxu0
        %v1794 = vld [vmem:[%s11] sm:$0xff]
        %v1795 = vld [vmem:[%s11 + $0x8] sm:$0xff]
        %v1796 = vld [vmem:[%s11 + $0x10] sm:$0xff]
        %v1797 = vld [vmem:[%s11 + $0x18] sm:$0xff]
        %v1798 = vld [vmem:[%s11 + $0x20] sm:$0xff]
        %v1799 = vld [vmem:[%s11 + $0x28] sm:$0xff]
        %v1800 = vld [vmem:[%s11 + $0x30] sm:$0xff]
        %v1801 = vld [vmem:[%s11 + $0x38] sm:$0xff]
        %1803 = vset.pattern.permute.xlu0 0
        %1804 = vperm.xlu0 %1803, %v1794
        %v1805 = vpop.permute.xlu0 %1804
        %1808 = vset.pattern.permute.xlu0 0
        %1809 = vperm.xlu0 %1808, %v1795
        %v1810 = vpop.permute.xlu0 %1809
        %1813 = vset.pattern.permute.xlu0 0
        %1814 = vperm.xlu0 %1813, %v1796
        %v1815 = vpop.permute.xlu0 %1814
        %1818 = vset.pattern.permute.xlu0 0
        %1819 = vperm.xlu0 %1818, %v1797
        %v1820 = vpop.permute.xlu0 %1819
        %1823 = vset.pattern.permute.xlu0 0
        %1824 = vperm.xlu0 %1823, %v1798
        %v1825 = vpop.permute.xlu0 %1824
        %1828 = vset.pattern.permute.xlu0 0
        %1829 = vperm.xlu0 %1828, %v1799
        %v1830 = vpop.permute.xlu0 %1829
        %1833 = vset.pattern.permute.xlu0 0
        %1834 = vperm.xlu0 %1833, %v1800
        %v1835 = vpop.permute.xlu0 %1834
        %1838 = vset.pattern.permute.xlu0 0
        %1839 = vperm.xlu0 %1838, %v1801
        %v1840 = vpop.permute.xlu0 %1839
        %v1842 = vmul.f32 %v1764, %v1805
        %v1843 = vmul.f32 %v1767, %v1810
        %v1844 = vmul.f32 %v1772, %v1815
        %v1845 = vmul.f32 %v1775, %v1820
        %v1846 = vmul.f32 %v1780, %v1825
        %v1847 = vmul.f32 %v1783, %v1830
        %v1848 = vmul.f32 %v1788, %v1835
        %v1849 = vmul.f32 %v1791, %v1840
        %v1850 = vld [vmem:[%s13] sm:$0xff]
        %v1851 = vld [vmem:[%s13 + $0x8] sm:$0xff]
        %v1852 = vld [vmem:[%s13 + $0x10] sm:$0xff]
        %v1853 = vld [vmem:[%s13 + $0x18] sm:$0xff]
        %v1854 = vld [vmem:[%s13 + $0x20] sm:$0xff]
        %v1855 = vld [vmem:[%s13 + $0x28] sm:$0xff]
        %v1856 = vld [vmem:[%s13 + $0x30] sm:$0xff]
        %v1857 = vld [vmem:[%s13 + $0x38] sm:$0xff]
        %1859 = vset.pattern.permute.xlu0 0
        %1860 = vperm.xlu0 %1859, %v1850
        %v1861 = vpop.permute.xlu0 %1860
        %1864 = vset.pattern.permute.xlu0 0
        %1865 = vperm.xlu0 %1864, %v1851
        %v1866 = vpop.permute.xlu0 %1865
        %1869 = vset.pattern.permute.xlu0 0
        %1870 = vperm.xlu0 %1869, %v1852
        %v1871 = vpop.permute.xlu0 %1870
        %1874 = vset.pattern.permute.xlu0 0
        %1875 = vperm.xlu0 %1874, %v1853
        %v1876 = vpop.permute.xlu0 %1875
        %1879 = vset.pattern.permute.xlu0 0
        %1880 = vperm.xlu0 %1879, %v1854
        %v1881 = vpop.permute.xlu0 %1880
        %1884 = vset.pattern.permute.xlu0 0
        %1885 = vperm.xlu0 %1884, %v1855
        %v1886 = vpop.permute.xlu0 %1885
        %1889 = vset.pattern.permute.xlu0 0
        %1890 = vperm.xlu0 %1889, %v1856
        %v1891 = vpop.permute.xlu0 %1890
        %1894 = vset.pattern.permute.xlu0 0
        %1895 = vperm.xlu0 %1894, %v1857
        %v1896 = vpop.permute.xlu0 %1895
        %v1898 = vadd.f32 %v1842, %v1861
        %v1899 = vadd.f32 %v1843, %v1866
        %v1900 = vadd.f32 %v1844, %v1871
        %v1901 = vadd.f32 %v1845, %v1876
        %v1902 = vadd.f32 %v1846, %v1881
        %v1903 = vadd.f32 %v1847, %v1886
        %v1904 = vadd.f32 %v1848, %v1891
        %v1905 = vadd.f32 %v1849, %v1896
        %vm1906 = vcmp.ge.f32.partialorder %v1898, 0.0
        %vm1907 = vcmp.ge.f32.partialorder %v1899, 0.0
        %vm1908 = vcmp.ge.f32.partialorder %v1900, 0.0
        %vm1909 = vcmp.ge.f32.partialorder %v1901, 0.0
        %vm1910 = vcmp.ge.f32.partialorder %v1902, 0.0
        %vm1911 = vcmp.ge.f32.partialorder %v1903, 0.0
        %vm1912 = vcmp.ge.f32.partialorder %v1904, 0.0
        %vm1913 = vcmp.ge.f32.partialorder %v1905, 0.0
        %v1914 = vmul.f32 %v1898, 0.2
        %v1915 = vmul.f32 %v1899, 0.2
        %v1916 = vmul.f32 %v1900, 0.2
        %v1917 = vmul.f32 %v1901, 0.2
        %v1918 = vmul.f32 %v1902, 0.2
        %v1919 = vmul.f32 %v1903, 0.2
        %v1920 = vmul.f32 %v1904, 0.2
        %v1921 = vmul.f32 %v1905, 0.2
        %v1922 = vsel %vm1906, %v1898, %v1914
        %v1923 = vsel %vm1907, %v1899, %v1915
        %v1924 = vsel %vm1908, %v1900, %v1916
        %v1925 = vsel %vm1909, %v1901, %v1917
        %v1926 = vsel %vm1910, %v1902, %v1918
        %v1927 = vsel %vm1911, %v1903, %v1919
        %v1928 = vsel %vm1912, %v1904, %v1920
        %v1929 = vsel %vm1913, %v1905, %v1921
        %1930 = vxpose.xlu0.b32.start [1/16] %v1922, 128
        %1931 = vxpose.xlu0.b32.cont [2/16] %v1923, 128
        %1932 = vxpose.xlu0.b32.cont [3/16] %v1924, 128
        %1933 = vxpose.xlu0.b32.cont [4/16] %v1925, 128
        %1934 = vxpose.xlu0.b32.cont [5/16] %v1926, 128
        %1935 = vxpose.xlu0.b32.cont [6/16] %v1927, 128
        %1936 = vxpose.xlu0.b32.cont [7/16] %v1928, 128
        %1937 = vxpose.xlu0.b32.cont [8/16] %v1929, 128
        %1938 = vxpose.xlu0.b32.cont [9/16] 0.0, 128
        %1939 = vxpose.xlu0.b32.cont [10/16] 0.0, 128
        %1940 = vxpose.xlu0.b32.cont [11/16] 0.0, 128
        %1941 = vxpose.xlu0.b32.cont [12/16] 0.0, 128
        %1942 = vxpose.xlu0.b32.cont [13/16] 0.0, 128
        %1943 = vxpose.xlu0.b32.cont [14/16] 0.0, 128
        %1944 = vxpose.xlu0.b32.cont [15/16] 0.0, 128
        %1945 = vxpose.xlu0.b32.end [16/16] 0.0, 128
        %v1946 = vpop.trf.xlu0
        %v1947 = vpop.trf.xlu0
        %v1948 = vpop.trf.xlu0
        %v1949 = vpop.trf.xlu0
        %v1950 = vpop.trf.xlu0
        %v1951 = vpop.trf.xlu0
        %v1952 = vpop.trf.xlu0
        %v1953 = vpop.trf.xlu0
        %v1954 = vpop.trf.xlu0
        %v1955 = vpop.trf.xlu0
        %v1956 = vpop.trf.xlu0
        %v1957 = vpop.trf.xlu0
        %v1958 = vpop.trf.xlu0
        %v1959 = vpop.trf.xlu0
        %v1960 = vpop.trf.xlu0
        %v1961 = vpop.trf.xlu0
        %v1962 = vld [vmem:[#allocation5] sm:$0xff]
        %v1963 = vld [vmem:[#allocation5 + $0x8] sm:$0xff]
        %v1964 = vld [vmem:[#allocation5 + $0x10] sm:$0xff]
        %v1965 = vld [vmem:[#allocation5 + $0x18] sm:$0xff]
        %v1966 = vld [vmem:[#allocation5 + $0x20] sm:$0xff]
        %v1967 = vld [vmem:[#allocation5 + $0x28] sm:$0xff]
        %v1968 = vld [vmem:[#allocation5 + $0x30] sm:$0xff]
        %v1969 = vld [vmem:[#allocation5 + $0x38] sm:$0xff]
        %v1970 = vpack.c.bf16 %v1947, %v1946
        %v1971 = vpack.c.bf16 %v1949, %v1948
        %v1972 = vpack.c.bf16 %v1951, %v1950
        %v1973 = vpack.c.bf16 %v1953, %v1952
        %v1974 = vpack.c.bf16 %v1955, %v1954
        %v1975 = vpack.c.bf16 %v1957, %v1956
        %v1976 = vpack.c.bf16 %v1959, %v1958
        %v1977 = vpack.c.bf16 %v1961, %v1960
        %v1978 = vld [vmem:[%s19] sm:$0x3]
        %v1980 = vlaneseq
        %v1981 = vshrl.u32 %v1980, 7
        %v1982 = vsub.s32 0, %v1981
        %v1983 = vrot.slane %v1978, %v1982
        %v1984 = vlaneseq
        %v1985 = vshrl.u32 %v1984, 7
        %v1986 = vsub.s32 1, %v1985
        %v1987 = vrot.slane %v1978, %v1986
        %v1998 = vunpack.c.l.b16 %v1962
        %v1999 = vunpack.c.h.b16 %v1962
        %v2000 = vunpack.c.l.b16 %v1963
        %v2001 = vunpack.c.h.b16 %v1963
        %v2002 = vunpack.c.l.b16 %v1964
        %v2003 = vunpack.c.h.b16 %v1964
        %v2004 = vunpack.c.l.b16 %v1965
        %v2005 = vunpack.c.h.b16 %v1965
        %v2006 = vunpack.c.l.b16 %v1966
        %v2007 = vunpack.c.h.b16 %v1966
        %v2008 = vunpack.c.l.b16 %v1967
        %v2009 = vunpack.c.h.b16 %v1967
        %v2010 = vunpack.c.l.b16 %v1968
        %v2011 = vunpack.c.h.b16 %v1968
        %v2012 = vunpack.c.l.b16 %v1969
        %v2013 = vunpack.c.h.b16 %v1969
        %v2014 = vpack.c.b16 %v2000, %v1998
        %v2015 = vpack.c.b16 %v2001, %v1999
        %v2016 = vpack.c.b16 %v2004, %v2002
        %v2017 = vpack.c.b16 %v2005, %v2003
        %v2018 = vpack.c.b16 %v2008, %v2006
        %v2019 = vpack.c.b16 %v2009, %v2007
        %v2020 = vpack.c.b16 %v2012, %v2010
        %v2021 = vpack.c.b16 %v2013, %v2011
        %v2031 = vsel %vm1716, %v1970, 0
        %v2034 = vsel %vm1716, %v1971, 0
        %v2037 = vsel %vm1716, %v1972, 0
        %v2040 = vsel %vm1716, %v1973, 0
        %v2043 = vsel %vm1716, %v1974, 0
        %v2046 = vsel %vm1716, %v1975, 0
        %v2049 = vsel %vm1716, %v1976, 0
        %v2052 = vsel %vm1716, %v1977, 0
        %2054 = vmatprep.subr.bf16.mxu0 0
        %2055 = vmatpush1.bf16.msra.mxu0 0
        %2056 = vmatprep.subr.bf16.mxu0 0
        %2057 = vmatpush1.bf16.msra.mxu0 0
        %2058 = vmatprep.subr.bf16.mxu0 0
        %2059 = vmatpush1.bf16.msra.mxu0 0
        %2060 = vmatprep.subr.bf16.mxu0 0
        %2061 = vmatpush1.bf16.msra.mxu0 0
        %2062 = vmatprep.subr.bf16.mxu0 %v2021
        %2063 = vmatpush1.bf16.msra.mxu0 %v2020
        %2064 = vmatprep.subr.bf16.mxu0 %v2019
        %2065 = vmatpush1.bf16.msra.mxu0 %v2018
        %2066 = vmatprep.subr.bf16.mxu0 %v2017
        %2067 = vmatpush1.bf16.msra.mxu0 %v2016
        %2068 = vmatprep.subr.bf16.mxu0 %v2015
        %2069 = vmatpush1.bf16.msra.mxu0 %v2014
        %2070 = vmatprep.subr.bf16.mxu0 0
        %2071 = vmatpush2.bf16.msra.mxu0 0
        %2072 = vmatprep.subr.bf16.mxu0 0
        %2073 = vmatpush2.bf16.msra.mxu0 0
        %2074 = vmatprep.subr.bf16.mxu0 0
        %2075 = vmatpush2.bf16.msra.mxu0 0
        %2076 = vmatprep.subr.bf16.mxu0 0
        %2077 = vmatpush2.bf16.msra.mxu0 0
        %2078 = vmatprep.subr.bf16.mxu0 0
        %2079 = vmatpush2.bf16.msra.mxu0 0
        %2080 = vmatprep.subr.bf16.mxu0 0
        %2081 = vmatpush2.bf16.msra.mxu0 0
        %2082 = vmatprep.subr.bf16.mxu0 0
        %2083 = vmatpush2.bf16.msra.mxu0 0
        %2084 = vmatprep.subr.bf16.mxu0 0
        %2085 = vmatpush2.bf16.msra.mxu0 0
        %2086 = vmatprep.mubr.bf16.mxu0 0
        %2087 = vmatmul.mubr.bf16.gmra.mxu0 %v2031
        %v2088 = vpop.f32.mrf.mxu0
        %v2089 = vadd.f32 %v1983, %v2088
        %v2090 = vpop.f32.mrf.mxu0
        %v2091 = vadd.f32 %v1987, %v2090
        %v2092 = vpop.f32.mrf.mxu0
        %v2093 = vadd.f32 %v1983, %v2092
        %v2094 = vpop.f32.mrf.mxu0
        %v2095 = vadd.f32 %v1987, %v2094
        %2096 = vmatprep.mubr.bf16.mxu0 0
        %2097 = vmatmul.mubr.bf16.gmra.mxu0 %v2034
        %v2098 = vpop.f32.mrf.mxu0
        %v2099 = vadd.f32 %v1983, %v2098
        %v2100 = vpop.f32.mrf.mxu0
        %v2101 = vadd.f32 %v1987, %v2100
        %v2102 = vpop.f32.mrf.mxu0
        %v2103 = vadd.f32 %v1983, %v2102
        %v2104 = vpop.f32.mrf.mxu0
        %v2105 = vadd.f32 %v1987, %v2104
        %2106 = vmatprep.mubr.bf16.mxu0 0
        %2107 = vmatmul.mubr.bf16.gmra.mxu0 %v2037
        %v2108 = vpop.f32.mrf.mxu0
        %v2109 = vadd.f32 %v1983, %v2108
        %v2110 = vpop.f32.mrf.mxu0
        %v2111 = vadd.f32 %v1987, %v2110
        %v2112 = vpop.f32.mrf.mxu0
        %v2113 = vadd.f32 %v1983, %v2112
        %v2114 = vpop.f32.mrf.mxu0
        %v2115 = vadd.f32 %v1987, %v2114
        %2116 = vmatprep.mubr.bf16.mxu0 0
        %2117 = vmatmul.mubr.bf16.gmra.mxu0 %v2040
        %v2118 = vpop.f32.mrf.mxu0
        %v2119 = vadd.f32 %v1983, %v2118
        %v2120 = vpop.f32.mrf.mxu0
        %v2121 = vadd.f32 %v1987, %v2120
        %v2122 = vpop.f32.mrf.mxu0
        %v2123 = vadd.f32 %v1983, %v2122
        %v2124 = vpop.f32.mrf.mxu0
        %v2125 = vadd.f32 %v1987, %v2124
        %2126 = vmatprep.mubr.bf16.mxu0 0
        %2127 = vmatmul.mubr.bf16.gmra.mxu0 %v2043
        %v2128 = vpop.f32.mrf.mxu0
        %v2129 = vadd.f32 %v1983, %v2128
        %v2130 = vpop.f32.mrf.mxu0
        %v2131 = vadd.f32 %v1987, %v2130
        %v2132 = vpop.f32.mrf.mxu0
        %v2133 = vadd.f32 %v1983, %v2132
        %v2134 = vpop.f32.mrf.mxu0
        %v2135 = vadd.f32 %v1987, %v2134
        %2136 = vmatprep.mubr.bf16.mxu0 0
        %2137 = vmatmul.mubr.bf16.gmra.mxu0 %v2046
        %v2138 = vpop.f32.mrf.mxu0
        %v2139 = vadd.f32 %v1983, %v2138
        %v2140 = vpop.f32.mrf.mxu0
        %v2141 = vadd.f32 %v1987, %v2140
        %v2142 = vpop.f32.mrf.mxu0
        %v2143 = vadd.f32 %v1983, %v2142
        %v2144 = vpop.f32.mrf.mxu0
        %v2145 = vadd.f32 %v1987, %v2144
        %2146 = vmatprep.mubr.bf16.mxu0 0
        %2147 = vmatmul.mubr.bf16.gmra.mxu0 %v2049
        %v2148 = vpop.f32.mrf.mxu0
        %v2149 = vadd.f32 %v1983, %v2148
        %v2150 = vpop.f32.mrf.mxu0
        %v2151 = vadd.f32 %v1987, %v2150
        %v2152 = vpop.f32.mrf.mxu0
        %v2153 = vadd.f32 %v1983, %v2152
        %v2154 = vpop.f32.mrf.mxu0
        %v2155 = vadd.f32 %v1987, %v2154
        %2156 = vmatprep.mubr.bf16.mxu0 0
        %2157 = vmatmul.mubr.bf16.gmra.mxu0 %v2052
        %v2158 = vpop.f32.mrf.mxu0
        %v2159 = vadd.f32 %v1983, %v2158
        %v2160 = vpop.f32.mrf.mxu0
        %v2161 = vadd.f32 %v1987, %v2160
        %v2162 = vpop.f32.mrf.mxu0
        %v2163 = vadd.f32 %v1983, %v2162
        %v2164 = vpop.f32.mrf.mxu0
        %v2165 = vadd.f32 %v1987, %v2164
        %2166 = vdwg.mxu0
        %v2167 = vmul.f32 %v2089, 0.125
        %v2168 = vmul.f32 %v2093, 0.125
        %v2169 = vmul.f32 %v2099, 0.125
        %v2170 = vmul.f32 %v2103, 0.125
        %v2171 = vmul.f32 %v2109, 0.125
        %v2172 = vmul.f32 %v2113, 0.125
        %v2173 = vmul.f32 %v2119, 0.125
        %v2174 = vmul.f32 %v2123, 0.125
        %v2175 = vmul.f32 %v2129, 0.125
        %v2176 = vmul.f32 %v2133, 0.125
        %v2177 = vmul.f32 %v2139, 0.125
        %v2178 = vmul.f32 %v2143, 0.125
        %v2179 = vmul.f32 %v2149, 0.125
        %v2180 = vmul.f32 %v2153, 0.125
        %v2181 = vmul.f32 %v2159, 0.125
        %v2182 = vmul.f32 %v2163, 0.125
        %v2183 = vpack.c.bf16 %v2093, %v2089
        %v2184 = vpack.c.bf16 %v2103, %v2099
        %v2185 = vpack.c.bf16 %v2113, %v2109
        %v2186 = vpack.c.bf16 %v2123, %v2119
        %v2187 = vpack.c.bf16 %v2133, %v2129
        %v2188 = vpack.c.bf16 %v2143, %v2139
        %v2189 = vpack.c.bf16 %v2153, %v2149
        %v2190 = vpack.c.bf16 %v2163, %v2159
        %v2191 = vpack.c.bf16 %v2168, %v2167
        %v2192 = vpack.c.bf16 %v2170, %v2169
        %v2193 = vpack.c.bf16 %v2172, %v2171
        %v2194 = vpack.c.bf16 %v2174, %v2173
        %v2195 = vpack.c.bf16 %v2176, %v2175
        %v2196 = vpack.c.bf16 %v2178, %v2177
        %v2197 = vpack.c.bf16 %v2180, %v2179
        %v2198 = vpack.c.bf16 %v2182, %v2181
        %2207 = vrot.lane.b32.xlu0 %v2191, 64
        %v2208 = vpop.permute.xlu0 %2207
        %2209 = vrot.lane.b32.xlu0 %v2192, 64
        %v2210 = vpop.permute.xlu0 %2209
        %2211 = vrot.lane.b32.xlu0 %v2193, 64
        %v2212 = vpop.permute.xlu0 %2211
        %2213 = vrot.lane.b32.xlu0 %v2194, 64
        %v2214 = vpop.permute.xlu0 %2213
        %2215 = vrot.lane.b32.xlu0 %v2195, 64
        %v2216 = vpop.permute.xlu0 %2215
        %2217 = vrot.lane.b32.xlu0 %v2196, 64
        %v2218 = vpop.permute.xlu0 %2217
        %2219 = vrot.lane.b32.xlu0 %v2197, 64
        %v2220 = vpop.permute.xlu0 %2219
        %2221 = vrot.lane.b32.xlu0 %v2198, 64
        %v2222 = vpop.permute.xlu0 %2221
        %v2224 = vsel %vm1716, %v2183, 0
        %v2227 = vsel %vm1716, %v2184, 0
        %v2230 = vsel %vm1716, %v2185, 0
        %v2233 = vsel %vm1716, %v2186, 0
        %v2236 = vsel %vm1716, %v2187, 0
        %v2239 = vsel %vm1716, %v2188, 0
        %v2242 = vsel %vm1716, %v2189, 0
        %v2245 = vsel %vm1716, %v2190, 0
        %v2248 = vsel %vm1716, %v2208, 0
        %v2251 = vsel %vm1716, %v2210, 0
        %v2254 = vsel %vm1716, %v2212, 0
        %v2257 = vsel %vm1716, %v2214, 0
        %v2260 = vsel %vm1716, %v2216, 0
        %v2263 = vsel %vm1716, %v2218, 0
        %v2266 = vsel %vm1716, %v2220, 0
        %v2269 = vsel %vm1716, %v2222, 0
        %2271 = vmatprep.subr.bf16.mxu0 0
        %2272 = vmatpush1.bf16.xpose.msra.mxu0 %v2269
        %2273 = vmatprep.subr.bf16.mxu0 0
        %2274 = vmatpush1.bf16.xpose.msra.mxu0 %v2266
        %2275 = vmatprep.subr.bf16.mxu0 0
        %2276 = vmatpush1.bf16.xpose.msra.mxu0 %v2263
        %2277 = vmatprep.subr.bf16.mxu0 0
        %2278 = vmatpush1.bf16.xpose.msra.mxu0 %v2260
        %2279 = vmatprep.subr.bf16.mxu0 0
        %2280 = vmatpush1.bf16.xpose.msra.mxu0 %v2257
        %2281 = vmatprep.subr.bf16.mxu0 0
        %2282 = vmatpush1.bf16.xpose.msra.mxu0 %v2254
        %2283 = vmatprep.subr.bf16.mxu0 0
        %2284 = vmatpush1.bf16.xpose.msra.mxu0 %v2251
        %2285 = vmatprep.subr.bf16.mxu0 0
        %2286 = vmatpush1.bf16.xpose.msra.mxu0 %v2248
        %2287 = vmatprep.subr.bf16.mxu0 0
        %2288 = vmatpush2.bf16.xpose.msra.mxu0 0
        %2289 = vmatprep.subr.bf16.mxu0 0
        %2290 = vmatpush2.bf16.xpose.msra.mxu0 0
        %2291 = vmatprep.subr.bf16.mxu0 0
        %2292 = vmatpush2.bf16.xpose.msra.mxu0 0
        %2293 = vmatprep.subr.bf16.mxu0 0
        %2294 = vmatpush2.bf16.xpose.msra.mxu0 0
        %2295 = vmatprep.subr.bf16.mxu0 0
        %2296 = vmatpush2.bf16.xpose.msra.mxu0 0
        %2297 = vmatprep.subr.bf16.mxu0 0
        %2298 = vmatpush2.bf16.xpose.msra.mxu0 0
        %2299 = vmatprep.subr.bf16.mxu0 0
        %2300 = vmatpush2.bf16.xpose.msra.mxu0 0
        %2301 = vmatprep.subr.bf16.mxu0 0
        %2302 = vmatpush2.bf16.xpose.msra.mxu0 0
        %2303 = vmatprep.mubr.bf16.mxu0 0
        %2304 = vmatmul.mubr.bf16.gmra.mxu0 %v2224
        %v2305 = vpop.f32.mrf.mxu0
        %v2306 = vadd.f32 0.0, %v2305
        %v2307 = vpop.f32.mrf.mxu0
        %v2308 = vpop.f32.mrf.mxu0
        %v2309 = vadd.f32 0.0, %v2308
        %v2310 = vpop.f32.mrf.mxu0
        %2311 = vmatprep.mubr.bf16.mxu0 0
        %2312 = vmatmul.mubr.bf16.gmra.mxu0 %v2227
        %v2313 = vpop.f32.mrf.mxu0
        %v2314 = vadd.f32 0.0, %v2313
        %v2315 = vpop.f32.mrf.mxu0
        %v2316 = vpop.f32.mrf.mxu0
        %v2317 = vadd.f32 0.0, %v2316
        %v2318 = vpop.f32.mrf.mxu0
        %2319 = vmatprep.mubr.bf16.mxu0 0
        %2320 = vmatmul.mubr.bf16.gmra.mxu0 %v2230
        %v2321 = vpop.f32.mrf.mxu0
        %v2322 = vadd.f32 0.0, %v2321
        %v2323 = vpop.f32.mrf.mxu0
        %v2324 = vpop.f32.mrf.mxu0
        %v2325 = vadd.f32 0.0, %v2324
        %v2326 = vpop.f32.mrf.mxu0
        %2327 = vmatprep.mubr.bf16.mxu0 0
        %2328 = vmatmul.mubr.bf16.gmra.mxu0 %v2233
        %v2329 = vpop.f32.mrf.mxu0
        %v2330 = vadd.f32 0.0, %v2329
        %v2331 = vpop.f32.mrf.mxu0
        %v2332 = vpop.f32.mrf.mxu0
        %v2333 = vadd.f32 0.0, %v2332
        %v2334 = vpop.f32.mrf.mxu0
        %2335 = vmatprep.mubr.bf16.mxu0 0
        %2336 = vmatmul.mubr.bf16.gmra.mxu0 %v2236
        %v2337 = vpop.f32.mrf.mxu0
        %v2338 = vadd.f32 0.0, %v2337
        %v2339 = vpop.f32.mrf.mxu0
        %v2340 = vpop.f32.mrf.mxu0
        %v2341 = vadd.f32 0.0, %v2340
        %v2342 = vpop.f32.mrf.mxu0
        %2343 = vmatprep.mubr.bf16.mxu0 0
        %2344 = vmatmul.mubr.bf16.gmra.mxu0 %v2239
        %v2345 = vpop.f32.mrf.mxu0
        %v2346 = vadd.f32 0.0, %v2345
        %v2347 = vpop.f32.mrf.mxu0
        %v2348 = vpop.f32.mrf.mxu0
        %v2349 = vadd.f32 0.0, %v2348
        %v2350 = vpop.f32.mrf.mxu0
        %2351 = vmatprep.mubr.bf16.mxu0 0
        %2352 = vmatmul.mubr.bf16.gmra.mxu0 %v2242
        %v2353 = vpop.f32.mrf.mxu0
        %v2354 = vadd.f32 0.0, %v2353
        %v2355 = vpop.f32.mrf.mxu0
        %v2356 = vpop.f32.mrf.mxu0
        %v2357 = vadd.f32 0.0, %v2356
        %v2358 = vpop.f32.mrf.mxu0
        %2359 = vmatprep.mubr.bf16.mxu0 0
        %2360 = vmatmul.mubr.bf16.gmra.mxu0 %v2245
        %v2361 = vpop.f32.mrf.mxu0
        %v2362 = vadd.f32 0.0, %v2361
        %v2363 = vpop.f32.mrf.mxu0
        %v2364 = vpop.f32.mrf.mxu0
        %v2365 = vadd.f32 0.0, %v2364
        %v2366 = vpop.f32.mrf.mxu0
        %2367 = vdwg.mxu0
        %2368 = vmax.xlane.f32.xlu0 %v2306
        %v2369 = vpop.xlane.xlu0 %2368
        %2370 = vmax.xlane.f32.xlu0 %v2309
        %v2371 = vpop.xlane.xlu0 %2370
        %2372 = vmax.xlane.f32.xlu0 %v2314
        %v2373 = vpop.xlane.xlu0 %2372
        %2374 = vmax.xlane.f32.xlu0 %v2317
        %v2375 = vpop.xlane.xlu0 %2374
        %2376 = vmax.xlane.f32.xlu0 %v2322
        %v2377 = vpop.xlane.xlu0 %2376
        %2378 = vmax.xlane.f32.xlu0 %v2325
        %v2379 = vpop.xlane.xlu0 %2378
        %2380 = vmax.xlane.f32.xlu0 %v2330
        %v2381 = vpop.xlane.xlu0 %2380
        %2382 = vmax.xlane.f32.xlu0 %v2333
        %v2383 = vpop.xlane.xlu0 %2382
        %2384 = vmax.xlane.f32.xlu0 %v2338
        %v2385 = vpop.xlane.xlu0 %2384
        %2386 = vmax.xlane.f32.xlu0 %v2341
        %v2387 = vpop.xlane.xlu0 %2386
        %2388 = vmax.xlane.f32.xlu0 %v2346
        %v2389 = vpop.xlane.xlu0 %2388
        %2390 = vmax.xlane.f32.xlu0 %v2349
        %v2391 = vpop.xlane.xlu0 %2390
        %2392 = vmax.xlane.f32.xlu0 %v2354
        %v2393 = vpop.xlane.xlu0 %2392
        %2394 = vmax.xlane.f32.xlu0 %v2357
        %v2395 = vpop.xlane.xlu0 %2394
        %2396 = vmax.xlane.f32.xlu0 %v2362
        %v2397 = vpop.xlane.xlu0 %2396
        %2398 = vmax.xlane.f32.xlu0 %v2365
        %v2399 = vpop.xlane.xlu0 %2398
        %v2400 = vsub.f32 %v2306, %v2369
        %v2401 = vsub.f32 %v2309, %v2371
        %v2402 = vsub.f32 %v2314, %v2373
        %v2403 = vsub.f32 %v2317, %v2375
        %v2404 = vsub.f32 %v2322, %v2377
        %v2405 = vsub.f32 %v2325, %v2379
        %v2406 = vsub.f32 %v2330, %v2381
        %v2407 = vsub.f32 %v2333, %v2383
        %v2408 = vsub.f32 %v2338, %v2385
        %v2409 = vsub.f32 %v2341, %v2387
        %v2410 = vsub.f32 %v2346, %v2389
        %v2411 = vsub.f32 %v2349, %v2391
        %v2412 = vsub.f32 %v2354, %v2393
        %v2413 = vsub.f32 %v2357, %v2395
        %v2414 = vsub.f32 %v2362, %v2397
        %v2415 = vsub.f32 %v2365, %v2399
        %v2416 = vmul.f32 %v2400, 1.442695
        %v2417 = vpow.pop %v2416
        %v2418 = vmul.f32 %v2401, 1.442695
        %v2419 = vpow.pop %v2418
        %v2420 = vmul.f32 %v2402, 1.442695
        %v2421 = vpow.pop %v2420
        %v2422 = vmul.f32 %v2403, 1.442695
        %v2423 = vpow.pop %v2422
        %v2424 = vmul.f32 %v2404, 1.442695
        %v2425 = vpow.pop %v2424
        %v2426 = vmul.f32 %v2405, 1.442695
        %v2427 = vpow.pop %v2426
        %v2428 = vmul.f32 %v2406, 1.442695
        %v2429 = vpow.pop %v2428
        %v2430 = vmul.f32 %v2407, 1.442695
        %v2431 = vpow.pop %v2430
        %v2432 = vmul.f32 %v2408, 1.442695
        %v2433 = vpow.pop %v2432
        %v2434 = vmul.f32 %v2409, 1.442695
        %v2435 = vpow.pop %v2434
        %v2436 = vmul.f32 %v2410, 1.442695
        %v2437 = vpow.pop %v2436
        %v2438 = vmul.f32 %v2411, 1.442695
        %v2439 = vpow.pop %v2438
        %v2440 = vmul.f32 %v2412, 1.442695
        %v2441 = vpow.pop %v2440
        %v2442 = vmul.f32 %v2413, 1.442695
        %v2443 = vpow.pop %v2442
        %v2444 = vmul.f32 %v2414, 1.442695
        %v2445 = vpow.pop %v2444
        %v2446 = vmul.f32 %v2415, 1.442695
        %v2447 = vpow.pop %v2446
        %2448 = vadd.xlane.f32.xlu0 %v2417
        %v2449 = vpop.xlane.xlu0 %2448
        %2450 = vadd.xlane.f32.xlu0 %v2419
        %v2451 = vpop.xlane.xlu0 %2450
        %2452 = vadd.xlane.f32.xlu0 %v2421
        %v2453 = vpop.xlane.xlu0 %2452
        %2454 = vadd.xlane.f32.xlu0 %v2423
        %v2455 = vpop.xlane.xlu0 %2454
        %2456 = vadd.xlane.f32.xlu0 %v2425
        %v2457 = vpop.xlane.xlu0 %2456
        %2458 = vadd.xlane.f32.xlu0 %v2427
        %v2459 = vpop.xlane.xlu0 %2458
        %2460 = vadd.xlane.f32.xlu0 %v2429
        %v2461 = vpop.xlane.xlu0 %2460
        %2462 = vadd.xlane.f32.xlu0 %v2431
        %v2463 = vpop.xlane.xlu0 %2462
        %2464 = vadd.xlane.f32.xlu0 %v2433
        %v2465 = vpop.xlane.xlu0 %2464
        %2466 = vadd.xlane.f32.xlu0 %v2435
        %v2467 = vpop.xlane.xlu0 %2466
        %2468 = vadd.xlane.f32.xlu0 %v2437
        %v2469 = vpop.xlane.xlu0 %2468
        %2470 = vadd.xlane.f32.xlu0 %v2439
        %v2471 = vpop.xlane.xlu0 %2470
        %2472 = vadd.xlane.f32.xlu0 %v2441
        %v2473 = vpop.xlane.xlu0 %2472
        %2474 = vadd.xlane.f32.xlu0 %v2443
        %v2475 = vpop.xlane.xlu0 %2474
        %2476 = vadd.xlane.f32.xlu0 %v2445
        %v2477 = vpop.xlane.xlu0 %2476
        %2478 = vadd.xlane.f32.xlu0 %v2447
        %v2479 = vpop.xlane.xlu0 %2478
        %v2480 = vrcp.pop %v2449
        %v2481 = vrcp.pop %v2451
        %v2482 = vrcp.pop %v2453
        %v2483 = vrcp.pop %v2455
        %v2484 = vrcp.pop %v2457
        %v2485 = vrcp.pop %v2459
        %v2486 = vrcp.pop %v2461
        %v2487 = vrcp.pop %v2463
        %v2488 = vrcp.pop %v2465
        %v2489 = vrcp.pop %v2467
        %v2490 = vrcp.pop %v2469
        %v2491 = vrcp.pop %v2471
        %v2492 = vrcp.pop %v2473
        %v2493 = vrcp.pop %v2475
        %v2494 = vrcp.pop %v2477
        %v2495 = vrcp.pop %v2479
        %v2496 = vmul.f32 %v2417, %v2480
        %v2497 = vmul.f32 %v2419, %v2481
        %v2498 = vmul.f32 %v2421, %v2482
        %v2499 = vmul.f32 %v2423, %v2483
        %v2500 = vmul.f32 %v2425, %v2484
        %v2501 = vmul.f32 %v2427, %v2485
        %v2502 = vmul.f32 %v2429, %v2486
        %v2503 = vmul.f32 %v2431, %v2487
        %v2504 = vmul.f32 %v2433, %v2488
        %v2505 = vmul.f32 %v2435, %v2489
        %v2506 = vmul.f32 %v2437, %v2490
        %v2507 = vmul.f32 %v2439, %v2491
        %v2508 = vmul.f32 %v2441, %v2492
        %v2509 = vmul.f32 %v2443, %v2493
        %v2510 = vmul.f32 %v2445, %v2494
        %v2511 = vmul.f32 %v2447, %v2495
        %v2512 = vpack.c.bf16 %v2497, %v2496
        %v2513 = vpack.c.bf16 %v2499, %v2498
        %v2514 = vpack.c.bf16 %v2501, %v2500
        %v2515 = vpack.c.bf16 %v2503, %v2502
        %v2516 = vpack.c.bf16 %v2505, %v2504
        %v2517 = vpack.c.bf16 %v2507, %v2506
        %v2518 = vpack.c.bf16 %v2509, %v2508
        %v2519 = vpack.c.bf16 %v2511, %v2510
        %v2520 = vpack.c.bf16 %v2095, %v2091
        %v2521 = vpack.c.bf16 %v2105, %v2101
        %v2522 = vpack.c.bf16 %v2115, %v2111
        %v2523 = vpack.c.bf16 %v2125, %v2121
        %v2524 = vpack.c.bf16 %v2135, %v2131
        %v2525 = vpack.c.bf16 %v2145, %v2141
        %v2526 = vpack.c.bf16 %v2155, %v2151
        %v2527 = vpack.c.bf16 %v2165, %v2161
        %2528 = vmatprep.subr.bf16.mxu0 0
        %2529 = vmatpush1.bf16.msra.mxu0 %v2527
        %2530 = vmatprep.subr.bf16.mxu0 0
        %2531 = vmatpush1.bf16.msra.mxu0 %v2526
        %2532 = vmatprep.subr.bf16.mxu0 0
        %2533 = vmatpush1.bf16.msra.mxu0 %v2525
        %2534 = vmatprep.subr.bf16.mxu0 0
        %2535 = vmatpush1.bf16.msra.mxu0 %v2524
        %2536 = vmatprep.subr.bf16.mxu0 0
        %2537 = vmatpush1.bf16.msra.mxu0 %v2523
        %2538 = vmatprep.subr.bf16.mxu0 0
        %2539 = vmatpush1.bf16.msra.mxu0 %v2522
        %2540 = vmatprep.subr.bf16.mxu0 0
        %2541 = vmatpush1.bf16.msra.mxu0 %v2521
        %2542 = vmatprep.subr.bf16.mxu0 0
        %2543 = vmatpush1.bf16.msra.mxu0 %v2520
        %2544 = vmatprep.subr.bf16.mxu0 0
        %2545 = vmatpush2.bf16.msra.mxu0 0
        %2546 = vmatprep.subr.bf16.mxu0 0
        %2547 = vmatpush2.bf16.msra.mxu0 0
        %2548 = vmatprep.subr.bf16.mxu0 0
        %2549 = vmatpush2.bf16.msra.mxu0 0
        %2550 = vmatprep.subr.bf16.mxu0 0
        %2551 = vmatpush2.bf16.msra.mxu0 0
        %2552 = vmatprep.subr.bf16.mxu0 0
        %2553 = vmatpush2.bf16.msra.mxu0 0
        %2554 = vmatprep.subr.bf16.mxu0 0
        %2555 = vmatpush2.bf16.msra.mxu0 0
        %2556 = vmatprep.subr.bf16.mxu0 0
        %2557 = vmatpush2.bf16.msra.mxu0 0
        %2558 = vmatprep.subr.bf16.mxu0 0
        %2559 = vmatpush2.bf16.msra.mxu0 0
        %2560 = vmatprep.mubr.bf16.mxu0 0
        %2561 = vmatmul.mubr.bf16.gmra.mxu0 %v2512
        %v2562 = vpop.f32.mrf.mxu0
        %v2563 = vadd.f32 0.0, %v2562
        %v2564 = vpop.f32.mrf.mxu0
        %v2565 = vpop.f32.mrf.mxu0
        %v2566 = vadd.f32 0.0, %v2565
        %v2567 = vpop.f32.mrf.mxu0
        %2568 = vmatprep.mubr.bf16.mxu0 0
        %2569 = vmatmul.mubr.bf16.gmra.mxu0 %v2513
        %v2570 = vpop.f32.mrf.mxu0
        %v2571 = vadd.f32 0.0, %v2570
        %v2572 = vpop.f32.mrf.mxu0
        %v2573 = vpop.f32.mrf.mxu0
        %v2574 = vadd.f32 0.0, %v2573
        %v2575 = vpop.f32.mrf.mxu0
        %2576 = vmatprep.mubr.bf16.mxu0 0
        %2577 = vmatmul.mubr.bf16.gmra.mxu0 %v2514
        %v2578 = vpop.f32.mrf.mxu0
        %v2579 = vadd.f32 0.0, %v2578
        %v2580 = vpop.f32.mrf.mxu0
        %v2581 = vpop.f32.mrf.mxu0
        %v2582 = vadd.f32 0.0, %v2581
        %v2583 = vpop.f32.mrf.mxu0
        %2584 = vmatprep.mubr.bf16.mxu0 0
        %2585 = vmatmul.mubr.bf16.gmra.mxu0 %v2515
        %v2586 = vpop.f32.mrf.mxu0
        %v2587 = vadd.f32 0.0, %v2586
        %v2588 = vpop.f32.mrf.mxu0
        %v2589 = vpop.f32.mrf.mxu0
        %v2590 = vadd.f32 0.0, %v2589
        %v2591 = vpop.f32.mrf.mxu0
        %2592 = vmatprep.mubr.bf16.mxu0 0
        %2593 = vmatmul.mubr.bf16.gmra.mxu0 %v2516
        %v2594 = vpop.f32.mrf.mxu0
        %v2595 = vadd.f32 0.0, %v2594
        %v2596 = vpop.f32.mrf.mxu0
        %v2597 = vpop.f32.mrf.mxu0
        %v2598 = vadd.f32 0.0, %v2597
        %v2599 = vpop.f32.mrf.mxu0
        %2600 = vmatprep.mubr.bf16.mxu0 0
        %2601 = vmatmul.mubr.bf16.gmra.mxu0 %v2517
        %v2602 = vpop.f32.mrf.mxu0
        %v2603 = vadd.f32 0.0, %v2602
        %v2604 = vpop.f32.mrf.mxu0
        %v2605 = vpop.f32.mrf.mxu0
        %v2606 = vadd.f32 0.0, %v2605
        %v2607 = vpop.f32.mrf.mxu0
        %2608 = vmatprep.mubr.bf16.mxu0 0
        %2609 = vmatmul.mubr.bf16.gmra.mxu0 %v2518
        %v2610 = vpop.f32.mrf.mxu0
        %v2611 = vadd.f32 0.0, %v2610
        %v2612 = vpop.f32.mrf.mxu0
        %v2613 = vpop.f32.mrf.mxu0
        %v2614 = vadd.f32 0.0, %v2613
        %v2615 = vpop.f32.mrf.mxu0
        %2616 = vmatprep.mubr.bf16.mxu0 0
        %2617 = vmatmul.mubr.bf16.gmra.mxu0 %v2519
        %v2618 = vpop.f32.mrf.mxu0
        %v2619 = vadd.f32 0.0, %v2618
        %v2620 = vpop.f32.mrf.mxu0
        %v2621 = vpop.f32.mrf.mxu0
        %v2622 = vadd.f32 0.0, %v2621
        %v2623 = vpop.f32.mrf.mxu0
        %2624 = vdwg.mxu0
        %v2625 = vadd.f32 %v2089, %v2563
        %v2626 = vadd.f32 %v2093, %v2566
        %v2627 = vadd.f32 %v2099, %v2571
        %v2628 = vadd.f32 %v2103, %v2574
        %v2629 = vadd.f32 %v2109, %v2579
        %v2630 = vadd.f32 %v2113, %v2582
        %v2631 = vadd.f32 %v2119, %v2587
        %v2632 = vadd.f32 %v2123, %v2590
        %v2633 = vadd.f32 %v2129, %v2595
        %v2634 = vadd.f32 %v2133, %v2598
        %v2635 = vadd.f32 %v2139, %v2603
        %v2636 = vadd.f32 %v2143, %v2606
        %v2637 = vadd.f32 %v2149, %v2611
        %v2638 = vadd.f32 %v2153, %v2614
        %v2639 = vadd.f32 %v2159, %v2619
        %v2640 = vadd.f32 %v2163, %v2622
        %v2641 = vld [vmem:[#allocation7] sm:$0xf]
        %v2642 = vld [vmem:[#allocation7 + $0x4] sm:$0xf]
        %v2643 = vld [vmem:[#allocation7 + $0x8] sm:$0xf]
        %v2644 = vld [vmem:[#allocation7 + $0xc] sm:$0xf]
        %v2645 = vld [vmem:[#allocation7 + $0x10] sm:$0xf]
        %v2646 = vld [vmem:[#allocation7 + $0x14] sm:$0xf]
        %v2647 = vld [vmem:[#allocation7 + $0x18] sm:$0xf]
        %v2648 = vld [vmem:[#allocation7 + $0x1c] sm:$0xf]
        %v2649 = vpack.c.bf16 %v2626, %v2625
        %v2650 = vpack.c.bf16 %v2628, %v2627
        %v2651 = vpack.c.bf16 %v2630, %v2629
        %v2652 = vpack.c.bf16 %v2632, %v2631
        %v2653 = vpack.c.bf16 %v2634, %v2633
        %v2654 = vpack.c.bf16 %v2636, %v2635
        %v2655 = vpack.c.bf16 %v2638, %v2637
        %v2656 = vpack.c.bf16 %v2640, %v2639
        %v2657 = vld [vmem:[#allocation8] sm:$0x1]
        %v2659 = vlaneseq
        %v2660 = vshrl.u32 %v2659, 7
        %v2661 = vsub.s32 0, %v2660
        %v2662 = vrot.slane %v2657, %v2661
        %v2672 = vunpack.c.l.b16 %v2641
        %v2673 = vunpack.c.l.b16 %v2642
        %v2674 = vunpack.c.l.b16 %v2643
        %v2675 = vunpack.c.l.b16 %v2644
        %v2676 = vunpack.c.l.b16 %v2645
        %v2677 = vunpack.c.l.b16 %v2646
        %v2678 = vunpack.c.l.b16 %v2647
        %v2679 = vunpack.c.l.b16 %v2648
        %v2680 = vpack.c.b16 %v2673, %v2672
        %v2681 = vpack.c.b16 %v2675, %v2674
        %v2682 = vpack.c.b16 %v2677, %v2676
        %v2683 = vpack.c.b16 %v2679, %v2678
        %v2689 = vsel %vm1716, %v2649, 0
        %v2692 = vsel %vm1716, %v2650, 0
        %v2695 = vsel %vm1716, %v2651, 0
        %v2698 = vsel %vm1716, %v2652, 0
        %v2701 = vsel %vm1716, %v2653, 0
        %v2704 = vsel %vm1716, %v2654, 0
        %v2707 = vsel %vm1716, %v2655, 0
        %v2710 = vsel %vm1716, %v2656, 0
        %2712 = vmatprep.subr.bf16.mxu0 0
        %2713 = vmatpush1.bf16.msra.mxu0 0
        %2714 = vmatprep.subr.bf16.mxu0 0
        %2715 = vmatpush1.bf16.msra.mxu0 0
        %2716 = vmatprep.subr.bf16.mxu0 0
        %2717 = vmatpush1.bf16.msra.mxu0 0
        %2718 = vmatprep.subr.bf16.mxu0 0
        %2719 = vmatpush1.bf16.msra.mxu0 0
        %2720 = vmatprep.subr.bf16.mxu0 0
        %2721 = vmatpush1.bf16.msra.mxu0 %v2683
        %2722 = vmatprep.subr.bf16.mxu0 0
        %2723 = vmatpush1.bf16.msra.mxu0 %v2682
        %2724 = vmatprep.subr.bf16.mxu0 0
        %2725 = vmatpush1.bf16.msra.mxu0 %v2681
        %2726 = vmatprep.subr.bf16.mxu0 0
        %2727 = vmatpush1.bf16.msra.mxu0 %v2680
        %2728 = vmatprep.subr.bf16.mxu0 0
        %2729 = vmatpush2.bf16.msra.mxu0 0
        %2730 = vmatprep.subr.bf16.mxu0 0
        %2731 = vmatpush2.bf16.msra.mxu0 0
        %2732 = vmatprep.subr.bf16.mxu0 0
        %2733 = vmatpush2.bf16.msra.mxu0 0
        %2734 = vmatprep.subr.bf16.mxu0 0
        %2735 = vmatpush2.bf16.msra.mxu0 0
        %2736 = vmatprep.subr.bf16.mxu0 0
        %2737 = vmatpush2.bf16.msra.mxu0 0
        %2738 = vmatprep.subr.bf16.mxu0 0
        %2739 = vmatpush2.bf16.msra.mxu0 0
        %2740 = vmatprep.subr.bf16.mxu0 0
        %2741 = vmatpush2.bf16.msra.mxu0 0
        %2742 = vmatprep.subr.bf16.mxu0 0
        %2743 = vmatpush2.bf16.msra.mxu0 0
        %2744 = vmatprep.mubr.bf16.mxu0 0
        %2745 = vmatmul.mubr.bf16.gmra.mxu0 %v2689
        %v2746 = vpop.f32.mrf.mxu0
        %v2747 = vadd.f32 %v2662, %v2746
        %v2748 = vpop.f32.mrf.mxu0
        %v2749 = vpop.f32.mrf.mxu0
        %v2750 = vadd.f32 %v2662, %v2749
        %v2751 = vpop.f32.mrf.mxu0
        %2752 = vmatprep.mubr.bf16.mxu0 0
        %2753 = vmatmul.mubr.bf16.gmra.mxu0 %v2692
        %v2754 = vpop.f32.mrf.mxu0
        %v2755 = vadd.f32 %v2662, %v2754
        %v2756 = vpop.f32.mrf.mxu0
        %v2757 = vpop.f32.mrf.mxu0
        %v2758 = vadd.f32 %v2662, %v2757
        %v2759 = vpop.f32.mrf.mxu0
        %2760 = vmatprep.mubr.bf16.mxu0 0
        %2761 = vmatmul.mubr.bf16.gmra.mxu0 %v2695
        %v2762 = vpop.f32.mrf.mxu0
        %v2763 = vadd.f32 %v2662, %v2762
        %v2764 = vpop.f32.mrf.mxu0
        %v2765 = vpop.f32.mrf.mxu0
        %v2766 = vadd.f32 %v2662, %v2765
        %v2767 = vpop.f32.mrf.mxu0
        %2768 = vmatprep.mubr.bf16.mxu0 0
        %2769 = vmatmul.mubr.bf16.gmra.mxu0 %v2698
        %v2770 = vpop.f32.mrf.mxu0
        %v2771 = vadd.f32 %v2662, %v2770
        %v2772 = vpop.f32.mrf.mxu0
        %v2773 = vpop.f32.mrf.mxu0
        %v2774 = vadd.f32 %v2662, %v2773
        %v2775 = vpop.f32.mrf.mxu0
        %2776 = vmatprep.mubr.bf16.mxu0 0
        %2777 = vmatmul.mubr.bf16.gmra.mxu0 %v2701
        %v2778 = vpop.f32.mrf.mxu0
        %v2779 = vadd.f32 %v2662, %v2778
        %v2780 = vpop.f32.mrf.mxu0
        %v2781 = vpop.f32.mrf.mxu0
        %v2782 = vadd.f32 %v2662, %v2781
        %v2783 = vpop.f32.mrf.mxu0
        %2784 = vmatprep.mubr.bf16.mxu0 0
        %2785 = vmatmul.mubr.bf16.gmra.mxu0 %v2704
        %v2786 = vpop.f32.mrf.mxu0
        %v2787 = vadd.f32 %v2662, %v2786
        %v2788 = vpop.f32.mrf.mxu0
        %v2789 = vpop.f32.mrf.mxu0
        %v2790 = vadd.f32 %v2662, %v2789
        %v2791 = vpop.f32.mrf.mxu0
        %2792 = vmatprep.mubr.bf16.mxu0 0
        %2793 = vmatmul.mubr.bf16.gmra.mxu0 %v2707
        %v2794 = vpop.f32.mrf.mxu0
        %v2795 = vadd.f32 %v2662, %v2794
        %v2796 = vpop.f32.mrf.mxu0
        %v2797 = vpop.f32.mrf.mxu0
        %v2798 = vadd.f32 %v2662, %v2797
        %v2799 = vpop.f32.mrf.mxu0
        %2800 = vmatprep.mubr.bf16.mxu0 0
        %2801 = vmatmul.mubr.bf16.gmra.mxu0 %v2710
        %v2802 = vpop.f32.mrf.mxu0
        %v2803 = vadd.f32 %v2662, %v2802
        %v2804 = vpop.f32.mrf.mxu0
        %v2805 = vpop.f32.mrf.mxu0
        %v2806 = vadd.f32 %v2662, %v2805
        %v2807 = vpop.f32.mrf.mxu0
        %2808 = vdwg.mxu0
        %v2809 = vmax.f32 %v2747, 0.0
        %v2810 = vmax.f32 %v2750, 0.0
        %v2811 = vmax.f32 %v2755, 0.0
        %v2812 = vmax.f32 %v2758, 0.0
        %v2813 = vmax.f32 %v2763, 0.0
        %v2814 = vmax.f32 %v2766, 0.0
        %v2815 = vmax.f32 %v2771, 0.0
        %v2816 = vmax.f32 %v2774, 0.0
        %v2817 = vmax.f32 %v2779, 0.0
        %v2818 = vmax.f32 %v2782, 0.0
        %v2819 = vmax.f32 %v2787, 0.0
        %v2820 = vmax.f32 %v2790, 0.0
        %v2821 = vmax.f32 %v2795, 0.0
        %v2822 = vmax.f32 %v2798, 0.0
        %v2823 = vmax.f32 %v2803, 0.0
        %v2824 = vmax.f32 %v2806, 0.0
        %v2825 = vadd.f32 %v2625, %v2809
        %v2826 = vadd.f32 %v2626, %v2810
        %v2827 = vadd.f32 %v2627, %v2811
        %v2828 = vadd.f32 %v2628, %v2812
        %v2829 = vadd.f32 %v2629, %v2813
        %v2830 = vadd.f32 %v2630, %v2814
        %v2831 = vadd.f32 %v2631, %v2815
        %v2832 = vadd.f32 %v2632, %v2816
        %v2833 = vadd.f32 %v2633, %v2817
        %v2834 = vadd.f32 %v2634, %v2818
        %v2835 = vadd.f32 %v2635, %v2819
        %v2836 = vadd.f32 %v2636, %v2820
        %v2837 = vadd.f32 %v2637, %v2821
        %v2838 = vadd.f32 %v2638, %v2822
        %v2839 = vadd.f32 %v2639, %v2823
        %v2840 = vadd.f32 %v2640, %v2824
        %v2841 = vld [vmem:[#allocation10] sm:$0xff]
        %v2842 = vld [vmem:[#allocation10 + $0x8] sm:$0xff]
        %v2843 = vld [vmem:[#allocation10 + $0x10] sm:$0xff]
        %v2844 = vld [vmem:[#allocation10 + $0x18] sm:$0xff]
        %v2845 = vld [vmem:[#allocation10 + $0x20] sm:$0xff]
        %v2846 = vld [vmem:[#allocation10 + $0x28] sm:$0xff]
        %v2847 = vld [vmem:[#allocation10 + $0x30] sm:$0xff]
        %v2848 = vld [vmem:[#allocation10 + $0x38] sm:$0xff]
        %v2849 = vpack.c.bf16 %v2826, %v2825
        %v2850 = vpack.c.bf16 %v2828, %v2827
        %v2851 = vpack.c.bf16 %v2830, %v2829
        %v2852 = vpack.c.bf16 %v2832, %v2831
        %v2853 = vpack.c.bf16 %v2834, %v2833
        %v2854 = vpack.c.bf16 %v2836, %v2835
        %v2855 = vpack.c.bf16 %v2838, %v2837
        %v2856 = vpack.c.bf16 %v2840, %v2839
        %v2857 = vld [vmem:[%s27] sm:$0x3]
        %v2859 = vlaneseq
        %v2860 = vshrl.u32 %v2859, 7
        %v2861 = vsub.s32 0, %v2860
        %v2862 = vrot.slane %v2857, %v2861
        %v2863 = vlaneseq
        %v2864 = vshrl.u32 %v2863, 7
        %v2865 = vsub.s32 1, %v2864
        %v2866 = vrot.slane %v2857, %v2865
        %v2877 = vunpack.c.l.b16 %v2841
        %v2878 = vunpack.c.h.b16 %v2841
        %v2879 = vunpack.c.l.b16 %v2842
        %v2880 = vunpack.c.h.b16 %v2842
        %v2881 = vunpack.c.l.b16 %v2843
        %v2882 = vunpack.c.h.b16 %v2843
        %v2883 = vunpack.c.l.b16 %v2844
        %v2884 = vunpack.c.h.b16 %v2844
        %v2885 = vunpack.c.l.b16 %v2845
        %v2886 = vunpack.c.h.b16 %v2845
        %v2887 = vunpack.c.l.b16 %v2846
        %v2888 = vunpack.c.h.b16 %v2846
        %v2889 = vunpack.c.l.b16 %v2847
        %v2890 = vunpack.c.h.b16 %v2847
        %v2891 = vunpack.c.l.b16 %v2848
        %v2892 = vunpack.c.h.b16 %v2848
        %v2893 = vpack.c.b16 %v2879, %v2877
        %v2894 = vpack.c.b16 %v2880, %v2878
        %v2895 = vpack.c.b16 %v2883, %v2881
        %v2896 = vpack.c.b16 %v2884, %v2882
        %v2897 = vpack.c.b16 %v2887, %v2885
        %v2898 = vpack.c.b16 %v2888, %v2886
        %v2899 = vpack.c.b16 %v2891, %v2889
        %v2900 = vpack.c.b16 %v2892, %v2890
        %v2910 = vsel %vm1716, %v2849, 0
        %v2913 = vsel %vm1716, %v2850, 0
        %v2916 = vsel %vm1716, %v2851, 0
        %v2919 = vsel %vm1716, %v2852, 0
        %v2922 = vsel %vm1716, %v2853, 0
        %v2925 = vsel %vm1716, %v2854, 0
        %v2928 = vsel %vm1716, %v2855, 0
        %v2931 = vsel %vm1716, %v2856, 0
        %2933 = vmatprep.subr.bf16.mxu0 0
        %2934 = vmatpush1.bf16.msra.mxu0 0
        %2935 = vmatprep.subr.bf16.mxu0 0
        %2936 = vmatpush1.bf16.msra.mxu0 0
        %2937 = vmatprep.subr.bf16.mxu0 0
        %2938 = vmatpush1.bf16.msra.mxu0 0
        %2939 = vmatprep.subr.bf16.mxu0 0
        %2940 = vmatpush1.bf16.msra.mxu0 0
        %2941 = vmatprep.subr.bf16.mxu0 %v2900
        %2942 = vmatpush1.bf16.msra.mxu0 %v2899
        %2943 = vmatprep.subr.bf16.mxu0 %v2898
        %2944 = vmatpush1.bf16.msra.mxu0 %v2897
        %2945 = vmatprep.subr.bf16.mxu0 %v2896
        %2946 = vmatpush1.bf16.msra.mxu0 %v2895
        %2947 = vmatprep.subr.bf16.mxu0 %v2894
        %2948 = vmatpush1.bf16.msra.mxu0 %v2893
        %2949 = vmatprep.subr.bf16.mxu0 0
        %2950 = vmatpush2.bf16.msra.mxu0 0
        %2951 = vmatprep.subr.bf16.mxu0 0
        %2952 = vmatpush2.bf16.msra.mxu0 0
        %2953 = vmatprep.subr.bf16.mxu0 0
        %2954 = vmatpush2.bf16.msra.mxu0 0
        %2955 = vmatprep.subr.bf16.mxu0 0
        %2956 = vmatpush2.bf16.msra.mxu0 0
        %2957 = vmatprep.subr.bf16.mxu0 0
        %2958 = vmatpush2.bf16.msra.mxu0 0
        %2959 = vmatprep.subr.bf16.mxu0 0
        %2960 = vmatpush2.bf16.msra.mxu0 0
        %2961 = vmatprep.subr.bf16.mxu0 0
        %2962 = vmatpush2.bf16.msra.mxu0 0
        %2963 = vmatprep.subr.bf16.mxu0 0
        %2964 = vmatpush2.bf16.msra.mxu0 0
        %2965 = vmatprep.mubr.bf16.mxu0 0
        %2966 = vmatmul.mubr.bf16.gmra.mxu0 %v2910
        %v2967 = vpop.f32.mrf.mxu0
        %v2968 = vadd.f32 %v2862, %v2967
        %v2969 = vpop.f32.mrf.mxu0
        %v2970 = vadd.f32 %v2866, %v2969
        %v2971 = vpop.f32.mrf.mxu0
        %v2972 = vadd.f32 %v2862, %v2971
        %v2973 = vpop.f32.mrf.mxu0
        %v2974 = vadd.f32 %v2866, %v2973
        %2975 = vmatprep.mubr.bf16.mxu0 0
        %2976 = vmatmul.mubr.bf16.gmra.mxu0 %v2913
        %v2977 = vpop.f32.mrf.mxu0
        %v2978 = vadd.f32 %v2862, %v2977
        %v2979 = vpop.f32.mrf.mxu0
        %v2980 = vadd.f32 %v2866, %v2979
        %v2981 = vpop.f32.mrf.mxu0
        %v2982 = vadd.f32 %v2862, %v2981
        %v2983 = vpop.f32.mrf.mxu0
        %v2984 = vadd.f32 %v2866, %v2983
        %2985 = vmatprep.mubr.bf16.mxu0 0
        %2986 = vmatmul.mubr.bf16.gmra.mxu0 %v2916
        %v2987 = vpop.f32.mrf.mxu0
        %v2988 = vadd.f32 %v2862, %v2987
        %v2989 = vpop.f32.mrf.mxu0
        %v2990 = vadd.f32 %v2866, %v2989
        %v2991 = vpop.f32.mrf.mxu0
        %v2992 = vadd.f32 %v2862, %v2991
        %v2993 = vpop.f32.mrf.mxu0
        %v2994 = vadd.f32 %v2866, %v2993
        %2995 = vmatprep.mubr.bf16.mxu0 0
        %2996 = vmatmul.mubr.bf16.gmra.mxu0 %v2919
        %v2997 = vpop.f32.mrf.mxu0
        %v2998 = vadd.f32 %v2862, %v2997
        %v2999 = vpop.f32.mrf.mxu0
        %v3000 = vadd.f32 %v2866, %v2999
        %v3001 = vpop.f32.mrf.mxu0
        %v3002 = vadd.f32 %v2862, %v3001
        %v3003 = vpop.f32.mrf.mxu0
        %v3004 = vadd.f32 %v2866, %v3003
        %3005 = vmatprep.mubr.bf16.mxu0 0
        %3006 = vmatmul.mubr.bf16.gmra.mxu0 %v2922
        %v3007 = vpop.f32.mrf.mxu0
        %v3008 = vadd.f32 %v2862, %v3007
        %v3009 = vpop.f32.mrf.mxu0
        %v3010 = vadd.f32 %v2866, %v3009
        %v3011 = vpop.f32.mrf.mxu0
        %v3012 = vadd.f32 %v2862, %v3011
        %v3013 = vpop.f32.mrf.mxu0
        %v3014 = vadd.f32 %v2866, %v3013
        %3015 = vmatprep.mubr.bf16.mxu0 0
        %3016 = vmatmul.mubr.bf16.gmra.mxu0 %v2925
        %v3017 = vpop.f32.mrf.mxu0
        %v3018 = vadd.f32 %v2862, %v3017
        %v3019 = vpop.f32.mrf.mxu0
        %v3020 = vadd.f32 %v2866, %v3019
        %v3021 = vpop.f32.mrf.mxu0
        %v3022 = vadd.f32 %v2862, %v3021
        %v3023 = vpop.f32.mrf.mxu0
        %v3024 = vadd.f32 %v2866, %v3023
        %3025 = vmatprep.mubr.bf16.mxu0 0
        %3026 = vmatmul.mubr.bf16.gmra.mxu0 %v2928
        %v3027 = vpop.f32.mrf.mxu0
        %v3028 = vadd.f32 %v2862, %v3027
        %v3029 = vpop.f32.mrf.mxu0
        %v3030 = vadd.f32 %v2866, %v3029
        %v3031 = vpop.f32.mrf.mxu0
        %v3032 = vadd.f32 %v2862, %v3031
        %v3033 = vpop.f32.mrf.mxu0
        %v3034 = vadd.f32 %v2866, %v3033
        %3035 = vmatprep.mubr.bf16.mxu0 0
        %3036 = vmatmul.mubr.bf16.gmra.mxu0 %v2931
        %v3037 = vpop.f32.mrf.mxu0
        %v3038 = vadd.f32 %v2862, %v3037
        %v3039 = vpop.f32.mrf.mxu0
        %v3040 = vadd.f32 %v2866, %v3039
        %v3041 = vpop.f32.mrf.mxu0
        %v3042 = vadd.f32 %v2862, %v3041
        %v3043 = vpop.f32.mrf.mxu0
        %v3044 = vadd.f32 %v2866, %v3043
        %3045 = vdwg.mxu0
        %v3046 = vmul.f32 %v2968, 0.125
        %v3047 = vmul.f32 %v2972, 0.125
        %v3048 = vmul.f32 %v2978, 0.125
        %v3049 = vmul.f32 %v2982, 0.125
        %v3050 = vmul.f32 %v2988, 0.125
        %v3051 = vmul.f32 %v2992, 0.125
        %v3052 = vmul.f32 %v2998, 0.125
        %v3053 = vmul.f32 %v3002, 0.125
        %v3054 = vmul.f32 %v3008, 0.125
        %v3055 = vmul.f32 %v3012, 0.125
        %v3056 = vmul.f32 %v3018, 0.125
        %v3057 = vmul.f32 %v3022, 0.125
        %v3058 = vmul.f32 %v3028, 0.125
        %v3059 = vmul.f32 %v3032, 0.125
        %v3060 = vmul.f32 %v3038, 0.125
        %v3061 = vmul.f32 %v3042, 0.125
        %v3062 = vpack.c.bf16 %v2972, %v2968
        %v3063 = vpack.c.bf16 %v2982, %v2978
        %v3064 = vpack.c.bf16 %v2992, %v2988
        %v3065 = vpack.c.bf16 %v3002, %v2998
        %v3066 = vpack.c.bf16 %v3012, %v3008
        %v3067 = vpack.c.bf16 %v3022, %v3018
        %v3068 = vpack.c.bf16 %v3032, %v3028
        %v3069 = vpack.c.bf16 %v3042, %v3038
        %v3070 = vpack.c.bf16 %v3047, %v3046
        %v3071 = vpack.c.bf16 %v3049, %v3048
        %v3072 = vpack.c.bf16 %v3051, %v3050
        %v3073 = vpack.c.bf16 %v3053, %v3052
        %v3074 = vpack.c.bf16 %v3055, %v3054
        %v3075 = vpack.c.bf16 %v3057, %v3056
        %v3076 = vpack.c.bf16 %v3059, %v3058
        %v3077 = vpack.c.bf16 %v3061, %v3060
        %3086 = vrot.lane.b32.xlu0 %v3070, 64
        %v3087 = vpop.permute.xlu0 %3086
        %3088 = vrot.lane.b32.xlu0 %v3071, 64
        %v3089 = vpop.permute.xlu0 %3088
        %3090 = vrot.lane.b32.xlu0 %v3072, 64
        %v3091 = vpop.permute.xlu0 %3090
        %3092 = vrot.lane.b32.xlu0 %v3073, 64
        %v3093 = vpop.permute.xlu0 %3092
        %3094 = vrot.lane.b32.xlu0 %v3074, 64
        %v3095 = vpop.permute.xlu0 %3094
        %3096 = vrot.lane.b32.xlu0 %v3075, 64
        %v3097 = vpop.permute.xlu0 %3096
        %3098 = vrot.lane.b32.xlu0 %v3076, 64
        %v3099 = vpop.permute.xlu0 %3098
        %3100 = vrot.lane.b32.xlu0 %v3077, 64
        %v3101 = vpop.permute.xlu0 %3100
        %v3103 = vsel %vm1716, %v3062, 0
        %v3106 = vsel %vm1716, %v3063, 0
        %v3109 = vsel %vm1716, %v3064, 0
        %v3112 = vsel %vm1716, %v3065, 0
        %v3115 = vsel %vm1716, %v3066, 0
        %v3118 = vsel %vm1716, %v3067, 0
        %v3121 = vsel %vm1716, %v3068, 0
        %v3124 = vsel %vm1716, %v3069, 0
        %v3127 = vsel %vm1716, %v3087, 0
        %v3130 = vsel %vm1716, %v3089, 0
        %v3133 = vsel %vm1716, %v3091, 0
        %v3136 = vsel %vm1716, %v3093, 0
        %v3139 = vsel %vm1716, %v3095, 0
        %v3142 = vsel %vm1716, %v3097, 0
        %v3145 = vsel %vm1716, %v3099, 0
        %v3148 = vsel %vm1716, %v3101, 0
        %3150 = vmatprep.subr.bf16.mxu0 0
        %3151 = vmatpush1.bf16.xpose.msra.mxu0 %v3148
        %3152 = vmatprep.subr.bf16.mxu0 0
        %3153 = vmatpush1.bf16.xpose.msra.mxu0 %v3145
        %3154 = vmatprep.subr.bf16.mxu0 0
        %3155 = vmatpush1.bf16.xpose.msra.mxu0 %v3142
        %3156 = vmatprep.subr.bf16.mxu0 0
        %3157 = vmatpush1.bf16.xpose.msra.mxu0 %v3139
        %3158 = vmatprep.subr.bf16.mxu0 0
        %3159 = vmatpush1.bf16.xpose.msra.mxu0 %v3136
        %3160 = vmatprep.subr.bf16.mxu0 0
        %3161 = vmatpush1.bf16.xpose.msra.mxu0 %v3133
        %3162 = vmatprep.subr.bf16.mxu0 0
        %3163 = vmatpush1.bf16.xpose.msra.mxu0 %v3130
        %3164 = vmatprep.subr.bf16.mxu0 0
        %3165 = vmatpush1.bf16.xpose.msra.mxu0 %v3127
        %3166 = vmatprep.subr.bf16.mxu0 0
        %3167 = vmatpush2.bf16.xpose.msra.mxu0 0
        %3168 = vmatprep.subr.bf16.mxu0 0
        %3169 = vmatpush2.bf16.xpose.msra.mxu0 0
        %3170 = vmatprep.subr.bf16.mxu0 0
        %3171 = vmatpush2.bf16.xpose.msra.mxu0 0
        %3172 = vmatprep.subr.bf16.mxu0 0
        %3173 = vmatpush2.bf16.xpose.msra.mxu0 0
        %3174 = vmatprep.subr.bf16.mxu0 0
        %3175 = vmatpush2.bf16.xpose.msra.mxu0 0
        %3176 = vmatprep.subr.bf16.mxu0 0
        %3177 = vmatpush2.bf16.xpose.msra.mxu0 0
        %3178 = vmatprep.subr.bf16.mxu0 0
        %3179 = vmatpush2.bf16.xpose.msra.mxu0 0
        %3180 = vmatprep.subr.bf16.mxu0 0
        %3181 = vmatpush2.bf16.xpose.msra.mxu0 0
        %3182 = vmatprep.mubr.bf16.mxu0 0
        %3183 = vmatmul.mubr.bf16.gmra.mxu0 %v3103
        %v3184 = vpop.f32.mrf.mxu0
        %v3185 = vadd.f32 0.0, %v3184
        %v3186 = vpop.f32.mrf.mxu0
        %v3187 = vpop.f32.mrf.mxu0
        %v3188 = vadd.f32 0.0, %v3187
        %v3189 = vpop.f32.mrf.mxu0
        %3190 = vmatprep.mubr.bf16.mxu0 0
        %3191 = vmatmul.mubr.bf16.gmra.mxu0 %v3106
        %v3192 = vpop.f32.mrf.mxu0
        %v3193 = vadd.f32 0.0, %v3192
        %v3194 = vpop.f32.mrf.mxu0
        %v3195 = vpop.f32.mrf.mxu0
        %v3196 = vadd.f32 0.0, %v3195
        %v3197 = vpop.f32.mrf.mxu0
        %3198 = vmatprep.mubr.bf16.mxu0 0
        %3199 = vmatmul.mubr.bf16.gmra.mxu0 %v3109
        %v3200 = vpop.f32.mrf.mxu0
        %v3201 = vadd.f32 0.0, %v3200
        %v3202 = vpop.f32.mrf.mxu0
        %v3203 = vpop.f32.mrf.mxu0
        %v3204 = vadd.f32 0.0, %v3203
        %v3205 = vpop.f32.mrf.mxu0
        %3206 = vmatprep.mubr.bf16.mxu0 0
        %3207 = vmatmul.mubr.bf16.gmra.mxu0 %v3112
        %v3208 = vpop.f32.mrf.mxu0
        %v3209 = vadd.f32 0.0, %v3208
        %v3210 = vpop.f32.mrf.mxu0
        %v3211 = vpop.f32.mrf.mxu0
        %v3212 = vadd.f32 0.0, %v3211
        %v3213 = vpop.f32.mrf.mxu0
        %3214 = vmatprep.mubr.bf16.mxu0 0
        %3215 = vmatmul.mubr.bf16.gmra.mxu0 %v3115
        %v3216 = vpop.f32.mrf.mxu0
        %v3217 = vadd.f32 0.0, %v3216
        %v3218 = vpop.f32.mrf.mxu0
        %v3219 = vpop.f32.mrf.mxu0
        %v3220 = vadd.f32 0.0, %v3219
        %v3221 = vpop.f32.mrf.mxu0
        %3222 = vmatprep.mubr.bf16.mxu0 0
        %3223 = vmatmul.mubr.bf16.gmra.mxu0 %v3118
        %v3224 = vpop.f32.mrf.mxu0
        %v3225 = vadd.f32 0.0, %v3224
        %v3226 = vpop.f32.mrf.mxu0
        %v3227 = vpop.f32.mrf.mxu0
        %v3228 = vadd.f32 0.0, %v3227
        %v3229 = vpop.f32.mrf.mxu0
        %3230 = vmatprep.mubr.bf16.mxu0 0
        %3231 = vmatmul.mubr.bf16.gmra.mxu0 %v3121
        %v3232 = vpop.f32.mrf.mxu0
        %v3233 = vadd.f32 0.0, %v3232
        %v3234 = vpop.f32.mrf.mxu0
        %v3235 = vpop.f32.mrf.mxu0
        %v3236 = vadd.f32 0.0, %v3235
        %v3237 = vpop.f32.mrf.mxu0
        %3238 = vmatprep.mubr.bf16.mxu0 0
        %3239 = vmatmul.mubr.bf16.gmra.mxu0 %v3124
        %v3240 = vpop.f32.mrf.mxu0
        %v3241 = vadd.f32 0.0, %v3240
        %v3242 = vpop.f32.mrf.mxu0
        %v3243 = vpop.f32.mrf.mxu0
        %v3244 = vadd.f32 0.0, %v3243
        %v3245 = vpop.f32.mrf.mxu0
        %3246 = vdwg.mxu0
        %3247 = vmax.xlane.f32.xlu0 %v3185
        %v3248 = vpop.xlane.xlu0 %3247
        %3249 = vmax.xlane.f32.xlu0 %v3188
        %v3250 = vpop.xlane.xlu0 %3249
        %3251 = vmax.xlane.f32.xlu0 %v3193
        %v3252 = vpop.xlane.xlu0 %3251
        %3253 = vmax.xlane.f32.xlu0 %v3196
        %v3254 = vpop.xlane.xlu0 %3253
        %3255 = vmax.xlane.f32.xlu0 %v3201
        %v3256 = vpop.xlane.xlu0 %3255
        %3257 = vmax.xlane.f32.xlu0 %v3204
        %v3258 = vpop.xlane.xlu0 %3257
        %3259 = vmax.xlane.f32.xlu0 %v3209
        %v3260 = vpop.xlane.xlu0 %3259
        %3261 = vmax.xlane.f32.xlu0 %v3212
        %v3262 = vpop.xlane.xlu0 %3261
        %3263 = vmax.xlane.f32.xlu0 %v3217
        %v3264 = vpop.xlane.xlu0 %3263
        %3265 = vmax.xlane.f32.xlu0 %v3220
        %v3266 = vpop.xlane.xlu0 %3265
        %3267 = vmax.xlane.f32.xlu0 %v3225
        %v3268 = vpop.xlane.xlu0 %3267
        %3269 = vmax.xlane.f32.xlu0 %v3228
        %v3270 = vpop.xlane.xlu0 %3269
        %3271 = vmax.xlane.f32.xlu0 %v3233
        %v3272 = vpop.xlane.xlu0 %3271
        %3273 = vmax.xlane.f32.xlu0 %v3236
        %v3274 = vpop.xlane.xlu0 %3273
        %3275 = vmax.xlane.f32.xlu0 %v3241
        %v3276 = vpop.xlane.xlu0 %3275
        %3277 = vmax.xlane.f32.xlu0 %v3244
        %v3278 = vpop.xlane.xlu0 %3277
        %v3279 = vsub.f32 %v3185, %v3248
        %v3280 = vsub.f32 %v3188, %v3250
        %v3281 = vsub.f32 %v3193, %v3252
        %v3282 = vsub.f32 %v3196, %v3254
        %v3283 = vsub.f32 %v3201, %v3256
        %v3284 = vsub.f32 %v3204, %v3258
        %v3285 = vsub.f32 %v3209, %v3260
        %v3286 = vsub.f32 %v3212, %v3262
        %v3287 = vsub.f32 %v3217, %v3264
        %v3288 = vsub.f32 %v3220, %v3266
        %v3289 = vsub.f32 %v3225, %v3268
        %v3290 = vsub.f32 %v3228, %v3270
        %v3291 = vsub.f32 %v3233, %v3272
        %v3292 = vsub.f32 %v3236, %v3274
        %v3293 = vsub.f32 %v3241, %v3276
        %v3294 = vsub.f32 %v3244, %v3278
        %v3295 = vmul.f32 %v3279, 1.442695
        %v3296 = vpow.pop %v3295
        %v3297 = vmul.f32 %v3280, 1.442695
        %v3298 = vpow.pop %v3297
        %v3299 = vmul.f32 %v3281, 1.442695
        %v3300 = vpow.pop %v3299
        %v3301 = vmul.f32 %v3282, 1.442695
        %v3302 = vpow.pop %v3301
        %v3303 = vmul.f32 %v3283, 1.442695
        %v3304 = vpow.pop %v3303
        %v3305 = vmul.f32 %v3284, 1.442695
        %v3306 = vpow.pop %v3305
        %v3307 = vmul.f32 %v3285, 1.442695
        %v3308 = vpow.pop %v3307
        %v3309 = vmul.f32 %v3286, 1.442695
        %v3310 = vpow.pop %v3309
        %v3311 = vmul.f32 %v3287, 1.442695
        %v3312 = vpow.pop %v3311
        %v3313 = vmul.f32 %v3288, 1.442695
        %v3314 = vpow.pop %v3313
        %v3315 = vmul.f32 %v3289, 1.442695
        %v3316 = vpow.pop %v3315
        %v3317 = vmul.f32 %v3290, 1.442695
        %v3318 = vpow.pop %v3317
        %v3319 = vmul.f32 %v3291, 1.442695
        %v3320 = vpow.pop %v3319
        %v3321 = vmul.f32 %v3292, 1.442695
        %v3322 = vpow.pop %v3321
        %v3323 = vmul.f32 %v3293, 1.442695
        %v3324 = vpow.pop %v3323
        %v3325 = vmul.f32 %v3294, 1.442695
        %v3326 = vpow.pop %v3325
        %3327 = vadd.xlane.f32.xlu0 %v3296
        %v3328 = vpop.xlane.xlu0 %3327
        %3329 = vadd.xlane.f32.xlu0 %v3298
        %v3330 = vpop.xlane.xlu0 %3329
        %3331 = vadd.xlane.f32.xlu0 %v3300
        %v3332 = vpop.xlane.xlu0 %3331
        %3333 = vadd.xlane.f32.xlu0 %v3302
        %v3334 = vpop.xlane.xlu0 %3333
        %3335 = vadd.xlane.f32.xlu0 %v3304
        %v3336 = vpop.xlane.xlu0 %3335
        %3337 = vadd.xlane.f32.xlu0 %v3306
        %v3338 = vpop.xlane.xlu0 %3337
        %3339 = vadd.xlane.f32.xlu0 %v3308
        %v3340 = vpop.xlane.xlu0 %3339
        %3341 = vadd.xlane.f32.xlu0 %v3310
        %v3342 = vpop.xlane.xlu0 %3341
        %3343 = vadd.xlane.f32.xlu0 %v3312
        %v3344 = vpop.xlane.xlu0 %3343
        %3345 = vadd.xlane.f32.xlu0 %v3314
        %v3346 = vpop.xlane.xlu0 %3345
        %3347 = vadd.xlane.f32.xlu0 %v3316
        %v3348 = vpop.xlane.xlu0 %3347
        %3349 = vadd.xlane.f32.xlu0 %v3318
        %v3350 = vpop.xlane.xlu0 %3349
        %3351 = vadd.xlane.f32.xlu0 %v3320
        %v3352 = vpop.xlane.xlu0 %3351
        %3353 = vadd.xlane.f32.xlu0 %v3322
        %v3354 = vpop.xlane.xlu0 %3353
        %3355 = vadd.xlane.f32.xlu0 %v3324
        %v3356 = vpop.xlane.xlu0 %3355
        %3357 = vadd.xlane.f32.xlu0 %v3326
        %v3358 = vpop.xlane.xlu0 %3357
        %v3359 = vrcp.pop %v3328
        %v3360 = vrcp.pop %v3330
        %v3361 = vrcp.pop %v3332
        %v3362 = vrcp.pop %v3334
        %v3363 = vrcp.pop %v3336
        %v3364 = vrcp.pop %v3338
        %v3365 = vrcp.pop %v3340
        %v3366 = vrcp.pop %v3342
        %v3367 = vrcp.pop %v3344
        %v3368 = vrcp.pop %v3346
        %v3369 = vrcp.pop %v3348
        %v3370 = vrcp.pop %v3350
        %v3371 = vrcp.pop %v3352
        %v3372 = vrcp.pop %v3354
        %v3373 = vrcp.pop %v3356
        %v3374 = vrcp.pop %v3358
        %v3375 = vmul.f32 %v3296, %v3359
        %v3376 = vmul.f32 %v3298, %v3360
        %v3377 = vmul.f32 %v3300, %v3361
        %v3378 = vmul.f32 %v3302, %v3362
        %v3379 = vmul.f32 %v3304, %v3363
        %v3380 = vmul.f32 %v3306, %v3364
        %v3381 = vmul.f32 %v3308, %v3365
        %v3382 = vmul.f32 %v3310, %v3366
        %v3383 = vmul.f32 %v3312, %v3367
        %v3384 = vmul.f32 %v3314, %v3368
        %v3385 = vmul.f32 %v3316, %v3369
        %v3386 = vmul.f32 %v3318, %v3370
        %v3387 = vmul.f32 %v3320, %v3371
        %v3388 = vmul.f32 %v3322, %v3372
        %v3389 = vmul.f32 %v3324, %v3373
        %v3390 = vmul.f32 %v3326, %v3374
        %v3391 = vpack.c.bf16 %v3376, %v3375
        %v3392 = vpack.c.bf16 %v3378, %v3377
        %v3393 = vpack.c.bf16 %v3380, %v3379
        %v3394 = vpack.c.bf16 %v3382, %v3381
        %v3395 = vpack.c.bf16 %v3384, %v3383
        %v3396 = vpack.c.bf16 %v3386, %v3385
        %v3397 = vpack.c.bf16 %v3388, %v3387
        %v3398 = vpack.c.bf16 %v3390, %v3389
        %v3399 = vpack.c.bf16 %v2974, %v2970
        %v3400 = vpack.c.bf16 %v2984, %v2980
        %v3401 = vpack.c.bf16 %v2994, %v2990
        %v3402 = vpack.c.bf16 %v3004, %v3000
        %v3403 = vpack.c.bf16 %v3014, %v3010
        %v3404 = vpack.c.bf16 %v3024, %v3020
        %v3405 = vpack.c.bf16 %v3034, %v3030
        %v3406 = vpack.c.bf16 %v3044, %v3040
        %3407 = vmatprep.subr.bf16.mxu0 0
        %3408 = vmatpush1.bf16.msra.mxu0 %v3406
        %3409 = vmatprep.subr.bf16.mxu0 0
        %3410 = vmatpush1.bf16.msra.mxu0 %v3405
        %3411 = vmatprep.subr.bf16.mxu0 0
        %3412 = vmatpush1.bf16.msra.mxu0 %v3404
        %3413 = vmatprep.subr.bf16.mxu0 0
        %3414 = vmatpush1.bf16.msra.mxu0 %v3403
        %3415 = vmatprep.subr.bf16.mxu0 0
        %3416 = vmatpush1.bf16.msra.mxu0 %v3402
        %3417 = vmatprep.subr.bf16.mxu0 0
        %3418 = vmatpush1.bf16.msra.mxu0 %v3401
        %3419 = vmatprep.subr.bf16.mxu0 0
        %3420 = vmatpush1.bf16.msra.mxu0 %v3400
        %3421 = vmatprep.subr.bf16.mxu0 0
        %3422 = vmatpush1.bf16.msra.mxu0 %v3399
        %3423 = vmatprep.subr.bf16.mxu0 0
        %3424 = vmatpush2.bf16.msra.mxu0 0
        %3425 = vmatprep.subr.bf16.mxu0 0
        %3426 = vmatpush2.bf16.msra.mxu0 0
        %3427 = vmatprep.subr.bf16.mxu0 0
        %3428 = vmatpush2.bf16.msra.mxu0 0
        %3429 = vmatprep.subr.bf16.mxu0 0
        %3430 = vmatpush2.bf16.msra.mxu0 0
        %3431 = vmatprep.subr.bf16.mxu0 0
        %3432 = vmatpush2.bf16.msra.mxu0 0
        %3433 = vmatprep.subr.bf16.mxu0 0
        %3434 = vmatpush2.bf16.msra.mxu0 0
        %3435 = vmatprep.subr.bf16.mxu0 0
        %3436 = vmatpush2.bf16.msra.mxu0 0
        %3437 = vmatprep.subr.bf16.mxu0 0
        %3438 = vmatpush2.bf16.msra.mxu0 0
        %3439 = vmatprep.mubr.bf16.mxu0 0
        %3440 = vmatmul.mubr.bf16.gmra.mxu0 %v3391
        %v3441 = vpop.f32.mrf.mxu0
        %v3442 = vadd.f32 0.0, %v3441
        %v3443 = vpop.f32.mrf.mxu0
        %v3444 = vpop.f32.mrf.mxu0
        %v3445 = vadd.f32 0.0, %v3444
        %v3446 = vpop.f32.mrf.mxu0
        %3447 = vmatprep.mubr.bf16.mxu0 0
        %3448 = vmatmul.mubr.bf16.gmra.mxu0 %v3392
        %v3449 = vpop.f32.mrf.mxu0
        %v3450 = vadd.f32 0.0, %v3449
        %v3451 = vpop.f32.mrf.mxu0
        %v3452 = vpop.f32.mrf.mxu0
        %v3453 = vadd.f32 0.0, %v3452
        %v3454 = vpop.f32.mrf.mxu0
        %3455 = vmatprep.mubr.bf16.mxu0 0
        %3456 = vmatmul.mubr.bf16.gmra.mxu0 %v3393
        %v3457 = vpop.f32.mrf.mxu0
        %v3458 = vadd.f32 0.0, %v3457
        %v3459 = vpop.f32.mrf.mxu0
        %v3460 = vpop.f32.mrf.mxu0
        %v3461 = vadd.f32 0.0, %v3460
        %v3462 = vpop.f32.mrf.mxu0
        %3463 = vmatprep.mubr.bf16.mxu0 0
        %3464 = vmatmul.mubr.bf16.gmra.mxu0 %v3394
        %v3465 = vpop.f32.mrf.mxu0
        %v3466 = vadd.f32 0.0, %v3465
        %v3467 = vpop.f32.mrf.mxu0
        %v3468 = vpop.f32.mrf.mxu0
        %v3469 = vadd.f32 0.0, %v3468
        %v3470 = vpop.f32.mrf.mxu0
        %3471 = vmatprep.mubr.bf16.mxu0 0
        %3472 = vmatmul.mubr.bf16.gmra.mxu0 %v3395
        %v3473 = vpop.f32.mrf.mxu0
        %v3474 = vadd.f32 0.0, %v3473
        %v3475 = vpop.f32.mrf.mxu0
        %v3476 = vpop.f32.mrf.mxu0
        %v3477 = vadd.f32 0.0, %v3476
        %v3478 = vpop.f32.mrf.mxu0
        %3479 = vmatprep.mubr.bf16.mxu0 0
        %3480 = vmatmul.mubr.bf16.gmra.mxu0 %v3396
        %v3481 = vpop.f32.mrf.mxu0
        %v3482 = vadd.f32 0.0, %v3481
        %v3483 = vpop.f32.mrf.mxu0
        %v3484 = vpop.f32.mrf.mxu0
        %v3485 = vadd.f32 0.0, %v3484
        %v3486 = vpop.f32.mrf.mxu0
        %3487 = vmatprep.mubr.bf16.mxu0 0
        %3488 = vmatmul.mubr.bf16.gmra.mxu0 %v3397
        %v3489 = vpop.f32.mrf.mxu0
        %v3490 = vadd.f32 0.0, %v3489
        %v3491 = vpop.f32.mrf.mxu0
        %v3492 = vpop.f32.mrf.mxu0
        %v3493 = vadd.f32 0.0, %v3492
        %v3494 = vpop.f32.mrf.mxu0
        %3495 = vmatprep.mubr.bf16.mxu0 0
        %3496 = vmatmul.mubr.bf16.gmra.mxu0 %v3398
        %v3497 = vpop.f32.mrf.mxu0
        %v3498 = vadd.f32 0.0, %v3497
        %v3499 = vpop.f32.mrf.mxu0
        %v3500 = vpop.f32.mrf.mxu0
        %v3501 = vadd.f32 0.0, %v3500
        %v3502 = vpop.f32.mrf.mxu0
        %3503 = vdwg.mxu0
        %v3504 = vadd.f32 %v2968, %v3442
        %v3505 = vadd.f32 %v2972, %v3445
        %v3506 = vadd.f32 %v2978, %v3450
        %v3507 = vadd.f32 %v2982, %v3453
        %v3508 = vadd.f32 %v2988, %v3458
        %v3509 = vadd.f32 %v2992, %v3461
        %v3510 = vadd.f32 %v2998, %v3466
        %v3511 = vadd.f32 %v3002, %v3469
        %v3512 = vadd.f32 %v3008, %v3474
        %v3513 = vadd.f32 %v3012, %v3477
        %v3514 = vadd.f32 %v3018, %v3482
        %v3515 = vadd.f32 %v3022, %v3485
        %v3516 = vadd.f32 %v3028, %v3490
        %v3517 = vadd.f32 %v3032, %v3493
        %v3518 = vadd.f32 %v3038, %v3498
        %v3519 = vadd.f32 %v3042, %v3501
        %v3520 = vld [vmem:[#allocation11] sm:$0xf]
        %v3521 = vld [vmem:[#allocation11 + $0x4] sm:$0xf]
        %v3522 = vld [vmem:[#allocation11 + $0x8] sm:$0xf]
        %v3523 = vld [vmem:[#allocation11 + $0xc] sm:$0xf]
        %v3524 = vld [vmem:[#allocation11 + $0x10] sm:$0xf]
        %v3525 = vld [vmem:[#allocation11 + $0x14] sm:$0xf]
        %v3526 = vld [vmem:[#allocation11 + $0x18] sm:$0xf]
        %v3527 = vld [vmem:[#allocation11 + $0x1c] sm:$0xf]
        %v3528 = vpack.c.bf16 %v3505, %v3504
        %v3529 = vpack.c.bf16 %v3507, %v3506
        %v3530 = vpack.c.bf16 %v3509, %v3508
        %v3531 = vpack.c.bf16 %v3511, %v3510
        %v3532 = vpack.c.bf16 %v3513, %v3512
        %v3533 = vpack.c.bf16 %v3515, %v3514
        %v3534 = vpack.c.bf16 %v3517, %v3516
        %v3535 = vpack.c.bf16 %v3519, %v3518
        %v3536 = vld [vmem:[#allocation13] sm:$0x1]
        %v3538 = vlaneseq
        %v3539 = vshrl.u32 %v3538, 7
        %v3540 = vsub.s32 0, %v3539
        %v3541 = vrot.slane %v3536, %v3540
        %v3551 = vunpack.c.l.b16 %v3520
        %v3552 = vunpack.c.l.b16 %v3521
        %v3553 = vunpack.c.l.b16 %v3522
        %v3554 = vunpack.c.l.b16 %v3523
        %v3555 = vunpack.c.l.b16 %v3524
        %v3556 = vunpack.c.l.b16 %v3525
        %v3557 = vunpack.c.l.b16 %v3526
        %v3558 = vunpack.c.l.b16 %v3527
        %v3559 = vpack.c.b16 %v3552, %v3551
        %v3560 = vpack.c.b16 %v3554, %v3553
        %v3561 = vpack.c.b16 %v3556, %v3555
        %v3562 = vpack.c.b16 %v3558, %v3557
        %v3568 = vsel %vm1716, %v3528, 0
        %v3571 = vsel %vm1716, %v3529, 0
        %v3574 = vsel %vm1716, %v3530, 0
        %v3577 = vsel %vm1716, %v3531, 0
        %v3580 = vsel %vm1716, %v3532, 0
        %v3583 = vsel %vm1716, %v3533, 0
        %v3586 = vsel %vm1716, %v3534, 0
        %v3589 = vsel %vm1716, %v3535, 0
        %3591 = vmatprep.subr.bf16.mxu0 0
        %3592 = vmatpush1.bf16.msra.mxu0 0
        %3593 = vmatprep.subr.bf16.mxu0 0
        %3594 = vmatpush1.bf16.msra.mxu0 0
        %3595 = vmatprep.subr.bf16.mxu0 0
        %3596 = vmatpush1.bf16.msra.mxu0 0
        %3597 = vmatprep.subr.bf16.mxu0 0
        %3598 = vmatpush1.bf16.msra.mxu0 0
        %3599 = vmatprep.subr.bf16.mxu0 0
        %3600 = vmatpush1.bf16.msra.mxu0 %v3562
        %3601 = vmatprep.subr.bf16.mxu0 0
        %3602 = vmatpush1.bf16.msra.mxu0 %v3561
        %3603 = vmatprep.subr.bf16.mxu0 0
        %3604 = vmatpush1.bf16.msra.mxu0 %v3560
        %3605 = vmatprep.subr.bf16.mxu0 0
        %3606 = vmatpush1.bf16.msra.mxu0 %v3559
        %3607 = vmatprep.subr.bf16.mxu0 0
        %3608 = vmatpush2.bf16.msra.mxu0 0
        %3609 = vmatprep.subr.bf16.mxu0 0
        %3610 = vmatpush2.bf16.msra.mxu0 0
        %3611 = vmatprep.subr.bf16.mxu0 0
        %3612 = vmatpush2.bf16.msra.mxu0 0
        %3613 = vmatprep.subr.bf16.mxu0 0
        %3614 = vmatpush2.bf16.msra.mxu0 0
        %3615 = vmatprep.subr.bf16.mxu0 0
        %3616 = vmatpush2.bf16.msra.mxu0 0
        %3617 = vmatprep.subr.bf16.mxu0 0
        %3618 = vmatpush2.bf16.msra.mxu0 0
        %3619 = vmatprep.subr.bf16.mxu0 0
        %3620 = vmatpush2.bf16.msra.mxu0 0
        %3621 = vmatprep.subr.bf16.mxu0 0
        %3622 = vmatpush2.bf16.msra.mxu0 0
        %3623 = vmatprep.mubr.bf16.mxu0 0
        %3624 = vmatmul.mubr.bf16.gmra.mxu0 %v3568
        %v3625 = vpop.f32.mrf.mxu0
        %v3626 = vadd.f32 %v3541, %v3625
        %v3627 = vpop.f32.mrf.mxu0
        %v3628 = vpop.f32.mrf.mxu0
        %v3629 = vadd.f32 %v3541, %v3628
        %v3630 = vpop.f32.mrf.mxu0
        %3631 = vmatprep.mubr.bf16.mxu0 0
        %3632 = vmatmul.mubr.bf16.gmra.mxu0 %v3571
        %v3633 = vpop.f32.mrf.mxu0
        %v3634 = vadd.f32 %v3541, %v3633
        %v3635 = vpop.f32.mrf.mxu0
        %v3636 = vpop.f32.mrf.mxu0
        %v3637 = vadd.f32 %v3541, %v3636
        %v3638 = vpop.f32.mrf.mxu0
        %3639 = vmatprep.mubr.bf16.mxu0 0
        %3640 = vmatmul.mubr.bf16.gmra.mxu0 %v3574
        %v3641 = vpop.f32.mrf.mxu0
        %v3642 = vadd.f32 %v3541, %v3641
        %v3643 = vpop.f32.mrf.mxu0
        %v3644 = vpop.f32.mrf.mxu0
        %v3645 = vadd.f32 %v3541, %v3644
        %v3646 = vpop.f32.mrf.mxu0
        %3647 = vmatprep.mubr.bf16.mxu0 0
        %3648 = vmatmul.mubr.bf16.gmra.mxu0 %v3577
        %v3649 = vpop.f32.mrf.mxu0
        %v3650 = vadd.f32 %v3541, %v3649
        %v3651 = vpop.f32.mrf.mxu0
        %v3652 = vpop.f32.mrf.mxu0
        %v3653 = vadd.f32 %v3541, %v3652
        %v3654 = vpop.f32.mrf.mxu0
        %3655 = vmatprep.mubr.bf16.mxu0 0
        %3656 = vmatmul.mubr.bf16.gmra.mxu0 %v3580
        %v3657 = vpop.f32.mrf.mxu0
        %v3658 = vadd.f32 %v3541, %v3657
        %v3659 = vpop.f32.mrf.mxu0
        %v3660 = vpop.f32.mrf.mxu0
        %v3661 = vadd.f32 %v3541, %v3660
        %v3662 = vpop.f32.mrf.mxu0
        %3663 = vmatprep.mubr.bf16.mxu0 0
        %3664 = vmatmul.mubr.bf16.gmra.mxu0 %v3583
        %v3665 = vpop.f32.mrf.mxu0
        %v3666 = vadd.f32 %v3541, %v3665
        %v3667 = vpop.f32.mrf.mxu0
        %v3668 = vpop.f32.mrf.mxu0
        %v3669 = vadd.f32 %v3541, %v3668
        %v3670 = vpop.f32.mrf.mxu0
        %3671 = vmatprep.mubr.bf16.mxu0 0
        %3672 = vmatmul.mubr.bf16.gmra.mxu0 %v3586
        %v3673 = vpop.f32.mrf.mxu0
        %v3674 = vadd.f32 %v3541, %v3673
        %v3675 = vpop.f32.mrf.mxu0
        %v3676 = vpop.f32.mrf.mxu0
        %v3677 = vadd.f32 %v3541, %v3676
        %v3678 = vpop.f32.mrf.mxu0
        %3679 = vmatprep.mubr.bf16.mxu0 0
        %3680 = vmatmul.mubr.bf16.gmra.mxu0 %v3589
        %v3681 = vpop.f32.mrf.mxu0
        %v3682 = vadd.f32 %v3541, %v3681
        %v3683 = vpop.f32.mrf.mxu0
        %v3684 = vpop.f32.mrf.mxu0
        %v3685 = vadd.f32 %v3541, %v3684
        %v3686 = vpop.f32.mrf.mxu0
        %3687 = vdwg.mxu0
        %v3688 = vmax.f32 %v3626, 0.0
        %v3689 = vmax.f32 %v3629, 0.0
        %v3690 = vmax.f32 %v3634, 0.0
        %v3691 = vmax.f32 %v3637, 0.0
        %v3692 = vmax.f32 %v3642, 0.0
        %v3693 = vmax.f32 %v3645, 0.0
        %v3694 = vmax.f32 %v3650, 0.0
        %v3695 = vmax.f32 %v3653, 0.0
        %v3696 = vmax.f32 %v3658, 0.0
        %v3697 = vmax.f32 %v3661, 0.0
        %v3698 = vmax.f32 %v3666, 0.0
        %v3699 = vmax.f32 %v3669, 0.0
        %v3700 = vmax.f32 %v3674, 0.0
        %v3701 = vmax.f32 %v3677, 0.0
        %v3702 = vmax.f32 %v3682, 0.0
        %v3703 = vmax.f32 %v3685, 0.0
        %v3704 = vadd.f32 %v3504, %v3688
        %v3705 = vadd.f32 %v3505, %v3689
        %v3706 = vadd.f32 %v3506, %v3690
        %v3707 = vadd.f32 %v3507, %v3691
        %v3708 = vadd.f32 %v3508, %v3692
        %v3709 = vadd.f32 %v3509, %v3693
        %v3710 = vadd.f32 %v3510, %v3694
        %v3711 = vadd.f32 %v3511, %v3695
        %v3712 = vadd.f32 %v3512, %v3696
        %v3713 = vadd.f32 %v3513, %v3697
        %v3714 = vadd.f32 %v3514, %v3698
        %v3715 = vadd.f32 %v3515, %v3699
        %v3716 = vadd.f32 %v3516, %v3700
        %v3717 = vadd.f32 %v3517, %v3701
        %v3718 = vadd.f32 %v3518, %v3702
        %v3719 = vadd.f32 %v3519, %v3703
        %v3720 = vld [vmem:[%s15] sm:$0xf]
        %v3721 = vld [vmem:[#allocation14] sm:$0xf]
        %v3722 = vld [vmem:[#allocation14 + $0x4] sm:$0xf]
        %v3723 = vld [vmem:[#allocation14 + $0x8] sm:$0xf]
        %v3724 = vld [vmem:[#allocation14 + $0xc] sm:$0xf]
        %v3725 = vld [vmem:[#allocation14 + $0x10] sm:$0xf]
        %v3726 = vld [vmem:[#allocation14 + $0x14] sm:$0xf]
        %v3727 = vld [vmem:[#allocation14 + $0x18] sm:$0xf]
        %v3728 = vld [vmem:[#allocation14 + $0x1c] sm:$0xf]
        %v3729 = vpack.c.bf16 %v3720, %v3720
        %v3730 = vld [vmem:[#allocation16] sm:$0x1]
        %v3732 = vlaneseq
        %v3733 = vshrl.u32 %v3732, 7
        %v3734 = vsub.s32 0, %v3733
        %v3735 = vrot.slane %v3730, %v3734
        %v3745 = vunpack.c.l.b16 %v3721
        %v3746 = vunpack.c.l.b16 %v3722
        %v3747 = vunpack.c.l.b16 %v3723
        %v3748 = vunpack.c.l.b16 %v3724
        %v3749 = vunpack.c.l.b16 %v3725
        %v3750 = vunpack.c.l.b16 %v3726
        %v3751 = vunpack.c.l.b16 %v3727
        %v3752 = vunpack.c.l.b16 %v3728
        %v3753 = vpack.c.b16 %v3746, %v3745
        %v3754 = vpack.c.b16 %v3748, %v3747
        %v3755 = vpack.c.b16 %v3750, %v3749
        %v3756 = vpack.c.b16 %v3752, %v3751
        %v3762 = vsel %vm1716, %v3729, 0
        %3764 = vmatprep.subr.bf16.mxu0 0
        %3765 = vmatpush1.bf16.msra.mxu0 0
        %3766 = vmatprep.subr.bf16.mxu0 0
        %3767 = vmatpush1.bf16.msra.mxu0 0
        %3768 = vmatprep.subr.bf16.mxu0 0
        %3769 = vmatpush1.bf16.msra.mxu0 0
        %3770 = vmatprep.subr.bf16.mxu0 0
        %3771 = vmatpush1.bf16.msra.mxu0 0
        %3772 = vmatprep.subr.bf16.mxu0 0
        %3773 = vmatpush1.bf16.msra.mxu0 %v3756
        %3774 = vmatprep.subr.bf16.mxu0 0
        %3775 = vmatpush1.bf16.msra.mxu0 %v3755
        %3776 = vmatprep.subr.bf16.mxu0 0
        %3777 = vmatpush1.bf16.msra.mxu0 %v3754
        %3778 = vmatprep.subr.bf16.mxu0 0
        %3779 = vmatpush1.bf16.msra.mxu0 %v3753
        %3780 = vmatprep.subr.bf16.mxu0 0
        %3781 = vmatpush2.bf16.msra.mxu0 0
        %3782 = vmatprep.subr.bf16.mxu0 0
        %3783 = vmatpush2.bf16.msra.mxu0 0
        %3784 = vmatprep.subr.bf16.mxu0 0
        %3785 = vmatpush2.bf16.msra.mxu0 0
        %3786 = vmatprep.subr.bf16.mxu0 0
        %3787 = vmatpush2.bf16.msra.mxu0 0
        %3788 = vmatprep.subr.bf16.mxu0 0
        %3789 = vmatpush2.bf16.msra.mxu0 0
        %3790 = vmatprep.subr.bf16.mxu0 0
        %3791 = vmatpush2.bf16.msra.mxu0 0
        %3792 = vmatprep.subr.bf16.mxu0 0
        %3793 = vmatpush2.bf16.msra.mxu0 0
        %3794 = vmatprep.subr.bf16.mxu0 0
        %3795 = vmatpush2.bf16.msra.mxu0 0
        %3796 = vmatprep.mubr.bf16.mxu0 0
        %3797 = vmatmul.mubr.bf16.gmra.mxu0 %v3762
        %v3798 = vpop.f32.mrf.mxu0
        %v3799 = vadd.f32 %v3735, %v3798
        %v3800 = vpop.f32.mrf.mxu0
        %v3801 = vpop.f32.mrf.mxu0
        %v3802 = vpop.f32.mrf.mxu0
        %3803 = vdwg.mxu0
        %v3804 = vld [vmem:[#allocation17] sm:$0xf]
        %v3805 = vld [vmem:[#allocation17 + $0x4] sm:$0xf]
        %v3806 = vld [vmem:[#allocation17 + $0x8] sm:$0xf]
        %v3807 = vld [vmem:[#allocation17 + $0xc] sm:$0xf]
        %v3808 = vld [vmem:[#allocation17 + $0x10] sm:$0xf]
        %v3809 = vld [vmem:[#allocation17 + $0x14] sm:$0xf]
        %v3810 = vld [vmem:[#allocation17 + $0x18] sm:$0xf]
        %v3811 = vld [vmem:[#allocation17 + $0x1c] sm:$0xf]
        %v3812 = vpack.c.bf16 %v3705, %v3704
        %v3813 = vpack.c.bf16 %v3707, %v3706
        %v3814 = vpack.c.bf16 %v3709, %v3708
        %v3815 = vpack.c.bf16 %v3711, %v3710
        %v3816 = vpack.c.bf16 %v3713, %v3712
        %v3817 = vpack.c.bf16 %v3715, %v3714
        %v3818 = vpack.c.bf16 %v3717, %v3716
        %v3819 = vpack.c.bf16 %v3719, %v3718
        %v3820 = vld [vmem:[#allocation19] sm:$0x1]
        %v3822 = vlaneseq
        %v3823 = vshrl.u32 %v3822, 7
        %v3824 = vsub.s32 0, %v3823
        %v3825 = vrot.slane %v3820, %v3824
        %v3835 = vunpack.c.l.b16 %v3804
        %v3836 = vunpack.c.l.b16 %v3805
        %v3837 = vunpack.c.l.b16 %v3806
        %v3838 = vunpack.c.l.b16 %v3807
        %v3839 = vunpack.c.l.b16 %v3808
        %v3840 = vunpack.c.l.b16 %v3809
        %v3841 = vunpack.c.l.b16 %v3810
        %v3842 = vunpack.c.l.b16 %v3811
        %v3843 = vpack.c.b16 %v3836, %v3835
        %v3844 = vpack.c.b16 %v3838, %v3837
        %v3845 = vpack.c.b16 %v3840, %v3839
        %v3846 = vpack.c.b16 %v3842, %v3841
        %v3852 = vsel %vm1716, %v3812, 0
        %v3855 = vsel %vm1716, %v3813, 0
        %v3858 = vsel %vm1716, %v3814, 0
        %v3861 = vsel %vm1716, %v3815, 0
        %v3864 = vsel %vm1716, %v3816, 0
        %v3867 = vsel %vm1716, %v3817, 0
        %v3870 = vsel %vm1716, %v3818, 0
        %v3873 = vsel %vm1716, %v3819, 0
        %3875 = vmatprep.subr.bf16.mxu0 0
        %3876 = vmatpush1.bf16.msra.mxu0 0
        %3877 = vmatprep.subr.bf16.mxu0 0
        %3878 = vmatpush1.bf16.msra.mxu0 0
        %3879 = vmatprep.subr.bf16.mxu0 0
        %3880 = vmatpush1.bf16.msra.mxu0 0
        %3881 = vmatprep.subr.bf16.mxu0 0
        %3882 = vmatpush1.bf16.msra.mxu0 0
        %3883 = vmatprep.subr.bf16.mxu0 0
        %3884 = vmatpush1.bf16.msra.mxu0 %v3846
        %3885 = vmatprep.subr.bf16.mxu0 0
        %3886 = vmatpush1.bf16.msra.mxu0 %v3845
        %3887 = vmatprep.subr.bf16.mxu0 0
        %3888 = vmatpush1.bf16.msra.mxu0 %v3844
        %3889 = vmatprep.subr.bf16.mxu0 0
        %3890 = vmatpush1.bf16.msra.mxu0 %v3843
        %3891 = vmatprep.subr.bf16.mxu0 0
        %3892 = vmatpush2.bf16.msra.mxu0 0
        %3893 = vmatprep.subr.bf16.mxu0 0
        %3894 = vmatpush2.bf16.msra.mxu0 0
        %3895 = vmatprep.subr.bf16.mxu0 0
        %3896 = vmatpush2.bf16.msra.mxu0 0
        %3897 = vmatprep.subr.bf16.mxu0 0
        %3898 = vmatpush2.bf16.msra.mxu0 0
        %3899 = vmatprep.subr.bf16.mxu0 0
        %3900 = vmatpush2.bf16.msra.mxu0 0
        %3901 = vmatprep.subr.bf16.mxu0 0
        %3902 = vmatpush2.bf16.msra.mxu0 0
        %3903 = vmatprep.subr.bf16.mxu0 0
        %3904 = vmatpush2.bf16.msra.mxu0 0
        %3905 = vmatprep.subr.bf16.mxu0 0
        %3906 = vmatpush2.bf16.msra.mxu0 0
        %3907 = vmatprep.mubr.bf16.mxu0 0
        %3908 = vmatmul.mubr.bf16.gmra.mxu0 %v3852
        %v3909 = vpop.f32.mrf.mxu0
        %v3910 = vadd.f32 %v3825, %v3909
        %v3911 = vpop.f32.mrf.mxu0
        %v3912 = vpop.f32.mrf.mxu0
        %v3913 = vadd.f32 %v3825, %v3912
        %v3914 = vpop.f32.mrf.mxu0
        %3915 = vmatprep.mubr.bf16.mxu0 0
        %3916 = vmatmul.mubr.bf16.gmra.mxu0 %v3855
        %v3917 = vpop.f32.mrf.mxu0
        %v3918 = vadd.f32 %v3825, %v3917
        %v3919 = vpop.f32.mrf.mxu0
        %v3920 = vpop.f32.mrf.mxu0
        %v3921 = vadd.f32 %v3825, %v3920
        %v3922 = vpop.f32.mrf.mxu0
        %3923 = vmatprep.mubr.bf16.mxu0 0
        %3924 = vmatmul.mubr.bf16.gmra.mxu0 %v3858
        %v3925 = vpop.f32.mrf.mxu0
        %v3926 = vadd.f32 %v3825, %v3925
        %v3927 = vpop.f32.mrf.mxu0
        %v3928 = vpop.f32.mrf.mxu0
        %v3929 = vadd.f32 %v3825, %v3928
        %v3930 = vpop.f32.mrf.mxu0
        %3931 = vmatprep.mubr.bf16.mxu0 0
        %3932 = vmatmul.mubr.bf16.gmra.mxu0 %v3861
        %v3933 = vpop.f32.mrf.mxu0
        %v3934 = vadd.f32 %v3825, %v3933
        %v3935 = vpop.f32.mrf.mxu0
        %v3936 = vpop.f32.mrf.mxu0
        %v3937 = vadd.f32 %v3825, %v3936
        %v3938 = vpop.f32.mrf.mxu0
        %3939 = vmatprep.mubr.bf16.mxu0 0
        %3940 = vmatmul.mubr.bf16.gmra.mxu0 %v3864
        %v3941 = vpop.f32.mrf.mxu0
        %v3942 = vadd.f32 %v3825, %v3941
        %v3943 = vpop.f32.mrf.mxu0
        %v3944 = vpop.f32.mrf.mxu0
        %v3945 = vadd.f32 %v3825, %v3944
        %v3946 = vpop.f32.mrf.mxu0
        %3947 = vmatprep.mubr.bf16.mxu0 0
        %3948 = vmatmul.mubr.bf16.gmra.mxu0 %v3867
        %v3949 = vpop.f32.mrf.mxu0
        %v3950 = vadd.f32 %v3825, %v3949
        %v3951 = vpop.f32.mrf.mxu0
        %v3952 = vpop.f32.mrf.mxu0
        %v3953 = vadd.f32 %v3825, %v3952
        %v3954 = vpop.f32.mrf.mxu0
        %3955 = vmatprep.mubr.bf16.mxu0 0
        %3956 = vmatmul.mubr.bf16.gmra.mxu0 %v3870
        %v3957 = vpop.f32.mrf.mxu0
        %v3958 = vadd.f32 %v3825, %v3957
        %v3959 = vpop.f32.mrf.mxu0
        %v3960 = vpop.f32.mrf.mxu0
        %v3961 = vadd.f32 %v3825, %v3960
        %v3962 = vpop.f32.mrf.mxu0
        %3963 = vmatprep.mubr.bf16.mxu0 0
        %3964 = vmatmul.mubr.bf16.gmra.mxu0 %v3873
        %v3965 = vpop.f32.mrf.mxu0
        %v3966 = vadd.f32 %v3825, %v3965
        %v3967 = vpop.f32.mrf.mxu0
        %v3968 = vpop.f32.mrf.mxu0
        %v3969 = vadd.f32 %v3825, %v3968
        %v3970 = vpop.f32.mrf.mxu0
        %3971 = vdwg.mxu0
        %v3972 = vmul.f32 %v3910, 0.125
        %v3973 = vmul.f32 %v3913, 0.125
        %v3974 = vmul.f32 %v3918, 0.125
        %v3975 = vmul.f32 %v3921, 0.125
        %v3976 = vmul.f32 %v3926, 0.125
        %v3977 = vmul.f32 %v3929, 0.125
        %v3978 = vmul.f32 %v3934, 0.125
        %v3979 = vmul.f32 %v3937, 0.125
        %v3980 = vmul.f32 %v3942, 0.125
        %v3981 = vmul.f32 %v3945, 0.125
        %v3982 = vmul.f32 %v3950, 0.125
        %v3983 = vmul.f32 %v3953, 0.125
        %v3984 = vmul.f32 %v3958, 0.125
        %v3985 = vmul.f32 %v3961, 0.125
        %v3986 = vmul.f32 %v3966, 0.125
        %v3987 = vmul.f32 %v3969, 0.125
        %v3988 = vpack.c.bf16 %v3799, %v3799
        %v3989 = vpack.c.bf16 %v3973, %v3972
        %v3990 = vpack.c.bf16 %v3975, %v3974
        %v3991 = vpack.c.bf16 %v3977, %v3976
        %v3992 = vpack.c.bf16 %v3979, %v3978
        %v3993 = vpack.c.bf16 %v3981, %v3980
        %v3994 = vpack.c.bf16 %v3983, %v3982
        %v3995 = vpack.c.bf16 %v3985, %v3984
        %v3996 = vpack.c.bf16 %v3987, %v3986
        %v3998 = vsel %vm1716, %v3988, 0
        %v4001 = vsel %vm1716, %v3989, 0
        %v4004 = vsel %vm1716, %v3990, 0
        %v4007 = vsel %vm1716, %v3991, 0
        %v4010 = vsel %vm1716, %v3992, 0
        %v4013 = vsel %vm1716, %v3993, 0
        %v4016 = vsel %vm1716, %v3994, 0
        %v4019 = vsel %vm1716, %v3995, 0
        %v4022 = vsel %vm1716, %v3996, 0
        %4024 = vmatprep.subr.bf16.mxu0 0
        %4025 = vmatpush1.bf16.xpose.msra.mxu0 %v4022
        %4026 = vmatprep.subr.bf16.mxu0 0
        %4027 = vmatpush1.bf16.xpose.msra.mxu0 %v4019
        %4028 = vmatprep.subr.bf16.mxu0 0
        %4029 = vmatpush1.bf16.xpose.msra.mxu0 %v4016
        %4030 = vmatprep.subr.bf16.mxu0 0
        %4031 = vmatpush1.bf16.xpose.msra.mxu0 %v4013
        %4032 = vmatprep.subr.bf16.mxu0 0
        %4033 = vmatpush1.bf16.xpose.msra.mxu0 %v4010
        %4034 = vmatprep.subr.bf16.mxu0 0
        %4035 = vmatpush1.bf16.xpose.msra.mxu0 %v4007
        %4036 = vmatprep.subr.bf16.mxu0 0
        %4037 = vmatpush1.bf16.xpose.msra.mxu0 %v4004
        %4038 = vmatprep.subr.bf16.mxu0 0
        %4039 = vmatpush1.bf16.xpose.msra.mxu0 %v4001
        %4040 = vmatprep.subr.bf16.mxu0 0
        %4041 = vmatpush2.bf16.xpose.msra.mxu0 0
        %4042 = vmatprep.subr.bf16.mxu0 0
        %4043 = vmatpush2.bf16.xpose.msra.mxu0 0
        %4044 = vmatprep.subr.bf16.mxu0 0
        %4045 = vmatpush2.bf16.xpose.msra.mxu0 0
        %4046 = vmatprep.subr.bf16.mxu0 0
        %4047 = vmatpush2.bf16.xpose.msra.mxu0 0
        %4048 = vmatprep.subr.bf16.mxu0 0
        %4049 = vmatpush2.bf16.xpose.msra.mxu0 0
        %4050 = vmatprep.subr.bf16.mxu0 0
        %4051 = vmatpush2.bf16.xpose.msra.mxu0 0
        %4052 = vmatprep.subr.bf16.mxu0 0
        %4053 = vmatpush2.bf16.xpose.msra.mxu0 0
        %4054 = vmatprep.subr.bf16.mxu0 0
        %4055 = vmatpush2.bf16.xpose.msra.mxu0 0
        %4056 = vmatprep.mubr.bf16.mxu0 0
        %4057 = vmatmul.mubr.bf16.gmra.mxu0 %v3998
        %v4058 = vpop.f32.mrf.mxu0
        %v4059 = vadd.f32 0.0, %v4058
        %v4060 = vpop.f32.mrf.mxu0
        %v4061 = vpop.f32.mrf.mxu0
        %v4062 = vpop.f32.mrf.mxu0
        %4063 = vdwg.mxu0
        %vm4064 = vcmask 1043456
        %v4065 = vsel %vm4064, %v4059, -inf
        %4066 = vmax.xlane.f32.xlu0 %v4065
        %v4067 = vpop.xlane.xlu0 %4066
        %v4068 = vsub.f32 %v4059, %v4067
        %v4069 = vmul.f32 %v4068, 1.442695
        %v4070 = vpow.pop %v4069
        %v4071 = vsel %vm4064, %v4070, 0.0
        %4072 = vadd.xlane.f32.xlu0 %v4071
        %v4073 = vpop.xlane.xlu0 %4072
        %v4074 = vrcp.pop %v4073
        %v4075 = vmul.f32 %v4070, %v4074
        %v4076 = vpack.c.bf16 %v4075, %v4075
        %v4077 = vpack.c.bf16 %v3913, %v3910
        %v4078 = vpack.c.bf16 %v3921, %v3918
        %v4079 = vpack.c.bf16 %v3929, %v3926
        %v4080 = vpack.c.bf16 %v3937, %v3934
        %v4081 = vpack.c.bf16 %v3945, %v3942
        %v4082 = vpack.c.bf16 %v3953, %v3950
        %v4083 = vpack.c.bf16 %v3961, %v3958
        %v4084 = vpack.c.bf16 %v3969, %v3966
        %4093 = vrot.lane.b32.xlu0 %v4077, 64
        %v4094 = vpop.permute.xlu0 %4093
        %4095 = vrot.lane.b32.xlu0 %v4078, 64
        %v4096 = vpop.permute.xlu0 %4095
        %4097 = vrot.lane.b32.xlu0 %v4079, 64
        %v4098 = vpop.permute.xlu0 %4097
        %4099 = vrot.lane.b32.xlu0 %v4080, 64
        %v4100 = vpop.permute.xlu0 %4099
        %4101 = vrot.lane.b32.xlu0 %v4081, 64
        %v4102 = vpop.permute.xlu0 %4101
        %4103 = vrot.lane.b32.xlu0 %v4082, 64
        %v4104 = vpop.permute.xlu0 %4103
        %4105 = vrot.lane.b32.xlu0 %v4083, 64
        %v4106 = vpop.permute.xlu0 %4105
        %4107 = vrot.lane.b32.xlu0 %v4084, 64
        %v4108 = vpop.permute.xlu0 %4107
        %4117 = vmatprep.subr.bf16.mxu0 0
        %4118 = vmatpush1.bf16.msra.mxu0 %v4108
        %4119 = vmatprep.subr.bf16.mxu0 0
        %4120 = vmatpush1.bf16.msra.mxu0 %v4106
        %4121 = vmatprep.subr.bf16.mxu0 0
        %4122 = vmatpush1.bf16.msra.mxu0 %v4104
        %4123 = vmatprep.subr.bf16.mxu0 0
        %4124 = vmatpush1.bf16.msra.mxu0 %v4102
        %4125 = vmatprep.subr.bf16.mxu0 0
        %4126 = vmatpush1.bf16.msra.mxu0 %v4100
        %4127 = vmatprep.subr.bf16.mxu0 0
        %4128 = vmatpush1.bf16.msra.mxu0 %v4098
        %4129 = vmatprep.subr.bf16.mxu0 0
        %4130 = vmatpush1.bf16.msra.mxu0 %v4096
        %4131 = vmatprep.subr.bf16.mxu0 0
        %4132 = vmatpush1.bf16.msra.mxu0 %v4094
        %4133 = vmatprep.subr.bf16.mxu0 0
        %4134 = vmatpush2.bf16.msra.mxu0 0
        %4135 = vmatprep.subr.bf16.mxu0 0
        %4136 = vmatpush2.bf16.msra.mxu0 0
        %4137 = vmatprep.subr.bf16.mxu0 0
        %4138 = vmatpush2.bf16.msra.mxu0 0
        %4139 = vmatprep.subr.bf16.mxu0 0
        %4140 = vmatpush2.bf16.msra.mxu0 0
        %4141 = vmatprep.subr.bf16.mxu0 0
        %4142 = vmatpush2.bf16.msra.mxu0 0
        %4143 = vmatprep.subr.bf16.mxu0 0
        %4144 = vmatpush2.bf16.msra.mxu0 0
        %4145 = vmatprep.subr.bf16.mxu0 0
        %4146 = vmatpush2.bf16.msra.mxu0 0
        %4147 = vmatprep.subr.bf16.mxu0 0
        %4148 = vmatpush2.bf16.msra.mxu0 0
        %4149 = vmatprep.mubr.bf16.mxu0 0
        %4150 = vmatmul.mubr.bf16.gmra.mxu0 %v4076
        %v4151 = vpop.f32.mrf.mxu0
        %v4152 = vadd.f32 0.0, %v4151
        %v4153 = vpop.f32.mrf.mxu0
        %v4154 = vpop.f32.mrf.mxu0
        %v4155 = vpop.f32.mrf.mxu0
        %4156 = vdwg.mxu0
        %v4157 = vadd.f32 %v3799, %v4152
        %v4158 = vld [vmem:[#allocation20] sm:$0xf]
        %v4159 = vld [vmem:[#allocation20 + $0x4] sm:$0xf]
        %v4160 = vld [vmem:[#allocation20 + $0x8] sm:$0xf]
        %v4161 = vld [vmem:[#allocation20 + $0xc] sm:$0xf]
        %v4162 = vld [vmem:[#allocation20 + $0x10] sm:$0xf]
        %v4163 = vld [vmem:[#allocation20 + $0x14] sm:$0xf]
        %v4164 = vld [vmem:[#allocation20 + $0x18] sm:$0xf]
        %v4165 = vld [vmem:[#allocation20 + $0x1c] sm:$0xf]
        %v4166 = vpack.c.bf16 %v4157, %v4157
        %v4167 = vld [vmem:[#allocation22] sm:$0x1]
        %v4169 = vlaneseq
        %v4170 = vshrl.u32 %v4169, 7
        %v4171 = vsub.s32 0, %v4170
        %v4172 = vrot.slane %v4167, %v4171
        %v4182 = vunpack.c.l.b16 %v4158
        %v4183 = vunpack.c.l.b16 %v4159
        %v4184 = vunpack.c.l.b16 %v4160
        %v4185 = vunpack.c.l.b16 %v4161
        %v4186 = vunpack.c.l.b16 %v4162
        %v4187 = vunpack.c.l.b16 %v4163
        %v4188 = vunpack.c.l.b16 %v4164
        %v4189 = vunpack.c.l.b16 %v4165
        %v4190 = vpack.c.b16 %v4183, %v4182
        %v4191 = vpack.c.b16 %v4185, %v4184
        %v4192 = vpack.c.b16 %v4187, %v4186
        %v4193 = vpack.c.b16 %v4189, %v4188
        %v4199 = vsel %vm1716, %v4166, 0
        %4201 = vmatprep.subr.bf16.mxu0 0
        %4202 = vmatpush1.bf16.msra.mxu0 0
        %4203 = vmatprep.subr.bf16.mxu0 0
        %4204 = vmatpush1.bf16.msra.mxu0 0
        %4205 = vmatprep.subr.bf16.mxu0 0
        %4206 = vmatpush1.bf16.msra.mxu0 0
        %4207 = vmatprep.subr.bf16.mxu0 0
        %4208 = vmatpush1.bf16.msra.mxu0 0
        %4209 = vmatprep.subr.bf16.mxu0 0
        %4210 = vmatpush1.bf16.msra.mxu0 %v4193
        %4211 = vmatprep.subr.bf16.mxu0 0
        %4212 = vmatpush1.bf16.msra.mxu0 %v4192
        %4213 = vmatprep.subr.bf16.mxu0 0
        %4214 = vmatpush1.bf16.msra.mxu0 %v4191
        %4215 = vmatprep.subr.bf16.mxu0 0
        %4216 = vmatpush1.bf16.msra.mxu0 %v4190
        %4217 = vmatprep.subr.bf16.mxu0 0
        %4218 = vmatpush2.bf16.msra.mxu0 0
        %4219 = vmatprep.subr.bf16.mxu0 0
        %4220 = vmatpush2.bf16.msra.mxu0 0
        %4221 = vmatprep.subr.bf16.mxu0 0
        %4222 = vmatpush2.bf16.msra.mxu0 0
        %4223 = vmatprep.subr.bf16.mxu0 0
        %4224 = vmatpush2.bf16.msra.mxu0 0
        %4225 = vmatprep.subr.bf16.mxu0 0
        %4226 = vmatpush2.bf16.msra.mxu0 0
        %4227 = vmatprep.subr.bf16.mxu0 0
        %4228 = vmatpush2.bf16.msra.mxu0 0
        %4229 = vmatprep.subr.bf16.mxu0 0
        %4230 = vmatpush2.bf16.msra.mxu0 0
        %4231 = vmatprep.subr.bf16.mxu0 0
        %4232 = vmatpush2.bf16.msra.mxu0 0
        %4233 = vmatprep.mubr.bf16.mxu0 0
        %4234 = vmatmul.mubr.bf16.gmra.mxu0 %v4199
        %v4235 = vpop.f32.mrf.mxu0
        %v4236 = vadd.f32 %v4172, %v4235
        %v4237 = vpop.f32.mrf.mxu0
        %v4238 = vpop.f32.mrf.mxu0
        %v4239 = vpop.f32.mrf.mxu0
        %4240 = vdwg.mxu0
        %v4241 = vmax.f32 %v4236, 0.0
        %v4242 = vadd.f32 %v4157, %v4241
        %v4243 = vld [vmem:[#allocation23] sm:$0xf]
        %v4244 = vld [vmem:[#allocation23 + $0x4] sm:$0xf]
        %v4245 = vld [vmem:[#allocation23 + $0x8] sm:$0xf]
        %v4246 = vld [vmem:[#allocation23 + $0xc] sm:$0xf]
        %v4247 = vld [vmem:[#allocation23 + $0x10] sm:$0xf]
        %v4248 = vld [vmem:[#allocation23 + $0x14] sm:$0xf]
        %v4249 = vld [vmem:[#allocation23 + $0x18] sm:$0xf]
        %v4250 = vld [vmem:[#allocation23 + $0x1c] sm:$0xf]
        %v4251 = vld [vmem:[#allocation25] sm:$0x1]
        %v4253 = vlaneseq
        %v4254 = vshrl.u32 %v4253, 7
        %v4255 = vsub.s32 0, %v4254
        %v4256 = vrot.slane %v4251, %v4255
        %v4266 = vunpack.c.l.b16 %v4243
        %v4267 = vunpack.c.l.b16 %v4244
        %v4268 = vunpack.c.l.b16 %v4245
        %v4269 = vunpack.c.l.b16 %v4246
        %v4270 = vunpack.c.l.b16 %v4247
        %v4271 = vunpack.c.l.b16 %v4248
        %v4272 = vunpack.c.l.b16 %v4249
        %v4273 = vunpack.c.l.b16 %v4250
        %v4274 = vpack.c.b16 %v4267, %v4266
        %v4275 = vpack.c.b16 %v4269, %v4268
        %v4276 = vpack.c.b16 %v4271, %v4270
        %v4277 = vpack.c.b16 %v4273, %v4272
        %4282 = vmatprep.subr.bf16.mxu0 0
        %4283 = vmatpush1.bf16.msra.mxu0 0
        %4284 = vmatprep.subr.bf16.mxu0 0
        %4285 = vmatpush1.bf16.msra.mxu0 0
        %4286 = vmatprep.subr.bf16.mxu0 0
        %4287 = vmatpush1.bf16.msra.mxu0 0
        %4288 = vmatprep.subr.bf16.mxu0 0
        %4289 = vmatpush1.bf16.msra.mxu0 0
        %4290 = vmatprep.subr.bf16.mxu0 0
        %4291 = vmatpush1.bf16.msra.mxu0 %v4277
        %4292 = vmatprep.subr.bf16.mxu0 0
        %4293 = vmatpush1.bf16.msra.mxu0 %v4276
        %4294 = vmatprep.subr.bf16.mxu0 0
        %4295 = vmatpush1.bf16.msra.mxu0 %v4275
        %4296 = vmatprep.subr.bf16.mxu0 0
        %4297 = vmatpush1.bf16.msra.mxu0 %v4274
        %4298 = vmatprep.subr.bf16.mxu0 0
        %4299 = vmatpush2.bf16.msra.mxu0 0
        %4300 = vmatprep.subr.bf16.mxu0 0
        %4301 = vmatpush2.bf16.msra.mxu0 0
        %4302 = vmatprep.subr.bf16.mxu0 0
        %4303 = vmatpush2.bf16.msra.mxu0 0
        %4304 = vmatprep.subr.bf16.mxu0 0
        %4305 = vmatpush2.bf16.msra.mxu0 0
        %4306 = vmatprep.subr.bf16.mxu0 0
        %4307 = vmatpush2.bf16.msra.mxu0 0
        %4308 = vmatprep.subr.bf16.mxu0 0
        %4309 = vmatpush2.bf16.msra.mxu0 0
        %4310 = vmatprep.subr.bf16.mxu0 0
        %4311 = vmatpush2.bf16.msra.mxu0 0
        %4312 = vmatprep.subr.bf16.mxu0 0
        %4313 = vmatpush2.bf16.msra.mxu0 0
        %4314 = vmatprep.mubr.bf16.mxu0 0
        %4315 = vmatmul.mubr.bf16.gmra.mxu0 %v3852
        %v4316 = vpop.f32.mrf.mxu0
        %v4317 = vadd.f32 %v4256, %v4316
        %v4318 = vpop.f32.mrf.mxu0
        %v4319 = vpop.f32.mrf.mxu0
        %v4320 = vadd.f32 %v4256, %v4319
        %v4321 = vpop.f32.mrf.mxu0
        %4322 = vmatprep.mubr.bf16.mxu0 0
        %4323 = vmatmul.mubr.bf16.gmra.mxu0 %v3855
        %v4324 = vpop.f32.mrf.mxu0
        %v4325 = vadd.f32 %v4256, %v4324
        %v4326 = vpop.f32.mrf.mxu0
        %v4327 = vpop.f32.mrf.mxu0
        %v4328 = vadd.f32 %v4256, %v4327
        %v4329 = vpop.f32.mrf.mxu0
        %4330 = vmatprep.mubr.bf16.mxu0 0
        %4331 = vmatmul.mubr.bf16.gmra.mxu0 %v3858
        %v4332 = vpop.f32.mrf.mxu0
        %v4333 = vadd.f32 %v4256, %v4332
        %v4334 = vpop.f32.mrf.mxu0
        %v4335 = vpop.f32.mrf.mxu0
        %v4336 = vadd.f32 %v4256, %v4335
        %v4337 = vpop.f32.mrf.mxu0
        %4338 = vmatprep.mubr.bf16.mxu0 0
        %4339 = vmatmul.mubr.bf16.gmra.mxu0 %v3861
        %v4340 = vpop.f32.mrf.mxu0
        %v4341 = vadd.f32 %v4256, %v4340
        %v4342 = vpop.f32.mrf.mxu0
        %v4343 = vpop.f32.mrf.mxu0
        %v4344 = vadd.f32 %v4256, %v4343
        %v4345 = vpop.f32.mrf.mxu0
        %4346 = vmatprep.mubr.bf16.mxu0 0
        %4347 = vmatmul.mubr.bf16.gmra.mxu0 %v3864
        %v4348 = vpop.f32.mrf.mxu0
        %v4349 = vadd.f32 %v4256, %v4348
        %v4350 = vpop.f32.mrf.mxu0
        %v4351 = vpop.f32.mrf.mxu0
        %v4352 = vadd.f32 %v4256, %v4351
        %v4353 = vpop.f32.mrf.mxu0
        %4354 = vmatprep.mubr.bf16.mxu0 0
        %4355 = vmatmul.mubr.bf16.gmra.mxu0 %v3867
        %v4356 = vpop.f32.mrf.mxu0
        %v4357 = vadd.f32 %v4256, %v4356
        %v4358 = vpop.f32.mrf.mxu0
        %v4359 = vpop.f32.mrf.mxu0
        %v4360 = vadd.f32 %v4256, %v4359
        %v4361 = vpop.f32.mrf.mxu0
        %4362 = vmatprep.mubr.bf16.mxu0 0
        %4363 = vmatmul.mubr.bf16.gmra.mxu0 %v3870
        %v4364 = vpop.f32.mrf.mxu0
        %v4365 = vadd.f32 %v4256, %v4364
        %v4366 = vpop.f32.mrf.mxu0
        %v4367 = vpop.f32.mrf.mxu0
        %v4368 = vadd.f32 %v4256, %v4367
        %v4369 = vpop.f32.mrf.mxu0
        %4370 = vmatprep.mubr.bf16.mxu0 0
        %4371 = vmatmul.mubr.bf16.gmra.mxu0 %v3873
        %v4372 = vpop.f32.mrf.mxu0
        %v4373 = vadd.f32 %v4256, %v4372
        %v4374 = vpop.f32.mrf.mxu0
        %v4375 = vpop.f32.mrf.mxu0
        %v4376 = vadd.f32 %v4256, %v4375
        %v4377 = vpop.f32.mrf.mxu0
        %4378 = vdwg.mxu0
        %v4379 = vld [vmem:[#allocation26] sm:$0xf]
        %v4380 = vld [vmem:[#allocation26 + $0x4] sm:$0xf]
        %v4381 = vld [vmem:[#allocation26 + $0x8] sm:$0xf]
        %v4382 = vld [vmem:[#allocation26 + $0xc] sm:$0xf]
        %v4383 = vld [vmem:[#allocation26 + $0x10] sm:$0xf]
        %v4384 = vld [vmem:[#allocation26 + $0x14] sm:$0xf]
        %v4385 = vld [vmem:[#allocation26 + $0x18] sm:$0xf]
        %v4386 = vld [vmem:[#allocation26 + $0x1c] sm:$0xf]
        %v4387 = vpack.c.bf16 %v4242, %v4242
        %v4388 = vld [vmem:[#allocation28] sm:$0x1]
        %v4390 = vlaneseq
        %v4391 = vshrl.u32 %v4390, 7
        %v4392 = vsub.s32 0, %v4391
        %v4393 = vrot.slane %v4388, %v4392
        %v4403 = vunpack.c.l.b16 %v4379
        %v4404 = vunpack.c.l.b16 %v4380
        %v4405 = vunpack.c.l.b16 %v4381
        %v4406 = vunpack.c.l.b16 %v4382
        %v4407 = vunpack.c.l.b16 %v4383
        %v4408 = vunpack.c.l.b16 %v4384
        %v4409 = vunpack.c.l.b16 %v4385
        %v4410 = vunpack.c.l.b16 %v4386
        %v4411 = vpack.c.b16 %v4404, %v4403
        %v4412 = vpack.c.b16 %v4406, %v4405
        %v4413 = vpack.c.b16 %v4408, %v4407
        %v4414 = vpack.c.b16 %v4410, %v4409
        %v4420 = vsel %vm1716, %v4387, 0
        %4422 = vmatprep.subr.bf16.mxu0 0
        %4423 = vmatpush1.bf16.msra.mxu0 0
        %4424 = vmatprep.subr.bf16.mxu0 0
        %4425 = vmatpush1.bf16.msra.mxu0 0
        %4426 = vmatprep.subr.bf16.mxu0 0
        %4427 = vmatpush1.bf16.msra.mxu0 0
        %4428 = vmatprep.subr.bf16.mxu0 0
        %4429 = vmatpush1.bf16.msra.mxu0 0
        %4430 = vmatprep.subr.bf16.mxu0 0
        %4431 = vmatpush1.bf16.msra.mxu0 %v4414
        %4432 = vmatprep.subr.bf16.mxu0 0
        %4433 = vmatpush1.bf16.msra.mxu0 %v4413
        %4434 = vmatprep.subr.bf16.mxu0 0
        %4435 = vmatpush1.bf16.msra.mxu0 %v4412
        %4436 = vmatprep.subr.bf16.mxu0 0
        %4437 = vmatpush1.bf16.msra.mxu0 %v4411
        %4438 = vmatprep.subr.bf16.mxu0 0
        %4439 = vmatpush2.bf16.msra.mxu0 0
        %4440 = vmatprep.subr.bf16.mxu0 0
        %4441 = vmatpush2.bf16.msra.mxu0 0
        %4442 = vmatprep.subr.bf16.mxu0 0
        %4443 = vmatpush2.bf16.msra.mxu0 0
        %4444 = vmatprep.subr.bf16.mxu0 0
        %4445 = vmatpush2.bf16.msra.mxu0 0
        %4446 = vmatprep.subr.bf16.mxu0 0
        %4447 = vmatpush2.bf16.msra.mxu0 0
        %4448 = vmatprep.subr.bf16.mxu0 0
        %4449 = vmatpush2.bf16.msra.mxu0 0
        %4450 = vmatprep.subr.bf16.mxu0 0
        %4451 = vmatpush2.bf16.msra.mxu0 0
        %4452 = vmatprep.subr.bf16.mxu0 0
        %4453 = vmatpush2.bf16.msra.mxu0 0
        %4454 = vmatprep.mubr.bf16.mxu0 0
        %4455 = vmatmul.mubr.bf16.gmra.mxu0 %v4420
        %v4456 = vpop.f32.mrf.mxu0
        %v4457 = vadd.f32 %v4393, %v4456
        %v4458 = vpop.f32.mrf.mxu0
        %v4459 = vpop.f32.mrf.mxu0
        %v4460 = vpop.f32.mrf.mxu0
        %4461 = vdwg.mxu0
        %v4462 = vmul.f32 %v4457, 0.125
        %v4463 = vpack.c.bf16 %v4320, %v4317
        %v4464 = vpack.c.bf16 %v4328, %v4325
        %v4465 = vpack.c.bf16 %v4336, %v4333
        %v4466 = vpack.c.bf16 %v4344, %v4341
        %v4467 = vpack.c.bf16 %v4352, %v4349
        %v4468 = vpack.c.bf16 %v4360, %v4357
        %v4469 = vpack.c.bf16 %v4368, %v4365
        %v4470 = vpack.c.bf16 %v4376, %v4373
        %v4471 = vpack.c.bf16 %v4462, %v4462
        %v4473 = vsel %vm1716, %v4463, 0
        %v4476 = vsel %vm1716, %v4464, 0
        %v4479 = vsel %vm1716, %v4465, 0
        %v4482 = vsel %vm1716, %v4466, 0
        %v4485 = vsel %vm1716, %v4467, 0
        %v4488 = vsel %vm1716, %v4468, 0
        %v4491 = vsel %vm1716, %v4469, 0
        %v4494 = vsel %vm1716, %v4470, 0
        %v4497 = vsel %vm1716, %v4471, 0
        %4499 = vmatprep.subr.bf16.mxu0 0
        %4500 = vmatpush1.bf16.xpose.msra.mxu0 0
        %4501 = vmatprep.subr.bf16.mxu0 0
        %4502 = vmatpush1.bf16.xpose.msra.mxu0 0
        %4503 = vmatprep.subr.bf16.mxu0 0
        %4504 = vmatpush1.bf16.xpose.msra.mxu0 0
        %4505 = vmatprep.subr.bf16.mxu0 0
        %4506 = vmatpush1.bf16.xpose.msra.mxu0 0
        %4507 = vmatprep.subr.bf16.mxu0 0
        %4508 = vmatpush1.bf16.xpose.msra.mxu0 0
        %4509 = vmatprep.subr.bf16.mxu0 0
        %4510 = vmatpush1.bf16.xpose.msra.mxu0 0
        %4511 = vmatprep.subr.bf16.mxu0 0
        %4512 = vmatpush1.bf16.xpose.msra.mxu0 0
        %4513 = vmatprep.subr.bf16.mxu0 0
        %4514 = vmatpush1.bf16.xpose.msra.mxu0 %v4497
        %4515 = vmatprep.subr.bf16.mxu0 0
        %4516 = vmatpush2.bf16.xpose.msra.mxu0 0
        %4517 = vmatprep.subr.bf16.mxu0 0
        %4518 = vmatpush2.bf16.xpose.msra.mxu0 0
        %4519 = vmatprep.subr.bf16.mxu0 0
        %4520 = vmatpush2.bf16.xpose.msra.mxu0 0
        %4521 = vmatprep.subr.bf16.mxu0 0
        %4522 = vmatpush2.bf16.xpose.msra.mxu0 0
        %4523 = vmatprep.subr.bf16.mxu0 0
        %4524 = vmatpush2.bf16.xpose.msra.mxu0 0
        %4525 = vmatprep.subr.bf16.mxu0 0
        %4526 = vmatpush2.bf16.xpose.msra.mxu0 0
        %4527 = vmatprep.subr.bf16.mxu0 0
        %4528 = vmatpush2.bf16.xpose.msra.mxu0 0
        %4529 = vmatprep.subr.bf16.mxu0 0
        %4530 = vmatpush2.bf16.xpose.msra.mxu0 0
        %4531 = vmatprep.mubr.bf16.mxu0 0
        %4532 = vmatmul.mubr.bf16.gmra.mxu0 %v4473
        %v4533 = vpop.f32.mrf.mxu0
        %v4534 = vadd.f32 0.0, %v4533
        %v4535 = vpop.f32.mrf.mxu0
        %v4536 = vpop.f32.mrf.mxu0
        %v4537 = vadd.f32 0.0, %v4536
        %v4538 = vpop.f32.mrf.mxu0
        %4539 = vmatprep.mubr.bf16.mxu0 0
        %4540 = vmatmul.mubr.bf16.gmra.mxu0 %v4476
        %v4541 = vpop.f32.mrf.mxu0
        %v4542 = vadd.f32 0.0, %v4541
        %v4543 = vpop.f32.mrf.mxu0
        %v4544 = vpop.f32.mrf.mxu0
        %v4545 = vadd.f32 0.0, %v4544
        %v4546 = vpop.f32.mrf.mxu0
        %4547 = vmatprep.mubr.bf16.mxu0 0
        %4548 = vmatmul.mubr.bf16.gmra.mxu0 %v4479
        %v4549 = vpop.f32.mrf.mxu0
        %v4550 = vadd.f32 0.0, %v4549
        %v4551 = vpop.f32.mrf.mxu0
        %v4552 = vpop.f32.mrf.mxu0
        %v4553 = vadd.f32 0.0, %v4552
        %v4554 = vpop.f32.mrf.mxu0
        %4555 = vmatprep.mubr.bf16.mxu0 0
        %4556 = vmatmul.mubr.bf16.gmra.mxu0 %v4482
        %v4557 = vpop.f32.mrf.mxu0
        %v4558 = vadd.f32 0.0, %v4557
        %v4559 = vpop.f32.mrf.mxu0
        %v4560 = vpop.f32.mrf.mxu0
        %v4561 = vadd.f32 0.0, %v4560
        %v4562 = vpop.f32.mrf.mxu0
        %4563 = vmatprep.mubr.bf16.mxu0 0
        %4564 = vmatmul.mubr.bf16.gmra.mxu0 %v4485
        %v4565 = vpop.f32.mrf.mxu0
        %v4566 = vadd.f32 0.0, %v4565
        %v4567 = vpop.f32.mrf.mxu0
        %v4568 = vpop.f32.mrf.mxu0
        %v4569 = vadd.f32 0.0, %v4568
        %v4570 = vpop.f32.mrf.mxu0
        %4571 = vmatprep.mubr.bf16.mxu0 0
        %4572 = vmatmul.mubr.bf16.gmra.mxu0 %v4488
        %v4573 = vpop.f32.mrf.mxu0
        %v4574 = vadd.f32 0.0, %v4573
        %v4575 = vpop.f32.mrf.mxu0
        %v4576 = vpop.f32.mrf.mxu0
        %v4577 = vadd.f32 0.0, %v4576
        %v4578 = vpop.f32.mrf.mxu0
        %4579 = vmatprep.mubr.bf16.mxu0 0
        %4580 = vmatmul.mubr.bf16.gmra.mxu0 %v4491
        %v4581 = vpop.f32.mrf.mxu0
        %v4582 = vadd.f32 0.0, %v4581
        %v4583 = vpop.f32.mrf.mxu0
        %v4584 = vpop.f32.mrf.mxu0
        %v4585 = vadd.f32 0.0, %v4584
        %v4586 = vpop.f32.mrf.mxu0
        %4587 = vmatprep.mubr.bf16.mxu0 0
        %4588 = vmatmul.mubr.bf16.gmra.mxu0 %v4494
        %v4589 = vpop.f32.mrf.mxu0
        %v4590 = vadd.f32 0.0, %v4589
        %v4591 = vpop.f32.mrf.mxu0
        %v4592 = vpop.f32.mrf.mxu0
        %v4593 = vadd.f32 0.0, %v4592
        %v4594 = vpop.f32.mrf.mxu0
        %4595 = vdwg.mxu0
        %vm4596 = vcmask 31744
        %v4597 = vsel %vm4596, %v4534, -inf
        %4598 = vmax.xlane.f32.xlu0 %v4597
        %v4599 = vpop.xlane.xlu0 %4598
        %v4600 = vsel %vm4596, %v4537, -inf
        %4601 = vmax.xlane.f32.xlu0 %v4600
        %v4602 = vpop.xlane.xlu0 %4601
        %v4603 = vsel %vm4596, %v4542, -inf
        %4604 = vmax.xlane.f32.xlu0 %v4603
        %v4605 = vpop.xlane.xlu0 %4604
        %v4606 = vsel %vm4596, %v4545, -inf
        %4607 = vmax.xlane.f32.xlu0 %v4606
        %v4608 = vpop.xlane.xlu0 %4607
        %v4609 = vsel %vm4596, %v4550, -inf
        %4610 = vmax.xlane.f32.xlu0 %v4609
        %v4611 = vpop.xlane.xlu0 %4610
        %v4612 = vsel %vm4596, %v4553, -inf
        %4613 = vmax.xlane.f32.xlu0 %v4612
        %v4614 = vpop.xlane.xlu0 %4613
        %v4615 = vsel %vm4596, %v4558, -inf
        %4616 = vmax.xlane.f32.xlu0 %v4615
        %v4617 = vpop.xlane.xlu0 %4616
        %v4618 = vsel %vm4596, %v4561, -inf
        %4619 = vmax.xlane.f32.xlu0 %v4618
        %v4620 = vpop.xlane.xlu0 %4619
        %v4621 = vsel %vm4596, %v4566, -inf
        %4622 = vmax.xlane.f32.xlu0 %v4621
        %v4623 = vpop.xlane.xlu0 %4622
        %v4624 = vsel %vm4596, %v4569, -inf
        %4625 = vmax.xlane.f32.xlu0 %v4624
        %v4626 = vpop.xlane.xlu0 %4625
        %v4627 = vsel %vm4596, %v4574, -inf
        %4628 = vmax.xlane.f32.xlu0 %v4627
        %v4629 = vpop.xlane.xlu0 %4628
        %v4630 = vsel %vm4596, %v4577, -inf
        %4631 = vmax.xlane.f32.xlu0 %v4630
        %v4632 = vpop.xlane.xlu0 %4631
        %v4633 = vsel %vm4596, %v4582, -inf
        %4634 = vmax.xlane.f32.xlu0 %v4633
        %v4635 = vpop.xlane.xlu0 %4634
        %v4636 = vsel %vm4596, %v4585, -inf
        %4637 = vmax.xlane.f32.xlu0 %v4636
        %v4638 = vpop.xlane.xlu0 %4637
        %v4639 = vsel %vm4596, %v4590, -inf
        %4640 = vmax.xlane.f32.xlu0 %v4639
        %v4641 = vpop.xlane.xlu0 %4640
        %v4642 = vsel %vm4596, %v4593, -inf
        %4643 = vmax.xlane.f32.xlu0 %v4642
        %v4644 = vpop.xlane.xlu0 %4643
        %v4645 = vsub.f32 %v4534, %v4599
        %v4646 = vsub.f32 %v4537, %v4602
        %v4647 = vsub.f32 %v4542, %v4605
        %v4648 = vsub.f32 %v4545, %v4608
        %v4649 = vsub.f32 %v4550, %v4611
        %v4650 = vsub.f32 %v4553, %v4614
        %v4651 = vsub.f32 %v4558, %v4617
        %v4652 = vsub.f32 %v4561, %v4620
        %v4653 = vsub.f32 %v4566, %v4623
        %v4654 = vsub.f32 %v4569, %v4626
        %v4655 = vsub.f32 %v4574, %v4629
        %v4656 = vsub.f32 %v4577, %v4632
        %v4657 = vsub.f32 %v4582, %v4635
        %v4658 = vsub.f32 %v4585, %v4638
        %v4659 = vsub.f32 %v4590, %v4641
        %v4660 = vsub.f32 %v4593, %v4644
        %v4661 = vmul.f32 %v4645, 1.442695
        %v4662 = vpow.pop %v4661
        %v4663 = vmul.f32 %v4646, 1.442695
        %v4664 = vpow.pop %v4663
        %v4665 = vmul.f32 %v4647, 1.442695
        %v4666 = vpow.pop %v4665
        %v4667 = vmul.f32 %v4648, 1.442695
        %v4668 = vpow.pop %v4667
        %v4669 = vmul.f32 %v4649, 1.442695
        %v4670 = vpow.pop %v4669
        %v4671 = vmul.f32 %v4650, 1.442695
        %v4672 = vpow.pop %v4671
        %v4673 = vmul.f32 %v4651, 1.442695
        %v4674 = vpow.pop %v4673
        %v4675 = vmul.f32 %v4652, 1.442695
        %v4676 = vpow.pop %v4675
        %v4677 = vmul.f32 %v4653, 1.442695
        %v4678 = vpow.pop %v4677
        %v4679 = vmul.f32 %v4654, 1.442695
        %v4680 = vpow.pop %v4679
        %v4681 = vmul.f32 %v4655, 1.442695
        %v4682 = vpow.pop %v4681
        %v4683 = vmul.f32 %v4656, 1.442695
        %v4684 = vpow.pop %v4683
        %v4685 = vmul.f32 %v4657, 1.442695
        %v4686 = vpow.pop %v4685
        %v4687 = vmul.f32 %v4658, 1.442695
        %v4688 = vpow.pop %v4687
        %v4689 = vmul.f32 %v4659, 1.442695
        %v4690 = vpow.pop %v4689
        %v4691 = vmul.f32 %v4660, 1.442695
        %v4692 = vpow.pop %v4691
        %v4693 = vsel %vm4596, %v4662, 0.0
        %4694 = vadd.xlane.f32.xlu0 %v4693
        %v4695 = vpop.xlane.xlu0 %4694
        %v4696 = vsel %vm4596, %v4664, 0.0
        %4697 = vadd.xlane.f32.xlu0 %v4696
        %v4698 = vpop.xlane.xlu0 %4697
        %v4699 = vsel %vm4596, %v4666, 0.0
        %4700 = vadd.xlane.f32.xlu0 %v4699
        %v4701 = vpop.xlane.xlu0 %4700
        %v4702 = vsel %vm4596, %v4668, 0.0
        %4703 = vadd.xlane.f32.xlu0 %v4702
        %v4704 = vpop.xlane.xlu0 %4703
        %v4705 = vsel %vm4596, %v4670, 0.0
        %4706 = vadd.xlane.f32.xlu0 %v4705
        %v4707 = vpop.xlane.xlu0 %4706
        %v4708 = vsel %vm4596, %v4672, 0.0
        %4709 = vadd.xlane.f32.xlu0 %v4708
        %v4710 = vpop.xlane.xlu0 %4709
        %v4711 = vsel %vm4596, %v4674, 0.0
        %4712 = vadd.xlane.f32.xlu0 %v4711
        %v4713 = vpop.xlane.xlu0 %4712
        %v4714 = vsel %vm4596, %v4676, 0.0
        %4715 = vadd.xlane.f32.xlu0 %v4714
        %v4716 = vpop.xlane.xlu0 %4715
        %v4717 = vsel %vm4596, %v4678, 0.0
        %4718 = vadd.xlane.f32.xlu0 %v4717
        %v4719 = vpop.xlane.xlu0 %4718
        %v4720 = vsel %vm4596, %v4680, 0.0
        %4721 = vadd.xlane.f32.xlu0 %v4720
        %v4722 = vpop.xlane.xlu0 %4721
        %v4723 = vsel %vm4596, %v4682, 0.0
        %4724 = vadd.xlane.f32.xlu0 %v4723
        %v4725 = vpop.xlane.xlu0 %4724
        %v4726 = vsel %vm4596, %v4684, 0.0
        %4727 = vadd.xlane.f32.xlu0 %v4726
        %v4728 = vpop.xlane.xlu0 %4727
        %v4729 = vsel %vm4596, %v4686, 0.0
        %4730 = vadd.xlane.f32.xlu0 %v4729
        %v4731 = vpop.xlane.xlu0 %4730
        %v4732 = vsel %vm4596, %v4688, 0.0
        %4733 = vadd.xlane.f32.xlu0 %v4732
        %v4734 = vpop.xlane.xlu0 %4733
        %v4735 = vsel %vm4596, %v4690, 0.0
        %4736 = vadd.xlane.f32.xlu0 %v4735
        %v4737 = vpop.xlane.xlu0 %4736
        %v4738 = vsel %vm4596, %v4692, 0.0
        %4739 = vadd.xlane.f32.xlu0 %v4738
        %v4740 = vpop.xlane.xlu0 %4739
        %v4741 = vrcp.pop %v4695
        %v4742 = vrcp.pop %v4698
        %v4743 = vrcp.pop %v4701
        %v4744 = vrcp.pop %v4704
        %v4745 = vrcp.pop %v4707
        %v4746 = vrcp.pop %v4710
        %v4747 = vrcp.pop %v4713
        %v4748 = vrcp.pop %v4716
        %v4749 = vrcp.pop %v4719
        %v4750 = vrcp.pop %v4722
        %v4751 = vrcp.pop %v4725
        %v4752 = vrcp.pop %v4728
        %v4753 = vrcp.pop %v4731
        %v4754 = vrcp.pop %v4734
        %v4755 = vrcp.pop %v4737
        %v4756 = vrcp.pop %v4740
        %v4757 = vmul.f32 %v4662, %v4741
        %v4758 = vmul.f32 %v4664, %v4742
        %v4759 = vmul.f32 %v4666, %v4743
        %v4760 = vmul.f32 %v4668, %v4744
        %v4761 = vmul.f32 %v4670, %v4745
        %v4762 = vmul.f32 %v4672, %v4746
        %v4763 = vmul.f32 %v4674, %v4747
        %v4764 = vmul.f32 %v4676, %v4748
        %v4765 = vmul.f32 %v4678, %v4749
        %v4766 = vmul.f32 %v4680, %v4750
        %v4767 = vmul.f32 %v4682, %v4751
        %v4768 = vmul.f32 %v4684, %v4752
        %v4769 = vmul.f32 %v4686, %v4753
        %v4770 = vmul.f32 %v4688, %v4754
        %v4771 = vmul.f32 %v4690, %v4755
        %v4772 = vmul.f32 %v4692, %v4756
        %v4773 = vpack.c.bf16 %v4758, %v4757
        %v4774 = vpack.c.bf16 %v4760, %v4759
        %v4775 = vpack.c.bf16 %v4762, %v4761
        %v4776 = vpack.c.bf16 %v4764, %v4763
        %v4777 = vpack.c.bf16 %v4766, %v4765
        %v4778 = vpack.c.bf16 %v4768, %v4767
        %v4779 = vpack.c.bf16 %v4770, %v4769
        %v4780 = vpack.c.bf16 %v4772, %v4771
        %v4781 = vpack.c.bf16 %v4457, %v4457
        %4783 = vrot.lane.b32.xlu0 %v4781, 64
        %v4784 = vpop.permute.xlu0 %4783
        %v4786 = vsel %vm4596, %v4773, 0
        %v4789 = vsel %vm4596, %v4774, 0
        %v4792 = vsel %vm4596, %v4775, 0
        %v4795 = vsel %vm4596, %v4776, 0
        %v4798 = vsel %vm4596, %v4777, 0
        %v4801 = vsel %vm4596, %v4778, 0
        %v4804 = vsel %vm4596, %v4779, 0
        %v4807 = vsel %vm4596, %v4780, 0
        %v4810 = vsel %vm1477, %v4784, 0
        %4812 = vmatprep.subr.bf16.mxu0 0
        %4813 = vmatpush1.bf16.msra.mxu0 0
        %4814 = vmatprep.subr.bf16.mxu0 0
        %4815 = vmatpush1.bf16.msra.mxu0 0
        %4816 = vmatprep.subr.bf16.mxu0 0
        %4817 = vmatpush1.bf16.msra.mxu0 0
        %4818 = vmatprep.subr.bf16.mxu0 0
        %4819 = vmatpush1.bf16.msra.mxu0 0
        %4820 = vmatprep.subr.bf16.mxu0 0
        %4821 = vmatpush1.bf16.msra.mxu0 0
        %4822 = vmatprep.subr.bf16.mxu0 0
        %4823 = vmatpush1.bf16.msra.mxu0 0
        %4824 = vmatprep.subr.bf16.mxu0 0
        %4825 = vmatpush1.bf16.msra.mxu0 0
        %4826 = vmatprep.subr.bf16.mxu0 0
        %4827 = vmatpush1.bf16.msra.mxu0 %v4810
        %4828 = vmatprep.subr.bf16.mxu0 0
        %4829 = vmatpush2.bf16.msra.mxu0 0
        %4830 = vmatprep.subr.bf16.mxu0 0
        %4831 = vmatpush2.bf16.msra.mxu0 0
        %4832 = vmatprep.subr.bf16.mxu0 0
        %4833 = vmatpush2.bf16.msra.mxu0 0
        %4834 = vmatprep.subr.bf16.mxu0 0
        %4835 = vmatpush2.bf16.msra.mxu0 0
        %4836 = vmatprep.subr.bf16.mxu0 0
        %4837 = vmatpush2.bf16.msra.mxu0 0
        %4838 = vmatprep.subr.bf16.mxu0 0
        %4839 = vmatpush2.bf16.msra.mxu0 0
        %4840 = vmatprep.subr.bf16.mxu0 0
        %4841 = vmatpush2.bf16.msra.mxu0 0
        %4842 = vmatprep.subr.bf16.mxu0 0
        %4843 = vmatpush2.bf16.msra.mxu0 0
        %4844 = vmatprep.mubr.bf16.mxu0 0
        %4845 = vmatmul.mubr.bf16.gmra.mxu0 %v4786
        %v4846 = vpop.f32.mrf.mxu0
        %v4847 = vadd.f32 0.0, %v4846
        %v4848 = vpop.f32.mrf.mxu0
        %v4849 = vpop.f32.mrf.mxu0
        %v4850 = vadd.f32 0.0, %v4849
        %v4851 = vpop.f32.mrf.mxu0
        %4852 = vmatprep.mubr.bf16.mxu0 0
        %4853 = vmatmul.mubr.bf16.gmra.mxu0 %v4789
        %v4854 = vpop.f32.mrf.mxu0
        %v4855 = vadd.f32 0.0, %v4854
        %v4856 = vpop.f32.mrf.mxu0
        %v4857 = vpop.f32.mrf.mxu0
        %v4858 = vadd.f32 0.0, %v4857
        %v4859 = vpop.f32.mrf.mxu0
        %4860 = vmatprep.mubr.bf16.mxu0 0
        %4861 = vmatmul.mubr.bf16.gmra.mxu0 %v4792
        %v4862 = vpop.f32.mrf.mxu0
        %v4863 = vadd.f32 0.0, %v4862
        %v4864 = vpop.f32.mrf.mxu0
        %v4865 = vpop.f32.mrf.mxu0
        %v4866 = vadd.f32 0.0, %v4865
        %v4867 = vpop.f32.mrf.mxu0
        %4868 = vmatprep.mubr.bf16.mxu0 0
        %4869 = vmatmul.mubr.bf16.gmra.mxu0 %v4795
        %v4870 = vpop.f32.mrf.mxu0
        %v4871 = vadd.f32 0.0, %v4870
        %v4872 = vpop.f32.mrf.mxu0
        %v4873 = vpop.f32.mrf.mxu0
        %v4874 = vadd.f32 0.0, %v4873
        %v4875 = vpop.f32.mrf.mxu0
        %4876 = vmatprep.mubr.bf16.mxu0 0
        %4877 = vmatmul.mubr.bf16.gmra.mxu0 %v4798
        %v4878 = vpop.f32.mrf.mxu0
        %v4879 = vadd.f32 0.0, %v4878
        %v4880 = vpop.f32.mrf.mxu0
        %v4881 = vpop.f32.mrf.mxu0
        %v4882 = vadd.f32 0.0, %v4881
        %v4883 = vpop.f32.mrf.mxu0
        %4884 = vmatprep.mubr.bf16.mxu0 0
        %4885 = vmatmul.mubr.bf16.gmra.mxu0 %v4801
        %v4886 = vpop.f32.mrf.mxu0
        %v4887 = vadd.f32 0.0, %v4886
        %v4888 = vpop.f32.mrf.mxu0
        %v4889 = vpop.f32.mrf.mxu0
        %v4890 = vadd.f32 0.0, %v4889
        %v4891 = vpop.f32.mrf.mxu0
        %4892 = vmatprep.mubr.bf16.mxu0 0
        %4893 = vmatmul.mubr.bf16.gmra.mxu0 %v4804
        %v4894 = vpop.f32.mrf.mxu0
        %v4895 = vadd.f32 0.0, %v4894
        %v4896 = vpop.f32.mrf.mxu0
        %v4897 = vpop.f32.mrf.mxu0
        %v4898 = vadd.f32 0.0, %v4897
        %v4899 = vpop.f32.mrf.mxu0
        %4900 = vmatprep.mubr.bf16.mxu0 0
        %4901 = vmatmul.mubr.bf16.gmra.mxu0 %v4807
        %v4902 = vpop.f32.mrf.mxu0
        %v4903 = vadd.f32 0.0, %v4902
        %v4904 = vpop.f32.mrf.mxu0
        %v4905 = vpop.f32.mrf.mxu0
        %v4906 = vadd.f32 0.0, %v4905
        %v4907 = vpop.f32.mrf.mxu0
        %4908 = vdwg.mxu0
        %v4909 = vadd.f32 %v4317, %v4847
        %v4910 = vadd.f32 %v4320, %v4850
        %v4911 = vadd.f32 %v4325, %v4855
        %v4912 = vadd.f32 %v4328, %v4858
        %v4913 = vadd.f32 %v4333, %v4863
        %v4914 = vadd.f32 %v4336, %v4866
        %v4915 = vadd.f32 %v4341, %v4871
        %v4916 = vadd.f32 %v4344, %v4874
        %v4917 = vadd.f32 %v4349, %v4879
        %v4918 = vadd.f32 %v4352, %v4882
        %v4919 = vadd.f32 %v4357, %v4887
        %v4920 = vadd.f32 %v4360, %v4890
        %v4921 = vadd.f32 %v4365, %v4895
        %v4922 = vadd.f32 %v4368, %v4898
        %v4923 = vadd.f32 %v4373, %v4903
        %v4924 = vadd.f32 %v4376, %v4906
        %v4925 = vld [vmem:[#allocation29] sm:$0xf]
        %v4926 = vld [vmem:[#allocation29 + $0x4] sm:$0xf]
        %v4927 = vld [vmem:[#allocation29 + $0x8] sm:$0xf]
        %v4928 = vld [vmem:[#allocation29 + $0xc] sm:$0xf]
        %v4929 = vld [vmem:[#allocation29 + $0x10] sm:$0xf]
        %v4930 = vld [vmem:[#allocation29 + $0x14] sm:$0xf]
        %v4931 = vld [vmem:[#allocation29 + $0x18] sm:$0xf]
        %v4932 = vld [vmem:[#allocation29 + $0x1c] sm:$0xf]
        %v4933 = vpack.c.bf16 %v4910, %v4909
        %v4934 = vpack.c.bf16 %v4912, %v4911
        %v4935 = vpack.c.bf16 %v4914, %v4913
        %v4936 = vpack.c.bf16 %v4916, %v4915
        %v4937 = vpack.c.bf16 %v4918, %v4917
        %v4938 = vpack.c.bf16 %v4920, %v4919
        %v4939 = vpack.c.bf16 %v4922, %v4921
        %v4940 = vpack.c.bf16 %v4924, %v4923
        %v4941 = vld [vmem:[#allocation31] sm:$0x1]
        %v4943 = vlaneseq
        %v4944 = vshrl.u32 %v4943, 7
        %v4945 = vsub.s32 0, %v4944
        %v4946 = vrot.slane %v4941, %v4945
        %v4956 = vunpack.c.l.b16 %v4925
        %v4957 = vunpack.c.l.b16 %v4926
        %v4958 = vunpack.c.l.b16 %v4927
        %v4959 = vunpack.c.l.b16 %v4928
        %v4960 = vunpack.c.l.b16 %v4929
        %v4961 = vunpack.c.l.b16 %v4930
        %v4962 = vunpack.c.l.b16 %v4931
        %v4963 = vunpack.c.l.b16 %v4932
        %v4964 = vpack.c.b16 %v4957, %v4956
        %v4965 = vpack.c.b16 %v4959, %v4958
        %v4966 = vpack.c.b16 %v4961, %v4960
        %v4967 = vpack.c.b16 %v4963, %v4962
        %v4973 = vsel %vm1716, %v4933, 0
        %v4976 = vsel %vm1716, %v4934, 0
        %v4979 = vsel %vm1716, %v4935, 0
        %v4982 = vsel %vm1716, %v4936, 0
        %v4985 = vsel %vm1716, %v4937, 0
        %v4988 = vsel %vm1716, %v4938, 0
        %v4991 = vsel %vm1716, %v4939, 0
        %v4994 = vsel %vm1716, %v4940, 0
        %4996 = vmatprep.subr.bf16.mxu0 0
        %4997 = vmatpush1.bf16.msra.mxu0 0
        %4998 = vmatprep.subr.bf16.mxu0 0
        %4999 = vmatpush1.bf16.msra.mxu0 0
        %5000 = vmatprep.subr.bf16.mxu0 0
        %5001 = vmatpush1.bf16.msra.mxu0 0
        %5002 = vmatprep.subr.bf16.mxu0 0
        %5003 = vmatpush1.bf16.msra.mxu0 0
        %5004 = vmatprep.subr.bf16.mxu0 0
        %5005 = vmatpush1.bf16.msra.mxu0 %v4967
        %5006 = vmatprep.subr.bf16.mxu0 0
        %5007 = vmatpush1.bf16.msra.mxu0 %v4966
        %5008 = vmatprep.subr.bf16.mxu0 0
        %5009 = vmatpush1.bf16.msra.mxu0 %v4965
        %5010 = vmatprep.subr.bf16.mxu0 0
        %5011 = vmatpush1.bf16.msra.mxu0 %v4964
        %5012 = vmatprep.subr.bf16.mxu0 0
        %5013 = vmatpush2.bf16.msra.mxu0 0
        %5014 = vmatprep.subr.bf16.mxu0 0
        %5015 = vmatpush2.bf16.msra.mxu0 0
        %5016 = vmatprep.subr.bf16.mxu0 0
        %5017 = vmatpush2.bf16.msra.mxu0 0
        %5018 = vmatprep.subr.bf16.mxu0 0
        %5019 = vmatpush2.bf16.msra.mxu0 0
        %5020 = vmatprep.subr.bf16.mxu0 0
        %5021 = vmatpush2.bf16.msra.mxu0 0
        %5022 = vmatprep.subr.bf16.mxu0 0
        %5023 = vmatpush2.bf16.msra.mxu0 0
        %5024 = vmatprep.subr.bf16.mxu0 0
        %5025 = vmatpush2.bf16.msra.mxu0 0
        %5026 = vmatprep.subr.bf16.mxu0 0
        %5027 = vmatpush2.bf16.msra.mxu0 0
        %5028 = vmatprep.mubr.bf16.mxu0 0
        %5029 = vmatmul.mubr.bf16.gmra.mxu0 %v4973
        %v5030 = vpop.f32.mrf.mxu0
        %v5031 = vadd.f32 %v4946, %v5030
        %v5032 = vpop.f32.mrf.mxu0
        %v5033 = vpop.f32.mrf.mxu0
        %v5034 = vadd.f32 %v4946, %v5033
        %v5035 = vpop.f32.mrf.mxu0
        %5036 = vmatprep.mubr.bf16.mxu0 0
        %5037 = vmatmul.mubr.bf16.gmra.mxu0 %v4976
        %v5038 = vpop.f32.mrf.mxu0
        %v5039 = vadd.f32 %v4946, %v5038
        %v5040 = vpop.f32.mrf.mxu0
        %v5041 = vpop.f32.mrf.mxu0
        %v5042 = vadd.f32 %v4946, %v5041
        %v5043 = vpop.f32.mrf.mxu0
        %5044 = vmatprep.mubr.bf16.mxu0 0
        %5045 = vmatmul.mubr.bf16.gmra.mxu0 %v4979
        %v5046 = vpop.f32.mrf.mxu0
        %v5047 = vadd.f32 %v4946, %v5046
        %v5048 = vpop.f32.mrf.mxu0
        %v5049 = vpop.f32.mrf.mxu0
        %v5050 = vadd.f32 %v4946, %v5049
        %v5051 = vpop.f32.mrf.mxu0
        %5052 = vmatprep.mubr.bf16.mxu0 0
        %5053 = vmatmul.mubr.bf16.gmra.mxu0 %v4982
        %v5054 = vpop.f32.mrf.mxu0
        %v5055 = vadd.f32 %v4946, %v5054
        %v5056 = vpop.f32.mrf.mxu0
        %v5057 = vpop.f32.mrf.mxu0
        %v5058 = vadd.f32 %v4946, %v5057
        %v5059 = vpop.f32.mrf.mxu0
        %5060 = vmatprep.mubr.bf16.mxu0 0
        %5061 = vmatmul.mubr.bf16.gmra.mxu0 %v4985
        %v5062 = vpop.f32.mrf.mxu0
        %v5063 = vadd.f32 %v4946, %v5062
        %v5064 = vpop.f32.mrf.mxu0
        %v5065 = vpop.f32.mrf.mxu0
        %v5066 = vadd.f32 %v4946, %v5065
        %v5067 = vpop.f32.mrf.mxu0
        %5068 = vmatprep.mubr.bf16.mxu0 0
        %5069 = vmatmul.mubr.bf16.gmra.mxu0 %v4988
        %v5070 = vpop.f32.mrf.mxu0
        %v5071 = vadd.f32 %v4946, %v5070
        %v5072 = vpop.f32.mrf.mxu0
        %v5073 = vpop.f32.mrf.mxu0
        %v5074 = vadd.f32 %v4946, %v5073
        %v5075 = vpop.f32.mrf.mxu0
        %5076 = vmatprep.mubr.bf16.mxu0 0
        %5077 = vmatmul.mubr.bf16.gmra.mxu0 %v4991
        %v5078 = vpop.f32.mrf.mxu0
        %v5079 = vadd.f32 %v4946, %v5078
        %v5080 = vpop.f32.mrf.mxu0
        %v5081 = vpop.f32.mrf.mxu0
        %v5082 = vadd.f32 %v4946, %v5081
        %v5083 = vpop.f32.mrf.mxu0
        %5084 = vmatprep.mubr.bf16.mxu0 0
        %5085 = vmatmul.mubr.bf16.gmra.mxu0 %v4994
        %v5086 = vpop.f32.mrf.mxu0
        %v5087 = vadd.f32 %v4946, %v5086
        %v5088 = vpop.f32.mrf.mxu0
        %v5089 = vpop.f32.mrf.mxu0
        %v5090 = vadd.f32 %v4946, %v5089
        %v5091 = vpop.f32.mrf.mxu0
        %5092 = vdwg.mxu0
        %v5093 = vmax.f32 %v5031, 0.0
        %v5094 = vmax.f32 %v5034, 0.0
        %v5095 = vmax.f32 %v5039, 0.0
        %v5096 = vmax.f32 %v5042, 0.0
        %v5097 = vmax.f32 %v5047, 0.0
        %v5098 = vmax.f32 %v5050, 0.0
        %v5099 = vmax.f32 %v5055, 0.0
        %v5100 = vmax.f32 %v5058, 0.0
        %v5101 = vmax.f32 %v5063, 0.0
        %v5102 = vmax.f32 %v5066, 0.0
        %v5103 = vmax.f32 %v5071, 0.0
        %v5104 = vmax.f32 %v5074, 0.0
        %v5105 = vmax.f32 %v5079, 0.0
        %v5106 = vmax.f32 %v5082, 0.0
        %v5107 = vmax.f32 %v5087, 0.0
        %v5108 = vmax.f32 %v5090, 0.0
        %v5109 = vadd.f32 %v4909, %v5093
        %v5110 = vadd.f32 %v4910, %v5094
        %v5111 = vadd.f32 %v4911, %v5095
        %v5112 = vadd.f32 %v4912, %v5096
        %v5113 = vadd.f32 %v4913, %v5097
        %v5114 = vadd.f32 %v4914, %v5098
        %v5115 = vadd.f32 %v4915, %v5099
        %v5116 = vadd.f32 %v4916, %v5100
        %v5117 = vadd.f32 %v4917, %v5101
        %v5118 = vadd.f32 %v4918, %v5102
        %v5119 = vadd.f32 %v4919, %v5103
        %v5120 = vadd.f32 %v4920, %v5104
        %v5121 = vadd.f32 %v4921, %v5105
        %v5122 = vadd.f32 %v4922, %v5106
        %v5123 = vadd.f32 %v4923, %v5107
        %v5124 = vadd.f32 %v4924, %v5108
        %5125 = vst [vmem:[%s1427] sm:$0xf] %v4075
        %v5126 = vsel %vm1716, %v5109, -inf
        %v5127 = vsel %vm1716, %v5110, -inf
        %v5128 = vsel %vm1716, %v5111, -inf
        %v5129 = vsel %vm1716, %v5112, -inf
        %v5130 = vsel %vm1716, %v5113, -inf
        %v5131 = vmax.f32 %v5126, %v5130
        %v5132 = vsel %vm1716, %v5114, -inf
        %v5133 = vmax.f32 %v5127, %v5132
        %v5134 = vsel %vm1716, %v5115, -inf
        %v5135 = vmax.f32 %v5128, %v5134
        %v5136 = vsel %vm1716, %v5116, -inf
        %v5137 = vmax.f32 %v5129, %v5136
        %v5138 = vsel %vm1716, %v5117, -inf
        %v5139 = vmax.f32 %v5131, %v5138
        %v5140 = vsel %vm1716, %v5118, -inf
        %v5141 = vmax.f32 %v5133, %v5140
        %v5142 = vsel %vm1716, %v5119, -inf
        %v5143 = vmax.f32 %v5135, %v5142
        %v5144 = vsel %vm1716, %v5120, -inf
        %v5145 = vmax.f32 %v5137, %v5144
        %v5146 = vsel %vm1716, %v5121, -inf
        %v5147 = vmax.f32 %v5139, %v5146
        %v5148 = vsel %vm1716, %v5122, -inf
        %v5149 = vmax.f32 %v5141, %v5148
        %v5150 = vsel %vm1716, %v5123, -inf
        %v5151 = vmax.f32 %v5143, %v5150
        %v5152 = vsel %vm1716, %v5124, -inf
        %v5153 = vmax.f32 %v5145, %v5152
        %v5154 = vmax.f32 %v5147, %v5149
        %v5155 = vmax.f32 %v5151, %v5153
        %v5156 = vmax.f32 %v5154, %v5155
        %v5157 = vrot.slane %v5156, 4
        %v5158 = vmax.f32 %v5156, %v5157
        %v5159 = vrot.slane %v5158, 2
        %v5160 = vmax.f32 %v5158, %v5159
        %v5161 = vrot.slane %v5160, 1
        %v5162 = vmax.f32 %v5160, %v5161
        %v5163 = vsel %vm1716, %v5109, 0.0
        %v5164 = vsel %vm1716, %v5110, 0.0
        %v5165 = vadd.f32 %v5163, %v5164
        %v5166 = vsel %vm1716, %v5111, 0.0
        %v5167 = vadd.f32 %v5165, %v5166
        %v5168 = vsel %vm1716, %v5112, 0.0
        %v5169 = vadd.f32 %v5167, %v5168
        %v5170 = vsel %vm1716, %v5113, 0.0
        %v5171 = vadd.f32 %v5169, %v5170
        %v5172 = vsel %vm1716, %v5114, 0.0
        %v5173 = vadd.f32 %v5171, %v5172
        %v5174 = vsel %vm1716, %v5115, 0.0
        %v5175 = vadd.f32 %v5173, %v5174
        %v5176 = vsel %vm1716, %v5116, 0.0
        %v5177 = vadd.f32 %v5175, %v5176
        %v5178 = vsel %vm1716, %v5117, 0.0
        %v5179 = vadd.f32 %v5177, %v5178
        %v5180 = vsel %vm1716, %v5118, 0.0
        %v5181 = vadd.f32 %v5179, %v5180
        %v5182 = vsel %vm1716, %v5119, 0.0
        %v5183 = vadd.f32 %v5181, %v5182
        %v5184 = vsel %vm1716, %v5120, 0.0
        %v5185 = vadd.f32 %v5183, %v5184
        %v5186 = vsel %vm1716, %v5121, 0.0
        %v5187 = vadd.f32 %v5185, %v5186
        %v5188 = vsel %vm1716, %v5122, 0.0
        %v5189 = vadd.f32 %v5187, %v5188
        %v5190 = vsel %vm1716, %v5123, 0.0
        %v5191 = vadd.f32 %v5189, %v5190
        %v5192 = vsel %vm1716, %v5124, 0.0
        %v5193 = vadd.f32 %v5191, %v5192
        %v5194 = vrot.slane %v5193, 4
        %v5195 = vadd.f32 %v5193, %v5194
        %v5196 = vrot.slane %v5195, 2
        %v5197 = vadd.f32 %v5195, %v5196
        %v5198 = vrot.slane %v5197, 1
        %v5199 = vadd.f32 %v5197, %v5198
        %v5200 = vrcp.pop 128.0
        %v5201 = vmul.f32 %v5199, %v5200
        %5203 = vrot.lane.b32.xlu0 %v5201, 64
        %v5204 = vpop.permute.xlu0 %5203
        %v5206 = vsel %vm1716, %v5162, %v5204
        %v5207 = vld [vmem:[#allocation32] sm:$0xff]
        %v5208 = vld [vmem:[#allocation32 + $0x8] sm:$0xff]
        %v5209 = vld [vmem:[#allocation32 + $0x10] sm:$0xff]
        %v5210 = vld [vmem:[#allocation32 + $0x18] sm:$0xff]
        %v5211 = vld [vmem:[#allocation32 + $0x20] sm:$0xff]
        %v5212 = vld [vmem:[#allocation32 + $0x28] sm:$0xff]
        %v5213 = vld [vmem:[#allocation32 + $0x30] sm:$0xff]
        %v5214 = vld [vmem:[#allocation32 + $0x38] sm:$0xff]
        %v5215 = vld [vmem:[#allocation32 + $0x40] sm:$0xff]
        %v5216 = vld [vmem:[#allocation32 + $0x48] sm:$0xff]
        %v5217 = vld [vmem:[#allocation32 + $0x50] sm:$0xff]
        %v5218 = vld [vmem:[#allocation32 + $0x58] sm:$0xff]
        %v5219 = vld [vmem:[#allocation32 + $0x60] sm:$0xff]
        %v5220 = vld [vmem:[#allocation32 + $0x68] sm:$0xff]
        %v5221 = vld [vmem:[#allocation32 + $0x70] sm:$0xff]
        %v5222 = vld [vmem:[#allocation32 + $0x78] sm:$0xff]
        %v5223 = vld [vmem:[#allocation32 + $0x80] sm:$0xff]
        %v5224 = vld [vmem:[#allocation32 + $0x88] sm:$0xff]
        %v5225 = vld [vmem:[#allocation32 + $0x90] sm:$0xff]
        %v5226 = vld [vmem:[#allocation32 + $0x98] sm:$0xff]
        %v5227 = vld [vmem:[#allocation32 + $0xa0] sm:$0xff]
        %v5228 = vld [vmem:[#allocation32 + $0xa8] sm:$0xff]
        %v5229 = vld [vmem:[#allocation32 + $0xb0] sm:$0xff]
        %v5230 = vld [vmem:[#allocation32 + $0xb8] sm:$0xff]
        %v5231 = vld [vmem:[#allocation32 + $0xc0] sm:$0xff]
        %v5232 = vld [vmem:[#allocation32 + $0xc8] sm:$0xff]
        %v5233 = vld [vmem:[#allocation32 + $0xd0] sm:$0xff]
        %v5234 = vld [vmem:[#allocation32 + $0xd8] sm:$0xff]
        %v5235 = vld [vmem:[#allocation32 + $0xe0] sm:$0xff]
        %v5236 = vld [vmem:[#allocation32 + $0xe8] sm:$0xff]
        %v5237 = vld [vmem:[#allocation32 + $0xf0] sm:$0xff]
        %v5238 = vld [vmem:[#allocation32 + $0xf8] sm:$0xff]
        %v5239 = vpack.c.bf16 %v5206, %v5206
        %v5272 = vunpack.c.l.b16 %v5207
        %v5273 = vunpack.c.h.b16 %v5207
        %v5274 = vunpack.c.l.b16 %v5208
        %v5275 = vunpack.c.h.b16 %v5208
        %v5276 = vunpack.c.l.b16 %v5209
        %v5277 = vunpack.c.h.b16 %v5209
        %v5278 = vunpack.c.l.b16 %v5210
        %v5279 = vunpack.c.h.b16 %v5210
        %v5280 = vunpack.c.l.b16 %v5211
        %v5281 = vunpack.c.h.b16 %v5211
        %v5282 = vunpack.c.l.b16 %v5212
        %v5283 = vunpack.c.h.b16 %v5212
        %v5284 = vunpack.c.l.b16 %v5213
        %v5285 = vunpack.c.h.b16 %v5213
        %v5286 = vunpack.c.l.b16 %v5214
        %v5287 = vunpack.c.h.b16 %v5214
        %v5288 = vunpack.c.l.b16 %v5215
        %v5289 = vunpack.c.h.b16 %v5215
        %v5290 = vunpack.c.l.b16 %v5216
        %v5291 = vunpack.c.h.b16 %v5216
        %v5292 = vunpack.c.l.b16 %v5217
        %v5293 = vunpack.c.h.b16 %v5217
        %v5294 = vunpack.c.l.b16 %v5218
        %v5295 = vunpack.c.h.b16 %v5218
        %v5296 = vunpack.c.l.b16 %v5219
        %v5297 = vunpack.c.h.b16 %v5219
        %v5298 = vunpack.c.l.b16 %v5220
        %v5299 = vunpack.c.h.b16 %v5220
        %v5300 = vunpack.c.l.b16 %v5221
        %v5301 = vunpack.c.h.b16 %v5221
        %v5302 = vunpack.c.l.b16 %v5222
        %v5303 = vunpack.c.h.b16 %v5222
        %v5304 = vunpack.c.l.b16 %v5223
        %v5305 = vunpack.c.h.b16 %v5223
        %v5306 = vunpack.c.l.b16 %v5224
        %v5307 = vunpack.c.h.b16 %v5224
        %v5308 = vunpack.c.l.b16 %v5225
        %v5309 = vunpack.c.h.b16 %v5225
        %v5310 = vunpack.c.l.b16 %v5226
        %v5311 = vunpack.c.h.b16 %v5226
        %v5312 = vunpack.c.l.b16 %v5227
        %v5313 = vunpack.c.h.b16 %v5227
        %v5314 = vunpack.c.l.b16 %v5228
        %v5315 = vunpack.c.h.b16 %v5228
        %v5316 = vunpack.c.l.b16 %v5229
        %v5317 = vunpack.c.h.b16 %v5229
        %v5318 = vunpack.c.l.b16 %v5230
        %v5319 = vunpack.c.h.b16 %v5230
        %v5320 = vunpack.c.l.b16 %v5231
        %v5321 = vunpack.c.h.b16 %v5231
        %v5322 = vunpack.c.l.b16 %v5232
        %v5323 = vunpack.c.h.b16 %v5232
        %v5324 = vunpack.c.l.b16 %v5233
        %v5325 = vunpack.c.h.b16 %v5233
        %v5326 = vunpack.c.l.b16 %v5234
        %v5327 = vunpack.c.h.b16 %v5234
        %v5328 = vunpack.c.l.b16 %v5235
        %v5329 = vunpack.c.h.b16 %v5235
        %v5330 = vunpack.c.l.b16 %v5236
        %v5331 = vunpack.c.h.b16 %v5236
        %v5332 = vunpack.c.l.b16 %v5237
        %v5333 = vunpack.c.h.b16 %v5237
        %v5334 = vunpack.c.l.b16 %v5238
        %v5335 = vunpack.c.h.b16 %v5238
        %v5336 = vpack.c.b16 %v5276, %v5272
        %v5337 = vpack.c.b16 %v5277, %v5273
        %v5338 = vpack.c.b16 %v5278, %v5274
        %v5339 = vpack.c.b16 %v5279, %v5275
        %v5340 = vpack.c.b16 %v5284, %v5280
        %v5341 = vpack.c.b16 %v5285, %v5281
        %v5342 = vpack.c.b16 %v5286, %v5282
        %v5343 = vpack.c.b16 %v5287, %v5283
        %v5344 = vpack.c.b16 %v5292, %v5288
        %v5345 = vpack.c.b16 %v5293, %v5289
        %v5346 = vpack.c.b16 %v5294, %v5290
        %v5347 = vpack.c.b16 %v5295, %v5291
        %v5348 = vpack.c.b16 %v5300, %v5296
        %v5349 = vpack.c.b16 %v5301, %v5297
        %v5350 = vpack.c.b16 %v5302, %v5298
        %v5351 = vpack.c.b16 %v5303, %v5299
        %v5352 = vpack.c.b16 %v5308, %v5304
        %v5353 = vpack.c.b16 %v5309, %v5305
        %v5354 = vpack.c.b16 %v5310, %v5306
        %v5355 = vpack.c.b16 %v5311, %v5307
        %v5356 = vpack.c.b16 %v5316, %v5312
        %v5357 = vpack.c.b16 %v5317, %v5313
        %v5358 = vpack.c.b16 %v5318, %v5314
        %v5359 = vpack.c.b16 %v5319, %v5315
        %v5360 = vpack.c.b16 %v5324, %v5320
        %v5361 = vpack.c.b16 %v5325, %v5321
        %v5362 = vpack.c.b16 %v5326, %v5322
        %v5363 = vpack.c.b16 %v5327, %v5323
        %v5364 = vpack.c.b16 %v5332, %v5328
        %v5365 = vpack.c.b16 %v5333, %v5329
        %v5366 = vpack.c.b16 %v5334, %v5330
        %v5367 = vpack.c.b16 %v5335, %v5331
        %5400 = vmatprep.subr.bf16.mxu0 %v5365
        %5401 = vmatpush1.bf16.msra.mxu0 %v5364
        %5402 = vmatprep.subr.bf16.mxu0 %v5361
        %5403 = vmatpush1.bf16.msra.mxu0 %v5360
        %5404 = vmatprep.subr.bf16.mxu0 %v5357
        %5405 = vmatpush1.bf16.msra.mxu0 %v5356
        %5406 = vmatprep.subr.bf16.mxu0 %v5353
        %5407 = vmatpush1.bf16.msra.mxu0 %v5352
        %5408 = vmatprep.subr.bf16.mxu0 %v5349
        %5409 = vmatpush1.bf16.msra.mxu0 %v5348
        %5410 = vmatprep.subr.bf16.mxu0 %v5345
        %5411 = vmatpush1.bf16.msra.mxu0 %v5344
        %5412 = vmatprep.subr.bf16.mxu0 %v5341
        %5413 = vmatpush1.bf16.msra.mxu0 %v5340
        %5414 = vmatprep.subr.bf16.mxu0 %v5337
        %5415 = vmatpush1.bf16.msra.mxu0 %v5336
        %5416 = vmatprep.subr.bf16.mxu0 0
        %5417 = vmatpush2.bf16.msra.mxu0 0
        %5418 = vmatprep.subr.bf16.mxu0 0
        %5419 = vmatpush2.bf16.msra.mxu0 0
        %5420 = vmatprep.subr.bf16.mxu0 0
        %5421 = vmatpush2.bf16.msra.mxu0 0
        %5422 = vmatprep.subr.bf16.mxu0 0
        %5423 = vmatpush2.bf16.msra.mxu0 0
        %5424 = vmatprep.subr.bf16.mxu0 0
        %5425 = vmatpush2.bf16.msra.mxu0 0
        %5426 = vmatprep.subr.bf16.mxu0 0
        %5427 = vmatpush2.bf16.msra.mxu0 0
        %5428 = vmatprep.subr.bf16.mxu0 0
        %5429 = vmatpush2.bf16.msra.mxu0 0
        %5430 = vmatprep.subr.bf16.mxu0 0
        %5431 = vmatpush2.bf16.msra.mxu0 0
        %5432 = vmatprep.mubr.bf16.mxu0 0
        %5433 = vmatmul.mubr.bf16.gmra.mxu0 %v5239
        %v5434 = vpop.f32.mrf.mxu0
        %v5435 = vadd.f32 0.0, %v5434
        %v5436 = vpop.f32.mrf.mxu0
        %v5437 = vadd.f32 0.0, %v5436
        %v5438 = vpop.f32.mrf.mxu0
        %v5439 = vpop.f32.mrf.mxu0
        %5440 = vdwg.mxu0
        %5441 = vmatprep.subr.bf16.mxu0 %v5367
        %5442 = vmatpush1.bf16.msra.mxu0 %v5366
        %5443 = vmatprep.subr.bf16.mxu0 %v5363
        %5444 = vmatpush1.bf16.msra.mxu0 %v5362
        %5445 = vmatprep.subr.bf16.mxu0 %v5359
        %5446 = vmatpush1.bf16.msra.mxu0 %v5358
        %5447 = vmatprep.subr.bf16.mxu0 %v5355
        %5448 = vmatpush1.bf16.msra.mxu0 %v5354
        %5449 = vmatprep.subr.bf16.mxu0 %v5351
        %5450 = vmatpush1.bf16.msra.mxu0 %v5350
        %5451 = vmatprep.subr.bf16.mxu0 %v5347
        %5452 = vmatpush1.bf16.msra.mxu0 %v5346
        %5453 = vmatprep.subr.bf16.mxu0 %v5343
        %5454 = vmatpush1.bf16.msra.mxu0 %v5342
        %5455 = vmatprep.subr.bf16.mxu0 %v5339
        %5456 = vmatpush1.bf16.msra.mxu0 %v5338
        %5457 = vmatprep.subr.bf16.mxu0 0
        %5458 = vmatpush2.bf16.msra.mxu0 0
        %5459 = vmatprep.subr.bf16.mxu0 0
        %5460 = vmatpush2.bf16.msra.mxu0 0
        %5461 = vmatprep.subr.bf16.mxu0 0
        %5462 = vmatpush2.bf16.msra.mxu0 0
        %5463 = vmatprep.subr.bf16.mxu0 0
        %5464 = vmatpush2.bf16.msra.mxu0 0
        %5465 = vmatprep.subr.bf16.mxu0 0
        %5466 = vmatpush2.bf16.msra.mxu0 0
        %5467 = vmatprep.subr.bf16.mxu0 0
        %5468 = vmatpush2.bf16.msra.mxu0 0
        %5469 = vmatprep.subr.bf16.mxu0 0
        %5470 = vmatpush2.bf16.msra.mxu0 0
        %5471 = vmatprep.subr.bf16.mxu0 0
        %5472 = vmatpush2.bf16.msra.mxu0 0
        %5473 = vmatprep.mubr.bf16.mxu0 0
        %5474 = vmatmul.mubr.bf16.gmra.mxu0 %v5239
        %v5475 = vpop.f32.mrf.mxu0
        %v5476 = vadd.f32 0.0, %v5475
        %v5477 = vpop.f32.mrf.mxu0
        %v5478 = vadd.f32 0.0, %v5477
        %v5479 = vpop.f32.mrf.mxu0
        %v5480 = vpop.f32.mrf.mxu0
        %5481 = vdwg.mxu0
        %v5482 = vld [vmem:[%s59] sm:$0xf]
        %v5484 = vlaneseq
        %v5485 = vshrl.u32 %v5484, 7
        %v5486 = vsub.s32 0, %v5485
        %v5487 = vrot.slane %v5482, %v5486
        %v5488 = vlaneseq
        %v5489 = vshrl.u32 %v5488, 7
        %v5490 = vsub.s32 1, %v5489
        %v5491 = vrot.slane %v5482, %v5490
        %v5492 = vlaneseq
        %v5493 = vshrl.u32 %v5492, 7
        %v5494 = vsub.s32 2, %v5493
        %v5495 = vrot.slane %v5482, %v5494
        %v5496 = vlaneseq
        %v5497 = vshrl.u32 %v5496, 7
        %v5498 = vsub.s32 3, %v5497
        %v5499 = vrot.slane %v5482, %v5498
        %v5504 = vmul.f32 %v5435, %v5487
        %v5505 = vmul.f32 %v5437, %v5491
        %v5506 = vmul.f32 %v5476, %v5495
        %v5507 = vmul.f32 %v5478, %v5499
        %v5508 = vld [vmem:[%s61] sm:$0xf]
        %v5510 = vlaneseq
        %v5511 = vshrl.u32 %v5510, 7
        %v5512 = vsub.s32 0, %v5511
        %v5513 = vrot.slane %v5508, %v5512
        %v5514 = vlaneseq
        %v5515 = vshrl.u32 %v5514, 7
        %v5516 = vsub.s32 1, %v5515
        %v5517 = vrot.slane %v5508, %v5516
        %v5518 = vlaneseq
        %v5519 = vshrl.u32 %v5518, 7
        %v5520 = vsub.s32 2, %v5519
        %v5521 = vrot.slane %v5508, %v5520
        %v5522 = vlaneseq
        %v5523 = vshrl.u32 %v5522, 7
        %v5524 = vsub.s32 3, %v5523
        %v5525 = vrot.slane %v5508, %v5524
        %v5530 = vadd.f32 %v5504, %v5513
        %v5531 = vadd.f32 %v5505, %v5517
        %v5532 = vadd.f32 %v5506, %v5521
        %v5533 = vadd.f32 %v5507, %v5525
        %vm5534 = vcmp.ge.f32.partialorder %v5530, 0.0
        %vm5535 = vcmp.ge.f32.partialorder %v5531, 0.0
        %vm5536 = vcmp.ge.f32.partialorder %v5532, 0.0
        %vm5537 = vcmp.ge.f32.partialorder %v5533, 0.0
        %v5538 = vmul.f32 %v5530, 0.2
        %v5539 = vmul.f32 %v5531, 0.2
        %v5540 = vmul.f32 %v5532, 0.2
        %v5541 = vmul.f32 %v5533, 0.2
        %v5542 = vsel %vm5534, %v5530, %v5538
        %v5543 = vsel %vm5535, %v5531, %v5539
        %v5544 = vsel %vm5536, %v5532, %v5540
        %v5545 = vsel %vm5537, %v5533, %v5541
        %v5546 = vld [vmem:[%s63] sm:$0xff]
        %v5547 = vld [vmem:[%s63 + $0x8] sm:$0xff]
        %v5548 = vld [vmem:[%s63 + $0x10] sm:$0xff]
        %v5549 = vld [vmem:[%s63 + $0x18] sm:$0xff]
        %v5550 = vld [vmem:[%s63 + $0x20] sm:$0xff]
        %v5551 = vld [vmem:[%s63 + $0x28] sm:$0xff]
        %v5552 = vld [vmem:[%s63 + $0x30] sm:$0xff]
        %v5553 = vld [vmem:[%s63 + $0x38] sm:$0xff]
        %v5554 = vld [vmem:[%s63 + $0x40] sm:$0xff]
        %v5555 = vld [vmem:[%s63 + $0x48] sm:$0xff]
        %v5556 = vld [vmem:[%s63 + $0x50] sm:$0xff]
        %v5557 = vld [vmem:[%s63 + $0x58] sm:$0xff]
        %v5558 = vld [vmem:[%s63 + $0x60] sm:$0xff]
        %v5559 = vld [vmem:[%s63 + $0x68] sm:$0xff]
        %v5560 = vld [vmem:[%s63 + $0x70] sm:$0xff]
        %v5561 = vld [vmem:[%s63 + $0x78] sm:$0xff]
        %v5562 = vld [vmem:[%s63 + $0x80] sm:$0xff]
        %v5563 = vld [vmem:[%s63 + $0x88] sm:$0xff]
        %v5564 = vld [vmem:[%s63 + $0x90] sm:$0xff]
        %v5565 = vld [vmem:[%s63 + $0x98] sm:$0xff]
        %v5566 = vld [vmem:[%s63 + $0xa0] sm:$0xff]
        %v5567 = vld [vmem:[%s63 + $0xa8] sm:$0xff]
        %v5568 = vld [vmem:[%s63 + $0xb0] sm:$0xff]
        %v5569 = vld [vmem:[%s63 + $0xb8] sm:$0xff]
        %v5570 = vld [vmem:[%s63 + $0xc0] sm:$0xff]
        %v5571 = vld [vmem:[%s63 + $0xc8] sm:$0xff]
        %v5572 = vld [vmem:[%s63 + $0xd0] sm:$0xff]
        %v5573 = vld [vmem:[%s63 + $0xd8] sm:$0xff]
        %v5574 = vld [vmem:[%s63 + $0xe0] sm:$0xff]
        %v5575 = vld [vmem:[%s63 + $0xe8] sm:$0xff]
        %v5576 = vld [vmem:[%s63 + $0xf0] sm:$0xff]
        %v5577 = vld [vmem:[%s63 + $0xf8] sm:$0xff]
        %v5578 = vld [vmem:[%s63 + $0x100] sm:$0xff]
        %v5579 = vld [vmem:[%s63 + $0x108] sm:$0xff]
        %v5580 = vld [vmem:[%s63 + $0x110] sm:$0xff]
        %v5581 = vld [vmem:[%s63 + $0x118] sm:$0xff]
        %v5582 = vld [vmem:[%s63 + $0x120] sm:$0xff]
        %v5583 = vld [vmem:[%s63 + $0x128] sm:$0xff]
        %v5584 = vld [vmem:[%s63 + $0x130] sm:$0xff]
        %v5585 = vld [vmem:[%s63 + $0x138] sm:$0xff]
        %v5586 = vld [vmem:[%s63 + $0x140] sm:$0xff]
        %v5587 = vld [vmem:[%s63 + $0x148] sm:$0xff]
        %v5588 = vld [vmem:[%s63 + $0x150] sm:$0xff]
        %v5589 = vld [vmem:[%s63 + $0x158] sm:$0xff]
        %v5590 = vld [vmem:[%s63 + $0x160] sm:$0xff]
        %v5591 = vld [vmem:[%s63 + $0x168] sm:$0xff]
        %v5592 = vld [vmem:[%s63 + $0x170] sm:$0xff]
        %v5593 = vld [vmem:[%s63 + $0x178] sm:$0xff]
        %v5594 = vld [vmem:[%s63 + $0x180] sm:$0xff]
        %v5595 = vld [vmem:[%s63 + $0x188] sm:$0xff]
        %v5596 = vld [vmem:[%s63 + $0x190] sm:$0xff]
        %v5597 = vld [vmem:[%s63 + $0x198] sm:$0xff]
        %v5598 = vld [vmem:[%s63 + $0x1a0] sm:$0xff]
        %v5599 = vld [vmem:[%s63 + $0x1a8] sm:$0xff]
        %v5600 = vld [vmem:[%s63 + $0x1b0] sm:$0xff]
        %v5601 = vld [vmem:[%s63 + $0x1b8] sm:$0xff]
        %v5602 = vld [vmem:[%s63 + $0x1c0] sm:$0xff]
        %v5603 = vld [vmem:[%s63 + $0x1c8] sm:$0xff]
        %v5604 = vld [vmem:[%s63 + $0x1d0] sm:$0xff]
        %v5605 = vld [vmem:[%s63 + $0x1d8] sm:$0xff]
        %v5606 = vld [vmem:[%s63 + $0x1e0] sm:$0xff]
        %v5607 = vld [vmem:[%s63 + $0x1e8] sm:$0xff]
        %v5608 = vld [vmem:[%s63 + $0x1f0] sm:$0xff]
        %v5609 = vld [vmem:[%s63 + $0x1f8] sm:$0xff]
        %v5610 = vpack.c.bf16 %v5542, %v5542
        %v5611 = vpack.c.bf16 %v5543, %v5543
        %v5612 = vpack.c.bf16 %v5544, %v5544
        %v5613 = vpack.c.bf16 %v5545, %v5545
        %v5678 = vunpack.c.l.b16 %v5546
        %v5679 = vunpack.c.h.b16 %v5546
        %v5680 = vunpack.c.l.b16 %v5547
        %v5681 = vunpack.c.h.b16 %v5547
        %v5682 = vunpack.c.l.b16 %v5548
        %v5683 = vunpack.c.h.b16 %v5548
        %v5684 = vunpack.c.l.b16 %v5549
        %v5685 = vunpack.c.h.b16 %v5549
        %v5686 = vunpack.c.l.b16 %v5550
        %v5687 = vunpack.c.h.b16 %v5550
        %v5688 = vunpack.c.l.b16 %v5551
        %v5689 = vunpack.c.h.b16 %v5551
        %v5690 = vunpack.c.l.b16 %v5552
        %v5691 = vunpack.c.h.b16 %v5552
        %v5692 = vunpack.c.l.b16 %v5553
        %v5693 = vunpack.c.h.b16 %v5553
        %v5694 = vunpack.c.l.b16 %v5554
        %v5695 = vunpack.c.h.b16 %v5554
        %v5696 = vunpack.c.l.b16 %v5555
        %v5697 = vunpack.c.h.b16 %v5555
        %v5698 = vunpack.c.l.b16 %v5556
        %v5699 = vunpack.c.h.b16 %v5556
        %v5700 = vunpack.c.l.b16 %v5557
        %v5701 = vunpack.c.h.b16 %v5557
        %v5702 = vunpack.c.l.b16 %v5558
        %v5703 = vunpack.c.h.b16 %v5558
        %v5704 = vunpack.c.l.b16 %v5559
        %v5705 = vunpack.c.h.b16 %v5559
        %v5706 = vunpack.c.l.b16 %v5560
        %v5707 = vunpack.c.h.b16 %v5560
        %v5708 = vunpack.c.l.b16 %v5561
        %v5709 = vunpack.c.h.b16 %v5561
        %v5710 = vunpack.c.l.b16 %v5562
        %v5711 = vunpack.c.h.b16 %v5562
        %v5712 = vunpack.c.l.b16 %v5563
        %v5713 = vunpack.c.h.b16 %v5563
        %v5714 = vunpack.c.l.b16 %v5564
        %v5715 = vunpack.c.h.b16 %v5564
        %v5716 = vunpack.c.l.b16 %v5565
        %v5717 = vunpack.c.h.b16 %v5565
        %v5718 = vunpack.c.l.b16 %v5566
        %v5719 = vunpack.c.h.b16 %v5566
        %v5720 = vunpack.c.l.b16 %v5567
        %v5721 = vunpack.c.h.b16 %v5567
        %v5722 = vunpack.c.l.b16 %v5568
        %v5723 = vunpack.c.h.b16 %v5568
        %v5724 = vunpack.c.l.b16 %v5569
        %v5725 = vunpack.c.h.b16 %v5569
        %v5726 = vunpack.c.l.b16 %v5570
        %v5727 = vunpack.c.h.b16 %v5570
        %v5728 = vunpack.c.l.b16 %v5571
        %v5729 = vunpack.c.h.b16 %v5571
        %v5730 = vunpack.c.l.b16 %v5572
        %v5731 = vunpack.c.h.b16 %v5572
        %v5732 = vunpack.c.l.b16 %v5573
        %v5733 = vunpack.c.h.b16 %v5573
        %v5734 = vunpack.c.l.b16 %v5574
        %v5735 = vunpack.c.h.b16 %v5574
        %v5736 = vunpack.c.l.b16 %v5575
        %v5737 = vunpack.c.h.b16 %v5575
        %v5738 = vunpack.c.l.b16 %v5576
        %v5739 = vunpack.c.h.b16 %v5576
        %v5740 = vunpack.c.l.b16 %v5577
        %v5741 = vunpack.c.h.b16 %v5577
        %v5742 = vunpack.c.l.b16 %v5578
        %v5743 = vunpack.c.h.b16 %v5578
        %v5744 = vunpack.c.l.b16 %v5579
        %v5745 = vunpack.c.h.b16 %v5579
        %v5746 = vunpack.c.l.b16 %v5580
        %v5747 = vunpack.c.h.b16 %v5580
        %v5748 = vunpack.c.l.b16 %v5581
        %v5749 = vunpack.c.h.b16 %v5581
        %v5750 = vunpack.c.l.b16 %v5582
        %v5751 = vunpack.c.h.b16 %v5582
        %v5752 = vunpack.c.l.b16 %v5583
        %v5753 = vunpack.c.h.b16 %v5583
        %v5754 = vunpack.c.l.b16 %v5584
        %v5755 = vunpack.c.h.b16 %v5584
        %v5756 = vunpack.c.l.b16 %v5585
        %v5757 = vunpack.c.h.b16 %v5585
        %v5758 = vunpack.c.l.b16 %v5586
        %v5759 = vunpack.c.h.b16 %v5586
        %v5760 = vunpack.c.l.b16 %v5587
        %v5761 = vunpack.c.h.b16 %v5587
        %v5762 = vunpack.c.l.b16 %v5588
        %v5763 = vunpack.c.h.b16 %v5588
        %v5764 = vunpack.c.l.b16 %v5589
        %v5765 = vunpack.c.h.b16 %v5589
        %v5766 = vunpack.c.l.b16 %v5590
        %v5767 = vunpack.c.h.b16 %v5590
        %v5768 = vunpack.c.l.b16 %v5591
        %v5769 = vunpack.c.h.b16 %v5591
        %v5770 = vunpack.c.l.b16 %v5592
        %v5771 = vunpack.c.h.b16 %v5592
        %v5772 = vunpack.c.l.b16 %v5593
        %v5773 = vunpack.c.h.b16 %v5593
        %v5774 = vunpack.c.l.b16 %v5594
        %v5775 = vunpack.c.h.b16 %v5594
        %v5776 = vunpack.c.l.b16 %v5595
        %v5777 = vunpack.c.h.b16 %v5595
        %v5778 = vunpack.c.l.b16 %v5596
        %v5779 = vunpack.c.h.b16 %v5596
        %v5780 = vunpack.c.l.b16 %v5597
        %v5781 = vunpack.c.h.b16 %v5597
        %v5782 = vunpack.c.l.b16 %v5598
        %v5783 = vunpack.c.h.b16 %v5598
        %v5784 = vunpack.c.l.b16 %v5599
        %v5785 = vunpack.c.h.b16 %v5599
        %v5786 = vunpack.c.l.b16 %v5600
        %v5787 = vunpack.c.h.b16 %v5600
        %v5788 = vunpack.c.l.b16 %v5601
        %v5789 = vunpack.c.h.b16 %v5601
        %v5790 = vunpack.c.l.b16 %v5602
        %v5791 = vunpack.c.h.b16 %v5602
        %v5792 = vunpack.c.l.b16 %v5603
        %v5793 = vunpack.c.h.b16 %v5603
        %v5794 = vunpack.c.l.b16 %v5604
        %v5795 = vunpack.c.h.b16 %v5604
        %v5796 = vunpack.c.l.b16 %v5605
        %v5797 = vunpack.c.h.b16 %v5605
        %v5798 = vunpack.c.l.b16 %v5606
        %v5799 = vunpack.c.h.b16 %v5606
        %v5800 = vunpack.c.l.b16 %v5607
        %v5801 = vunpack.c.h.b16 %v5607
        %v5802 = vunpack.c.l.b16 %v5608
        %v5803 = vunpack.c.h.b16 %v5608
        %v5804 = vunpack.c.l.b16 %v5609
        %v5805 = vunpack.c.h.b16 %v5609
        %v5806 = vpack.c.b16 %v5680, %v5678
        %v5807 = vpack.c.b16 %v5681, %v5679
        %v5808 = vpack.c.b16 %v5684, %v5682
        %v5809 = vpack.c.b16 %v5685, %v5683
        %v5810 = vpack.c.b16 %v5688, %v5686
        %v5811 = vpack.c.b16 %v5689, %v5687
        %v5812 = vpack.c.b16 %v5692, %v5690
        %v5813 = vpack.c.b16 %v5693, %v5691
        %v5814 = vpack.c.b16 %v5696, %v5694
        %v5815 = vpack.c.b16 %v5697, %v5695
        %v5816 = vpack.c.b16 %v5700, %v5698
        %v5817 = vpack.c.b16 %v5701, %v5699
        %v5818 = vpack.c.b16 %v5704, %v5702
        %v5819 = vpack.c.b16 %v5705, %v5703
        %v5820 = vpack.c.b16 %v5708, %v5706
        %v5821 = vpack.c.b16 %v5709, %v5707
        %v5822 = vpack.c.b16 %v5712, %v5710
        %v5823 = vpack.c.b16 %v5713, %v5711
        %v5824 = vpack.c.b16 %v5716, %v5714
        %v5825 = vpack.c.b16 %v5717, %v5715
        %v5826 = vpack.c.b16 %v5720, %v5718
        %v5827 = vpack.c.b16 %v5721, %v5719
        %v5828 = vpack.c.b16 %v5724, %v5722
        %v5829 = vpack.c.b16 %v5725, %v5723
        %v5830 = vpack.c.b16 %v5728, %v5726
        %v5831 = vpack.c.b16 %v5729, %v5727
        %v5832 = vpack.c.b16 %v5732, %v5730
        %v5833 = vpack.c.b16 %v5733, %v5731
        %v5834 = vpack.c.b16 %v5736, %v5734
        %v5835 = vpack.c.b16 %v5737, %v5735
        %v5836 = vpack.c.b16 %v5740, %v5738
        %v5837 = vpack.c.b16 %v5741, %v5739
        %v5838 = vpack.c.b16 %v5744, %v5742
        %v5839 = vpack.c.b16 %v5745, %v5743
        %v5840 = vpack.c.b16 %v5748, %v5746
        %v5841 = vpack.c.b16 %v5749, %v5747
        %v5842 = vpack.c.b16 %v5752, %v5750
        %v5843 = vpack.c.b16 %v5753, %v5751
        %v5844 = vpack.c.b16 %v5756, %v5754
        %v5845 = vpack.c.b16 %v5757, %v5755
        %v5846 = vpack.c.b16 %v5760, %v5758
        %v5847 = vpack.c.b16 %v5761, %v5759
        %v5848 = vpack.c.b16 %v5764, %v5762
        %v5849 = vpack.c.b16 %v5765, %v5763
        %v5850 = vpack.c.b16 %v5768, %v5766
        %v5851 = vpack.c.b16 %v5769, %v5767
        %v5852 = vpack.c.b16 %v5772, %v5770
        %v5853 = vpack.c.b16 %v5773, %v5771
        %v5854 = vpack.c.b16 %v5776, %v5774
        %v5855 = vpack.c.b16 %v5777, %v5775
        %v5856 = vpack.c.b16 %v5780, %v5778
        %v5857 = vpack.c.b16 %v5781, %v5779
        %v5858 = vpack.c.b16 %v5784, %v5782
        %v5859 = vpack.c.b16 %v5785, %v5783
        %v5860 = vpack.c.b16 %v5788, %v5786
        %v5861 = vpack.c.b16 %v5789, %v5787
        %v5862 = vpack.c.b16 %v5792, %v5790
        %v5863 = vpack.c.b16 %v5793, %v5791
        %v5864 = vpack.c.b16 %v5796, %v5794
        %v5865 = vpack.c.b16 %v5797, %v5795
        %v5866 = vpack.c.b16 %v5800, %v5798
        %v5867 = vpack.c.b16 %v5801, %v5799
        %v5868 = vpack.c.b16 %v5804, %v5802
        %v5869 = vpack.c.b16 %v5805, %v5803
        %5934 = vmatprep.subr.bf16.mxu0 %v5821
        %5935 = vmatpush1.bf16.msra.mxu0 %v5820
        %5936 = vmatprep.subr.bf16.mxu0 %v5819
        %5937 = vmatpush1.bf16.msra.mxu0 %v5818
        %5938 = vmatprep.subr.bf16.mxu0 %v5817
        %5939 = vmatpush1.bf16.msra.mxu0 %v5816
        %5940 = vmatprep.subr.bf16.mxu0 %v5815
        %5941 = vmatpush1.bf16.msra.mxu0 %v5814
        %5942 = vmatprep.subr.bf16.mxu0 %v5813
        %5943 = vmatpush1.bf16.msra.mxu0 %v5812
        %5944 = vmatprep.subr.bf16.mxu0 %v5811
        %5945 = vmatpush1.bf16.msra.mxu0 %v5810
        %5946 = vmatprep.subr.bf16.mxu0 %v5809
        %5947 = vmatpush1.bf16.msra.mxu0 %v5808
        %5948 = vmatprep.subr.bf16.mxu0 %v5807
        %5949 = vmatpush1.bf16.msra.mxu0 %v5806
        %5950 = vmatprep.subr.bf16.mxu0 %v5837
        %5951 = vmatpush2.bf16.msra.mxu0 %v5836
        %5952 = vmatprep.subr.bf16.mxu0 %v5835
        %5953 = vmatpush2.bf16.msra.mxu0 %v5834
        %5954 = vmatprep.subr.bf16.mxu0 %v5833
        %5955 = vmatpush2.bf16.msra.mxu0 %v5832
        %5956 = vmatprep.subr.bf16.mxu0 %v5831
        %5957 = vmatpush2.bf16.msra.mxu0 %v5830
        %5958 = vmatprep.subr.bf16.mxu0 %v5829
        %5959 = vmatpush2.bf16.msra.mxu0 %v5828
        %5960 = vmatprep.subr.bf16.mxu0 %v5827
        %5961 = vmatpush2.bf16.msra.mxu0 %v5826
        %5962 = vmatprep.subr.bf16.mxu0 %v5825
        %5963 = vmatpush2.bf16.msra.mxu0 %v5824
        %5964 = vmatprep.subr.bf16.mxu0 %v5823
        %5965 = vmatpush2.bf16.msra.mxu0 %v5822
        %5966 = vmatprep.mubr.bf16.mxu0 %v5611
        %5967 = vmatmul.mubr.bf16.gmra.mxu0 %v5610
        %v5968 = vpop.f32.mrf.mxu0
        %v5969 = vadd.f32 0.0, %v5968
        %v5970 = vpop.f32.mrf.mxu0
        %v5971 = vadd.f32 0.0, %v5970
        %v5972 = vpop.f32.mrf.mxu0
        %v5973 = vpop.f32.mrf.mxu0
        %5974 = vdwg.mxu0
        %5975 = vmatprep.subr.bf16.mxu0 %v5853
        %5976 = vmatpush1.bf16.msra.mxu0 %v5852
        %5977 = vmatprep.subr.bf16.mxu0 %v5851
        %5978 = vmatpush1.bf16.msra.mxu0 %v5850
        %5979 = vmatprep.subr.bf16.mxu0 %v5849
        %5980 = vmatpush1.bf16.msra.mxu0 %v5848
        %5981 = vmatprep.subr.bf16.mxu0 %v5847
        %5982 = vmatpush1.bf16.msra.mxu0 %v5846
        %5983 = vmatprep.subr.bf16.mxu0 %v5845
        %5984 = vmatpush1.bf16.msra.mxu0 %v5844
        %5985 = vmatprep.subr.bf16.mxu0 %v5843
        %5986 = vmatpush1.bf16.msra.mxu0 %v5842
        %5987 = vmatprep.subr.bf16.mxu0 %v5841
        %5988 = vmatpush1.bf16.msra.mxu0 %v5840
        %5989 = vmatprep.subr.bf16.mxu0 %v5839
        %5990 = vmatpush1.bf16.msra.mxu0 %v5838
        %5991 = vmatprep.subr.bf16.mxu0 %v5869
        %5992 = vmatpush2.bf16.msra.mxu0 %v5868
        %5993 = vmatprep.subr.bf16.mxu0 %v5867
        %5994 = vmatpush2.bf16.msra.mxu0 %v5866
        %5995 = vmatprep.subr.bf16.mxu0 %v5865
        %5996 = vmatpush2.bf16.msra.mxu0 %v5864
        %5997 = vmatprep.subr.bf16.mxu0 %v5863
        %5998 = vmatpush2.bf16.msra.mxu0 %v5862
        %5999 = vmatprep.subr.bf16.mxu0 %v5861
        %6000 = vmatpush2.bf16.msra.mxu0 %v5860
        %6001 = vmatprep.subr.bf16.mxu0 %v5859
        %6002 = vmatpush2.bf16.msra.mxu0 %v5858
        %6003 = vmatprep.subr.bf16.mxu0 %v5857
        %6004 = vmatpush2.bf16.msra.mxu0 %v5856
        %6005 = vmatprep.subr.bf16.mxu0 %v5855
        %6006 = vmatpush2.bf16.msra.mxu0 %v5854
        %6007 = vmatprep.mubr.bf16.mxu0 %v5613
        %6008 = vmatmul.mubr.bf16.gmra.mxu0 %v5612
        %v6009 = vpop.f32.mrf.mxu0
        %v6010 = vadd.f32 %v5969, %v6009
        %v6011 = vpop.f32.mrf.mxu0
        %v6012 = vadd.f32 %v5971, %v6011
        %v6013 = vpop.f32.mrf.mxu0
        %v6014 = vpop.f32.mrf.mxu0
        %6015 = vdwg.mxu0
        %v6016 = vld [vmem:[%s65] sm:$0x3]
        %v6018 = vlaneseq
        %v6019 = vshrl.u32 %v6018, 7
        %v6020 = vsub.s32 0, %v6019
        %v6021 = vrot.slane %v6016, %v6020
        %v6022 = vlaneseq
        %v6023 = vshrl.u32 %v6022, 7
        %v6024 = vsub.s32 1, %v6023
        %v6025 = vrot.slane %v6016, %v6024
        %v6028 = vmul.f32 %v6010, %v6021
        %v6029 = vmul.f32 %v6012, %v6025
        %v6030 = vld [vmem:[#allocation34] sm:$0x3]
        %v6032 = vlaneseq
        %v6033 = vshrl.u32 %v6032, 7
        %v6034 = vsub.s32 0, %v6033
        %v6035 = vrot.slane %v6030, %v6034
        %v6036 = vlaneseq
        %v6037 = vshrl.u32 %v6036, 7
        %v6038 = vsub.s32 1, %v6037
        %v6039 = vrot.slane %v6030, %v6038
        %v6042 = vadd.f32 %v6028, %v6035
        %v6043 = vadd.f32 %v6029, %v6039
        %vm6044 = vcmp.ge.f32.partialorder %v6042, 0.0
        %vm6045 = vcmp.ge.f32.partialorder %v6043, 0.0
        %v6046 = vmul.f32 %v6042, 0.2
        %v6047 = vmul.f32 %v6043, 0.2
        %v6048 = vsel %vm6044, %v6042, %v6046
        %v6049 = vsel %vm6045, %v6043, %v6047
        %v6050 = vld [vmem:[%s69] sm:$0xf]
        %v6051 = vld [vmem:[%s69 + $0x4] sm:$0xf]
        %v6052 = vld [vmem:[%s69 + $0x8] sm:$0xf]
        %v6053 = vld [vmem:[%s69 + $0xc] sm:$0xf]
        %v6054 = vld [vmem:[%s69 + $0x10] sm:$0xf]
        %v6055 = vld [vmem:[%s69 + $0x14] sm:$0xf]
        %v6056 = vld [vmem:[%s69 + $0x18] sm:$0xf]
        %v6057 = vld [vmem:[%s69 + $0x1c] sm:$0xf]
        %v6058 = vld [vmem:[%s69 + $0x20] sm:$0xf]
        %v6059 = vld [vmem:[%s69 + $0x24] sm:$0xf]
        %v6060 = vld [vmem:[%s69 + $0x28] sm:$0xf]
        %v6061 = vld [vmem:[%s69 + $0x2c] sm:$0xf]
        %v6062 = vld [vmem:[%s69 + $0x30] sm:$0xf]
        %v6063 = vld [vmem:[%s69 + $0x34] sm:$0xf]
        %v6064 = vld [vmem:[%s69 + $0x38] sm:$0xf]
        %v6065 = vld [vmem:[%s69 + $0x3c] sm:$0xf]
        %v6066 = vld [vmem:[%s69 + $0x40] sm:$0xf]
        %v6067 = vld [vmem:[%s69 + $0x44] sm:$0xf]
        %v6068 = vld [vmem:[%s69 + $0x48] sm:$0xf]
        %v6069 = vld [vmem:[%s69 + $0x4c] sm:$0xf]
        %v6070 = vld [vmem:[%s69 + $0x50] sm:$0xf]
        %v6071 = vld [vmem:[%s69 + $0x54] sm:$0xf]
        %v6072 = vld [vmem:[%s69 + $0x58] sm:$0xf]
        %v6073 = vld [vmem:[%s69 + $0x5c] sm:$0xf]
        %v6074 = vld [vmem:[%s69 + $0x60] sm:$0xf]
        %v6075 = vld [vmem:[%s69 + $0x64] sm:$0xf]
        %v6076 = vld [vmem:[%s69 + $0x68] sm:$0xf]
        %v6077 = vld [vmem:[%s69 + $0x6c] sm:$0xf]
        %v6078 = vld [vmem:[%s69 + $0x70] sm:$0xf]
        %v6079 = vld [vmem:[%s69 + $0x74] sm:$0xf]
        %v6080 = vld [vmem:[%s69 + $0x78] sm:$0xf]
        %v6081 = vld [vmem:[%s69 + $0x7c] sm:$0xf]
        %v6082 = vpack.c.bf16 %v6048, %v6048
        %v6083 = vpack.c.bf16 %v6049, %v6049
        %v6084 = vld [vmem:[#allocation35] sm:$0x1]
        %v6117 = vunpack.c.l.b16 %v6050
        %v6118 = vunpack.c.l.b16 %v6051
        %v6119 = vunpack.c.l.b16 %v6052
        %v6120 = vunpack.c.l.b16 %v6053
        %v6121 = vunpack.c.l.b16 %v6054
        %v6122 = vunpack.c.l.b16 %v6055
        %v6123 = vunpack.c.l.b16 %v6056
        %v6124 = vunpack.c.l.b16 %v6057
        %v6125 = vunpack.c.l.b16 %v6058
        %v6126 = vunpack.c.l.b16 %v6059
        %v6127 = vunpack.c.l.b16 %v6060
        %v6128 = vunpack.c.l.b16 %v6061
        %v6129 = vunpack.c.l.b16 %v6062
        %v6130 = vunpack.c.l.b16 %v6063
        %v6131 = vunpack.c.l.b16 %v6064
        %v6132 = vunpack.c.l.b16 %v6065
        %v6133 = vunpack.c.l.b16 %v6066
        %v6134 = vunpack.c.l.b16 %v6067
        %v6135 = vunpack.c.l.b16 %v6068
        %v6136 = vunpack.c.l.b16 %v6069
        %v6137 = vunpack.c.l.b16 %v6070
        %v6138 = vunpack.c.l.b16 %v6071
        %v6139 = vunpack.c.l.b16 %v6072
        %v6140 = vunpack.c.l.b16 %v6073
        %v6141 = vunpack.c.l.b16 %v6074
        %v6142 = vunpack.c.l.b16 %v6075
        %v6143 = vunpack.c.l.b16 %v6076
        %v6144 = vunpack.c.l.b16 %v6077
        %v6145 = vunpack.c.l.b16 %v6078
        %v6146 = vunpack.c.l.b16 %v6079
        %v6147 = vunpack.c.l.b16 %v6080
        %v6148 = vunpack.c.l.b16 %v6081
        %v6149 = vpack.c.b16 %v6118, %v6117
        %v6150 = vpack.c.b16 %v6120, %v6119
        %v6151 = vpack.c.b16 %v6122, %v6121
        %v6152 = vpack.c.b16 %v6124, %v6123
        %v6153 = vpack.c.b16 %v6126, %v6125
        %v6154 = vpack.c.b16 %v6128, %v6127
        %v6155 = vpack.c.b16 %v6130, %v6129
        %v6156 = vpack.c.b16 %v6132, %v6131
        %v6157 = vpack.c.b16 %v6134, %v6133
        %v6158 = vpack.c.b16 %v6136, %v6135
        %v6159 = vpack.c.b16 %v6138, %v6137
        %v6160 = vpack.c.b16 %v6140, %v6139
        %v6161 = vpack.c.b16 %v6142, %v6141
        %v6162 = vpack.c.b16 %v6144, %v6143
        %v6163 = vpack.c.b16 %v6146, %v6145
        %v6164 = vpack.c.b16 %v6148, %v6147
        %6181 = vmatprep.subr.bf16.mxu0 0
        %6182 = vmatpush1.bf16.msra.mxu0 %v6156
        %6183 = vmatprep.subr.bf16.mxu0 0
        %6184 = vmatpush1.bf16.msra.mxu0 %v6155
        %6185 = vmatprep.subr.bf16.mxu0 0
        %6186 = vmatpush1.bf16.msra.mxu0 %v6154
        %6187 = vmatprep.subr.bf16.mxu0 0
        %6188 = vmatpush1.bf16.msra.mxu0 %v6153
        %6189 = vmatprep.subr.bf16.mxu0 0
        %6190 = vmatpush1.bf16.msra.mxu0 %v6152
        %6191 = vmatprep.subr.bf16.mxu0 0
        %6192 = vmatpush1.bf16.msra.mxu0 %v6151
        %6193 = vmatprep.subr.bf16.mxu0 0
        %6194 = vmatpush1.bf16.msra.mxu0 %v6150
        %6195 = vmatprep.subr.bf16.mxu0 0
        %6196 = vmatpush1.bf16.msra.mxu0 %v6149
        %6197 = vmatprep.subr.bf16.mxu0 0
        %6198 = vmatpush2.bf16.msra.mxu0 %v6164
        %6199 = vmatprep.subr.bf16.mxu0 0
        %6200 = vmatpush2.bf16.msra.mxu0 %v6163
        %6201 = vmatprep.subr.bf16.mxu0 0
        %6202 = vmatpush2.bf16.msra.mxu0 %v6162
        %6203 = vmatprep.subr.bf16.mxu0 0
        %6204 = vmatpush2.bf16.msra.mxu0 %v6161
        %6205 = vmatprep.subr.bf16.mxu0 0
        %6206 = vmatpush2.bf16.msra.mxu0 %v6160
        %6207 = vmatprep.subr.bf16.mxu0 0
        %6208 = vmatpush2.bf16.msra.mxu0 %v6159
        %6209 = vmatprep.subr.bf16.mxu0 0
        %6210 = vmatpush2.bf16.msra.mxu0 %v6158
        %6211 = vmatprep.subr.bf16.mxu0 0
        %6212 = vmatpush2.bf16.msra.mxu0 %v6157
        %6213 = vmatprep.mubr.bf16.mxu0 %v6083
        %6214 = vmatmul.mubr.bf16.gmra.mxu0 %v6082
        %v6215 = vpop.f32.mrf.mxu0
        %v6216 = vadd.f32 %v6084, %v6215
        %v6217 = vpop.f32.mrf.mxu0
        %v6218 = vpop.f32.mrf.mxu0
        %v6219 = vpop.f32.mrf.mxu0
        %6220 = vdwg.mxu0
        %vm6221 = vcmask 319488
        %6222 = vst.msk [vmem:[%s1420] sm:$0x1] %vm6221, %v6216
        %s6223 = sand.u32 %s874, 1
        %s6224 = scalar_lea.sflag [#allocation4], %s6223
        %s6225 = sand.u32 %s874, 1
        %s6226 = scalar_lea.vmem [#allocation37], %s6225
        %s6227 = sand.u32 %s900, 1
        %s6228 = scalar_lea.sflag [#allocation39], %s6227
        %s6229 = sand.u32 %s900, 1
        %s6230 = smul.addr %s6229, 4
        %s6231 = scalar_lea.vmem [#allocation38], %s6230
        // Predicated region
        $region253: #{attentive_swap_net_forward.1} parent=163 // pred_check
          %p6232 = pneg %p884
        $region254: #{attentive_swap_net_forward.1} parent=163 // pred_check_branch
          %6234 = sbr.rel (%p6232) target = $region256
        $region255: #{attentive_swap_net_forward.1} parent=163 // pred_region
          %s6236 = ssub.s32 16, 16
          %6237 = vsyncadd %s6224, %s6236
          %s6238 = smul.addr %s105, 16
          %s6239 = scalar_lea.hbm %s73, %s6238
          %s6241 = sshll.u32 %s6226, 4
          %s6242 = int_to_ptr.vmem [resolvable:$true] %s6241
          %6244 = dma.vmem_to_hbm [thread:$0]  %s6242, 16, %s6239, %s6224
        $region256: #{attentive_swap_net_forward.1} parent=163 // pred_fallthru
          _
        // Predicated region
        $region257: #{attentive_swap_net_forward.1} parent=163 // pred_check
          %p6245 = pneg %p910
        $region258: #{attentive_swap_net_forward.1} parent=163 // pred_check_branch
          %6247 = sbr.rel (%p6245) target = $region260
        $region259: #{attentive_swap_net_forward.1} parent=163 // pred_region
          %s6249 = ssub.s32 64, 64
          %6250 = vsyncadd %s6228, %s6249
          %s6251 = smul.addr %s105, 64
          %s6252 = scalar_lea.hbm %s75, %s6251
          %s6254 = sshll.u32 %s6231, 4
          %s6255 = int_to_ptr.vmem [resolvable:$true] %s6254
          %6257 = dma.vmem_to_hbm [thread:$0]  %s6255, 64, %s6252, %s6228
        $region260: #{attentive_swap_net_forward.1} parent=163 // pred_fallthru
          _
      $region164: #{attentive_swap_net_forward.1} parent=5 // pred_fallthru
        _
      %p6258 = scmp.le.s32.totalorder 2, %s100
      // Predicated region
      $region261: #{attentive_swap_net_forward.1} parent=5 // pred_check
        %p6259 = pneg %p6258
      $region262: #{attentive_swap_net_forward.1} parent=5 // pred_check_branch
        %6261 = sbr.rel (%p6259) target = $region264
      $region263: #{attentive_swap_net_forward.1} parent=5 // pred_region
        %s6262 = ssub.s32 %s100, 2
        // Predicated region
        $region265: #{attentive_swap_net_forward.1} parent=263 // pred_check
          %p6263 = pneg %p890
        $region266: #{attentive_swap_net_forward.1} parent=263 // pred_check_branch
          %6265 = sbr.rel (%p6263) target = $region268
        $region267: #{attentive_swap_net_forward.1} parent=263 // pred_region
          %s6266 = sand.u32 %s875, 1
          %s6267 = scalar_lea.sflag [#allocation4], %s6266
          %s6268 = sand.u32 %s875, 1
          %s6269 = scalar_lea.vmem [#allocation37], %s6268
          %6270 = dma.done %s6267, 16
        $region268: #{attentive_swap_net_forward.1} parent=263 // pred_fallthru
          _
        // Predicated region
        $region269: #{attentive_swap_net_forward.1} parent=263 // pred_check
          %p6271 = pneg %p916
        $region270: #{attentive_swap_net_forward.1} parent=263 // pred_check_branch
          %6273 = sbr.rel (%p6271) target = $region272
        $region271: #{attentive_swap_net_forward.1} parent=263 // pred_region
          %s6274 = sand.u32 %s901, 1
          %s6275 = scalar_lea.sflag [#allocation39], %s6274
          %s6276 = sand.u32 %s901, 1
          %s6277 = smul.addr %s6276, 4
          %s6278 = scalar_lea.vmem [#allocation38], %s6277
          %6279 = dma.done %s6275, 64
        $region272: #{attentive_swap_net_forward.1} parent=263 // pred_fallthru
          _
      $region264: #{attentive_swap_net_forward.1} parent=5 // pred_fallthru
        _
    $region6: #{attentive_swap_net_forward.1} parent=1 // loop_footer
      %s104 = sadd.s32 1, %s100
    $region7: #{attentive_swap_net_forward.1} parent=1 // loop_footer_branch
      %99 = sbr.rel target = $region3
    $region8: #{attentive_swap_net_forward.1} parent=1 // loop_exit
      _
    %6280 = vsyncpa [#allocation3], 1
    %s6281 = scalar_lea.sflag [#allocation3], 1
    %6282 = vsyncpa %s6281, 1
    %6283 = vsyncpa [#allocation6], 1
    %6284 = vsyncpa [#allocation9], 1
    %6285 = vsyncpa [#allocation12], 1
    %6286 = vsyncpa [#allocation15], 1
    %6287 = vsyncpa [#allocation18], 1
    %6288 = vsyncpa [#allocation21], 1
    %6289 = vsyncpa [#allocation24], 1
    %6290 = vsyncpa [#allocation27], 1
    %6291 = vsyncpa [#allocation30], 1
    %6292 = vsyncpa [#allocation33], 1
    %6293 = vsyncpa [#allocation36], 1
    %6294 = vsyncpa [#allocation4], 1
    %s6295 = scalar_lea.sflag [#allocation4], 1
    %6296 = vsyncpa %s6295, 1
    %6297 = vsyncpa [#allocation39], 1
    %s6298 = scalar_lea.sflag [#allocation39], 1
    %6299 = vsyncpa %s6298, 1

</llo_original>
